<compile_context>
chip_gen: v5e
topology: v5e:2x2
jax: 0.10.0
libtpu: 0.0.40
codegen_flags: <defaults>
</compile_context>

<pallas_src>
import functools

import jax
import jax.numpy as jnp
import numpy as np
from jax.experimental import pallas as pl
from jax.experimental.pallas import tpu as pltpu

# ---------------------------------------------------------------------------
# Problem sizes
# ---------------------------------------------------------------------------
D_HID = 512                                   # per-branch hidden size
D_OUT = 340                                   # num classes
D_OUT_PAD = 384                               # 340 padded to 3x128 lanes
N_BRANCH = 8
BRANCH_IN = [2048, 1536, 2048, 2048, 2048, 1536, 2048, 2048]
D_IN_PAD = 2048                               # 1536-dim branches zero-padded


def _default_n_group():
    """2 grid groups (one per TensorCore) on v7x, 1 on single-TC v5e/v6e."""
    try:
        kind = jax.devices()[0].device_kind.lower()
    except Exception:
        return 1
    return 2 if ("v7" in kind or "7x" in kind) else 1


# ---------------------------------------------------------------------------
# Kernel
# ---------------------------------------------------------------------------
def _ensemble_kernel(br_per_step, use_dropout, *refs):
    if use_dropout:
        (x_ref, w_ref, b_ref, u_ref, wfc_ref, wsum_ref, bfc_ref, bsum_ref,
         out_ref, acc_out, acc_sum) = refs
    else:
        (x_ref, w_ref, b_ref, wfc_ref, wsum_ref, bfc_ref, bsum_ref,
         out_ref, acc_out, acc_sum) = refs
        u_ref = None

    g = pl.program_id(0)
    s = pl.program_id(1)
    last_s = pl.num_programs(1) - 1

    # per-group accumulator init
    @pl.when(s == 0)
    def _():
        acc_out[...] = jnp.zeros_like(acc_out)
        acc_sum[...] = jnp.zeros_like(acc_sum)

    # whole branches per grid step (static unroll)
    for j in range(br_per_step):
        h = jnp.dot(x_ref[j], w_ref[j],
                    preferred_element_type=jnp.float32) + b_ref[j]
        if use_dropout:
            # premultiplied bf16 mask: 0 or 1/(1-p)   (F.dropout training mode)
            h = h * u_ref[j].astype(jnp.float32)
        acc_sum[...] += h
        acc_out[...] += jnp.dot(h.astype(jnp.bfloat16), wfc_ref[j],
                                preferred_element_type=jnp.float32)

    # end of group: finish this core's partial output
    @pl.when(s == last_s)
    def _():
        res = acc_out[...] + jnp.dot(acc_sum[...].astype(jnp.bfloat16),
                                     wsum_ref[...],
                                     preferred_element_type=jnp.float32)
        # biases are added exactly once (into the last group's partial);
        # the wrapper always sums over the group axis.
        use_bias = (g == pl.num_programs(0) - 1).astype(jnp.float32)
        out_ref[0] = (res + use_bias * (bfc_ref[...] + bsum_ref[...])
                      ).astype(out_ref.dtype)


def make_ensemble_fn(batch, p, *, br_per_step=2, n_group=None):
    if n_group is None:
        n_group = _default_n_group()
    assert N_BRANCH % (n_group * br_per_step) == 0
    n_steps = N_BRANCH // (n_group * br_per_step)
    use_dropout = float(p) > 0.0
    kernel = functools.partial(_ensemble_kernel, br_per_step, use_dropout)

    def branch_blk(gi, si):
        return (gi * n_steps + si, 0, 0)

    in_specs = [
        # activations (8, B, 2048) bf16
        pl.BlockSpec((br_per_step, batch, D_IN_PAD), branch_blk),
        # branch weights (8, 2048, 512) bf16 (1536-dim branches zero-padded)
        pl.BlockSpec((br_per_step, D_IN_PAD, D_HID), branch_blk),
        # per-branch bias (8, 1, 512) f32
        pl.BlockSpec((br_per_step, 1, D_HID), branch_blk),
    ]
    if use_dropout:
        # premultiplied dropout mask (8, B, 512) bf16
        in_specs.append(pl.BlockSpec((br_per_step, batch, D_HID), branch_blk))
    in_specs += [
        # per-branch blocks of W_fc^T (8, 512, 384) bf16
        pl.BlockSpec((br_per_step, D_HID, D_OUT_PAD), branch_blk),
        # W_sum^T (512, 384) bf16
        pl.BlockSpec((D_HID, D_OUT_PAD), lambda gi, si: (0, 0)),
        # biases (1, 384) f32
        pl.BlockSpec((1, D_OUT_PAD), lambda gi, si: (0, 0)),
        pl.BlockSpec((1, D_OUT_PAD), lambda gi, si: (0, 0)),
    ]

    # advisory cost hint so XLA can overlap this head with upstream backbones
    flops = 2 * batch * (N_BRANCH * D_IN_PAD * D_HID
                         + N_BRANCH * D_HID * D_OUT_PAD
                         + D_HID * D_OUT_PAD)
    bytes_accessed = (
        (N_BRANCH * D_IN_PAD * D_HID
         + N_BRANCH * D_HID * D_OUT_PAD + D_HID * D_OUT_PAD) * 2   # bf16 weights
        + N_BRANCH * batch * D_IN_PAD * 2                          # activations
        + (N_BRANCH * batch * D_HID * 2 if use_dropout else 0)     # dropout mask
        + (N_BRANCH * D_HID + 2 * D_OUT_PAD) * 4                   # biases
        + n_group * batch * D_OUT_PAD * 4)                         # output

    call = pl.pallas_call(
        kernel,
        grid_spec=pltpu.PrefetchScalarGridSpec(
            num_scalar_prefetch=0,
            grid=(n_group, n_steps),
            in_specs=in_specs,
            out_specs=pl.BlockSpec((1, batch, D_OUT_PAD),
                                   lambda gi, si: (gi, 0, 0)),
            scratch_shapes=[
                pltpu.VMEM((batch, D_OUT_PAD), jnp.float32),   # fc(concat) acc
                pltpu.VMEM((batch, D_HID), jnp.float32),       # sum_i h_i acc
            ]),
        out_shape=jax.ShapeDtypeStruct((n_group, batch, D_OUT_PAD), jnp.float32),
        compiler_params=pltpu.CompilerParams(
            dimension_semantics=("parallel", "arbitrary"),
            vmem_limit_bytes=32 * 1024 * 1024),
        cost_estimate=pl.CostEstimate(flops=flops, transcendentals=0,
                                      bytes_accessed=bytes_accessed),
    )

    if use_dropout:
        def forward(x_stack, params, mask):
            out = call(x_stack, params["w"], params["b"], mask,
                       params["wfc"], params["wsum"],
                       params["bfc"], params["bsum"])
            return jnp.sum(out, axis=0)[:, :D_OUT]
    else:
        def forward(x_stack, params):
            out = call(x_stack, params["w"], params["b"],
                       params["wfc"], params["wsum"],
                       params["bfc"], params["bsum"])
            return jnp.sum(out, axis=0)[:, :D_OUT]
    return jax.jit(forward)


# ---------------------------------------------------------------------------
# Parameters (nn.Linear-style init, weights stored transposed / bf16)
# ---------------------------------------------------------------------------
def init_params(key):
    ks = jax.random.split(key, 2 * N_BRANCH + 4)
    ws, bs = [], []
    for i, d_in in enumerate(BRANCH_IN):
        bound = 1.0 / np.sqrt(d_in)
        w = jax.random.uniform(ks[2 * i], (d_in, D_HID), jnp.float32, -bound, bound)
        b = jax.random.uniform(ks[2 * i + 1], (D_HID,), jnp.float32, -bound, bound)
        ws.append(jnp.pad(w, ((0, D_IN_PAD - d_in), (0, 0))).astype(jnp.bfloat16))
        bs.append(b)
    params = {
        "w": jnp.stack(ws),                        # (8, 2048, 512) bf16 (zero-padded rows)
        "b": jnp.stack(bs)[:, None, :],            # (8, 1, 512)    f32
    }
    bound = 1.0 / np.sqrt(N_BRANCH * D_HID)
    wfc = jax.random.uniform(ks[-4], (D_OUT, N_BRANCH * D_HID), jnp.float32,
                             -bound, bound)        # PyTorch layout (340, 4096)
    wfc_t = jnp.transpose(wfc).reshape(N_BRANCH, D_HID, D_OUT)
    params["wfc"] = jnp.pad(wfc_t, ((0, 0), (0, 0), (0, D_OUT_PAD - D_OUT))
                            ).astype(jnp.bfloat16)  # (8, 512, 384) bf16
    params["bfc"] = jnp.pad(
        jax.random.uniform(ks[-3], (1, D_OUT), jnp.float32, -bound, bound),
        ((0, 0), (0, D_OUT_PAD - D_OUT)))
    bound = 1.0 / np.sqrt(D_HID)
    wsum = jax.random.uniform(ks[-2], (D_OUT, D_HID), jnp.float32, -bound, bound)
    params["wsum"] = jnp.pad(jnp.transpose(wsum), ((0, 0), (0, D_OUT_PAD - D_OUT))
                             ).astype(jnp.bfloat16)  # (512, 384) bf16
    params["bsum"] = jnp.pad(
        jax.random.uniform(ks[-1], (1, D_OUT), jnp.float32, -bound, bound),
        ((0, 0), (0, D_OUT_PAD - D_OUT)))
    return params


def stack_branch_inputs(xs):
    """Pad each branch's features to 2048 and stack -> (8, B, 2048) bf16.

    Done once at the feature producer, NOT per head call (keeps the per-call
    graph free of 8 pads + stack + casts)."""
    return jnp.stack([
        jnp.pad(x, ((0, 0), (0, D_IN_PAD - x.shape[1]))).astype(jnp.bfloat16)
        for x in xs])


# ---------------------------------------------------------------------------
# Pure-JAX reference (identical bf16/f32 numerics, same dropout mask)
# ---------------------------------------------------------------------------
def reference_forward(params, x_stack, mask, p):
    hs = []
    for i in range(N_BRANCH):
        h = jnp.dot(x_stack[i], params["w"][i],
                    preferred_element_type=jnp.float32) + params["b"][i, 0]
        if p > 0.0:
            h = h * mask[i].astype(jnp.float32)
        hs.append(h)
    h_cat = jnp.concatenate([h.astype(jnp.bfloat16) for h in hs], axis=1)
    wfc_full = params["wfc"].reshape(N_BRANCH * D_HID, D_OUT_PAD)
    x = jnp.dot(h_cat, wfc_full, preferred_element_type=jnp.float32) + params["bfc"]
    x_sum = jnp.dot(sum(hs).astype(jnp.bfloat16), params["wsum"],
                    preferred_element_type=jnp.float32) + params["bsum"]
    return (x + x_sum)[:, :D_OUT]


if __name__ == "__main__":
    B = 8
    P = 0.2
    key = jax.random.PRNGKey(0)
    pkey, xkey, dkey = jax.random.split(key, 3)
    params = init_params(pkey)
    xkeys = jax.random.split(xkey, N_BRANCH)
    xs = [jax.random.normal(xkeys[i], (B, BRANCH_IN[i]), jnp.float32)
          for i in range(N_BRANCH)]
    x_stack = stack_branch_inputs(xs)            # producer-side, once

    # 1) inference path (dropout off): no mask tensor is streamed at all
    fn0 = make_ensemble_fn(B, 0.0)
    out0 = jax.block_until_ready(fn0(x_stack, params))
    ref0 = reference_forward(params, x_stack, None, 0.0)
    np.testing.assert_allclose(np.asarray(out0), np.asarray(ref0),
                               rtol=2e-2, atol=2e-2)

    # 2) module semantics: dropout p=0.2 (training mode) via a premultiplied
    #    bf16 mask (0 or 1/(1-p)); the reference consumes the same mask.
    u = jax.random.uniform(dkey, (N_BRANCH, B, D_HID), jnp.float32)
    mask = ((u >= P).astype(jnp.bfloat16) * (1.0 / (1.0 - P))).astype(jnp.bfloat16)
    fn = make_ensemble_fn(B, P)
    out = jax.block_until_ready(fn(x_stack, params, mask))
    ref = reference_forward(params, x_stack, mask, P)
    np.testing.assert_allclose(np.asarray(out), np.asarray(ref),
                               rtol=2e-2, atol=2e-2)

    assert out.shape == (B, D_OUT)
    assert bool(jnp.all(jnp.isfinite(out)))
    print("KERNEL_OK")
</pallas_src>

<mosaic_0001>
module attributes {stable_mosaic.version = 11 : i64} {
  func.func @_ensemble_kernel(%arg0: i32, %arg1: i32, %arg2: memref<2x8x2048xbf16, #tpu.memory_space<vmem>>, %arg3: memref<2x2048x512xbf16, #tpu.memory_space<vmem>>, %arg4: memref<2x1x512xf32, #tpu.memory_space<vmem>>, %arg5: memref<2x512x384xbf16, #tpu.memory_space<vmem>>, %arg6: memref<512x384xbf16, #tpu.memory_space<vmem>>, %arg7: memref<1x384xf32, #tpu.memory_space<vmem>>, %arg8: memref<1x384xf32, #tpu.memory_space<vmem>>, %arg9: memref<1x8x384xf32, #tpu.memory_space<vmem>>, %arg10: memref<8x384xf32, #tpu.memory_space<vmem>>, %arg11: memref<8x512xf32, #tpu.memory_space<vmem>>) attributes {dimension_semantics = [#tpu.dimension_semantics<parallel>, #tpu.dimension_semantics<arbitrary>], iteration_bounds = array<i64: 1, 4>, scalar_prefetch = 0 : i64, scratch_operands = 2 : i64, tpu.core_type = #tpu.core_type<tc>, window_params = [{transform_indices = @transform_0, window_bounds = array<i64: 2, 8, 2048>}, {transform_indices = @transform_1, window_bounds = array<i64: 2, 2048, 512>}, {transform_indices = @transform_2, window_bounds = array<i64: 2, 1, 512>}, {transform_indices = @transform_3, window_bounds = array<i64: 2, 512, 384>}, {pipeline_mode = #tpu.pipeline_mode<synchronous>, transform_indices = @transform_4, window_bounds = array<i64: 512, 384>}, {pipeline_mode = #tpu.pipeline_mode<synchronous>, transform_indices = @transform_5, window_bounds = array<i64: 1, 384>}, {pipeline_mode = #tpu.pipeline_mode<synchronous>, transform_indices = @transform_6, window_bounds = array<i64: 1, 384>}, {transform_indices = @transform_7, window_bounds = array<i64: 1, 8, 384>}]} {
    %c0_i32 = arith.constant 0 : i32
    %0 = arith.cmpi eq, %arg1, %c0_i32 : i32
    %1 = arith.extui %0 : i1 to i32
    %c0_i32_0 = arith.constant 0 : i32
    %2 = arith.cmpi ne, %1, %c0_i32_0 : i32
    scf.if %2 {
      %cst_43 = arith.constant 0.000000e+00 : f32
      %44 = vector.broadcast %cst_43 : f32 to vector<8x384xf32>
      %c0_44 = arith.constant 0 : index
      %c0_45 = arith.constant 0 : index
      %45 = vector.load %arg10[%c0_44, %c0_45] : memref<8x384xf32, #tpu.memory_space<vmem>>, vector<8x384xf32>
      tpu.vector_store %arg10[%c0_44, %c0_45], %44 {strides = array<i32>} : memref<8x384xf32, #tpu.memory_space<vmem>>, vector<8x384xf32>,
      %cst_46 = arith.constant 0.000000e+00 : f32
      %46 = vector.broadcast %cst_46 : f32 to vector<8x512xf32>
      %c0_47 = arith.constant 0 : index
      %c0_48 = arith.constant 0 : index
      %47 = vector.load %arg11[%c0_47, %c0_48] : memref<8x512xf32, #tpu.memory_space<vmem>>, vector<8x512xf32>
      tpu.vector_store %arg11[%c0_47, %c0_48], %46 {strides = array<i32>} : memref<8x512xf32, #tpu.memory_space<vmem>>, vector<8x512xf32>,
    } else {
    }
    %c0 = arith.constant 0 : index
    %c0_1 = arith.constant 0 : index
    %c0_2 = arith.constant 0 : index
    %3 = vector.load %arg2[%c0, %c0_1, %c0_2] : memref<2x8x2048xbf16, #tpu.memory_space<vmem>>, vector<1x8x2048xbf16>
    %4 = vector.shape_cast %3 : vector<1x8x2048xbf16> to vector<8x2048xbf16>
    %c0_3 = arith.constant 0 : index
    %c0_4 = arith.constant 0 : index
    %c0_5 = arith.constant 0 : index
    %5 = vector.load %arg3[%c0_3, %c0_4, %c0_5] : memref<2x2048x512xbf16, #tpu.memory_space<vmem>>, vector<1x2048x512xbf16>
    %6 = vector.shape_cast %5 : vector<1x2048x512xbf16> to vector<2048x512xbf16>
    %cst = arith.constant dense<0.000000e+00> : vector<8x512xf32>
    %7 = tpu.matmul %4, %6, %cst {dimension_numbers = #tpu.dot_dimension_numbers<[1], [0], [0], [1], [0, 0, 1, 1], [], []>} : vector<8x2048xbf16>, vector<2048x512xbf16>, vector<8x512xf32> -> vector<8x512xf32>
    %c0_6 = arith.constant 0 : index
    %c0_7 = arith.constant 0 : index
    %c0_8 = arith.constant 0 : index
    %8 = vector.load %arg4[%c0_6, %c0_7, %c0_8] : memref<2x1x512xf32, #tpu.memory_space<vmem>>, vector<1x1x512xf32>
    %9 = vector.shape_cast %8 : vector<1x1x512xf32> to vector<1x512xf32>
    %10 = vector.broadcast %9 : vector<1x512xf32> to vector<8x512xf32>
    %11 = arith.addf %7, %10 : vector<8x512xf32>
    %c0_9 = arith.constant 0 : index
    %c0_10 = arith.constant 0 : index
    %12 = vector.load %arg11[%c0_9, %c0_10] : memref<8x512xf32, #tpu.memory_space<vmem>>, vector<8x512xf32>
    %13 = arith.addf %12, %11 : vector<8x512xf32>
    %c0_11 = arith.constant 0 : index
    %c0_12 = arith.constant 0 : index
    %14 = vector.load %arg11[%c0_11, %c0_12] : memref<8x512xf32, #tpu.memory_space<vmem>>, vector<8x512xf32>
    tpu.vector_store %arg11[%c0_11, %c0_12], %13 {strides = array<i32>} : memref<8x512xf32, #tpu.memory_space<vmem>>, vector<8x512xf32>,
    %c0_13 = arith.constant 0 : index
    %c0_14 = arith.constant 0 : index
    %15 = vector.load %arg10[%c0_13, %c0_14] : memref<8x384xf32, #tpu.memory_space<vmem>>, vector<8x384xf32>
    %16 = arith.truncf %11 : vector<8x512xf32> to vector<8x512xbf16>
    %c0_15 = arith.constant 0 : index
    %c0_16 = arith.constant 0 : index
    %c0_17 = arith.constant 0 : index
    %17 = vector.load %arg5[%c0_15, %c0_16, %c0_17] : memref<2x512x384xbf16, #tpu.memory_space<vmem>>, vector<1x512x384xbf16>
    %18 = vector.shape_cast %17 : vector<1x512x384xbf16> to vector<512x384xbf16>
    %cst_18 = arith.constant dense<0.000000e+00> : vector<8x384xf32>
    %19 = tpu.matmul %16, %18, %cst_18 {dimension_numbers = #tpu.dot_dimension_numbers<[1], [0], [0], [1], [0, 0, 1, 1], [], []>} : vector<8x512xbf16>, vector<512x384xbf16>, vector<8x384xf32> -> vector<8x384xf32>
    %20 = arith.addf %15, %19 : vector<8x384xf32>
    %c0_19 = arith.constant 0 : index
    %c0_20 = arith.constant 0 : index
    %21 = vector.load %arg10[%c0_19, %c0_20] : memref<8x384xf32, #tpu.memory_space<vmem>>, vector<8x384xf32>
    tpu.vector_store %arg10[%c0_19, %c0_20], %20 {strides = array<i32>} : memref<8x384xf32, #tpu.memory_space<vmem>>, vector<8x384xf32>,
    %c1 = arith.constant 1 : index
    %c0_21 = arith.constant 0 : index
    %c0_22 = arith.constant 0 : index
    %22 = vector.load %arg2[%c1, %c0_21, %c0_22] : memref<2x8x2048xbf16, #tpu.memory_space<vmem>>, vector<1x8x2048xbf16>
    %23 = vector.shape_cast %22 : vector<1x8x2048xbf16> to vector<8x2048xbf16>
    %c1_23 = arith.constant 1 : index
    %c0_24 = arith.constant 0 : index
    %c0_25 = arith.constant 0 : index
    %24 = vector.load %arg3[%c1_23, %c0_24, %c0_25] : memref<2x2048x512xbf16, #tpu.memory_space<vmem>>, vector<1x2048x512xbf16>
    %25 = vector.shape_cast %24 : vector<1x2048x512xbf16> to vector<2048x512xbf16>
    %cst_26 = arith.constant dense<0.000000e+00> : vector<8x512xf32>
    %26 = tpu.matmul %23, %25, %cst_26 {dimension_numbers = #tpu.dot_dimension_numbers<[1], [0], [0], [1], [0, 0, 1, 1], [], []>} : vector<8x2048xbf16>, vector<2048x512xbf16>, vector<8x512xf32> -> vector<8x512xf32>
    %c1_27 = arith.constant 1 : index
    %c0_28 = arith.constant 0 : index
    %c0_29 = arith.constant 0 : index
    %27 = vector.load %arg4[%c1_27, %c0_28, %c0_29] : memref<2x1x512xf32, #tpu.memory_space<vmem>>, vector<1x1x512xf32>
    %28 = vector.shape_cast %27 : vector<1x1x512xf32> to vector<1x512xf32>
    %29 = vector.broadcast %28 : vector<1x512xf32> to vector<8x512xf32>
    %30 = arith.addf %26, %29 : vector<8x512xf32>
    %c0_30 = arith.constant 0 : index
    %c0_31 = arith.constant 0 : index
    %31 = vector.load %arg11[%c0_30, %c0_31] : memref<8x512xf32, #tpu.memory_space<vmem>>, vector<8x512xf32>
    %32 = arith.addf %31, %30 : vector<8x512xf32>
    %c0_32 = arith.constant 0 : index
    %c0_33 = arith.constant 0 : index
    %33 = vector.load %arg11[%c0_32, %c0_33] : memref<8x512xf32, #tpu.memory_space<vmem>>, vector<8x512xf32>
    tpu.vector_store %arg11[%c0_32, %c0_33], %32 {strides = array<i32>} : memref<8x512xf32, #tpu.memory_space<vmem>>, vector<8x512xf32>,
    %c0_34 = arith.constant 0 : index
    %c0_35 = arith.constant 0 : index
    %34 = vector.load %arg10[%c0_34, %c0_35] : memref<8x384xf32, #tpu.memory_space<vmem>>, vector<8x384xf32>
    %35 = arith.truncf %30 : vector<8x512xf32> to vector<8x512xbf16>
    %c1_36 = arith.constant 1 : index
    %c0_37 = arith.constant 0 : index
    %c0_38 = arith.constant 0 : index
    %36 = vector.load %arg5[%c1_36, %c0_37, %c0_38] : memref<2x512x384xbf16, #tpu.memory_space<vmem>>, vector<1x512x384xbf16>
    %37 = vector.shape_cast %36 : vector<1x512x384xbf16> to vector<512x384xbf16>
    %cst_39 = arith.constant dense<0.000000e+00> : vector<8x384xf32>
    %38 = tpu.matmul %35, %37, %cst_39 {dimension_numbers = #tpu.dot_dimension_numbers<[1], [0], [0], [1], [0, 0, 1, 1], [], []>} : vector<8x512xbf16>, vector<512x384xbf16>, vector<8x384xf32> -> vector<8x384xf32>
    %39 = arith.addf %34, %38 : vector<8x384xf32>
    %c0_40 = arith.constant 0 : index
    %c0_41 = arith.constant 0 : index
    %40 = vector.load %arg10[%c0_40, %c0_41] : memref<8x384xf32, #tpu.memory_space<vmem>>, vector<8x384xf32>
    tpu.vector_store %arg10[%c0_40, %c0_41], %39 {strides = array<i32>} : memref<8x384xf32, #tpu.memory_space<vmem>>, vector<8x384xf32>,
    %c3_i32 = arith.constant 3 : i32
    %41 = arith.cmpi eq, %arg1, %c3_i32 : i32
    %42 = arith.extui %41 : i1 to i32
    %c0_i32_42 = arith.constant 0 : i32
    %43 = arith.cmpi ne, %42, %c0_i32_42 : i32
    scf.if %43 {
      %c0_43 = arith.constant 0 : index
      %c0_44 = arith.constant 0 : index
      %44 = vector.load %arg10[%c0_43, %c0_44] : memref<8x384xf32, #tpu.memory_space<vmem>>, vector<8x384xf32>
      %c0_45 = arith.constant 0 : index
      %c0_46 = arith.constant 0 : index
      %45 = vector.load %arg11[%c0_45, %c0_46] : memref<8x512xf32, #tpu.memory_space<vmem>>, vector<8x512xf32>
      %46 = arith.truncf %45 : vector<8x512xf32> to vector<8x512xbf16>
      %c0_47 = arith.constant 0 : index
      %c0_48 = arith.constant 0 : index
      %47 = vector.load %arg6[%c0_47, %c0_48] : memref<512x384xbf16, #tpu.memory_space<vmem>>, vector<512x384xbf16>
      %cst_49 = arith.constant dense<0.000000e+00> : vector<8x384xf32>
      %48 = tpu.matmul %46, %47, %cst_49 {dimension_numbers = #tpu.dot_dimension_numbers<[1], [0], [0], [1], [0, 0, 1, 1], [], []>} : vector<8x512xbf16>, vector<512x384xbf16>, vector<8x384xf32> -> vector<8x384xf32>
      %49 = arith.addf %44, %48 : vector<8x384xf32>
      %c0_i32_50 = arith.constant 0 : i32
      %50 = arith.cmpi eq, %arg0, %c0_i32_50 : i32
      %51 = arith.extui %50 : i1 to i32
      %52 = arith.sitofp %51 : i32 to f32
      %c0_51 = arith.constant 0 : index
      %c0_52 = arith.constant 0 : index
      %53 = vector.load %arg7[%c0_51, %c0_52] : memref<1x384xf32, #tpu.memory_space<vmem>>, vector<1x384xf32>
      %c0_53 = arith.constant 0 : index
      %c0_54 = arith.constant 0 : index
      %54 = vector.load %arg8[%c0_53, %c0_54] : memref<1x384xf32, #tpu.memory_space<vmem>>, vector<1x384xf32>
      %55 = arith.addf %53, %54 : vector<1x384xf32>
      %56 = vector.broadcast %52 : f32 to vector<1x384xf32>
      %57 = arith.mulf %56, %55 : vector<1x384xf32>
      %58 = vector.broadcast %57 : vector<1x384xf32> to vector<8x384xf32>
      %59 = arith.addf %49, %58 : vector<8x384xf32>
      %c0_55 = arith.constant 0 : index
      %c0_56 = arith.constant 0 : index
      %c0_57 = arith.constant 0 : index
      %60 = vector.load %arg9[%c0_55, %c0_56, %c0_57] : memref<1x8x384xf32, #tpu.memory_space<vmem>>, vector<1x8x384xf32>
      %61 = vector.shape_cast %60 : vector<1x8x384xf32> to vector<8x384xf32>
      %62 = vector.shape_cast %59 : vector<8x384xf32> to vector<1x8x384xf32>
      tpu.vector_store %arg9[%c0_55, %c0_56, %c0_57], %62 {strides = array<i32>} : memref<1x8x384xf32, #tpu.memory_space<vmem>>, vector<1x8x384xf32>,
    } else {
    }
    return
  }
  func.func @transform_0(%arg0: i32, %arg1: i32) -> (i32, i32, i32) {
    %c4_i32 = arith.constant 4 : i32
    %0 = arith.muli %arg0, %c4_i32 : i32
    %1 = arith.addi %0, %arg1 : i32
    %c0_i32 = arith.constant 0 : i32
    %c0_i32_0 = arith.constant 0 : i32
    %c0_i32_1 = arith.constant 0 : i32
    return %1, %c0_i32, %c0_i32_0 : i32, i32, i32
  }
  func.func @transform_1(%arg0: i32, %arg1: i32) -> (i32, i32, i32) {
    %c4_i32 = arith.constant 4 : i32
    %0 = arith.muli %arg0, %c4_i32 : i32
    %1 = arith.addi %0, %arg1 : i32
    %c0_i32 = arith.constant 0 : i32
    %c0_i32_0 = arith.constant 0 : i32
    %c0_i32_1 = arith.constant 0 : i32
    return %1, %c0_i32, %c0_i32_0 : i32, i32, i32
  }
  func.func @transform_2(%arg0: i32, %arg1: i32) -> (i32, i32, i32) {
    %c4_i32 = arith.constant 4 : i32
    %0 = arith.muli %arg0, %c4_i32 : i32
    %1 = arith.addi %0, %arg1 : i32
    %c0_i32 = arith.constant 0 : i32
    %c0_i32_0 = arith.constant 0 : i32
    %c0_i32_1 = arith.constant 0 : i32
    return %1, %c0_i32, %c0_i32_0 : i32, i32, i32
  }
  func.func @transform_3(%arg0: i32, %arg1: i32) -> (i32, i32, i32) {
    %c4_i32 = arith.constant 4 : i32
    %0 = arith.muli %arg0, %c4_i32 : i32
    %1 = arith.addi %0, %arg1 : i32
    %c0_i32 = arith.constant 0 : i32
    %c0_i32_0 = arith.constant 0 : i32
    %c0_i32_1 = arith.constant 0 : i32
    return %1, %c0_i32, %c0_i32_0 : i32, i32, i32
  }
  func.func @transform_4(%arg0: i32, %arg1: i32) -> (i32, i32) {
    %c0_i32 = arith.constant 0 : i32
    %c0_i32_0 = arith.constant 0 : i32
    %c0_i32_1 = arith.constant 0 : i32
    return %c0_i32, %c0_i32_0 : i32, i32
  }
  func.func @transform_5(%arg0: i32, %arg1: i32) -> (i32, i32) {
    %c0_i32 = arith.constant 0 : i32
    %c0_i32_0 = arith.constant 0 : i32
    %c0_i32_1 = arith.constant 0 : i32
    return %c0_i32, %c0_i32_0 : i32, i32
  }
  func.func @transform_6(%arg0: i32, %arg1: i32) -> (i32, i32) {
    %c0_i32 = arith.constant 0 : i32
    %c0_i32_0 = arith.constant 0 : i32
    %c0_i32_1 = arith.constant 0 : i32
    return %c0_i32, %c0_i32_0 : i32, i32
  }
  func.func @transform_7(%arg0: i32, %arg1: i32) -> (i32, i32, i32) {
    %c0_i32 = arith.constant 0 : i32
    %c0_i32_0 = arith.constant 0 : i32
    %c0_i32_1 = arith.constant 0 : i32
    return %arg0, %c0_i32, %c0_i32_0 : i32, i32, i32
  }
}

</mosaic_0001>

<llo_original>
// kernel: forward.1
$region0: #{forward.1}
  #allocation0 [shape = 'u32[]', space=smem, size = 0x4, offset = 0x4, fixed_abs, tag = 'smem constant byte address 0x4 - core index']
  #allocation1 [shape = 'u32[72,128]{1,0:T(1,128)}', space=vmem, size = 0x9000, scoped, tag = 'internal scratch']
  #allocation2 [shape = 'f32[8,384]{1,0:T(8,128)}', space=vmem, size = 0x3000, scoped, tag = 'scratch operand']
  #allocation3 [shape = 'f32[8,512]{1,0:T(8,128)}', space=vmem, size = 0x4000, scoped, tag = 'scratch operand']
  %s0 = inlined_call_operand.hbm [shape: bf16[8,8,2048], index: 0, kind: input, shape index: {}]
  %s1 = inlined_call_operand.hbm [shape: bf16[8,2048,512], index: 1, kind: input, shape index: {}]
  %s2 = inlined_call_operand.hbm [shape: f32[8,1,512], index: 2, kind: input, shape index: {}]
  %s3 = inlined_call_operand.hbm [shape: bf16[8,512,384], index: 3, kind: input, shape index: {}]
  %s4 = inlined_call_operand.hbm [shape: bf16[512,384], index: 4, kind: input, shape index: {}]
  %s5 = inlined_call_operand.hbm [shape: f32[1,384], index: 5, kind: input, shape index: {}]
  %s6 = inlined_call_operand.hbm [shape: f32[1,384], index: 6, kind: input, shape index: {}]
  %s7 = inlined_call_operand.hbm [shape: f32[1,8,384], index: 7, kind: output, shape index: {}]
  %s8 = sld [smem:[#allocation0]]
  $region97: #{forward.1} parent=0
    _
  %s10 = ssub.s32 1, %s8
  %s11 = scalar_select 0, %s10, %s8
  $region1: #{forward.1} parent=0
    #allocation4 [shape = 'u8[131072]{0}', space=vmem, size = 0x20000, scoped, tag = 'input window, operand 0']
    #allocation5 [shape = 's32[2]{0}', space=sflag, size = 0x8, scoped, tag = 'scoped memory for forward.1']
    #allocation6 [shape = 's32[2]{0}', space=sflag, size = 0x8, scoped, tag = 'scoped memory for forward.1']
    #allocation7 [shape = 'u8[8388608]{0}', space=vmem, size = 0x800000, scoped, tag = 'input window, operand 1']
    #allocation8 [shape = 's32[2]{0}', space=sflag, size = 0x8, scoped, tag = 'scoped memory for forward.1']
    #allocation9 [shape = 'u8[8192]{0}', space=vmem, size = 0x2000, scoped, tag = 'input window, operand 2']
    #allocation10 [shape = 'u8[1572864]{0}', space=vmem, size = 0x180000, scoped, tag = 'input window, operand 3']
    #allocation11 [shape = 's32[2]{0}', space=sflag, size = 0x8, scoped, tag = 'scoped memory for forward.1']
    #allocation12 [shape = 'u8[393216]{0}', space=vmem, size = 0x60000, scoped, tag = 'input window, operand 4, single buffered']
    #allocation13 [shape = 'u8[1536]{0}', space=vmem, size = 0x800, scoped, tag = 'input window, operand 5, single buffered']
    #allocation14 [shape = 's32[1]{0}', space=sflag, size = 0x4, scoped, tag = 'scoped memory for forward.1']
    #allocation15 [shape = 'u8[1536]{0}', space=vmem, size = 0x800, scoped, tag = 'input window, operand 6, single buffered']
    #allocation16 [shape = 'u8[12288]{0}', space=vmem, size = 0x3000, scoped, tag = 'output window, operand 0, single buffered']
    %12 = vsyncpa [#allocation5], 0
    %s13 = scalar_lea.sflag [#allocation5], 1
    %14 = vsyncpa %s13, 0
    %15 = vsyncpa [#allocation8], 0
    %s16 = scalar_lea.sflag [#allocation8], 1
    %17 = vsyncpa %s16, 0
    %18 = vsyncpa [#allocation11], 0
    %s19 = scalar_lea.sflag [#allocation11], 1
    %20 = vsyncpa %s19, 0
    %21 = vsyncpa [#allocation14], 0
    %22 = vsyncpa [#allocation6], 0
    loop: start=0, step=1, limit=6
    $region2: #{forward.1} parent=1 // loop_pre_header
      _
    $region3: #{forward.1} parent=1 // loop_header
      %s24 = sphi 0, %s28
      %p25 = scmp.ge.s32.totalorder %s24, 6
      %s31 = sphi 0, %s43
      %s32 = sphi 0, %s39
      %s33 = sphi 0, %s31
      %s34 = sphi 0, %s32
      %s35 = sphi 0, %s33
      %s36 = sphi 0, %s34
      %s50 = sphi 0, %s52
      %s53 = sphi 0, %s50
      %s54 = sphi 0, %s53
      %s70 = sphi 0, %s54
      %s80 = sphi 0, %s82
      %s83 = sphi 0, %s80
      %s84 = sphi 0, %s83
      %s100 = sphi 0, %s84
      %s110 = sphi 0, %s112
      %s113 = sphi 0, %s110
      %s114 = sphi 0, %s113
      %s130 = sphi 0, %s114
      %s140 = sphi 0, %s142
      %s143 = sphi 0, %s140
      %s144 = sphi 0, %s143
      %s160 = sphi 0, %s144
      %s164 = sphi 0, %s164
      %s166 = sphi 0, %s164
      %s167 = sphi 0, %s166
      %s181 = sphi 0, %s167
      %s185 = sphi 0, %s185
      %s187 = sphi 0, %s185
      %s188 = sphi 0, %s187
      %s202 = sphi 0, %s188
      %s206 = sphi 0, %s206
      %s208 = sphi 0, %s206
      %s209 = sphi 0, %s208
      %s223 = sphi 0, %s209
      %s229 = sphi 0, %s231
      %s232 = sphi 0, %s229
      %s233 = sphi 0, %s232
      %s249 = sphi 0, %s233
    $region4: #{forward.1} parent=1 // loop_header_branch
      %27 = sbr.rel (%p25) target = $region8
    $region5: #{forward.1} parent=1 // loop_body
      %s29 = ssub.s32 %s24, 1
      %s30 = ssub.s32 %s24, 2
      %s37 = sadd.s32 1, %s32
      %p38 = scmp.ge.s32.totalorder %s37, 4
      %s39 = scalar_select %p38, 0, %s37
      %s40 = sadd.s32 1, %s31
      %s41 = scalar_select %p38, %s40, %s31
      %p42 = scmp.ge.s32.totalorder %s41, 1
      %s43 = scalar_select %p42, 0, %s41
      %s44 = smul.u32 %s31, 4
      %s45 = sadd.s32 %s44, %s32
      %s46 = smul.u32 %s43, 4
      %s47 = sadd.s32 %s46, %s39
      %s48 = ssub.s32 %s45, %s47
      %p49 = scmp.eq.s32.totalorder %s48, 0
      %s51 = sadd.s32 %s50, 1
      %s52 = scalar_select %p49, %s50, %s51
      %p55 = pneg %p49
      %p56 = scmp.eq.s32.totalorder %s24, 3
      %p57 = por %p55, %p56
      %p58 = scmp.ne.s32.totalorder %s50, %s53
      %p59 = scmp.eq.s32.totalorder %s24, 0
      %p60 = por %p58, %p59
      %p61 = scmp.ne.s32.totalorder %s50, %s53
      %p62 = scmp.eq.s32.totalorder %s29, 3
      %p63 = por %p61, %p62
      %p64 = scmp.ne.s32.totalorder %s53, %s54
      %p65 = scmp.eq.s32.totalorder %s29, 0
      %p66 = por %p64, %p65
      %p67 = scmp.ne.s32.totalorder %s53, %s54
      %p68 = scmp.eq.s32.totalorder %s30, 3
      %p69 = por %p67, %p68
      %p71 = scmp.ne.s32.totalorder %s54, %s70
      %p72 = scmp.eq.s32.totalorder %s30, 0
      %p73 = por %p71, %p72
      %s74 = smul.u32 %s31, 4
      %s75 = sadd.s32 %s74, %s32
      %s76 = smul.u32 %s43, 4
      %s77 = sadd.s32 %s76, %s39
      %s78 = ssub.s32 %s75, %s77
      %p79 = scmp.eq.s32.totalorder %s78, 0
      %s81 = sadd.s32 %s80, 1
      %s82 = scalar_select %p79, %s80, %s81
      %p85 = pneg %p79
      %p86 = scmp.eq.s32.totalorder %s24, 3
      %p87 = por %p85, %p86
      %p88 = scmp.ne.s32.totalorder %s80, %s83
      %p89 = scmp.eq.s32.totalorder %s24, 0
      %p90 = por %p88, %p89
      %p91 = scmp.ne.s32.totalorder %s80, %s83
      %p92 = scmp.eq.s32.totalorder %s29, 3
      %p93 = por %p91, %p92
      %p94 = scmp.ne.s32.totalorder %s83, %s84
      %p95 = scmp.eq.s32.totalorder %s29, 0
      %p96 = por %p94, %p95
      %p97 = scmp.ne.s32.totalorder %s83, %s84
      %p98 = scmp.eq.s32.totalorder %s30, 3
      %p99 = por %p97, %p98
      %p101 = scmp.ne.s32.totalorder %s84, %s100
      %p102 = scmp.eq.s32.totalorder %s30, 0
      %p103 = por %p101, %p102
      %s104 = smul.u32 %s31, 4
      %s105 = sadd.s32 %s104, %s32
      %s106 = smul.u32 %s43, 4
      %s107 = sadd.s32 %s106, %s39
      %s108 = ssub.s32 %s105, %s107
      %p109 = scmp.eq.s32.totalorder %s108, 0
      %s111 = sadd.s32 %s110, 1
      %s112 = scalar_select %p109, %s110, %s111
      %p115 = pneg %p109
      %p116 = scmp.eq.s32.totalorder %s24, 3
      %p117 = por %p115, %p116
      %p118 = scmp.ne.s32.totalorder %s110, %s113
      %p119 = scmp.eq.s32.totalorder %s24, 0
      %p120 = por %p118, %p119
      %p121 = scmp.ne.s32.totalorder %s110, %s113
      %p122 = scmp.eq.s32.totalorder %s29, 3
      %p123 = por %p121, %p122
      %p124 = scmp.ne.s32.totalorder %s113, %s114
      %p125 = scmp.eq.s32.totalorder %s29, 0
      %p126 = por %p124, %p125
      %p127 = scmp.ne.s32.totalorder %s113, %s114
      %p128 = scmp.eq.s32.totalorder %s30, 3
      %p129 = por %p127, %p128
      %p131 = scmp.ne.s32.totalorder %s114, %s130
      %p132 = scmp.eq.s32.totalorder %s30, 0
      %p133 = por %p131, %p132
      %s134 = smul.u32 %s31, 4
      %s135 = sadd.s32 %s134, %s32
      %s136 = smul.u32 %s43, 4
      %s137 = sadd.s32 %s136, %s39
      %s138 = ssub.s32 %s135, %s137
      %p139 = scmp.eq.s32.totalorder %s138, 0
      %s141 = sadd.s32 %s140, 1
      %s142 = scalar_select %p139, %s140, %s141
      %p145 = pneg %p139
      %p146 = scmp.eq.s32.totalorder %s24, 3
      %p147 = por %p145, %p146
      %p148 = scmp.ne.s32.totalorder %s140, %s143
      %p149 = scmp.eq.s32.totalorder %s24, 0
      %p150 = por %p148, %p149
      %p151 = scmp.ne.s32.totalorder %s140, %s143
      %p152 = scmp.eq.s32.totalorder %s29, 3
      %p153 = por %p151, %p152
      %p154 = scmp.ne.s32.totalorder %s143, %s144
      %p155 = scmp.eq.s32.totalorder %s29, 0
      %p156 = por %p154, %p155
      %p157 = scmp.ne.s32.totalorder %s143, %s144
      %p158 = scmp.eq.s32.totalorder %s30, 3
      %p159 = por %p157, %p158
      %p161 = scmp.ne.s32.totalorder %s144, %s160
      %p162 = scmp.eq.s32.totalorder %s30, 0
      %p163 = por %p161, %p162
      %s165 = sadd.s32 %s164, 1
      %p168 = scmp.eq.s32.totalorder %s24, 3
      %p169 = scmp.ne.s32.totalorder %s164, %s166
      %p170 = scmp.eq.s32.totalorder %s24, 0
      %p171 = por %p169, %p170
      %p172 = scmp.ne.s32.totalorder %s164, %s166
      %p173 = scmp.eq.s32.totalorder %s29, 3
      %p174 = por %p172, %p173
      %p175 = scmp.ne.s32.totalorder %s166, %s167
      %p176 = scmp.eq.s32.totalorder %s29, 0
      %p177 = por %p175, %p176
      %p178 = scmp.ne.s32.totalorder %s166, %s167
      %p179 = scmp.eq.s32.totalorder %s30, 3
      %p180 = por %p178, %p179
      %p182 = scmp.ne.s32.totalorder %s167, %s181
      %p183 = scmp.eq.s32.totalorder %s30, 0
      %p184 = por %p182, %p183
      %s186 = sadd.s32 %s185, 1
      %p189 = scmp.eq.s32.totalorder %s24, 3
      %p190 = scmp.ne.s32.totalorder %s185, %s187
      %p191 = scmp.eq.s32.totalorder %s24, 0
      %p192 = por %p190, %p191
      %p193 = scmp.ne.s32.totalorder %s185, %s187
      %p194 = scmp.eq.s32.totalorder %s29, 3
      %p195 = por %p193, %p194
      %p196 = scmp.ne.s32.totalorder %s187, %s188
      %p197 = scmp.eq.s32.totalorder %s29, 0
      %p198 = por %p196, %p197
      %p199 = scmp.ne.s32.totalorder %s187, %s188
      %p200 = scmp.eq.s32.totalorder %s30, 3
      %p201 = por %p199, %p200
      %p203 = scmp.ne.s32.totalorder %s188, %s202
      %p204 = scmp.eq.s32.totalorder %s30, 0
      %p205 = por %p203, %p204
      %s207 = sadd.s32 %s206, 1
      %p210 = scmp.eq.s32.totalorder %s24, 3
      %p211 = scmp.ne.s32.totalorder %s206, %s208
      %p212 = scmp.eq.s32.totalorder %s24, 0
      %p213 = por %p211, %p212
      %p214 = scmp.ne.s32.totalorder %s206, %s208
      %p215 = scmp.eq.s32.totalorder %s29, 3
      %p216 = por %p214, %p215
      %p217 = scmp.ne.s32.totalorder %s208, %s209
      %p218 = scmp.eq.s32.totalorder %s29, 0
      %p219 = por %p217, %p218
      %p220 = scmp.ne.s32.totalorder %s208, %s209
      %p221 = scmp.eq.s32.totalorder %s30, 3
      %p222 = por %p220, %p221
      %p224 = scmp.ne.s32.totalorder %s209, %s223
      %p225 = scmp.eq.s32.totalorder %s30, 0
      %p226 = por %p224, %p225
      %s227 = ssub.s32 %s31, %s43
      %p228 = scmp.eq.s32.totalorder %s227, 0
      %s230 = sadd.s32 %s229, 1
      %s231 = scalar_select %p228, %s229, %s230
      %p234 = pneg %p228
      %p235 = scmp.eq.s32.totalorder %s24, 3
      %p236 = por %p234, %p235
      %p237 = scmp.ne.s32.totalorder %s229, %s232
      %p238 = scmp.eq.s32.totalorder %s24, 0
      %p239 = por %p237, %p238
      %p240 = scmp.ne.s32.totalorder %s229, %s232
      %p241 = scmp.eq.s32.totalorder %s29, 3
      %p242 = por %p240, %p241
      %p243 = scmp.ne.s32.totalorder %s232, %s233
      %p244 = scmp.eq.s32.totalorder %s29, 0
      %p245 = por %p243, %p244
      %p246 = scmp.ne.s32.totalorder %s232, %s233
      %p247 = scmp.eq.s32.totalorder %s30, 3
      %p248 = por %p246, %p247
      %p250 = scmp.ne.s32.totalorder %s233, %s249
      %p251 = scmp.eq.s32.totalorder %s30, 0
      %p252 = por %p250, %p251
      %p253 = scmp.le.s32.totalorder 1, %s24
      %p254 = scmp.lt.s32.totalorder %s24, 5
      %p255 = pnand %p253, %p254
      %p256 = pneg %p255
      // Predicated region
      $region9: #{forward.1} parent=5 // pred_check
        _
      $region10: #{forward.1} parent=5 // pred_check_branch
        %258 = sbr.rel (%p255) target = $region12
      $region11: #{forward.1} parent=5 // pred_region
        %s259 = ssub.s32 %s24, 1
        // Predicated region
        $region13: #{forward.1} parent=11 // pred_check
          %p260 = pneg %p177
        $region14: #{forward.1} parent=11 // pred_check_branch
          %262 = sbr.rel (%p260) target = $region16
        $region15: #{forward.1} parent=11 // pred_region
          %264 = vsyncadd [#allocation11], 0
          %s265 = sshll.u32 %s4, 4
          %s266 = int_to_ptr.hbm [resolvable:$true] %s265
          %s267 = sshll.u32 [#allocation12], 4
          %s268 = int_to_ptr.vmem [resolvable:$true] %s267
          %273 = dma.hbm_to_vmem [thread:$0]  %s266, 12288, %s268, [#allocation11], 192, 192, 12
        $region16: #{forward.1} parent=11 // pred_fallthru
          _
        // Predicated region
        $region17: #{forward.1} parent=11 // pred_check
          %p274 = pneg %p198
        $region18: #{forward.1} parent=11 // pred_check_branch
          %276 = sbr.rel (%p274) target = $region20
        $region19: #{forward.1} parent=11 // pred_region
          %278 = vsyncadd [#allocation14], 0
          %s280 = sshll.u32 %s5, 4
          %s281 = int_to_ptr.hbm [resolvable:$true] %s280
          %s282 = sshll.u32 [#allocation13], 4
          %s283 = int_to_ptr.vmem [resolvable:$true] %s282
          %285 = dma.hbm_to_vmem [thread:$0]  %s281, 48, %s283, [#allocation14]
        $region20: #{forward.1} parent=11 // pred_fallthru
          _
        // Predicated region
        $region21: #{forward.1} parent=11 // pred_check
          %p286 = pneg %p219
        $region22: #{forward.1} parent=11 // pred_check_branch
          %288 = sbr.rel (%p286) target = $region24
        $region23: #{forward.1} parent=11 // pred_region
          %290 = vsyncadd [#allocation14], 0
          %s292 = sshll.u32 %s6, 4
          %s293 = int_to_ptr.hbm [resolvable:$true] %s292
          %s294 = sshll.u32 [#allocation15], 4
          %s295 = int_to_ptr.vmem [resolvable:$true] %s294
          %297 = dma.hbm_to_vmem [thread:$0]  %s293, 48, %s295, [#allocation14]
        $region24: #{forward.1} parent=11 // pred_fallthru
          _
      $region12: #{forward.1} parent=5 // pred_fallthru
        _
      %p298 = scmp.lt.s32.totalorder %s24, 4
      // Predicated region
      $region25: #{forward.1} parent=5 // pred_check
        %p299 = pneg %p298
      $region26: #{forward.1} parent=5 // pred_check_branch
        %301 = sbr.rel (%p299) target = $region28
      $region27: #{forward.1} parent=5 // pred_region
        // Predicated region
        $region29: #{forward.1} parent=27 // pred_check
          %p302 = pneg %p60
        $region30: #{forward.1} parent=27 // pred_check_branch
          %304 = sbr.rel (%p302) target = $region32
        $region31: #{forward.1} parent=27 // pred_region
          %s305 = sand.u32 %s50, 1
          %s306 = scalar_lea.sflag [#allocation5], %s305
          %s307 = sand.u32 %s50, 1
          %s308 = smul.addr %s307, 128
          %s309 = scalar_lea.vmem [#allocation4], %s308
          %s310 = smul.u32 %s31, 4
          %s311 = sadd.s32 %s310, %s32
          %s312 = smul.u32 2, %s311
          %314 = vsyncadd %s306, 0
          %s315 = smul.addr %s312, 16
          %s316 = smul.addr %s315, 4
          %s317 = scalar_lea.hbm %s0, %s316
          %s318 = sshll.u32 %s317, 4
          %s319 = int_to_ptr.hbm [resolvable:$true] %s318
          %s320 = sshll.u32 %s309, 4
          %s321 = int_to_ptr.vmem [resolvable:$true] %s320
          %326 = dma.hbm_to_vmem [thread:$0]  %s319, 2048, %s321, %s306, 1024, 1024, 64
        $region32: #{forward.1} parent=27 // pred_fallthru
          _
        // Predicated region
        $region33: #{forward.1} parent=27 // pred_check
          %p327 = pneg %p90
        $region34: #{forward.1} parent=27 // pred_check_branch
          %329 = sbr.rel (%p327) target = $region36
        $region35: #{forward.1} parent=27 // pred_region
          %s330 = sand.u32 %s24, 1
          %s331 = scalar_lea.sflag [#allocation8], %s330
          %s332 = sand.u32 %s80, 1
          %s333 = smul.addr %s332, 8192
          %s334 = scalar_lea.vmem [#allocation7], %s333
          %s335 = smul.u32 %s31, 4
          %s336 = sadd.s32 %s335, %s32
          %s337 = smul.u32 2, %s336
          %339 = vsyncadd %s331, 0
          %s340 = smul.addr %s337, 1024
          %s341 = smul.addr %s340, 4
          %s342 = scalar_lea.hbm %s1, %s341
          %s343 = sshll.u32 %s342, 4
          %s344 = int_to_ptr.hbm [resolvable:$true] %s343
          %s345 = sshll.u32 %s334, 4
          %s346 = int_to_ptr.vmem [resolvable:$true] %s345
          %351 = dma.hbm_to_vmem [thread:$0]  %s344, 131072, %s346, %s331, 256, 256, 16
        $region36: #{forward.1} parent=27 // pred_fallthru
          _
        // Predicated region
        $region37: #{forward.1} parent=27 // pred_check
          %p352 = pneg %p120
        $region38: #{forward.1} parent=27 // pred_check_branch
          %354 = sbr.rel (%p352) target = $region40
        $region39: #{forward.1} parent=27 // pred_region
          %s355 = sand.u32 %s24, 1
          %s356 = scalar_lea.sflag [#allocation8], %s355
          %s357 = sand.u32 %s110, 1
          %s358 = smul.addr %s357, 8
          %s359 = scalar_lea.vmem [#allocation9], %s358
          %s360 = smul.u32 %s31, 4
          %s361 = sadd.s32 %s360, %s32
          %s362 = smul.u32 2, %s361
          %364 = vsyncadd %s356, 0
          %s365 = smul.addr %s362, 4
          %s366 = scalar_lea.hbm %s2, %s365
          %s367 = sshll.u32 %s366, 4
          %s368 = int_to_ptr.hbm [resolvable:$true] %s367
          %s369 = sshll.u32 %s359, 4
          %s370 = int_to_ptr.vmem [resolvable:$true] %s369
          %375 = dma.hbm_to_vmem [thread:$0]  %s368, 128, %s370, %s356, 64, 64, 4
        $region40: #{forward.1} parent=27 // pred_fallthru
          _
        // Predicated region
        $region41: #{forward.1} parent=27 // pred_check
          %p376 = pneg %p150
        $region42: #{forward.1} parent=27 // pred_check_branch
          %378 = sbr.rel (%p376) target = $region44
        $region43: #{forward.1} parent=27 // pred_region
          %s379 = sand.u32 %s24, 1
          %s380 = scalar_lea.sflag [#allocation11], %s379
          %s381 = sand.u32 %s140, 1
          %s382 = smul.addr %s381, 1536
          %s383 = scalar_lea.vmem [#allocation10], %s382
          %s384 = smul.u32 %s31, 4
          %s385 = sadd.s32 %s384, %s32
          %s386 = smul.u32 2, %s385
          %388 = vsyncadd %s380, 0
          %s389 = smul.addr %s386, 192
          %s390 = smul.addr %s389, 4
          %s391 = scalar_lea.hbm %s3, %s390
          %s392 = sshll.u32 %s391, 4
          %s393 = int_to_ptr.hbm [resolvable:$true] %s392
          %s394 = sshll.u32 %s383, 4
          %s395 = int_to_ptr.vmem [resolvable:$true] %s394
          %400 = dma.hbm_to_vmem [thread:$0]  %s393, 24576, %s395, %s380, 192, 192, 12
        $region44: #{forward.1} parent=27 // pred_fallthru
          _
      $region28: #{forward.1} parent=5 // pred_fallthru
        _
      %p401 = scmp.le.s32.totalorder 1, %s24
      %p402 = scmp.lt.s32.totalorder %s24, 5
      %p403 = pnand %p401, %p402
      %p404 = pneg %p403
      // Predicated region
      $region45: #{forward.1} parent=5 // pred_check
        _
      $region46: #{forward.1} parent=5 // pred_check_branch
        %406 = sbr.rel (%p403) target = $region48
      $region47: #{forward.1} parent=5 // pred_region
        %s407 = ssub.s32 %s24, 1
        %s408 = sand.u32 %s53, 1
        %s409 = scalar_lea.sflag [#allocation5], %s408
        %s410 = sand.u32 %s53, 1
        %s411 = smul.addr %s410, 128
        %s412 = scalar_lea.vmem [#allocation4], %s411
        // Predicated region
        $region49: #{forward.1} parent=47 // pred_check
          %p413 = pneg %p66
        $region50: #{forward.1} parent=47 // pred_check_branch
          %415 = sbr.rel (%p413) target = $region52
        $region51: #{forward.1} parent=47 // pred_region
          %417 = dma.done %s409, 2048
        $region52: #{forward.1} parent=47 // pred_fallthru
          _
        %s418 = sand.u32 %s29, 1
        %s419 = scalar_lea.sflag [#allocation8], %s418
        %s420 = sand.u32 %s83, 1
        %s421 = smul.addr %s420, 8192
        %s422 = scalar_lea.vmem [#allocation7], %s421
        // Predicated region
        $region53: #{forward.1} parent=47 // pred_check
          %p423 = pneg %p96
        $region54: #{forward.1} parent=47 // pred_check_branch
          %425 = sbr.rel (%p423) target = $region56
        $region55: #{forward.1} parent=47 // pred_region
          %427 = dma.done %s419, 131072
        $region56: #{forward.1} parent=47 // pred_fallthru
          _
        %s428 = sand.u32 %s29, 1
        %s429 = scalar_lea.sflag [#allocation8], %s428
        %s430 = sand.u32 %s113, 1
        %s431 = smul.addr %s430, 8
        %s432 = scalar_lea.vmem [#allocation9], %s431
        // Predicated region
        $region57: #{forward.1} parent=47 // pred_check
          %p433 = pneg %p126
        $region58: #{forward.1} parent=47 // pred_check_branch
          %435 = sbr.rel (%p433) target = $region60
        $region59: #{forward.1} parent=47 // pred_region
          %437 = dma.done %s429, 128
        $region60: #{forward.1} parent=47 // pred_fallthru
          _
        %s438 = sand.u32 %s29, 1
        %s439 = scalar_lea.sflag [#allocation11], %s438
        %s440 = sand.u32 %s143, 1
        %s441 = smul.addr %s440, 1536
        %s442 = scalar_lea.vmem [#allocation10], %s441
        // Predicated region
        $region61: #{forward.1} parent=47 // pred_check
          %p443 = pneg %p156
        $region62: #{forward.1} parent=47 // pred_check_branch
          %445 = sbr.rel (%p443) target = $region64
        $region63: #{forward.1} parent=47 // pred_region
          %447 = dma.done %s439, 24576
        $region64: #{forward.1} parent=47 // pred_fallthru
          _
        // Predicated region
        $region65: #{forward.1} parent=47 // pred_check
          %p448 = pneg %p177
        $region66: #{forward.1} parent=47 // pred_check_branch
          %450 = sbr.rel (%p448) target = $region68
        $region67: #{forward.1} parent=47 // pred_region
          %452 = dma.done [#allocation11], 12288
        $region68: #{forward.1} parent=47 // pred_fallthru
          _
        // Predicated region
        $region69: #{forward.1} parent=47 // pred_check
          %p453 = pneg %p198
        $region70: #{forward.1} parent=47 // pred_check_branch
          %455 = sbr.rel (%p453) target = $region72
        $region71: #{forward.1} parent=47 // pred_region
          %457 = dma.done [#allocation14], 48
        $region72: #{forward.1} parent=47 // pred_fallthru
          _
        // Predicated region
        $region73: #{forward.1} parent=47 // pred_check
          %p458 = pneg %p219
        $region74: #{forward.1} parent=47 // pred_check_branch
          %460 = sbr.rel (%p458) target = $region76
        $region75: #{forward.1} parent=47 // pred_region
          %462 = dma.done [#allocation14], 48
        $region76: #{forward.1} parent=47 // pred_fallthru
          _
        %s463 = sand.u32 %s53, 1
        %s464 = scalar_lea.sflag [#allocation5], %s463
        %s465 = sand.u32 %s53, 1
        %s466 = smul.addr %s465, 128
        %s467 = scalar_lea.vmem [#allocation4], %s466
        %p468 = pneg %p66
        %p469 = pneg %p63
        %s470 = sand.u32 %s29, 1
        %s471 = scalar_lea.sflag [#allocation8], %s470
        %s472 = sand.u32 %s83, 1
        %s473 = smul.addr %s472, 8192
        %s474 = scalar_lea.vmem [#allocation7], %s473
        %p475 = pneg %p96
        %p476 = pneg %p93
        %s477 = sand.u32 %s29, 1
        %s478 = scalar_lea.sflag [#allocation8], %s477
        %s479 = sand.u32 %s113, 1
        %s480 = smul.addr %s479, 8
        %s481 = scalar_lea.vmem [#allocation9], %s480
        %p482 = pneg %p126
        %p483 = pneg %p123
        %s484 = sand.u32 %s29, 1
        %s485 = scalar_lea.sflag [#allocation11], %s484
        %s486 = sand.u32 %s143, 1
        %s487 = smul.addr %s486, 1536
        %s488 = scalar_lea.vmem [#allocation10], %s487
        %p489 = pneg %p156
        %p490 = pneg %p153
        %p491 = pneg %p177
        %p492 = pneg %p174
        %p493 = pneg %p198
        %p494 = pneg %p195
        %p495 = pneg %p219
        %p496 = pneg %p216
        %p497 = pneg %p245
        %p498 = pneg %p242
        %s499 = smul.u32 %s33, 4
        %s500 = sadd.s32 %s499, %s34
        %s501 = smul.u32 2, %s500
        %s502 = smul.u32 %s33, 4
        %s503 = sadd.s32 %s502, %s34
        %s504 = smul.u32 2, %s503
        %s505 = smul.u32 %s33, 4
        %s506 = sadd.s32 %s505, %s34
        %s507 = smul.u32 2, %s506
        %s508 = smul.u32 %s33, 4
        %s509 = sadd.s32 %s508, %s34
        %s510 = smul.u32 2, %s509
        %p511 = scmp.eq.s32.totalorder %s34, 0
        // Predicated region
        $region77: #{forward.1} parent=47 // pred_check
          %p512 = pneg %p511
        $region78: #{forward.1} parent=47 // pred_check_branch
          %514 = sbr.rel (%p512) target = $region80
        $region79: #{forward.1} parent=47 // pred_region
          %515 = vst [vmem:[#allocation2] sm:$0xff] 0.0
          %516 = vst [vmem:[#allocation2 + $0x8] sm:$0xff] 0.0
          %517 = vst [vmem:[#allocation2 + $0x10] sm:$0xff] 0.0
          %518 = vst [vmem:[#allocation3] sm:$0xff] 0.0
          %519 = vst [vmem:[#allocation3 + $0x8] sm:$0xff] 0.0
          %520 = vst [vmem:[#allocation3 + $0x10] sm:$0xff] 0.0
          %521 = vst [vmem:[#allocation3 + $0x18] sm:$0xff] 0.0
        $region80: #{forward.1} parent=47 // pred_fallthru
          _
        %v522 = vld [vmem:[%s412] sm:$0xff]
        %v523 = vld [vmem:[%s412 + $0x8] sm:$0xff]
        %v524 = vld [vmem:[%s412 + $0x10] sm:$0xff]
        %v525 = vld [vmem:[%s412 + $0x18] sm:$0xff]
        %v526 = vld [vmem:[%s412 + $0x20] sm:$0xff]
        %v527 = vld [vmem:[%s412 + $0x28] sm:$0xff]
        %v528 = vld [vmem:[%s412 + $0x30] sm:$0xff]
        %v529 = vld [vmem:[%s412 + $0x38] sm:$0xff]
        %v530 = vld [vmem:[%s422] sm:$0xff]
        %v531 = vld [vmem:[%s422 + $0x8] sm:$0xff]
        %v532 = vld [vmem:[%s422 + $0x10] sm:$0xff]
        %v533 = vld [vmem:[%s422 + $0x18] sm:$0xff]
        %v534 = vld [vmem:[%s422 + $0x20] sm:$0xff]
        %v535 = vld [vmem:[%s422 + $0x28] sm:$0xff]
        %v536 = vld [vmem:[%s422 + $0x30] sm:$0xff]
        %v537 = vld [vmem:[%s422 + $0x38] sm:$0xff]
        %v538 = vld [vmem:[%s422 + $0x40] sm:$0xff]
        %v539 = vld [vmem:[%s422 + $0x48] sm:$0xff]
        %v540 = vld [vmem:[%s422 + $0x50] sm:$0xff]
        %v541 = vld [vmem:[%s422 + $0x58] sm:$0xff]
        %v542 = vld [vmem:[%s422 + $0x60] sm:$0xff]
        %v543 = vld [vmem:[%s422 + $0x68] sm:$0xff]
        %v544 = vld [vmem:[%s422 + $0x70] sm:$0xff]
        %v545 = vld [vmem:[%s422 + $0x78] sm:$0xff]
        %v546 = vld [vmem:[%s422 + $0x80] sm:$0xff]
        %v547 = vld [vmem:[%s422 + $0x88] sm:$0xff]
        %v548 = vld [vmem:[%s422 + $0x90] sm:$0xff]
        %v549 = vld [vmem:[%s422 + $0x98] sm:$0xff]
        %v550 = vld [vmem:[%s422 + $0xa0] sm:$0xff]
        %v551 = vld [vmem:[%s422 + $0xa8] sm:$0xff]
        %v552 = vld [vmem:[%s422 + $0xb0] sm:$0xff]
        %v553 = vld [vmem:[%s422 + $0xb8] sm:$0xff]
        %v554 = vld [vmem:[%s422 + $0xc0] sm:$0xff]
        %v555 = vld [vmem:[%s422 + $0xc8] sm:$0xff]
        %v556 = vld [vmem:[%s422 + $0xd0] sm:$0xff]
        %v557 = vld [vmem:[%s422 + $0xd8] sm:$0xff]
        %v558 = vld [vmem:[%s422 + $0xe0] sm:$0xff]
        %v559 = vld [vmem:[%s422 + $0xe8] sm:$0xff]
        %v560 = vld [vmem:[%s422 + $0xf0] sm:$0xff]
        %v561 = vld [vmem:[%s422 + $0xf8] sm:$0xff]
        %v562 = vld [vmem:[%s422 + $0x100] sm:$0xff]
        %v563 = vld [vmem:[%s422 + $0x108] sm:$0xff]
        %v564 = vld [vmem:[%s422 + $0x110] sm:$0xff]
        %v565 = vld [vmem:[%s422 + $0x118] sm:$0xff]
        %v566 = vld [vmem:[%s422 + $0x120] sm:$0xff]
        %v567 = vld [vmem:[%s422 + $0x128] sm:$0xff]
        %v568 = vld [vmem:[%s422 + $0x130] sm:$0xff]
        %v569 = vld [vmem:[%s422 + $0x138] sm:$0xff]
        %v570 = vld [vmem:[%s422 + $0x140] sm:$0xff]
        %v571 = vld [vmem:[%s422 + $0x148] sm:$0xff]
        %v572 = vld [vmem:[%s422 + $0x150] sm:$0xff]
        %v573 = vld [vmem:[%s422 + $0x158] sm:$0xff]
        %v574 = vld [vmem:[%s422 + $0x160] sm:$0xff]
        %v575 = vld [vmem:[%s422 + $0x168] sm:$0xff]
        %v576 = vld [vmem:[%s422 + $0x170] sm:$0xff]
        %v577 = vld [vmem:[%s422 + $0x178] sm:$0xff]
        %v578 = vld [vmem:[%s422 + $0x180] sm:$0xff]
        %v579 = vld [vmem:[%s422 + $0x188] sm:$0xff]
        %v580 = vld [vmem:[%s422 + $0x190] sm:$0xff]
        %v581 = vld [vmem:[%s422 + $0x198] sm:$0xff]
        %v582 = vld [vmem:[%s422 + $0x1a0] sm:$0xff]
        %v583 = vld [vmem:[%s422 + $0x1a8] sm:$0xff]
        %v584 = vld [vmem:[%s422 + $0x1b0] sm:$0xff]
        %v585 = vld [vmem:[%s422 + $0x1b8] sm:$0xff]
        %v586 = vld [vmem:[%s422 + $0x1c0] sm:$0xff]
        %v587 = vld [vmem:[%s422 + $0x1c8] sm:$0xff]
        %v588 = vld [vmem:[%s422 + $0x1d0] sm:$0xff]
        %v589 = vld [vmem:[%s422 + $0x1d8] sm:$0xff]
        %v590 = vld [vmem:[%s422 + $0x1e0] sm:$0xff]
        %v591 = vld [vmem:[%s422 + $0x1e8] sm:$0xff]
        %v592 = vld [vmem:[%s422 + $0x1f0] sm:$0xff]
        %v593 = vld [vmem:[%s422 + $0x1f8] sm:$0xff]
        %v594 = vld [vmem:[%s422 + $0x200] sm:$0xff]
        %v595 = vld [vmem:[%s422 + $0x208] sm:$0xff]
        %v596 = vld [vmem:[%s422 + $0x210] sm:$0xff]
        %v597 = vld [vmem:[%s422 + $0x218] sm:$0xff]
        %v598 = vld [vmem:[%s422 + $0x220] sm:$0xff]
        %v599 = vld [vmem:[%s422 + $0x228] sm:$0xff]
        %v600 = vld [vmem:[%s422 + $0x230] sm:$0xff]
        %v601 = vld [vmem:[%s422 + $0x238] sm:$0xff]
        %v602 = vld [vmem:[%s422 + $0x240] sm:$0xff]
        %v603 = vld [vmem:[%s422 + $0x248] sm:$0xff]
        %v604 = vld [vmem:[%s422 + $0x250] sm:$0xff]
        %v605 = vld [vmem:[%s422 + $0x258] sm:$0xff]
        %v606 = vld [vmem:[%s422 + $0x260] sm:$0xff]
        %v607 = vld [vmem:[%s422 + $0x268] sm:$0xff]
        %v608 = vld [vmem:[%s422 + $0x270] sm:$0xff]
        %v609 = vld [vmem:[%s422 + $0x278] sm:$0xff]
        %v610 = vld [vmem:[%s422 + $0x280] sm:$0xff]
        %v611 = vld [vmem:[%s422 + $0x288] sm:$0xff]
        %v612 = vld [vmem:[%s422 + $0x290] sm:$0xff]
        %v613 = vld [vmem:[%s422 + $0x298] sm:$0xff]
        %v614 = vld [vmem:[%s422 + $0x2a0] sm:$0xff]
        %v615 = vld [vmem:[%s422 + $0x2a8] sm:$0xff]
        %v616 = vld [vmem:[%s422 + $0x2b0] sm:$0xff]
        %v617 = vld [vmem:[%s422 + $0x2b8] sm:$0xff]
        %v618 = vld [vmem:[%s422 + $0x2c0] sm:$0xff]
        %v619 = vld [vmem:[%s422 + $0x2c8] sm:$0xff]
        %v620 = vld [vmem:[%s422 + $0x2d0] sm:$0xff]
        %v621 = vld [vmem:[%s422 + $0x2d8] sm:$0xff]
        %v622 = vld [vmem:[%s422 + $0x2e0] sm:$0xff]
        %v623 = vld [vmem:[%s422 + $0x2e8] sm:$0xff]
        %v624 = vld [vmem:[%s422 + $0x2f0] sm:$0xff]
        %v625 = vld [vmem:[%s422 + $0x2f8] sm:$0xff]
        %v626 = vld [vmem:[%s422 + $0x300] sm:$0xff]
        %v627 = vld [vmem:[%s422 + $0x308] sm:$0xff]
        %v628 = vld [vmem:[%s422 + $0x310] sm:$0xff]
        %v629 = vld [vmem:[%s422 + $0x318] sm:$0xff]
        %v630 = vld [vmem:[%s422 + $0x320] sm:$0xff]
        %v631 = vld [vmem:[%s422 + $0x328] sm:$0xff]
        %v632 = vld [vmem:[%s422 + $0x330] sm:$0xff]
        %v633 = vld [vmem:[%s422 + $0x338] sm:$0xff]
        %v634 = vld [vmem:[%s422 + $0x340] sm:$0xff]
        %v635 = vld [vmem:[%s422 + $0x348] sm:$0xff]
        %v636 = vld [vmem:[%s422 + $0x350] sm:$0xff]
        %v637 = vld [vmem:[%s422 + $0x358] sm:$0xff]
        %v638 = vld [vmem:[%s422 + $0x360] sm:$0xff]
        %v639 = vld [vmem:[%s422 + $0x368] sm:$0xff]
        %v640 = vld [vmem:[%s422 + $0x370] sm:$0xff]
        %v641 = vld [vmem:[%s422 + $0x378] sm:$0xff]
        %v642 = vld [vmem:[%s422 + $0x380] sm:$0xff]
        %v643 = vld [vmem:[%s422 + $0x388] sm:$0xff]
        %v644 = vld [vmem:[%s422 + $0x390] sm:$0xff]
        %v645 = vld [vmem:[%s422 + $0x398] sm:$0xff]
        %v646 = vld [vmem:[%s422 + $0x3a0] sm:$0xff]
        %v647 = vld [vmem:[%s422 + $0x3a8] sm:$0xff]
        %v648 = vld [vmem:[%s422 + $0x3b0] sm:$0xff]
        %v649 = vld [vmem:[%s422 + $0x3b8] sm:$0xff]
        %v650 = vld [vmem:[%s422 + $0x3c0] sm:$0xff]
        %v651 = vld [vmem:[%s422 + $0x3c8] sm:$0xff]
        %v652 = vld [vmem:[%s422 + $0x3d0] sm:$0xff]
        %v653 = vld [vmem:[%s422 + $0x3d8] sm:$0xff]
        %v654 = vld [vmem:[%s422 + $0x3e0] sm:$0xff]
        %v655 = vld [vmem:[%s422 + $0x3e8] sm:$0xff]
        %v656 = vld [vmem:[%s422 + $0x3f0] sm:$0xff]
        %v657 = vld [vmem:[%s422 + $0x3f8] sm:$0xff]
        %v658 = vld [vmem:[%s422 + $0x400] sm:$0xff]
        %v659 = vld [vmem:[%s422 + $0x408] sm:$0xff]
        %v660 = vld [vmem:[%s422 + $0x410] sm:$0xff]
        %v661 = vld [vmem:[%s422 + $0x418] sm:$0xff]
        %v662 = vld [vmem:[%s422 + $0x420] sm:$0xff]
        %v663 = vld [vmem:[%s422 + $0x428] sm:$0xff]
        %v664 = vld [vmem:[%s422 + $0x430] sm:$0xff]
        %v665 = vld [vmem:[%s422 + $0x438] sm:$0xff]
        %v666 = vld [vmem:[%s422 + $0x440] sm:$0xff]
        %v667 = vld [vmem:[%s422 + $0x448] sm:$0xff]
        %v668 = vld [vmem:[%s422 + $0x450] sm:$0xff]
        %v669 = vld [vmem:[%s422 + $0x458] sm:$0xff]
        %v670 = vld [vmem:[%s422 + $0x460] sm:$0xff]
        %v671 = vld [vmem:[%s422 + $0x468] sm:$0xff]
        %v672 = vld [vmem:[%s422 + $0x470] sm:$0xff]
        %v673 = vld [vmem:[%s422 + $0x478] sm:$0xff]
        %v674 = vld [vmem:[%s422 + $0x480] sm:$0xff]
        %v675 = vld [vmem:[%s422 + $0x488] sm:$0xff]
        %v676 = vld [vmem:[%s422 + $0x490] sm:$0xff]
        %v677 = vld [vmem:[%s422 + $0x498] sm:$0xff]
        %v678 = vld [vmem:[%s422 + $0x4a0] sm:$0xff]
        %v679 = vld [vmem:[%s422 + $0x4a8] sm:$0xff]
        %v680 = vld [vmem:[%s422 + $0x4b0] sm:$0xff]
        %v681 = vld [vmem:[%s422 + $0x4b8] sm:$0xff]
        %v682 = vld [vmem:[%s422 + $0x4c0] sm:$0xff]
        %v683 = vld [vmem:[%s422 + $0x4c8] sm:$0xff]
        %v684 = vld [vmem:[%s422 + $0x4d0] sm:$0xff]
        %v685 = vld [vmem:[%s422 + $0x4d8] sm:$0xff]
        %v686 = vld [vmem:[%s422 + $0x4e0] sm:$0xff]
        %v687 = vld [vmem:[%s422 + $0x4e8] sm:$0xff]
        %v688 = vld [vmem:[%s422 + $0x4f0] sm:$0xff]
        %v689 = vld [vmem:[%s422 + $0x4f8] sm:$0xff]
        %v690 = vld [vmem:[%s422 + $0x500] sm:$0xff]
        %v691 = vld [vmem:[%s422 + $0x508] sm:$0xff]
        %v692 = vld [vmem:[%s422 + $0x510] sm:$0xff]
        %v693 = vld [vmem:[%s422 + $0x518] sm:$0xff]
        %v694 = vld [vmem:[%s422 + $0x520] sm:$0xff]
        %v695 = vld [vmem:[%s422 + $0x528] sm:$0xff]
        %v696 = vld [vmem:[%s422 + $0x530] sm:$0xff]
        %v697 = vld [vmem:[%s422 + $0x538] sm:$0xff]
        %v698 = vld [vmem:[%s422 + $0x540] sm:$0xff]
        %v699 = vld [vmem:[%s422 + $0x548] sm:$0xff]
        %v700 = vld [vmem:[%s422 + $0x550] sm:$0xff]
        %v701 = vld [vmem:[%s422 + $0x558] sm:$0xff]
        %v702 = vld [vmem:[%s422 + $0x560] sm:$0xff]
        %v703 = vld [vmem:[%s422 + $0x568] sm:$0xff]
        %v704 = vld [vmem:[%s422 + $0x570] sm:$0xff]
        %v705 = vld [vmem:[%s422 + $0x578] sm:$0xff]
        %v706 = vld [vmem:[%s422 + $0x580] sm:$0xff]
        %v707 = vld [vmem:[%s422 + $0x588] sm:$0xff]
        %v708 = vld [vmem:[%s422 + $0x590] sm:$0xff]
        %v709 = vld [vmem:[%s422 + $0x598] sm:$0xff]
        %v710 = vld [vmem:[%s422 + $0x5a0] sm:$0xff]
        %v711 = vld [vmem:[%s422 + $0x5a8] sm:$0xff]
        %v712 = vld [vmem:[%s422 + $0x5b0] sm:$0xff]
        %v713 = vld [vmem:[%s422 + $0x5b8] sm:$0xff]
        %v714 = vld [vmem:[%s422 + $0x5c0] sm:$0xff]
        %v715 = vld [vmem:[%s422 + $0x5c8] sm:$0xff]
        %v716 = vld [vmem:[%s422 + $0x5d0] sm:$0xff]
        %v717 = vld [vmem:[%s422 + $0x5d8] sm:$0xff]
        %v718 = vld [vmem:[%s422 + $0x5e0] sm:$0xff]
        %v719 = vld [vmem:[%s422 + $0x5e8] sm:$0xff]
        %v720 = vld [vmem:[%s422 + $0x5f0] sm:$0xff]
        %v721 = vld [vmem:[%s422 + $0x5f8] sm:$0xff]
        %v722 = vld [vmem:[%s422 + $0x600] sm:$0xff]
        %v723 = vld [vmem:[%s422 + $0x608] sm:$0xff]
        %v724 = vld [vmem:[%s422 + $0x610] sm:$0xff]
        %v725 = vld [vmem:[%s422 + $0x618] sm:$0xff]
        %v726 = vld [vmem:[%s422 + $0x620] sm:$0xff]
        %v727 = vld [vmem:[%s422 + $0x628] sm:$0xff]
        %v728 = vld [vmem:[%s422 + $0x630] sm:$0xff]
        %v729 = vld [vmem:[%s422 + $0x638] sm:$0xff]
        %v730 = vld [vmem:[%s422 + $0x640] sm:$0xff]
        %v731 = vld [vmem:[%s422 + $0x648] sm:$0xff]
        %v732 = vld [vmem:[%s422 + $0x650] sm:$0xff]
        %v733 = vld [vmem:[%s422 + $0x658] sm:$0xff]
        %v734 = vld [vmem:[%s422 + $0x660] sm:$0xff]
        %v735 = vld [vmem:[%s422 + $0x668] sm:$0xff]
        %v736 = vld [vmem:[%s422 + $0x670] sm:$0xff]
        %v737 = vld [vmem:[%s422 + $0x678] sm:$0xff]
        %v738 = vld [vmem:[%s422 + $0x680] sm:$0xff]
        %v739 = vld [vmem:[%s422 + $0x688] sm:$0xff]
        %v740 = vld [vmem:[%s422 + $0x690] sm:$0xff]
        %v741 = vld [vmem:[%s422 + $0x698] sm:$0xff]
        %v742 = vld [vmem:[%s422 + $0x6a0] sm:$0xff]
        %v743 = vld [vmem:[%s422 + $0x6a8] sm:$0xff]
        %v744 = vld [vmem:[%s422 + $0x6b0] sm:$0xff]
        %v745 = vld [vmem:[%s422 + $0x6b8] sm:$0xff]
        %v746 = vld [vmem:[%s422 + $0x6c0] sm:$0xff]
        %v747 = vld [vmem:[%s422 + $0x6c8] sm:$0xff]
        %v748 = vld [vmem:[%s422 + $0x6d0] sm:$0xff]
        %v749 = vld [vmem:[%s422 + $0x6d8] sm:$0xff]
        %v750 = vld [vmem:[%s422 + $0x6e0] sm:$0xff]
        %v751 = vld [vmem:[%s422 + $0x6e8] sm:$0xff]
        %v752 = vld [vmem:[%s422 + $0x6f0] sm:$0xff]
        %v753 = vld [vmem:[%s422 + $0x6f8] sm:$0xff]
        %v754 = vld [vmem:[%s422 + $0x700] sm:$0xff]
        %v755 = vld [vmem:[%s422 + $0x708] sm:$0xff]
        %v756 = vld [vmem:[%s422 + $0x710] sm:$0xff]
        %v757 = vld [vmem:[%s422 + $0x718] sm:$0xff]
        %v758 = vld [vmem:[%s422 + $0x720] sm:$0xff]
        %v759 = vld [vmem:[%s422 + $0x728] sm:$0xff]
        %v760 = vld [vmem:[%s422 + $0x730] sm:$0xff]
        %v761 = vld [vmem:[%s422 + $0x738] sm:$0xff]
        %v762 = vld [vmem:[%s422 + $0x740] sm:$0xff]
        %v763 = vld [vmem:[%s422 + $0x748] sm:$0xff]
        %v764 = vld [vmem:[%s422 + $0x750] sm:$0xff]
        %v765 = vld [vmem:[%s422 + $0x758] sm:$0xff]
        %v766 = vld [vmem:[%s422 + $0x760] sm:$0xff]
        %v767 = vld [vmem:[%s422 + $0x768] sm:$0xff]
        %v768 = vld [vmem:[%s422 + $0x770] sm:$0xff]
        %v769 = vld [vmem:[%s422 + $0x778] sm:$0xff]
        %v770 = vld [vmem:[%s422 + $0x780] sm:$0xff]
        %v771 = vld [vmem:[%s422 + $0x788] sm:$0xff]
        %v772 = vld [vmem:[%s422 + $0x790] sm:$0xff]
        %v773 = vld [vmem:[%s422 + $0x798] sm:$0xff]
        %v774 = vld [vmem:[%s422 + $0x7a0] sm:$0xff]
        %v775 = vld [vmem:[%s422 + $0x7a8] sm:$0xff]
        %v776 = vld [vmem:[%s422 + $0x7b0] sm:$0xff]
        %v777 = vld [vmem:[%s422 + $0x7b8] sm:$0xff]
        %v778 = vld [vmem:[%s422 + $0x7c0] sm:$0xff]
        %v779 = vld [vmem:[%s422 + $0x7c8] sm:$0xff]
        %v780 = vld [vmem:[%s422 + $0x7d0] sm:$0xff]
        %v781 = vld [vmem:[%s422 + $0x7d8] sm:$0xff]
        %v782 = vld [vmem:[%s422 + $0x7e0] sm:$0xff]
        %v783 = vld [vmem:[%s422 + $0x7e8] sm:$0xff]
        %v784 = vld [vmem:[%s422 + $0x7f0] sm:$0xff]
        %v785 = vld [vmem:[%s422 + $0x7f8] sm:$0xff]
        %v786 = vld [vmem:[%s422 + $0x800] sm:$0xff]
        %v787 = vld [vmem:[%s422 + $0x808] sm:$0xff]
        %v788 = vld [vmem:[%s422 + $0x810] sm:$0xff]
        %v789 = vld [vmem:[%s422 + $0x818] sm:$0xff]
        %v790 = vld [vmem:[%s422 + $0x820] sm:$0xff]
        %v791 = vld [vmem:[%s422 + $0x828] sm:$0xff]
        %v792 = vld [vmem:[%s422 + $0x830] sm:$0xff]
        %v793 = vld [vmem:[%s422 + $0x838] sm:$0xff]
        %v794 = vld [vmem:[%s422 + $0x840] sm:$0xff]
        %v795 = vld [vmem:[%s422 + $0x848] sm:$0xff]
        %v796 = vld [vmem:[%s422 + $0x850] sm:$0xff]
        %v797 = vld [vmem:[%s422 + $0x858] sm:$0xff]
        %v798 = vld [vmem:[%s422 + $0x860] sm:$0xff]
        %v799 = vld [vmem:[%s422 + $0x868] sm:$0xff]
        %v800 = vld [vmem:[%s422 + $0x870] sm:$0xff]
        %v801 = vld [vmem:[%s422 + $0x878] sm:$0xff]
        %v802 = vld [vmem:[%s422 + $0x880] sm:$0xff]
        %v803 = vld [vmem:[%s422 + $0x888] sm:$0xff]
        %v804 = vld [vmem:[%s422 + $0x890] sm:$0xff]
        %v805 = vld [vmem:[%s422 + $0x898] sm:$0xff]
        %v806 = vld [vmem:[%s422 + $0x8a0] sm:$0xff]
        %v807 = vld [vmem:[%s422 + $0x8a8] sm:$0xff]
        %v808 = vld [vmem:[%s422 + $0x8b0] sm:$0xff]
        %v809 = vld [vmem:[%s422 + $0x8b8] sm:$0xff]
        %v810 = vld [vmem:[%s422 + $0x8c0] sm:$0xff]
        %v811 = vld [vmem:[%s422 + $0x8c8] sm:$0xff]
        %v812 = vld [vmem:[%s422 + $0x8d0] sm:$0xff]
        %v813 = vld [vmem:[%s422 + $0x8d8] sm:$0xff]
        %v814 = vld [vmem:[%s422 + $0x8e0] sm:$0xff]
        %v815 = vld [vmem:[%s422 + $0x8e8] sm:$0xff]
        %v816 = vld [vmem:[%s422 + $0x8f0] sm:$0xff]
        %v817 = vld [vmem:[%s422 + $0x8f8] sm:$0xff]
        %v818 = vld [vmem:[%s422 + $0x900] sm:$0xff]
        %v819 = vld [vmem:[%s422 + $0x908] sm:$0xff]
        %v820 = vld [vmem:[%s422 + $0x910] sm:$0xff]
        %v821 = vld [vmem:[%s422 + $0x918] sm:$0xff]
        %v822 = vld [vmem:[%s422 + $0x920] sm:$0xff]
        %v823 = vld [vmem:[%s422 + $0x928] sm:$0xff]
        %v824 = vld [vmem:[%s422 + $0x930] sm:$0xff]
        %v825 = vld [vmem:[%s422 + $0x938] sm:$0xff]
        %v826 = vld [vmem:[%s422 + $0x940] sm:$0xff]
        %v827 = vld [vmem:[%s422 + $0x948] sm:$0xff]
        %v828 = vld [vmem:[%s422 + $0x950] sm:$0xff]
        %v829 = vld [vmem:[%s422 + $0x958] sm:$0xff]
        %v830 = vld [vmem:[%s422 + $0x960] sm:$0xff]
        %v831 = vld [vmem:[%s422 + $0x968] sm:$0xff]
        %v832 = vld [vmem:[%s422 + $0x970] sm:$0xff]
        %v833 = vld [vmem:[%s422 + $0x978] sm:$0xff]
        %v834 = vld [vmem:[%s422 + $0x980] sm:$0xff]
        %v835 = vld [vmem:[%s422 + $0x988] sm:$0xff]
        %v836 = vld [vmem:[%s422 + $0x990] sm:$0xff]
        %v837 = vld [vmem:[%s422 + $0x998] sm:$0xff]
        %v838 = vld [vmem:[%s422 + $0x9a0] sm:$0xff]
        %v839 = vld [vmem:[%s422 + $0x9a8] sm:$0xff]
        %v840 = vld [vmem:[%s422 + $0x9b0] sm:$0xff]
        %v841 = vld [vmem:[%s422 + $0x9b8] sm:$0xff]
        %v842 = vld [vmem:[%s422 + $0x9c0] sm:$0xff]
        %v843 = vld [vmem:[%s422 + $0x9c8] sm:$0xff]
        %v844 = vld [vmem:[%s422 + $0x9d0] sm:$0xff]
        %v845 = vld [vmem:[%s422 + $0x9d8] sm:$0xff]
        %v846 = vld [vmem:[%s422 + $0x9e0] sm:$0xff]
        %v847 = vld [vmem:[%s422 + $0x9e8] sm:$0xff]
        %v848 = vld [vmem:[%s422 + $0x9f0] sm:$0xff]
        %v849 = vld [vmem:[%s422 + $0x9f8] sm:$0xff]
        %v850 = vld [vmem:[%s422 + $0xa00] sm:$0xff]
        %v851 = vld [vmem:[%s422 + $0xa08] sm:$0xff]
        %v852 = vld [vmem:[%s422 + $0xa10] sm:$0xff]
        %v853 = vld [vmem:[%s422 + $0xa18] sm:$0xff]
        %v854 = vld [vmem:[%s422 + $0xa20] sm:$0xff]
        %v855 = vld [vmem:[%s422 + $0xa28] sm:$0xff]
        %v856 = vld [vmem:[%s422 + $0xa30] sm:$0xff]
        %v857 = vld [vmem:[%s422 + $0xa38] sm:$0xff]
        %v858 = vld [vmem:[%s422 + $0xa40] sm:$0xff]
        %v859 = vld [vmem:[%s422 + $0xa48] sm:$0xff]
        %v860 = vld [vmem:[%s422 + $0xa50] sm:$0xff]
        %v861 = vld [vmem:[%s422 + $0xa58] sm:$0xff]
        %v862 = vld [vmem:[%s422 + $0xa60] sm:$0xff]
        %v863 = vld [vmem:[%s422 + $0xa68] sm:$0xff]
        %v864 = vld [vmem:[%s422 + $0xa70] sm:$0xff]
        %v865 = vld [vmem:[%s422 + $0xa78] sm:$0xff]
        %v866 = vld [vmem:[%s422 + $0xa80] sm:$0xff]
        %v867 = vld [vmem:[%s422 + $0xa88] sm:$0xff]
        %v868 = vld [vmem:[%s422 + $0xa90] sm:$0xff]
        %v869 = vld [vmem:[%s422 + $0xa98] sm:$0xff]
        %v870 = vld [vmem:[%s422 + $0xaa0] sm:$0xff]
        %v871 = vld [vmem:[%s422 + $0xaa8] sm:$0xff]
        %v872 = vld [vmem:[%s422 + $0xab0] sm:$0xff]
        %v873 = vld [vmem:[%s422 + $0xab8] sm:$0xff]
        %v874 = vld [vmem:[%s422 + $0xac0] sm:$0xff]
        %v875 = vld [vmem:[%s422 + $0xac8] sm:$0xff]
        %v876 = vld [vmem:[%s422 + $0xad0] sm:$0xff]
        %v877 = vld [vmem:[%s422 + $0xad8] sm:$0xff]
        %v878 = vld [vmem:[%s422 + $0xae0] sm:$0xff]
        %v879 = vld [vmem:[%s422 + $0xae8] sm:$0xff]
        %v880 = vld [vmem:[%s422 + $0xaf0] sm:$0xff]
        %v881 = vld [vmem:[%s422 + $0xaf8] sm:$0xff]
        %v882 = vld [vmem:[%s422 + $0xb00] sm:$0xff]
        %v883 = vld [vmem:[%s422 + $0xb08] sm:$0xff]
        %v884 = vld [vmem:[%s422 + $0xb10] sm:$0xff]
        %v885 = vld [vmem:[%s422 + $0xb18] sm:$0xff]
        %v886 = vld [vmem:[%s422 + $0xb20] sm:$0xff]
        %v887 = vld [vmem:[%s422 + $0xb28] sm:$0xff]
        %v888 = vld [vmem:[%s422 + $0xb30] sm:$0xff]
        %v889 = vld [vmem:[%s422 + $0xb38] sm:$0xff]
        %v890 = vld [vmem:[%s422 + $0xb40] sm:$0xff]
        %v891 = vld [vmem:[%s422 + $0xb48] sm:$0xff]
        %v892 = vld [vmem:[%s422 + $0xb50] sm:$0xff]
        %v893 = vld [vmem:[%s422 + $0xb58] sm:$0xff]
        %v894 = vld [vmem:[%s422 + $0xb60] sm:$0xff]
        %v895 = vld [vmem:[%s422 + $0xb68] sm:$0xff]
        %v896 = vld [vmem:[%s422 + $0xb70] sm:$0xff]
        %v897 = vld [vmem:[%s422 + $0xb78] sm:$0xff]
        %v898 = vld [vmem:[%s422 + $0xb80] sm:$0xff]
        %v899 = vld [vmem:[%s422 + $0xb88] sm:$0xff]
        %v900 = vld [vmem:[%s422 + $0xb90] sm:$0xff]
        %v901 = vld [vmem:[%s422 + $0xb98] sm:$0xff]
        %v902 = vld [vmem:[%s422 + $0xba0] sm:$0xff]
        %v903 = vld [vmem:[%s422 + $0xba8] sm:$0xff]
        %v904 = vld [vmem:[%s422 + $0xbb0] sm:$0xff]
        %v905 = vld [vmem:[%s422 + $0xbb8] sm:$0xff]
        %v906 = vld [vmem:[%s422 + $0xbc0] sm:$0xff]
        %v907 = vld [vmem:[%s422 + $0xbc8] sm:$0xff]
        %v908 = vld [vmem:[%s422 + $0xbd0] sm:$0xff]
        %v909 = vld [vmem:[%s422 + $0xbd8] sm:$0xff]
        %v910 = vld [vmem:[%s422 + $0xbe0] sm:$0xff]
        %v911 = vld [vmem:[%s422 + $0xbe8] sm:$0xff]
        %v912 = vld [vmem:[%s422 + $0xbf0] sm:$0xff]
        %v913 = vld [vmem:[%s422 + $0xbf8] sm:$0xff]
        %v914 = vld [vmem:[%s422 + $0xc00] sm:$0xff]
        %v915 = vld [vmem:[%s422 + $0xc08] sm:$0xff]
        %v916 = vld [vmem:[%s422 + $0xc10] sm:$0xff]
        %v917 = vld [vmem:[%s422 + $0xc18] sm:$0xff]
        %v918 = vld [vmem:[%s422 + $0xc20] sm:$0xff]
        %v919 = vld [vmem:[%s422 + $0xc28] sm:$0xff]
        %v920 = vld [vmem:[%s422 + $0xc30] sm:$0xff]
        %v921 = vld [vmem:[%s422 + $0xc38] sm:$0xff]
        %v922 = vld [vmem:[%s422 + $0xc40] sm:$0xff]
        %v923 = vld [vmem:[%s422 + $0xc48] sm:$0xff]
        %v924 = vld [vmem:[%s422 + $0xc50] sm:$0xff]
        %v925 = vld [vmem:[%s422 + $0xc58] sm:$0xff]
        %v926 = vld [vmem:[%s422 + $0xc60] sm:$0xff]
        %v927 = vld [vmem:[%s422 + $0xc68] sm:$0xff]
        %v928 = vld [vmem:[%s422 + $0xc70] sm:$0xff]
        %v929 = vld [vmem:[%s422 + $0xc78] sm:$0xff]
        %v930 = vld [vmem:[%s422 + $0xc80] sm:$0xff]
        %v931 = vld [vmem:[%s422 + $0xc88] sm:$0xff]
        %v932 = vld [vmem:[%s422 + $0xc90] sm:$0xff]
        %v933 = vld [vmem:[%s422 + $0xc98] sm:$0xff]
        %v934 = vld [vmem:[%s422 + $0xca0] sm:$0xff]
        %v935 = vld [vmem:[%s422 + $0xca8] sm:$0xff]
        %v936 = vld [vmem:[%s422 + $0xcb0] sm:$0xff]
        %v937 = vld [vmem:[%s422 + $0xcb8] sm:$0xff]
        %v938 = vld [vmem:[%s422 + $0xcc0] sm:$0xff]
        %v939 = vld [vmem:[%s422 + $0xcc8] sm:$0xff]
        %v940 = vld [vmem:[%s422 + $0xcd0] sm:$0xff]
        %v941 = vld [vmem:[%s422 + $0xcd8] sm:$0xff]
        %v942 = vld [vmem:[%s422 + $0xce0] sm:$0xff]
        %v943 = vld [vmem:[%s422 + $0xce8] sm:$0xff]
        %v944 = vld [vmem:[%s422 + $0xcf0] sm:$0xff]
        %v945 = vld [vmem:[%s422 + $0xcf8] sm:$0xff]
        %v946 = vld [vmem:[%s422 + $0xd00] sm:$0xff]
        %v947 = vld [vmem:[%s422 + $0xd08] sm:$0xff]
        %v948 = vld [vmem:[%s422 + $0xd10] sm:$0xff]
        %v949 = vld [vmem:[%s422 + $0xd18] sm:$0xff]
        %v950 = vld [vmem:[%s422 + $0xd20] sm:$0xff]
        %v951 = vld [vmem:[%s422 + $0xd28] sm:$0xff]
        %v952 = vld [vmem:[%s422 + $0xd30] sm:$0xff]
        %v953 = vld [vmem:[%s422 + $0xd38] sm:$0xff]
        %v954 = vld [vmem:[%s422 + $0xd40] sm:$0xff]
        %v955 = vld [vmem:[%s422 + $0xd48] sm:$0xff]
        %v956 = vld [vmem:[%s422 + $0xd50] sm:$0xff]
        %v957 = vld [vmem:[%s422 + $0xd58] sm:$0xff]
        %v958 = vld [vmem:[%s422 + $0xd60] sm:$0xff]
        %v959 = vld [vmem:[%s422 + $0xd68] sm:$0xff]
        %v960 = vld [vmem:[%s422 + $0xd70] sm:$0xff]
        %v961 = vld [vmem:[%s422 + $0xd78] sm:$0xff]
        %v962 = vld [vmem:[%s422 + $0xd80] sm:$0xff]
        %v963 = vld [vmem:[%s422 + $0xd88] sm:$0xff]
        %v964 = vld [vmem:[%s422 + $0xd90] sm:$0xff]
        %v965 = vld [vmem:[%s422 + $0xd98] sm:$0xff]
        %v966 = vld [vmem:[%s422 + $0xda0] sm:$0xff]
        %v967 = vld [vmem:[%s422 + $0xda8] sm:$0xff]
        %v968 = vld [vmem:[%s422 + $0xdb0] sm:$0xff]
        %v969 = vld [vmem:[%s422 + $0xdb8] sm:$0xff]
        %v970 = vld [vmem:[%s422 + $0xdc0] sm:$0xff]
        %v971 = vld [vmem:[%s422 + $0xdc8] sm:$0xff]
        %v972 = vld [vmem:[%s422 + $0xdd0] sm:$0xff]
        %v973 = vld [vmem:[%s422 + $0xdd8] sm:$0xff]
        %v974 = vld [vmem:[%s422 + $0xde0] sm:$0xff]
        %v975 = vld [vmem:[%s422 + $0xde8] sm:$0xff]
        %v976 = vld [vmem:[%s422 + $0xdf0] sm:$0xff]
        %v977 = vld [vmem:[%s422 + $0xdf8] sm:$0xff]
        %v978 = vld [vmem:[%s422 + $0xe00] sm:$0xff]
        %v979 = vld [vmem:[%s422 + $0xe08] sm:$0xff]
        %v980 = vld [vmem:[%s422 + $0xe10] sm:$0xff]
        %v981 = vld [vmem:[%s422 + $0xe18] sm:$0xff]
        %v982 = vld [vmem:[%s422 + $0xe20] sm:$0xff]
        %v983 = vld [vmem:[%s422 + $0xe28] sm:$0xff]
        %v984 = vld [vmem:[%s422 + $0xe30] sm:$0xff]
        %v985 = vld [vmem:[%s422 + $0xe38] sm:$0xff]
        %v986 = vld [vmem:[%s422 + $0xe40] sm:$0xff]
        %v987 = vld [vmem:[%s422 + $0xe48] sm:$0xff]
        %v988 = vld [vmem:[%s422 + $0xe50] sm:$0xff]
        %v989 = vld [vmem:[%s422 + $0xe58] sm:$0xff]
        %v990 = vld [vmem:[%s422 + $0xe60] sm:$0xff]
        %v991 = vld [vmem:[%s422 + $0xe68] sm:$0xff]
        %v992 = vld [vmem:[%s422 + $0xe70] sm:$0xff]
        %v993 = vld [vmem:[%s422 + $0xe78] sm:$0xff]
        %v994 = vld [vmem:[%s422 + $0xe80] sm:$0xff]
        %v995 = vld [vmem:[%s422 + $0xe88] sm:$0xff]
        %v996 = vld [vmem:[%s422 + $0xe90] sm:$0xff]
        %v997 = vld [vmem:[%s422 + $0xe98] sm:$0xff]
        %v998 = vld [vmem:[%s422 + $0xea0] sm:$0xff]
        %v999 = vld [vmem:[%s422 + $0xea8] sm:$0xff]
        %v1000 = vld [vmem:[%s422 + $0xeb0] sm:$0xff]
        %v1001 = vld [vmem:[%s422 + $0xeb8] sm:$0xff]
        %v1002 = vld [vmem:[%s422 + $0xec0] sm:$0xff]
        %v1003 = vld [vmem:[%s422 + $0xec8] sm:$0xff]
        %v1004 = vld [vmem:[%s422 + $0xed0] sm:$0xff]
        %v1005 = vld [vmem:[%s422 + $0xed8] sm:$0xff]
        %v1006 = vld [vmem:[%s422 + $0xee0] sm:$0xff]
        %v1007 = vld [vmem:[%s422 + $0xee8] sm:$0xff]
        %v1008 = vld [vmem:[%s422 + $0xef0] sm:$0xff]
        %v1009 = vld [vmem:[%s422 + $0xef8] sm:$0xff]
        %v1010 = vld [vmem:[%s422 + $0xf00] sm:$0xff]
        %v1011 = vld [vmem:[%s422 + $0xf08] sm:$0xff]
        %v1012 = vld [vmem:[%s422 + $0xf10] sm:$0xff]
        %v1013 = vld [vmem:[%s422 + $0xf18] sm:$0xff]
        %v1014 = vld [vmem:[%s422 + $0xf20] sm:$0xff]
        %v1015 = vld [vmem:[%s422 + $0xf28] sm:$0xff]
        %v1016 = vld [vmem:[%s422 + $0xf30] sm:$0xff]
        %v1017 = vld [vmem:[%s422 + $0xf38] sm:$0xff]
        %v1018 = vld [vmem:[%s422 + $0xf40] sm:$0xff]
        %v1019 = vld [vmem:[%s422 + $0xf48] sm:$0xff]
        %v1020 = vld [vmem:[%s422 + $0xf50] sm:$0xff]
        %v1021 = vld [vmem:[%s422 + $0xf58] sm:$0xff]
        %v1022 = vld [vmem:[%s422 + $0xf60] sm:$0xff]
        %v1023 = vld [vmem:[%s422 + $0xf68] sm:$0xff]
        %v1024 = vld [vmem:[%s422 + $0xf70] sm:$0xff]
        %v1025 = vld [vmem:[%s422 + $0xf78] sm:$0xff]
        %v1026 = vld [vmem:[%s422 + $0xf80] sm:$0xff]
        %v1027 = vld [vmem:[%s422 + $0xf88] sm:$0xff]
        %v1028 = vld [vmem:[%s422 + $0xf90] sm:$0xff]
        %v1029 = vld [vmem:[%s422 + $0xf98] sm:$0xff]
        %v1030 = vld [vmem:[%s422 + $0xfa0] sm:$0xff]
        %v1031 = vld [vmem:[%s422 + $0xfa8] sm:$0xff]
        %v1032 = vld [vmem:[%s422 + $0xfb0] sm:$0xff]
        %v1033 = vld [vmem:[%s422 + $0xfb8] sm:$0xff]
        %v1034 = vld [vmem:[%s422 + $0xfc0] sm:$0xff]
        %v1035 = vld [vmem:[%s422 + $0xfc8] sm:$0xff]
        %v1036 = vld [vmem:[%s422 + $0xfd0] sm:$0xff]
        %v1037 = vld [vmem:[%s422 + $0xfd8] sm:$0xff]
        %v1038 = vld [vmem:[%s422 + $0xfe0] sm:$0xff]
        %v1039 = vld [vmem:[%s422 + $0xfe8] sm:$0xff]
        %v1040 = vld [vmem:[%s422 + $0xff0] sm:$0xff]
        %v1041 = vld [vmem:[%s422 + $0xff8] sm:$0xff]
        %v1042 = vld [vmem:[%s432] sm:$0xf]
        %v1044 = vperm.slane %v1042, 0
        %v1045 = vperm.slane %v1042, 1
        %v1046 = vperm.slane %v1042, 2
        %v1047 = vperm.slane %v1042, 3
        %v1060 = vunpack.c.l.b16 %v522
        %v1061 = vunpack.c.h.b16 %v522
        %v1062 = vunpack.c.l.b16 %v523
        %v1063 = vunpack.c.h.b16 %v523
        %v1064 = vunpack.c.l.b16 %v524
        %v1065 = vunpack.c.h.b16 %v524
        %v1066 = vunpack.c.l.b16 %v525
        %v1067 = vunpack.c.h.b16 %v525
        %v1068 = vunpack.c.l.b16 %v526
        %v1069 = vunpack.c.h.b16 %v526
        %v1070 = vunpack.c.l.b16 %v527
        %v1071 = vunpack.c.h.b16 %v527
        %v1072 = vunpack.c.l.b16 %v528
        %v1073 = vunpack.c.h.b16 %v528
        %v1074 = vunpack.c.l.b16 %v529
        %v1075 = vunpack.c.h.b16 %v529
        %v1076 = vpack.c.b16 %v1060, %v1060
        %v1077 = vpack.c.b16 %v1061, %v1061
        %v1078 = vpack.c.b16 %v1062, %v1062
        %v1079 = vpack.c.b16 %v1063, %v1063
        %v1080 = vpack.c.b16 %v1064, %v1064
        %v1081 = vpack.c.b16 %v1065, %v1065
        %v1082 = vpack.c.b16 %v1066, %v1066
        %v1083 = vpack.c.b16 %v1067, %v1067
        %v1084 = vpack.c.b16 %v1068, %v1068
        %v1085 = vpack.c.b16 %v1069, %v1069
        %v1086 = vpack.c.b16 %v1070, %v1070
        %v1087 = vpack.c.b16 %v1071, %v1071
        %v1088 = vpack.c.b16 %v1072, %v1072
        %v1089 = vpack.c.b16 %v1073, %v1073
        %v1090 = vpack.c.b16 %v1074, %v1074
        %v1091 = vpack.c.b16 %v1075, %v1075
        %v1620 = vunpack.c.l.b16 %v530
        %v1621 = vunpack.c.h.b16 %v530
        %v1622 = vunpack.c.l.b16 %v531
        %v1623 = vunpack.c.h.b16 %v531
        %v1624 = vunpack.c.l.b16 %v532
        %v1625 = vunpack.c.h.b16 %v532
        %v1626 = vunpack.c.l.b16 %v533
        %v1627 = vunpack.c.h.b16 %v533
        %v1628 = vunpack.c.l.b16 %v534
        %v1629 = vunpack.c.h.b16 %v534
        %v1630 = vunpack.c.l.b16 %v535
        %v1631 = vunpack.c.h.b16 %v535
        %v1632 = vunpack.c.l.b16 %v536
        %v1633 = vunpack.c.h.b16 %v536
        %v1634 = vunpack.c.l.b16 %v537
        %v1635 = vunpack.c.h.b16 %v537
        %v1636 = vunpack.c.l.b16 %v538
        %v1637 = vunpack.c.h.b16 %v538
        %v1638 = vunpack.c.l.b16 %v539
        %v1639 = vunpack.c.h.b16 %v539
        %v1640 = vunpack.c.l.b16 %v540
        %v1641 = vunpack.c.h.b16 %v540
        %v1642 = vunpack.c.l.b16 %v541
        %v1643 = vunpack.c.h.b16 %v541
        %v1644 = vunpack.c.l.b16 %v542
        %v1645 = vunpack.c.h.b16 %v542
        %v1646 = vunpack.c.l.b16 %v543
        %v1647 = vunpack.c.h.b16 %v543
        %v1648 = vunpack.c.l.b16 %v544
        %v1649 = vunpack.c.h.b16 %v544
        %v1650 = vunpack.c.l.b16 %v545
        %v1651 = vunpack.c.h.b16 %v545
        %v1652 = vunpack.c.l.b16 %v546
        %v1653 = vunpack.c.h.b16 %v546
        %v1654 = vunpack.c.l.b16 %v547
        %v1655 = vunpack.c.h.b16 %v547
        %v1656 = vunpack.c.l.b16 %v548
        %v1657 = vunpack.c.h.b16 %v548
        %v1658 = vunpack.c.l.b16 %v549
        %v1659 = vunpack.c.h.b16 %v549
        %v1660 = vunpack.c.l.b16 %v550
        %v1661 = vunpack.c.h.b16 %v550
        %v1662 = vunpack.c.l.b16 %v551
        %v1663 = vunpack.c.h.b16 %v551
        %v1664 = vunpack.c.l.b16 %v552
        %v1665 = vunpack.c.h.b16 %v552
        %v1666 = vunpack.c.l.b16 %v553
        %v1667 = vunpack.c.h.b16 %v553
        %v1668 = vunpack.c.l.b16 %v554
        %v1669 = vunpack.c.h.b16 %v554
        %v1670 = vunpack.c.l.b16 %v555
        %v1671 = vunpack.c.h.b16 %v555
        %v1672 = vunpack.c.l.b16 %v556
        %v1673 = vunpack.c.h.b16 %v556
        %v1674 = vunpack.c.l.b16 %v557
        %v1675 = vunpack.c.h.b16 %v557
        %v1676 = vunpack.c.l.b16 %v558
        %v1677 = vunpack.c.h.b16 %v558
        %v1678 = vunpack.c.l.b16 %v559
        %v1679 = vunpack.c.h.b16 %v559
        %v1680 = vunpack.c.l.b16 %v560
        %v1681 = vunpack.c.h.b16 %v560
        %v1682 = vunpack.c.l.b16 %v561
        %v1683 = vunpack.c.h.b16 %v561
        %v1684 = vunpack.c.l.b16 %v562
        %v1685 = vunpack.c.h.b16 %v562
        %v1686 = vunpack.c.l.b16 %v563
        %v1687 = vunpack.c.h.b16 %v563
        %v1688 = vunpack.c.l.b16 %v564
        %v1689 = vunpack.c.h.b16 %v564
        %v1690 = vunpack.c.l.b16 %v565
        %v1691 = vunpack.c.h.b16 %v565
        %v1692 = vunpack.c.l.b16 %v566
        %v1693 = vunpack.c.h.b16 %v566
        %v1694 = vunpack.c.l.b16 %v567
        %v1695 = vunpack.c.h.b16 %v567
        %v1696 = vunpack.c.l.b16 %v568
        %v1697 = vunpack.c.h.b16 %v568
        %v1698 = vunpack.c.l.b16 %v569
        %v1699 = vunpack.c.h.b16 %v569
        %v1700 = vunpack.c.l.b16 %v570
        %v1701 = vunpack.c.h.b16 %v570
        %v1702 = vunpack.c.l.b16 %v571
        %v1703 = vunpack.c.h.b16 %v571
        %v1704 = vunpack.c.l.b16 %v572
        %v1705 = vunpack.c.h.b16 %v572
        %v1706 = vunpack.c.l.b16 %v573
        %v1707 = vunpack.c.h.b16 %v573
        %v1708 = vunpack.c.l.b16 %v574
        %v1709 = vunpack.c.h.b16 %v574
        %v1710 = vunpack.c.l.b16 %v575
        %v1711 = vunpack.c.h.b16 %v575
        %v1712 = vunpack.c.l.b16 %v576
        %v1713 = vunpack.c.h.b16 %v576
        %v1714 = vunpack.c.l.b16 %v577
        %v1715 = vunpack.c.h.b16 %v577
        %v1716 = vunpack.c.l.b16 %v578
        %v1717 = vunpack.c.h.b16 %v578
        %v1718 = vunpack.c.l.b16 %v579
        %v1719 = vunpack.c.h.b16 %v579
        %v1720 = vunpack.c.l.b16 %v580
        %v1721 = vunpack.c.h.b16 %v580
        %v1722 = vunpack.c.l.b16 %v581
        %v1723 = vunpack.c.h.b16 %v581
        %v1724 = vunpack.c.l.b16 %v582
        %v1725 = vunpack.c.h.b16 %v582
        %v1726 = vunpack.c.l.b16 %v583
        %v1727 = vunpack.c.h.b16 %v583
        %v1728 = vunpack.c.l.b16 %v584
        %v1729 = vunpack.c.h.b16 %v584
        %v1730 = vunpack.c.l.b16 %v585
        %v1731 = vunpack.c.h.b16 %v585
        %v1732 = vunpack.c.l.b16 %v586
        %v1733 = vunpack.c.h.b16 %v586
        %v1734 = vunpack.c.l.b16 %v587
        %v1735 = vunpack.c.h.b16 %v587
        %v1736 = vunpack.c.l.b16 %v588
        %v1737 = vunpack.c.h.b16 %v588
        %v1738 = vunpack.c.l.b16 %v589
        %v1739 = vunpack.c.h.b16 %v589
        %v1740 = vunpack.c.l.b16 %v590
        %v1741 = vunpack.c.h.b16 %v590
        %v1742 = vunpack.c.l.b16 %v591
        %v1743 = vunpack.c.h.b16 %v591
        %v1744 = vunpack.c.l.b16 %v592
        %v1745 = vunpack.c.h.b16 %v592
        %v1746 = vunpack.c.l.b16 %v593
        %v1747 = vunpack.c.h.b16 %v593
        %v1748 = vunpack.c.l.b16 %v594
        %v1749 = vunpack.c.h.b16 %v594
        %v1750 = vunpack.c.l.b16 %v595
        %v1751 = vunpack.c.h.b16 %v595
        %v1752 = vunpack.c.l.b16 %v596
        %v1753 = vunpack.c.h.b16 %v596
        %v1754 = vunpack.c.l.b16 %v597
        %v1755 = vunpack.c.h.b16 %v597
        %v1756 = vunpack.c.l.b16 %v598
        %v1757 = vunpack.c.h.b16 %v598
        %v1758 = vunpack.c.l.b16 %v599
        %v1759 = vunpack.c.h.b16 %v599
        %v1760 = vunpack.c.l.b16 %v600
        %v1761 = vunpack.c.h.b16 %v600
        %v1762 = vunpack.c.l.b16 %v601
        %v1763 = vunpack.c.h.b16 %v601
        %v1764 = vunpack.c.l.b16 %v602
        %v1765 = vunpack.c.h.b16 %v602
        %v1766 = vunpack.c.l.b16 %v603
        %v1767 = vunpack.c.h.b16 %v603
        %v1768 = vunpack.c.l.b16 %v604
        %v1769 = vunpack.c.h.b16 %v604
        %v1770 = vunpack.c.l.b16 %v605
        %v1771 = vunpack.c.h.b16 %v605
        %v1772 = vunpack.c.l.b16 %v606
        %v1773 = vunpack.c.h.b16 %v606
        %v1774 = vunpack.c.l.b16 %v607
        %v1775 = vunpack.c.h.b16 %v607
        %v1776 = vunpack.c.l.b16 %v608
        %v1777 = vunpack.c.h.b16 %v608
        %v1778 = vunpack.c.l.b16 %v609
        %v1779 = vunpack.c.h.b16 %v609
        %v1780 = vunpack.c.l.b16 %v610
        %v1781 = vunpack.c.h.b16 %v610
        %v1782 = vunpack.c.l.b16 %v611
        %v1783 = vunpack.c.h.b16 %v611
        %v1784 = vunpack.c.l.b16 %v612
        %v1785 = vunpack.c.h.b16 %v612
        %v1786 = vunpack.c.l.b16 %v613
        %v1787 = vunpack.c.h.b16 %v613
        %v1788 = vunpack.c.l.b16 %v614
        %v1789 = vunpack.c.h.b16 %v614
        %v1790 = vunpack.c.l.b16 %v615
        %v1791 = vunpack.c.h.b16 %v615
        %v1792 = vunpack.c.l.b16 %v616
        %v1793 = vunpack.c.h.b16 %v616
        %v1794 = vunpack.c.l.b16 %v617
        %v1795 = vunpack.c.h.b16 %v617
        %v1796 = vunpack.c.l.b16 %v618
        %v1797 = vunpack.c.h.b16 %v618
        %v1798 = vunpack.c.l.b16 %v619
        %v1799 = vunpack.c.h.b16 %v619
        %v1800 = vunpack.c.l.b16 %v620
        %v1801 = vunpack.c.h.b16 %v620
        %v1802 = vunpack.c.l.b16 %v621
        %v1803 = vunpack.c.h.b16 %v621
        %v1804 = vunpack.c.l.b16 %v622
        %v1805 = vunpack.c.h.b16 %v622
        %v1806 = vunpack.c.l.b16 %v623
        %v1807 = vunpack.c.h.b16 %v623
        %v1808 = vunpack.c.l.b16 %v624
        %v1809 = vunpack.c.h.b16 %v624
        %v1810 = vunpack.c.l.b16 %v625
        %v1811 = vunpack.c.h.b16 %v625
        %v1812 = vunpack.c.l.b16 %v626
        %v1813 = vunpack.c.h.b16 %v626
        %v1814 = vunpack.c.l.b16 %v627
        %v1815 = vunpack.c.h.b16 %v627
        %v1816 = vunpack.c.l.b16 %v628
        %v1817 = vunpack.c.h.b16 %v628
        %v1818 = vunpack.c.l.b16 %v629
        %v1819 = vunpack.c.h.b16 %v629
        %v1820 = vunpack.c.l.b16 %v630
        %v1821 = vunpack.c.h.b16 %v630
        %v1822 = vunpack.c.l.b16 %v631
        %v1823 = vunpack.c.h.b16 %v631
        %v1824 = vunpack.c.l.b16 %v632
        %v1825 = vunpack.c.h.b16 %v632
        %v1826 = vunpack.c.l.b16 %v633
        %v1827 = vunpack.c.h.b16 %v633
        %v1828 = vunpack.c.l.b16 %v634
        %v1829 = vunpack.c.h.b16 %v634
        %v1830 = vunpack.c.l.b16 %v635
        %v1831 = vunpack.c.h.b16 %v635
        %v1832 = vunpack.c.l.b16 %v636
        %v1833 = vunpack.c.h.b16 %v636
        %v1834 = vunpack.c.l.b16 %v637
        %v1835 = vunpack.c.h.b16 %v637
        %v1836 = vunpack.c.l.b16 %v638
        %v1837 = vunpack.c.h.b16 %v638
        %v1838 = vunpack.c.l.b16 %v639
        %v1839 = vunpack.c.h.b16 %v639
        %v1840 = vunpack.c.l.b16 %v640
        %v1841 = vunpack.c.h.b16 %v640
        %v1842 = vunpack.c.l.b16 %v641
        %v1843 = vunpack.c.h.b16 %v641
        %v1844 = vunpack.c.l.b16 %v642
        %v1845 = vunpack.c.h.b16 %v642
        %v1846 = vunpack.c.l.b16 %v643
        %v1847 = vunpack.c.h.b16 %v643
        %v1848 = vunpack.c.l.b16 %v644
        %v1849 = vunpack.c.h.b16 %v644
        %v1850 = vunpack.c.l.b16 %v645
        %v1851 = vunpack.c.h.b16 %v645
        %v1852 = vunpack.c.l.b16 %v646
        %v1853 = vunpack.c.h.b16 %v646
        %v1854 = vunpack.c.l.b16 %v647
        %v1855 = vunpack.c.h.b16 %v647
        %v1856 = vunpack.c.l.b16 %v648
        %v1857 = vunpack.c.h.b16 %v648
        %v1858 = vunpack.c.l.b16 %v649
        %v1859 = vunpack.c.h.b16 %v649
        %v1860 = vunpack.c.l.b16 %v650
        %v1861 = vunpack.c.h.b16 %v650
        %v1862 = vunpack.c.l.b16 %v651
        %v1863 = vunpack.c.h.b16 %v651
        %v1864 = vunpack.c.l.b16 %v652
        %v1865 = vunpack.c.h.b16 %v652
        %v1866 = vunpack.c.l.b16 %v653
        %v1867 = vunpack.c.h.b16 %v653
        %v1868 = vunpack.c.l.b16 %v654
        %v1869 = vunpack.c.h.b16 %v654
        %v1870 = vunpack.c.l.b16 %v655
        %v1871 = vunpack.c.h.b16 %v655
        %v1872 = vunpack.c.l.b16 %v656
        %v1873 = vunpack.c.h.b16 %v656
        %v1874 = vunpack.c.l.b16 %v657
        %v1875 = vunpack.c.h.b16 %v657
        %v1876 = vunpack.c.l.b16 %v658
        %v1877 = vunpack.c.h.b16 %v658
        %v1878 = vunpack.c.l.b16 %v659
        %v1879 = vunpack.c.h.b16 %v659
        %v1880 = vunpack.c.l.b16 %v660
        %v1881 = vunpack.c.h.b16 %v660
        %v1882 = vunpack.c.l.b16 %v661
        %v1883 = vunpack.c.h.b16 %v661
        %v1884 = vunpack.c.l.b16 %v662
        %v1885 = vunpack.c.h.b16 %v662
        %v1886 = vunpack.c.l.b16 %v663
        %v1887 = vunpack.c.h.b16 %v663
        %v1888 = vunpack.c.l.b16 %v664
        %v1889 = vunpack.c.h.b16 %v664
        %v1890 = vunpack.c.l.b16 %v665
        %v1891 = vunpack.c.h.b16 %v665
        %v1892 = vunpack.c.l.b16 %v666
        %v1893 = vunpack.c.h.b16 %v666
        %v1894 = vunpack.c.l.b16 %v667
        %v1895 = vunpack.c.h.b16 %v667
        %v1896 = vunpack.c.l.b16 %v668
        %v1897 = vunpack.c.h.b16 %v668
        %v1898 = vunpack.c.l.b16 %v669
        %v1899 = vunpack.c.h.b16 %v669
        %v1900 = vunpack.c.l.b16 %v670
        %v1901 = vunpack.c.h.b16 %v670
        %v1902 = vunpack.c.l.b16 %v671
        %v1903 = vunpack.c.h.b16 %v671
        %v1904 = vunpack.c.l.b16 %v672
        %v1905 = vunpack.c.h.b16 %v672
        %v1906 = vunpack.c.l.b16 %v673
        %v1907 = vunpack.c.h.b16 %v673
        %v1908 = vunpack.c.l.b16 %v674
        %v1909 = vunpack.c.h.b16 %v674
        %v1910 = vunpack.c.l.b16 %v675
        %v1911 = vunpack.c.h.b16 %v675
        %v1912 = vunpack.c.l.b16 %v676
        %v1913 = vunpack.c.h.b16 %v676
        %v1914 = vunpack.c.l.b16 %v677
        %v1915 = vunpack.c.h.b16 %v677
        %v1916 = vunpack.c.l.b16 %v678
        %v1917 = vunpack.c.h.b16 %v678
        %v1918 = vunpack.c.l.b16 %v679
        %v1919 = vunpack.c.h.b16 %v679
        %v1920 = vunpack.c.l.b16 %v680
        %v1921 = vunpack.c.h.b16 %v680
        %v1922 = vunpack.c.l.b16 %v681
        %v1923 = vunpack.c.h.b16 %v681
        %v1924 = vunpack.c.l.b16 %v682
        %v1925 = vunpack.c.h.b16 %v682
        %v1926 = vunpack.c.l.b16 %v683
        %v1927 = vunpack.c.h.b16 %v683
        %v1928 = vunpack.c.l.b16 %v684
        %v1929 = vunpack.c.h.b16 %v684
        %v1930 = vunpack.c.l.b16 %v685
        %v1931 = vunpack.c.h.b16 %v685
        %v1932 = vunpack.c.l.b16 %v686
        %v1933 = vunpack.c.h.b16 %v686
        %v1934 = vunpack.c.l.b16 %v687
        %v1935 = vunpack.c.h.b16 %v687
        %v1936 = vunpack.c.l.b16 %v688
        %v1937 = vunpack.c.h.b16 %v688
        %v1938 = vunpack.c.l.b16 %v689
        %v1939 = vunpack.c.h.b16 %v689
        %v1940 = vunpack.c.l.b16 %v690
        %v1941 = vunpack.c.h.b16 %v690
        %v1942 = vunpack.c.l.b16 %v691
        %v1943 = vunpack.c.h.b16 %v691
        %v1944 = vunpack.c.l.b16 %v692
        %v1945 = vunpack.c.h.b16 %v692
        %v1946 = vunpack.c.l.b16 %v693
        %v1947 = vunpack.c.h.b16 %v693
        %v1948 = vunpack.c.l.b16 %v694
        %v1949 = vunpack.c.h.b16 %v694
        %v1950 = vunpack.c.l.b16 %v695
        %v1951 = vunpack.c.h.b16 %v695
        %v1952 = vunpack.c.l.b16 %v696
        %v1953 = vunpack.c.h.b16 %v696
        %v1954 = vunpack.c.l.b16 %v697
        %v1955 = vunpack.c.h.b16 %v697
        %v1956 = vunpack.c.l.b16 %v698
        %v1957 = vunpack.c.h.b16 %v698
        %v1958 = vunpack.c.l.b16 %v699
        %v1959 = vunpack.c.h.b16 %v699
        %v1960 = vunpack.c.l.b16 %v700
        %v1961 = vunpack.c.h.b16 %v700
        %v1962 = vunpack.c.l.b16 %v701
        %v1963 = vunpack.c.h.b16 %v701
        %v1964 = vunpack.c.l.b16 %v702
        %v1965 = vunpack.c.h.b16 %v702
        %v1966 = vunpack.c.l.b16 %v703
        %v1967 = vunpack.c.h.b16 %v703
        %v1968 = vunpack.c.l.b16 %v704
        %v1969 = vunpack.c.h.b16 %v704
        %v1970 = vunpack.c.l.b16 %v705
        %v1971 = vunpack.c.h.b16 %v705
        %v1972 = vunpack.c.l.b16 %v706
        %v1973 = vunpack.c.h.b16 %v706
        %v1974 = vunpack.c.l.b16 %v707
        %v1975 = vunpack.c.h.b16 %v707
        %v1976 = vunpack.c.l.b16 %v708
        %v1977 = vunpack.c.h.b16 %v708
        %v1978 = vunpack.c.l.b16 %v709
        %v1979 = vunpack.c.h.b16 %v709
        %v1980 = vunpack.c.l.b16 %v710
        %v1981 = vunpack.c.h.b16 %v710
        %v1982 = vunpack.c.l.b16 %v711
        %v1983 = vunpack.c.h.b16 %v711
        %v1984 = vunpack.c.l.b16 %v712
        %v1985 = vunpack.c.h.b16 %v712
        %v1986 = vunpack.c.l.b16 %v713
        %v1987 = vunpack.c.h.b16 %v713
        %v1988 = vunpack.c.l.b16 %v714
        %v1989 = vunpack.c.h.b16 %v714
        %v1990 = vunpack.c.l.b16 %v715
        %v1991 = vunpack.c.h.b16 %v715
        %v1992 = vunpack.c.l.b16 %v716
        %v1993 = vunpack.c.h.b16 %v716
        %v1994 = vunpack.c.l.b16 %v717
        %v1995 = vunpack.c.h.b16 %v717
        %v1996 = vunpack.c.l.b16 %v718
        %v1997 = vunpack.c.h.b16 %v718
        %v1998 = vunpack.c.l.b16 %v719
        %v1999 = vunpack.c.h.b16 %v719
        %v2000 = vunpack.c.l.b16 %v720
        %v2001 = vunpack.c.h.b16 %v720
        %v2002 = vunpack.c.l.b16 %v721
        %v2003 = vunpack.c.h.b16 %v721
        %v2004 = vunpack.c.l.b16 %v722
        %v2005 = vunpack.c.h.b16 %v722
        %v2006 = vunpack.c.l.b16 %v723
        %v2007 = vunpack.c.h.b16 %v723
        %v2008 = vunpack.c.l.b16 %v724
        %v2009 = vunpack.c.h.b16 %v724
        %v2010 = vunpack.c.l.b16 %v725
        %v2011 = vunpack.c.h.b16 %v725
        %v2012 = vunpack.c.l.b16 %v726
        %v2013 = vunpack.c.h.b16 %v726
        %v2014 = vunpack.c.l.b16 %v727
        %v2015 = vunpack.c.h.b16 %v727
        %v2016 = vunpack.c.l.b16 %v728
        %v2017 = vunpack.c.h.b16 %v728
        %v2018 = vunpack.c.l.b16 %v729
        %v2019 = vunpack.c.h.b16 %v729
        %v2020 = vunpack.c.l.b16 %v730
        %v2021 = vunpack.c.h.b16 %v730
        %v2022 = vunpack.c.l.b16 %v731
        %v2023 = vunpack.c.h.b16 %v731
        %v2024 = vunpack.c.l.b16 %v732
        %v2025 = vunpack.c.h.b16 %v732
        %v2026 = vunpack.c.l.b16 %v733
        %v2027 = vunpack.c.h.b16 %v733
        %v2028 = vunpack.c.l.b16 %v734
        %v2029 = vunpack.c.h.b16 %v734
        %v2030 = vunpack.c.l.b16 %v735
        %v2031 = vunpack.c.h.b16 %v735
        %v2032 = vunpack.c.l.b16 %v736
        %v2033 = vunpack.c.h.b16 %v736
        %v2034 = vunpack.c.l.b16 %v737
        %v2035 = vunpack.c.h.b16 %v737
        %v2036 = vunpack.c.l.b16 %v738
        %v2037 = vunpack.c.h.b16 %v738
        %v2038 = vunpack.c.l.b16 %v739
        %v2039 = vunpack.c.h.b16 %v739
        %v2040 = vunpack.c.l.b16 %v740
        %v2041 = vunpack.c.h.b16 %v740
        %v2042 = vunpack.c.l.b16 %v741
        %v2043 = vunpack.c.h.b16 %v741
        %v2044 = vunpack.c.l.b16 %v742
        %v2045 = vunpack.c.h.b16 %v742
        %v2046 = vunpack.c.l.b16 %v743
        %v2047 = vunpack.c.h.b16 %v743
        %v2048 = vunpack.c.l.b16 %v744
        %v2049 = vunpack.c.h.b16 %v744
        %v2050 = vunpack.c.l.b16 %v745
        %v2051 = vunpack.c.h.b16 %v745
        %v2052 = vunpack.c.l.b16 %v746
        %v2053 = vunpack.c.h.b16 %v746
        %v2054 = vunpack.c.l.b16 %v747
        %v2055 = vunpack.c.h.b16 %v747
        %v2056 = vunpack.c.l.b16 %v748
        %v2057 = vunpack.c.h.b16 %v748
        %v2058 = vunpack.c.l.b16 %v749
        %v2059 = vunpack.c.h.b16 %v749
        %v2060 = vunpack.c.l.b16 %v750
        %v2061 = vunpack.c.h.b16 %v750
        %v2062 = vunpack.c.l.b16 %v751
        %v2063 = vunpack.c.h.b16 %v751
        %v2064 = vunpack.c.l.b16 %v752
        %v2065 = vunpack.c.h.b16 %v752
        %v2066 = vunpack.c.l.b16 %v753
        %v2067 = vunpack.c.h.b16 %v753
        %v2068 = vunpack.c.l.b16 %v754
        %v2069 = vunpack.c.h.b16 %v754
        %v2070 = vunpack.c.l.b16 %v755
        %v2071 = vunpack.c.h.b16 %v755
        %v2072 = vunpack.c.l.b16 %v756
        %v2073 = vunpack.c.h.b16 %v756
        %v2074 = vunpack.c.l.b16 %v757
        %v2075 = vunpack.c.h.b16 %v757
        %v2076 = vunpack.c.l.b16 %v758
        %v2077 = vunpack.c.h.b16 %v758
        %v2078 = vunpack.c.l.b16 %v759
        %v2079 = vunpack.c.h.b16 %v759
        %v2080 = vunpack.c.l.b16 %v760
        %v2081 = vunpack.c.h.b16 %v760
        %v2082 = vunpack.c.l.b16 %v761
        %v2083 = vunpack.c.h.b16 %v761
        %v2084 = vunpack.c.l.b16 %v762
        %v2085 = vunpack.c.h.b16 %v762
        %v2086 = vunpack.c.l.b16 %v763
        %v2087 = vunpack.c.h.b16 %v763
        %v2088 = vunpack.c.l.b16 %v764
        %v2089 = vunpack.c.h.b16 %v764
        %v2090 = vunpack.c.l.b16 %v765
        %v2091 = vunpack.c.h.b16 %v765
        %v2092 = vunpack.c.l.b16 %v766
        %v2093 = vunpack.c.h.b16 %v766
        %v2094 = vunpack.c.l.b16 %v767
        %v2095 = vunpack.c.h.b16 %v767
        %v2096 = vunpack.c.l.b16 %v768
        %v2097 = vunpack.c.h.b16 %v768
        %v2098 = vunpack.c.l.b16 %v769
        %v2099 = vunpack.c.h.b16 %v769
        %v2100 = vunpack.c.l.b16 %v770
        %v2101 = vunpack.c.h.b16 %v770
        %v2102 = vunpack.c.l.b16 %v771
        %v2103 = vunpack.c.h.b16 %v771
        %v2104 = vunpack.c.l.b16 %v772
        %v2105 = vunpack.c.h.b16 %v772
        %v2106 = vunpack.c.l.b16 %v773
        %v2107 = vunpack.c.h.b16 %v773
        %v2108 = vunpack.c.l.b16 %v774
        %v2109 = vunpack.c.h.b16 %v774
        %v2110 = vunpack.c.l.b16 %v775
        %v2111 = vunpack.c.h.b16 %v775
        %v2112 = vunpack.c.l.b16 %v776
        %v2113 = vunpack.c.h.b16 %v776
        %v2114 = vunpack.c.l.b16 %v777
        %v2115 = vunpack.c.h.b16 %v777
        %v2116 = vunpack.c.l.b16 %v778
        %v2117 = vunpack.c.h.b16 %v778
        %v2118 = vunpack.c.l.b16 %v779
        %v2119 = vunpack.c.h.b16 %v779
        %v2120 = vunpack.c.l.b16 %v780
        %v2121 = vunpack.c.h.b16 %v780
        %v2122 = vunpack.c.l.b16 %v781
        %v2123 = vunpack.c.h.b16 %v781
        %v2124 = vunpack.c.l.b16 %v782
        %v2125 = vunpack.c.h.b16 %v782
        %v2126 = vunpack.c.l.b16 %v783
        %v2127 = vunpack.c.h.b16 %v783
        %v2128 = vunpack.c.l.b16 %v784
        %v2129 = vunpack.c.h.b16 %v784
        %v2130 = vunpack.c.l.b16 %v785
        %v2131 = vunpack.c.h.b16 %v785
        %v2132 = vunpack.c.l.b16 %v786
        %v2133 = vunpack.c.h.b16 %v786
        %v2134 = vunpack.c.l.b16 %v787
        %v2135 = vunpack.c.h.b16 %v787
        %v2136 = vunpack.c.l.b16 %v788
        %v2137 = vunpack.c.h.b16 %v788
        %v2138 = vunpack.c.l.b16 %v789
        %v2139 = vunpack.c.h.b16 %v789
        %v2140 = vunpack.c.l.b16 %v790
        %v2141 = vunpack.c.h.b16 %v790
        %v2142 = vunpack.c.l.b16 %v791
        %v2143 = vunpack.c.h.b16 %v791
        %v2144 = vunpack.c.l.b16 %v792
        %v2145 = vunpack.c.h.b16 %v792
        %v2146 = vunpack.c.l.b16 %v793
        %v2147 = vunpack.c.h.b16 %v793
        %v2148 = vunpack.c.l.b16 %v794
        %v2149 = vunpack.c.h.b16 %v794
        %v2150 = vunpack.c.l.b16 %v795
        %v2151 = vunpack.c.h.b16 %v795
        %v2152 = vunpack.c.l.b16 %v796
        %v2153 = vunpack.c.h.b16 %v796
        %v2154 = vunpack.c.l.b16 %v797
        %v2155 = vunpack.c.h.b16 %v797
        %v2156 = vunpack.c.l.b16 %v798
        %v2157 = vunpack.c.h.b16 %v798
        %v2158 = vunpack.c.l.b16 %v799
        %v2159 = vunpack.c.h.b16 %v799
        %v2160 = vunpack.c.l.b16 %v800
        %v2161 = vunpack.c.h.b16 %v800
        %v2162 = vunpack.c.l.b16 %v801
        %v2163 = vunpack.c.h.b16 %v801
        %v2164 = vunpack.c.l.b16 %v802
        %v2165 = vunpack.c.h.b16 %v802
        %v2166 = vunpack.c.l.b16 %v803
        %v2167 = vunpack.c.h.b16 %v803
        %v2168 = vunpack.c.l.b16 %v804
        %v2169 = vunpack.c.h.b16 %v804
        %v2170 = vunpack.c.l.b16 %v805
        %v2171 = vunpack.c.h.b16 %v805
        %v2172 = vunpack.c.l.b16 %v806
        %v2173 = vunpack.c.h.b16 %v806
        %v2174 = vunpack.c.l.b16 %v807
        %v2175 = vunpack.c.h.b16 %v807
        %v2176 = vunpack.c.l.b16 %v808
        %v2177 = vunpack.c.h.b16 %v808
        %v2178 = vunpack.c.l.b16 %v809
        %v2179 = vunpack.c.h.b16 %v809
        %v2180 = vunpack.c.l.b16 %v810
        %v2181 = vunpack.c.h.b16 %v810
        %v2182 = vunpack.c.l.b16 %v811
        %v2183 = vunpack.c.h.b16 %v811
        %v2184 = vunpack.c.l.b16 %v812
        %v2185 = vunpack.c.h.b16 %v812
        %v2186 = vunpack.c.l.b16 %v813
        %v2187 = vunpack.c.h.b16 %v813
        %v2188 = vunpack.c.l.b16 %v814
        %v2189 = vunpack.c.h.b16 %v814
        %v2190 = vunpack.c.l.b16 %v815
        %v2191 = vunpack.c.h.b16 %v815
        %v2192 = vunpack.c.l.b16 %v816
        %v2193 = vunpack.c.h.b16 %v816
        %v2194 = vunpack.c.l.b16 %v817
        %v2195 = vunpack.c.h.b16 %v817
        %v2196 = vunpack.c.l.b16 %v818
        %v2197 = vunpack.c.h.b16 %v818
        %v2198 = vunpack.c.l.b16 %v819
        %v2199 = vunpack.c.h.b16 %v819
        %v2200 = vunpack.c.l.b16 %v820
        %v2201 = vunpack.c.h.b16 %v820
        %v2202 = vunpack.c.l.b16 %v821
        %v2203 = vunpack.c.h.b16 %v821
        %v2204 = vunpack.c.l.b16 %v822
        %v2205 = vunpack.c.h.b16 %v822
        %v2206 = vunpack.c.l.b16 %v823
        %v2207 = vunpack.c.h.b16 %v823
        %v2208 = vunpack.c.l.b16 %v824
        %v2209 = vunpack.c.h.b16 %v824
        %v2210 = vunpack.c.l.b16 %v825
        %v2211 = vunpack.c.h.b16 %v825
        %v2212 = vunpack.c.l.b16 %v826
        %v2213 = vunpack.c.h.b16 %v826
        %v2214 = vunpack.c.l.b16 %v827
        %v2215 = vunpack.c.h.b16 %v827
        %v2216 = vunpack.c.l.b16 %v828
        %v2217 = vunpack.c.h.b16 %v828
        %v2218 = vunpack.c.l.b16 %v829
        %v2219 = vunpack.c.h.b16 %v829
        %v2220 = vunpack.c.l.b16 %v830
        %v2221 = vunpack.c.h.b16 %v830
        %v2222 = vunpack.c.l.b16 %v831
        %v2223 = vunpack.c.h.b16 %v831
        %v2224 = vunpack.c.l.b16 %v832
        %v2225 = vunpack.c.h.b16 %v832
        %v2226 = vunpack.c.l.b16 %v833
        %v2227 = vunpack.c.h.b16 %v833
        %v2228 = vunpack.c.l.b16 %v834
        %v2229 = vunpack.c.h.b16 %v834
        %v2230 = vunpack.c.l.b16 %v835
        %v2231 = vunpack.c.h.b16 %v835
        %v2232 = vunpack.c.l.b16 %v836
        %v2233 = vunpack.c.h.b16 %v836
        %v2234 = vunpack.c.l.b16 %v837
        %v2235 = vunpack.c.h.b16 %v837
        %v2236 = vunpack.c.l.b16 %v838
        %v2237 = vunpack.c.h.b16 %v838
        %v2238 = vunpack.c.l.b16 %v839
        %v2239 = vunpack.c.h.b16 %v839
        %v2240 = vunpack.c.l.b16 %v840
        %v2241 = vunpack.c.h.b16 %v840
        %v2242 = vunpack.c.l.b16 %v841
        %v2243 = vunpack.c.h.b16 %v841
        %v2244 = vunpack.c.l.b16 %v842
        %v2245 = vunpack.c.h.b16 %v842
        %v2246 = vunpack.c.l.b16 %v843
        %v2247 = vunpack.c.h.b16 %v843
        %v2248 = vunpack.c.l.b16 %v844
        %v2249 = vunpack.c.h.b16 %v844
        %v2250 = vunpack.c.l.b16 %v845
        %v2251 = vunpack.c.h.b16 %v845
        %v2252 = vunpack.c.l.b16 %v846
        %v2253 = vunpack.c.h.b16 %v846
        %v2254 = vunpack.c.l.b16 %v847
        %v2255 = vunpack.c.h.b16 %v847
        %v2256 = vunpack.c.l.b16 %v848
        %v2257 = vunpack.c.h.b16 %v848
        %v2258 = vunpack.c.l.b16 %v849
        %v2259 = vunpack.c.h.b16 %v849
        %v2260 = vunpack.c.l.b16 %v850
        %v2261 = vunpack.c.h.b16 %v850
        %v2262 = vunpack.c.l.b16 %v851
        %v2263 = vunpack.c.h.b16 %v851
        %v2264 = vunpack.c.l.b16 %v852
        %v2265 = vunpack.c.h.b16 %v852
        %v2266 = vunpack.c.l.b16 %v853
        %v2267 = vunpack.c.h.b16 %v853
        %v2268 = vunpack.c.l.b16 %v854
        %v2269 = vunpack.c.h.b16 %v854
        %v2270 = vunpack.c.l.b16 %v855
        %v2271 = vunpack.c.h.b16 %v855
        %v2272 = vunpack.c.l.b16 %v856
        %v2273 = vunpack.c.h.b16 %v856
        %v2274 = vunpack.c.l.b16 %v857
        %v2275 = vunpack.c.h.b16 %v857
        %v2276 = vunpack.c.l.b16 %v858
        %v2277 = vunpack.c.h.b16 %v858
        %v2278 = vunpack.c.l.b16 %v859
        %v2279 = vunpack.c.h.b16 %v859
        %v2280 = vunpack.c.l.b16 %v860
        %v2281 = vunpack.c.h.b16 %v860
        %v2282 = vunpack.c.l.b16 %v861
        %v2283 = vunpack.c.h.b16 %v861
        %v2284 = vunpack.c.l.b16 %v862
        %v2285 = vunpack.c.h.b16 %v862
        %v2286 = vunpack.c.l.b16 %v863
        %v2287 = vunpack.c.h.b16 %v863
        %v2288 = vunpack.c.l.b16 %v864
        %v2289 = vunpack.c.h.b16 %v864
        %v2290 = vunpack.c.l.b16 %v865
        %v2291 = vunpack.c.h.b16 %v865
        %v2292 = vunpack.c.l.b16 %v866
        %v2293 = vunpack.c.h.b16 %v866
        %v2294 = vunpack.c.l.b16 %v867
        %v2295 = vunpack.c.h.b16 %v867
        %v2296 = vunpack.c.l.b16 %v868
        %v2297 = vunpack.c.h.b16 %v868
        %v2298 = vunpack.c.l.b16 %v869
        %v2299 = vunpack.c.h.b16 %v869
        %v2300 = vunpack.c.l.b16 %v870
        %v2301 = vunpack.c.h.b16 %v870
        %v2302 = vunpack.c.l.b16 %v871
        %v2303 = vunpack.c.h.b16 %v871
        %v2304 = vunpack.c.l.b16 %v872
        %v2305 = vunpack.c.h.b16 %v872
        %v2306 = vunpack.c.l.b16 %v873
        %v2307 = vunpack.c.h.b16 %v873
        %v2308 = vunpack.c.l.b16 %v874
        %v2309 = vunpack.c.h.b16 %v874
        %v2310 = vunpack.c.l.b16 %v875
        %v2311 = vunpack.c.h.b16 %v875
        %v2312 = vunpack.c.l.b16 %v876
        %v2313 = vunpack.c.h.b16 %v876
        %v2314 = vunpack.c.l.b16 %v877
        %v2315 = vunpack.c.h.b16 %v877
        %v2316 = vunpack.c.l.b16 %v878
        %v2317 = vunpack.c.h.b16 %v878
        %v2318 = vunpack.c.l.b16 %v879
        %v2319 = vunpack.c.h.b16 %v879
        %v2320 = vunpack.c.l.b16 %v880
        %v2321 = vunpack.c.h.b16 %v880
        %v2322 = vunpack.c.l.b16 %v881
        %v2323 = vunpack.c.h.b16 %v881
        %v2324 = vunpack.c.l.b16 %v882
        %v2325 = vunpack.c.h.b16 %v882
        %v2326 = vunpack.c.l.b16 %v883
        %v2327 = vunpack.c.h.b16 %v883
        %v2328 = vunpack.c.l.b16 %v884
        %v2329 = vunpack.c.h.b16 %v884
        %v2330 = vunpack.c.l.b16 %v885
        %v2331 = vunpack.c.h.b16 %v885
        %v2332 = vunpack.c.l.b16 %v886
        %v2333 = vunpack.c.h.b16 %v886
        %v2334 = vunpack.c.l.b16 %v887
        %v2335 = vunpack.c.h.b16 %v887
        %v2336 = vunpack.c.l.b16 %v888
        %v2337 = vunpack.c.h.b16 %v888
        %v2338 = vunpack.c.l.b16 %v889
        %v2339 = vunpack.c.h.b16 %v889
        %v2340 = vunpack.c.l.b16 %v890
        %v2341 = vunpack.c.h.b16 %v890
        %v2342 = vunpack.c.l.b16 %v891
        %v2343 = vunpack.c.h.b16 %v891
        %v2344 = vunpack.c.l.b16 %v892
        %v2345 = vunpack.c.h.b16 %v892
        %v2346 = vunpack.c.l.b16 %v893
        %v2347 = vunpack.c.h.b16 %v893
        %v2348 = vunpack.c.l.b16 %v894
        %v2349 = vunpack.c.h.b16 %v894
        %v2350 = vunpack.c.l.b16 %v895
        %v2351 = vunpack.c.h.b16 %v895
        %v2352 = vunpack.c.l.b16 %v896
        %v2353 = vunpack.c.h.b16 %v896
        %v2354 = vunpack.c.l.b16 %v897
        %v2355 = vunpack.c.h.b16 %v897
        %v2356 = vunpack.c.l.b16 %v898
        %v2357 = vunpack.c.h.b16 %v898
        %v2358 = vunpack.c.l.b16 %v899
        %v2359 = vunpack.c.h.b16 %v899
        %v2360 = vunpack.c.l.b16 %v900
        %v2361 = vunpack.c.h.b16 %v900
        %v2362 = vunpack.c.l.b16 %v901
        %v2363 = vunpack.c.h.b16 %v901
        %v2364 = vunpack.c.l.b16 %v902
        %v2365 = vunpack.c.h.b16 %v902
        %v2366 = vunpack.c.l.b16 %v903
        %v2367 = vunpack.c.h.b16 %v903
        %v2368 = vunpack.c.l.b16 %v904
        %v2369 = vunpack.c.h.b16 %v904
        %v2370 = vunpack.c.l.b16 %v905
        %v2371 = vunpack.c.h.b16 %v905
        %v2372 = vunpack.c.l.b16 %v906
        %v2373 = vunpack.c.h.b16 %v906
        %v2374 = vunpack.c.l.b16 %v907
        %v2375 = vunpack.c.h.b16 %v907
        %v2376 = vunpack.c.l.b16 %v908
        %v2377 = vunpack.c.h.b16 %v908
        %v2378 = vunpack.c.l.b16 %v909
        %v2379 = vunpack.c.h.b16 %v909
        %v2380 = vunpack.c.l.b16 %v910
        %v2381 = vunpack.c.h.b16 %v910
        %v2382 = vunpack.c.l.b16 %v911
        %v2383 = vunpack.c.h.b16 %v911
        %v2384 = vunpack.c.l.b16 %v912
        %v2385 = vunpack.c.h.b16 %v912
        %v2386 = vunpack.c.l.b16 %v913
        %v2387 = vunpack.c.h.b16 %v913
        %v2388 = vunpack.c.l.b16 %v914
        %v2389 = vunpack.c.h.b16 %v914
        %v2390 = vunpack.c.l.b16 %v915
        %v2391 = vunpack.c.h.b16 %v915
        %v2392 = vunpack.c.l.b16 %v916
        %v2393 = vunpack.c.h.b16 %v916
        %v2394 = vunpack.c.l.b16 %v917
        %v2395 = vunpack.c.h.b16 %v917
        %v2396 = vunpack.c.l.b16 %v918
        %v2397 = vunpack.c.h.b16 %v918
        %v2398 = vunpack.c.l.b16 %v919
        %v2399 = vunpack.c.h.b16 %v919
        %v2400 = vunpack.c.l.b16 %v920
        %v2401 = vunpack.c.h.b16 %v920
        %v2402 = vunpack.c.l.b16 %v921
        %v2403 = vunpack.c.h.b16 %v921
        %v2404 = vunpack.c.l.b16 %v922
        %v2405 = vunpack.c.h.b16 %v922
        %v2406 = vunpack.c.l.b16 %v923
        %v2407 = vunpack.c.h.b16 %v923
        %v2408 = vunpack.c.l.b16 %v924
        %v2409 = vunpack.c.h.b16 %v924
        %v2410 = vunpack.c.l.b16 %v925
        %v2411 = vunpack.c.h.b16 %v925
        %v2412 = vunpack.c.l.b16 %v926
        %v2413 = vunpack.c.h.b16 %v926
        %v2414 = vunpack.c.l.b16 %v927
        %v2415 = vunpack.c.h.b16 %v927
        %v2416 = vunpack.c.l.b16 %v928
        %v2417 = vunpack.c.h.b16 %v928
        %v2418 = vunpack.c.l.b16 %v929
        %v2419 = vunpack.c.h.b16 %v929
        %v2420 = vunpack.c.l.b16 %v930
        %v2421 = vunpack.c.h.b16 %v930
        %v2422 = vunpack.c.l.b16 %v931
        %v2423 = vunpack.c.h.b16 %v931
        %v2424 = vunpack.c.l.b16 %v932
        %v2425 = vunpack.c.h.b16 %v932
        %v2426 = vunpack.c.l.b16 %v933
        %v2427 = vunpack.c.h.b16 %v933
        %v2428 = vunpack.c.l.b16 %v934
        %v2429 = vunpack.c.h.b16 %v934
        %v2430 = vunpack.c.l.b16 %v935
        %v2431 = vunpack.c.h.b16 %v935
        %v2432 = vunpack.c.l.b16 %v936
        %v2433 = vunpack.c.h.b16 %v936
        %v2434 = vunpack.c.l.b16 %v937
        %v2435 = vunpack.c.h.b16 %v937
        %v2436 = vunpack.c.l.b16 %v938
        %v2437 = vunpack.c.h.b16 %v938
        %v2438 = vunpack.c.l.b16 %v939
        %v2439 = vunpack.c.h.b16 %v939
        %v2440 = vunpack.c.l.b16 %v940
        %v2441 = vunpack.c.h.b16 %v940
        %v2442 = vunpack.c.l.b16 %v941
        %v2443 = vunpack.c.h.b16 %v941
        %v2444 = vunpack.c.l.b16 %v942
        %v2445 = vunpack.c.h.b16 %v942
        %v2446 = vunpack.c.l.b16 %v943
        %v2447 = vunpack.c.h.b16 %v943
        %v2448 = vunpack.c.l.b16 %v944
        %v2449 = vunpack.c.h.b16 %v944
        %v2450 = vunpack.c.l.b16 %v945
        %v2451 = vunpack.c.h.b16 %v945
        %v2452 = vunpack.c.l.b16 %v946
        %v2453 = vunpack.c.h.b16 %v946
        %v2454 = vunpack.c.l.b16 %v947
        %v2455 = vunpack.c.h.b16 %v947
        %v2456 = vunpack.c.l.b16 %v948
        %v2457 = vunpack.c.h.b16 %v948
        %v2458 = vunpack.c.l.b16 %v949
        %v2459 = vunpack.c.h.b16 %v949
        %v2460 = vunpack.c.l.b16 %v950
        %v2461 = vunpack.c.h.b16 %v950
        %v2462 = vunpack.c.l.b16 %v951
        %v2463 = vunpack.c.h.b16 %v951
        %v2464 = vunpack.c.l.b16 %v952
        %v2465 = vunpack.c.h.b16 %v952
        %v2466 = vunpack.c.l.b16 %v953
        %v2467 = vunpack.c.h.b16 %v953
        %v2468 = vunpack.c.l.b16 %v954
        %v2469 = vunpack.c.h.b16 %v954
        %v2470 = vunpack.c.l.b16 %v955
        %v2471 = vunpack.c.h.b16 %v955
        %v2472 = vunpack.c.l.b16 %v956
        %v2473 = vunpack.c.h.b16 %v956
        %v2474 = vunpack.c.l.b16 %v957
        %v2475 = vunpack.c.h.b16 %v957
        %v2476 = vunpack.c.l.b16 %v958
        %v2477 = vunpack.c.h.b16 %v958
        %v2478 = vunpack.c.l.b16 %v959
        %v2479 = vunpack.c.h.b16 %v959
        %v2480 = vunpack.c.l.b16 %v960
        %v2481 = vunpack.c.h.b16 %v960
        %v2482 = vunpack.c.l.b16 %v961
        %v2483 = vunpack.c.h.b16 %v961
        %v2484 = vunpack.c.l.b16 %v962
        %v2485 = vunpack.c.h.b16 %v962
        %v2486 = vunpack.c.l.b16 %v963
        %v2487 = vunpack.c.h.b16 %v963
        %v2488 = vunpack.c.l.b16 %v964
        %v2489 = vunpack.c.h.b16 %v964
        %v2490 = vunpack.c.l.b16 %v965
        %v2491 = vunpack.c.h.b16 %v965
        %v2492 = vunpack.c.l.b16 %v966
        %v2493 = vunpack.c.h.b16 %v966
        %v2494 = vunpack.c.l.b16 %v967
        %v2495 = vunpack.c.h.b16 %v967
        %v2496 = vunpack.c.l.b16 %v968
        %v2497 = vunpack.c.h.b16 %v968
        %v2498 = vunpack.c.l.b16 %v969
        %v2499 = vunpack.c.h.b16 %v969
        %v2500 = vunpack.c.l.b16 %v970
        %v2501 = vunpack.c.h.b16 %v970
        %v2502 = vunpack.c.l.b16 %v971
        %v2503 = vunpack.c.h.b16 %v971
        %v2504 = vunpack.c.l.b16 %v972
        %v2505 = vunpack.c.h.b16 %v972
        %v2506 = vunpack.c.l.b16 %v973
        %v2507 = vunpack.c.h.b16 %v973
        %v2508 = vunpack.c.l.b16 %v974
        %v2509 = vunpack.c.h.b16 %v974
        %v2510 = vunpack.c.l.b16 %v975
        %v2511 = vunpack.c.h.b16 %v975
        %v2512 = vunpack.c.l.b16 %v976
        %v2513 = vunpack.c.h.b16 %v976
        %v2514 = vunpack.c.l.b16 %v977
        %v2515 = vunpack.c.h.b16 %v977
        %v2516 = vunpack.c.l.b16 %v978
        %v2517 = vunpack.c.h.b16 %v978
        %v2518 = vunpack.c.l.b16 %v979
        %v2519 = vunpack.c.h.b16 %v979
        %v2520 = vunpack.c.l.b16 %v980
        %v2521 = vunpack.c.h.b16 %v980
        %v2522 = vunpack.c.l.b16 %v981
        %v2523 = vunpack.c.h.b16 %v981
        %v2524 = vunpack.c.l.b16 %v982
        %v2525 = vunpack.c.h.b16 %v982
        %v2526 = vunpack.c.l.b16 %v983
        %v2527 = vunpack.c.h.b16 %v983
        %v2528 = vunpack.c.l.b16 %v984
        %v2529 = vunpack.c.h.b16 %v984
        %v2530 = vunpack.c.l.b16 %v985
        %v2531 = vunpack.c.h.b16 %v985
        %v2532 = vunpack.c.l.b16 %v986
        %v2533 = vunpack.c.h.b16 %v986
        %v2534 = vunpack.c.l.b16 %v987
        %v2535 = vunpack.c.h.b16 %v987
        %v2536 = vunpack.c.l.b16 %v988
        %v2537 = vunpack.c.h.b16 %v988
        %v2538 = vunpack.c.l.b16 %v989
        %v2539 = vunpack.c.h.b16 %v989
        %v2540 = vunpack.c.l.b16 %v990
        %v2541 = vunpack.c.h.b16 %v990
        %v2542 = vunpack.c.l.b16 %v991
        %v2543 = vunpack.c.h.b16 %v991
        %v2544 = vunpack.c.l.b16 %v992
        %v2545 = vunpack.c.h.b16 %v992
        %v2546 = vunpack.c.l.b16 %v993
        %v2547 = vunpack.c.h.b16 %v993
        %v2548 = vunpack.c.l.b16 %v994
        %v2549 = vunpack.c.h.b16 %v994
        %v2550 = vunpack.c.l.b16 %v995
        %v2551 = vunpack.c.h.b16 %v995
        %v2552 = vunpack.c.l.b16 %v996
        %v2553 = vunpack.c.h.b16 %v996
        %v2554 = vunpack.c.l.b16 %v997
        %v2555 = vunpack.c.h.b16 %v997
        %v2556 = vunpack.c.l.b16 %v998
        %v2557 = vunpack.c.h.b16 %v998
        %v2558 = vunpack.c.l.b16 %v999
        %v2559 = vunpack.c.h.b16 %v999
        %v2560 = vunpack.c.l.b16 %v1000
        %v2561 = vunpack.c.h.b16 %v1000
        %v2562 = vunpack.c.l.b16 %v1001
        %v2563 = vunpack.c.h.b16 %v1001
        %v2564 = vunpack.c.l.b16 %v1002
        %v2565 = vunpack.c.h.b16 %v1002
        %v2566 = vunpack.c.l.b16 %v1003
        %v2567 = vunpack.c.h.b16 %v1003
        %v2568 = vunpack.c.l.b16 %v1004
        %v2569 = vunpack.c.h.b16 %v1004
        %v2570 = vunpack.c.l.b16 %v1005
        %v2571 = vunpack.c.h.b16 %v1005
        %v2572 = vunpack.c.l.b16 %v1006
        %v2573 = vunpack.c.h.b16 %v1006
        %v2574 = vunpack.c.l.b16 %v1007
        %v2575 = vunpack.c.h.b16 %v1007
        %v2576 = vunpack.c.l.b16 %v1008
        %v2577 = vunpack.c.h.b16 %v1008
        %v2578 = vunpack.c.l.b16 %v1009
        %v2579 = vunpack.c.h.b16 %v1009
        %v2580 = vunpack.c.l.b16 %v1010
        %v2581 = vunpack.c.h.b16 %v1010
        %v2582 = vunpack.c.l.b16 %v1011
        %v2583 = vunpack.c.h.b16 %v1011
        %v2584 = vunpack.c.l.b16 %v1012
        %v2585 = vunpack.c.h.b16 %v1012
        %v2586 = vunpack.c.l.b16 %v1013
        %v2587 = vunpack.c.h.b16 %v1013
        %v2588 = vunpack.c.l.b16 %v1014
        %v2589 = vunpack.c.h.b16 %v1014
        %v2590 = vunpack.c.l.b16 %v1015
        %v2591 = vunpack.c.h.b16 %v1015
        %v2592 = vunpack.c.l.b16 %v1016
        %v2593 = vunpack.c.h.b16 %v1016
        %v2594 = vunpack.c.l.b16 %v1017
        %v2595 = vunpack.c.h.b16 %v1017
        %v2596 = vunpack.c.l.b16 %v1018
        %v2597 = vunpack.c.h.b16 %v1018
        %v2598 = vunpack.c.l.b16 %v1019
        %v2599 = vunpack.c.h.b16 %v1019
        %v2600 = vunpack.c.l.b16 %v1020
        %v2601 = vunpack.c.h.b16 %v1020
        %v2602 = vunpack.c.l.b16 %v1021
        %v2603 = vunpack.c.h.b16 %v1021
        %v2604 = vunpack.c.l.b16 %v1022
        %v2605 = vunpack.c.h.b16 %v1022
        %v2606 = vunpack.c.l.b16 %v1023
        %v2607 = vunpack.c.h.b16 %v1023
        %v2608 = vunpack.c.l.b16 %v1024
        %v2609 = vunpack.c.h.b16 %v1024
        %v2610 = vunpack.c.l.b16 %v1025
        %v2611 = vunpack.c.h.b16 %v1025
        %v2612 = vunpack.c.l.b16 %v1026
        %v2613 = vunpack.c.h.b16 %v1026
        %v2614 = vunpack.c.l.b16 %v1027
        %v2615 = vunpack.c.h.b16 %v1027
        %v2616 = vunpack.c.l.b16 %v1028
        %v2617 = vunpack.c.h.b16 %v1028
        %v2618 = vunpack.c.l.b16 %v1029
        %v2619 = vunpack.c.h.b16 %v1029
        %v2620 = vunpack.c.l.b16 %v1030
        %v2621 = vunpack.c.h.b16 %v1030
        %v2622 = vunpack.c.l.b16 %v1031
        %v2623 = vunpack.c.h.b16 %v1031
        %v2624 = vunpack.c.l.b16 %v1032
        %v2625 = vunpack.c.h.b16 %v1032
        %v2626 = vunpack.c.l.b16 %v1033
        %v2627 = vunpack.c.h.b16 %v1033
        %v2628 = vunpack.c.l.b16 %v1034
        %v2629 = vunpack.c.h.b16 %v1034
        %v2630 = vunpack.c.l.b16 %v1035
        %v2631 = vunpack.c.h.b16 %v1035
        %v2632 = vunpack.c.l.b16 %v1036
        %v2633 = vunpack.c.h.b16 %v1036
        %v2634 = vunpack.c.l.b16 %v1037
        %v2635 = vunpack.c.h.b16 %v1037
        %v2636 = vunpack.c.l.b16 %v1038
        %v2637 = vunpack.c.h.b16 %v1038
        %v2638 = vunpack.c.l.b16 %v1039
        %v2639 = vunpack.c.h.b16 %v1039
        %v2640 = vunpack.c.l.b16 %v1040
        %v2641 = vunpack.c.h.b16 %v1040
        %v2642 = vunpack.c.l.b16 %v1041
        %v2643 = vunpack.c.h.b16 %v1041
        %v2644 = vpack.c.b16 %v1624, %v1620
        %v2645 = vpack.c.b16 %v1625, %v1621
        %v2646 = vpack.c.b16 %v1626, %v1622
        %v2647 = vpack.c.b16 %v1627, %v1623
        %v2648 = vpack.c.b16 %v1632, %v1628
        %v2649 = vpack.c.b16 %v1633, %v1629
        %v2650 = vpack.c.b16 %v1634, %v1630
        %v2651 = vpack.c.b16 %v1635, %v1631
        %v2652 = vpack.c.b16 %v1640, %v1636
        %v2653 = vpack.c.b16 %v1641, %v1637
        %v2654 = vpack.c.b16 %v1642, %v1638
        %v2655 = vpack.c.b16 %v1643, %v1639
        %v2656 = vpack.c.b16 %v1648, %v1644
        %v2657 = vpack.c.b16 %v1649, %v1645
        %v2658 = vpack.c.b16 %v1650, %v1646
        %v2659 = vpack.c.b16 %v1651, %v1647
        %v2660 = vpack.c.b16 %v1656, %v1652
        %v2661 = vpack.c.b16 %v1657, %v1653
        %v2662 = vpack.c.b16 %v1658, %v1654
        %v2663 = vpack.c.b16 %v1659, %v1655
        %v2664 = vpack.c.b16 %v1664, %v1660
        %v2665 = vpack.c.b16 %v1665, %v1661
        %v2666 = vpack.c.b16 %v1666, %v1662
        %v2667 = vpack.c.b16 %v1667, %v1663
        %v2668 = vpack.c.b16 %v1672, %v1668
        %v2669 = vpack.c.b16 %v1673, %v1669
        %v2670 = vpack.c.b16 %v1674, %v1670
        %v2671 = vpack.c.b16 %v1675, %v1671
        %v2672 = vpack.c.b16 %v1680, %v1676
        %v2673 = vpack.c.b16 %v1681, %v1677
        %v2674 = vpack.c.b16 %v1682, %v1678
        %v2675 = vpack.c.b16 %v1683, %v1679
        %v2676 = vpack.c.b16 %v1688, %v1684
        %v2677 = vpack.c.b16 %v1689, %v1685
        %v2678 = vpack.c.b16 %v1690, %v1686
        %v2679 = vpack.c.b16 %v1691, %v1687
        %v2680 = vpack.c.b16 %v1696, %v1692
        %v2681 = vpack.c.b16 %v1697, %v1693
        %v2682 = vpack.c.b16 %v1698, %v1694
        %v2683 = vpack.c.b16 %v1699, %v1695
        %v2684 = vpack.c.b16 %v1704, %v1700
        %v2685 = vpack.c.b16 %v1705, %v1701
        %v2686 = vpack.c.b16 %v1706, %v1702
        %v2687 = vpack.c.b16 %v1707, %v1703
        %v2688 = vpack.c.b16 %v1712, %v1708
        %v2689 = vpack.c.b16 %v1713, %v1709
        %v2690 = vpack.c.b16 %v1714, %v1710
        %v2691 = vpack.c.b16 %v1715, %v1711
        %v2692 = vpack.c.b16 %v1720, %v1716
        %v2693 = vpack.c.b16 %v1721, %v1717
        %v2694 = vpack.c.b16 %v1722, %v1718
        %v2695 = vpack.c.b16 %v1723, %v1719
        %v2696 = vpack.c.b16 %v1728, %v1724
        %v2697 = vpack.c.b16 %v1729, %v1725
        %v2698 = vpack.c.b16 %v1730, %v1726
        %v2699 = vpack.c.b16 %v1731, %v1727
        %v2700 = vpack.c.b16 %v1736, %v1732
        %v2701 = vpack.c.b16 %v1737, %v1733
        %v2702 = vpack.c.b16 %v1738, %v1734
        %v2703 = vpack.c.b16 %v1739, %v1735
        %v2704 = vpack.c.b16 %v1744, %v1740
        %v2705 = vpack.c.b16 %v1745, %v1741
        %v2706 = vpack.c.b16 %v1746, %v1742
        %v2707 = vpack.c.b16 %v1747, %v1743
        %v2708 = vpack.c.b16 %v1752, %v1748
        %v2709 = vpack.c.b16 %v1753, %v1749
        %v2710 = vpack.c.b16 %v1754, %v1750
        %v2711 = vpack.c.b16 %v1755, %v1751
        %v2712 = vpack.c.b16 %v1760, %v1756
        %v2713 = vpack.c.b16 %v1761, %v1757
        %v2714 = vpack.c.b16 %v1762, %v1758
        %v2715 = vpack.c.b16 %v1763, %v1759
        %v2716 = vpack.c.b16 %v1768, %v1764
        %v2717 = vpack.c.b16 %v1769, %v1765
        %v2718 = vpack.c.b16 %v1770, %v1766
        %v2719 = vpack.c.b16 %v1771, %v1767
        %v2720 = vpack.c.b16 %v1776, %v1772
        %v2721 = vpack.c.b16 %v1777, %v1773
        %v2722 = vpack.c.b16 %v1778, %v1774
        %v2723 = vpack.c.b16 %v1779, %v1775
        %v2724 = vpack.c.b16 %v1784, %v1780
        %v2725 = vpack.c.b16 %v1785, %v1781
        %v2726 = vpack.c.b16 %v1786, %v1782
        %v2727 = vpack.c.b16 %v1787, %v1783
        %v2728 = vpack.c.b16 %v1792, %v1788
        %v2729 = vpack.c.b16 %v1793, %v1789
        %v2730 = vpack.c.b16 %v1794, %v1790
        %v2731 = vpack.c.b16 %v1795, %v1791
        %v2732 = vpack.c.b16 %v1800, %v1796
        %v2733 = vpack.c.b16 %v1801, %v1797
        %v2734 = vpack.c.b16 %v1802, %v1798
        %v2735 = vpack.c.b16 %v1803, %v1799
        %v2736 = vpack.c.b16 %v1808, %v1804
        %v2737 = vpack.c.b16 %v1809, %v1805
        %v2738 = vpack.c.b16 %v1810, %v1806
        %v2739 = vpack.c.b16 %v1811, %v1807
        %v2740 = vpack.c.b16 %v1816, %v1812
        %v2741 = vpack.c.b16 %v1817, %v1813
        %v2742 = vpack.c.b16 %v1818, %v1814
        %v2743 = vpack.c.b16 %v1819, %v1815
        %v2744 = vpack.c.b16 %v1824, %v1820
        %v2745 = vpack.c.b16 %v1825, %v1821
        %v2746 = vpack.c.b16 %v1826, %v1822
        %v2747 = vpack.c.b16 %v1827, %v1823
        %v2748 = vpack.c.b16 %v1832, %v1828
        %v2749 = vpack.c.b16 %v1833, %v1829
        %v2750 = vpack.c.b16 %v1834, %v1830
        %v2751 = vpack.c.b16 %v1835, %v1831
        %v2752 = vpack.c.b16 %v1840, %v1836
        %v2753 = vpack.c.b16 %v1841, %v1837
        %v2754 = vpack.c.b16 %v1842, %v1838
        %v2755 = vpack.c.b16 %v1843, %v1839
        %v2756 = vpack.c.b16 %v1848, %v1844
        %v2757 = vpack.c.b16 %v1849, %v1845
        %v2758 = vpack.c.b16 %v1850, %v1846
        %v2759 = vpack.c.b16 %v1851, %v1847
        %v2760 = vpack.c.b16 %v1856, %v1852
        %v2761 = vpack.c.b16 %v1857, %v1853
        %v2762 = vpack.c.b16 %v1858, %v1854
        %v2763 = vpack.c.b16 %v1859, %v1855
        %v2764 = vpack.c.b16 %v1864, %v1860
        %v2765 = vpack.c.b16 %v1865, %v1861
        %v2766 = vpack.c.b16 %v1866, %v1862
        %v2767 = vpack.c.b16 %v1867, %v1863
        %v2768 = vpack.c.b16 %v1872, %v1868
        %v2769 = vpack.c.b16 %v1873, %v1869
        %v2770 = vpack.c.b16 %v1874, %v1870
        %v2771 = vpack.c.b16 %v1875, %v1871
        %v2772 = vpack.c.b16 %v1880, %v1876
        %v2773 = vpack.c.b16 %v1881, %v1877
        %v2774 = vpack.c.b16 %v1882, %v1878
        %v2775 = vpack.c.b16 %v1883, %v1879
        %v2776 = vpack.c.b16 %v1888, %v1884
        %v2777 = vpack.c.b16 %v1889, %v1885
        %v2778 = vpack.c.b16 %v1890, %v1886
        %v2779 = vpack.c.b16 %v1891, %v1887
        %v2780 = vpack.c.b16 %v1896, %v1892
        %v2781 = vpack.c.b16 %v1897, %v1893
        %v2782 = vpack.c.b16 %v1898, %v1894
        %v2783 = vpack.c.b16 %v1899, %v1895
        %v2784 = vpack.c.b16 %v1904, %v1900
        %v2785 = vpack.c.b16 %v1905, %v1901
        %v2786 = vpack.c.b16 %v1906, %v1902
        %v2787 = vpack.c.b16 %v1907, %v1903
        %v2788 = vpack.c.b16 %v1912, %v1908
        %v2789 = vpack.c.b16 %v1913, %v1909
        %v2790 = vpack.c.b16 %v1914, %v1910
        %v2791 = vpack.c.b16 %v1915, %v1911
        %v2792 = vpack.c.b16 %v1920, %v1916
        %v2793 = vpack.c.b16 %v1921, %v1917
        %v2794 = vpack.c.b16 %v1922, %v1918
        %v2795 = vpack.c.b16 %v1923, %v1919
        %v2796 = vpack.c.b16 %v1928, %v1924
        %v2797 = vpack.c.b16 %v1929, %v1925
        %v2798 = vpack.c.b16 %v1930, %v1926
        %v2799 = vpack.c.b16 %v1931, %v1927
        %v2800 = vpack.c.b16 %v1936, %v1932
        %v2801 = vpack.c.b16 %v1937, %v1933
        %v2802 = vpack.c.b16 %v1938, %v1934
        %v2803 = vpack.c.b16 %v1939, %v1935
        %v2804 = vpack.c.b16 %v1944, %v1940
        %v2805 = vpack.c.b16 %v1945, %v1941
        %v2806 = vpack.c.b16 %v1946, %v1942
        %v2807 = vpack.c.b16 %v1947, %v1943
        %v2808 = vpack.c.b16 %v1952, %v1948
        %v2809 = vpack.c.b16 %v1953, %v1949
        %v2810 = vpack.c.b16 %v1954, %v1950
        %v2811 = vpack.c.b16 %v1955, %v1951
        %v2812 = vpack.c.b16 %v1960, %v1956
        %v2813 = vpack.c.b16 %v1961, %v1957
        %v2814 = vpack.c.b16 %v1962, %v1958
        %v2815 = vpack.c.b16 %v1963, %v1959
        %v2816 = vpack.c.b16 %v1968, %v1964
        %v2817 = vpack.c.b16 %v1969, %v1965
        %v2818 = vpack.c.b16 %v1970, %v1966
        %v2819 = vpack.c.b16 %v1971, %v1967
        %v2820 = vpack.c.b16 %v1976, %v1972
        %v2821 = vpack.c.b16 %v1977, %v1973
        %v2822 = vpack.c.b16 %v1978, %v1974
        %v2823 = vpack.c.b16 %v1979, %v1975
        %v2824 = vpack.c.b16 %v1984, %v1980
        %v2825 = vpack.c.b16 %v1985, %v1981
        %v2826 = vpack.c.b16 %v1986, %v1982
        %v2827 = vpack.c.b16 %v1987, %v1983
        %v2828 = vpack.c.b16 %v1992, %v1988
        %v2829 = vpack.c.b16 %v1993, %v1989
        %v2830 = vpack.c.b16 %v1994, %v1990
        %v2831 = vpack.c.b16 %v1995, %v1991
        %v2832 = vpack.c.b16 %v2000, %v1996
        %v2833 = vpack.c.b16 %v2001, %v1997
        %v2834 = vpack.c.b16 %v2002, %v1998
        %v2835 = vpack.c.b16 %v2003, %v1999
        %v2836 = vpack.c.b16 %v2008, %v2004
        %v2837 = vpack.c.b16 %v2009, %v2005
        %v2838 = vpack.c.b16 %v2010, %v2006
        %v2839 = vpack.c.b16 %v2011, %v2007
        %v2840 = vpack.c.b16 %v2016, %v2012
        %v2841 = vpack.c.b16 %v2017, %v2013
        %v2842 = vpack.c.b16 %v2018, %v2014
        %v2843 = vpack.c.b16 %v2019, %v2015
        %v2844 = vpack.c.b16 %v2024, %v2020
        %v2845 = vpack.c.b16 %v2025, %v2021
        %v2846 = vpack.c.b16 %v2026, %v2022
        %v2847 = vpack.c.b16 %v2027, %v2023
        %v2848 = vpack.c.b16 %v2032, %v2028
        %v2849 = vpack.c.b16 %v2033, %v2029
        %v2850 = vpack.c.b16 %v2034, %v2030
        %v2851 = vpack.c.b16 %v2035, %v2031
        %v2852 = vpack.c.b16 %v2040, %v2036
        %v2853 = vpack.c.b16 %v2041, %v2037
        %v2854 = vpack.c.b16 %v2042, %v2038
        %v2855 = vpack.c.b16 %v2043, %v2039
        %v2856 = vpack.c.b16 %v2048, %v2044
        %v2857 = vpack.c.b16 %v2049, %v2045
        %v2858 = vpack.c.b16 %v2050, %v2046
        %v2859 = vpack.c.b16 %v2051, %v2047
        %v2860 = vpack.c.b16 %v2056, %v2052
        %v2861 = vpack.c.b16 %v2057, %v2053
        %v2862 = vpack.c.b16 %v2058, %v2054
        %v2863 = vpack.c.b16 %v2059, %v2055
        %v2864 = vpack.c.b16 %v2064, %v2060
        %v2865 = vpack.c.b16 %v2065, %v2061
        %v2866 = vpack.c.b16 %v2066, %v2062
        %v2867 = vpack.c.b16 %v2067, %v2063
        %v2868 = vpack.c.b16 %v2072, %v2068
        %v2869 = vpack.c.b16 %v2073, %v2069
        %v2870 = vpack.c.b16 %v2074, %v2070
        %v2871 = vpack.c.b16 %v2075, %v2071
        %v2872 = vpack.c.b16 %v2080, %v2076
        %v2873 = vpack.c.b16 %v2081, %v2077
        %v2874 = vpack.c.b16 %v2082, %v2078
        %v2875 = vpack.c.b16 %v2083, %v2079
        %v2876 = vpack.c.b16 %v2088, %v2084
        %v2877 = vpack.c.b16 %v2089, %v2085
        %v2878 = vpack.c.b16 %v2090, %v2086
        %v2879 = vpack.c.b16 %v2091, %v2087
        %v2880 = vpack.c.b16 %v2096, %v2092
        %v2881 = vpack.c.b16 %v2097, %v2093
        %v2882 = vpack.c.b16 %v2098, %v2094
        %v2883 = vpack.c.b16 %v2099, %v2095
        %v2884 = vpack.c.b16 %v2104, %v2100
        %v2885 = vpack.c.b16 %v2105, %v2101
        %v2886 = vpack.c.b16 %v2106, %v2102
        %v2887 = vpack.c.b16 %v2107, %v2103
        %v2888 = vpack.c.b16 %v2112, %v2108
        %v2889 = vpack.c.b16 %v2113, %v2109
        %v2890 = vpack.c.b16 %v2114, %v2110
        %v2891 = vpack.c.b16 %v2115, %v2111
        %v2892 = vpack.c.b16 %v2120, %v2116
        %v2893 = vpack.c.b16 %v2121, %v2117
        %v2894 = vpack.c.b16 %v2122, %v2118
        %v2895 = vpack.c.b16 %v2123, %v2119
        %v2896 = vpack.c.b16 %v2128, %v2124
        %v2897 = vpack.c.b16 %v2129, %v2125
        %v2898 = vpack.c.b16 %v2130, %v2126
        %v2899 = vpack.c.b16 %v2131, %v2127
        %v2900 = vpack.c.b16 %v2136, %v2132
        %v2901 = vpack.c.b16 %v2137, %v2133
        %v2902 = vpack.c.b16 %v2138, %v2134
        %v2903 = vpack.c.b16 %v2139, %v2135
        %v2904 = vpack.c.b16 %v2144, %v2140
        %v2905 = vpack.c.b16 %v2145, %v2141
        %v2906 = vpack.c.b16 %v2146, %v2142
        %v2907 = vpack.c.b16 %v2147, %v2143
        %v2908 = vpack.c.b16 %v2152, %v2148
        %v2909 = vpack.c.b16 %v2153, %v2149
        %v2910 = vpack.c.b16 %v2154, %v2150
        %v2911 = vpack.c.b16 %v2155, %v2151
        %v2912 = vpack.c.b16 %v2160, %v2156
        %v2913 = vpack.c.b16 %v2161, %v2157
        %v2914 = vpack.c.b16 %v2162, %v2158
        %v2915 = vpack.c.b16 %v2163, %v2159
        %v2916 = vpack.c.b16 %v2168, %v2164
        %v2917 = vpack.c.b16 %v2169, %v2165
        %v2918 = vpack.c.b16 %v2170, %v2166
        %v2919 = vpack.c.b16 %v2171, %v2167
        %v2920 = vpack.c.b16 %v2176, %v2172
        %v2921 = vpack.c.b16 %v2177, %v2173
        %v2922 = vpack.c.b16 %v2178, %v2174
        %v2923 = vpack.c.b16 %v2179, %v2175
        %v2924 = vpack.c.b16 %v2184, %v2180
        %v2925 = vpack.c.b16 %v2185, %v2181
        %v2926 = vpack.c.b16 %v2186, %v2182
        %v2927 = vpack.c.b16 %v2187, %v2183
        %v2928 = vpack.c.b16 %v2192, %v2188
        %v2929 = vpack.c.b16 %v2193, %v2189
        %v2930 = vpack.c.b16 %v2194, %v2190
        %v2931 = vpack.c.b16 %v2195, %v2191
        %v2932 = vpack.c.b16 %v2200, %v2196
        %v2933 = vpack.c.b16 %v2201, %v2197
        %v2934 = vpack.c.b16 %v2202, %v2198
        %v2935 = vpack.c.b16 %v2203, %v2199
        %v2936 = vpack.c.b16 %v2208, %v2204
        %v2937 = vpack.c.b16 %v2209, %v2205
        %v2938 = vpack.c.b16 %v2210, %v2206
        %v2939 = vpack.c.b16 %v2211, %v2207
        %v2940 = vpack.c.b16 %v2216, %v2212
        %v2941 = vpack.c.b16 %v2217, %v2213
        %v2942 = vpack.c.b16 %v2218, %v2214
        %v2943 = vpack.c.b16 %v2219, %v2215
        %v2944 = vpack.c.b16 %v2224, %v2220
        %v2945 = vpack.c.b16 %v2225, %v2221
        %v2946 = vpack.c.b16 %v2226, %v2222
        %v2947 = vpack.c.b16 %v2227, %v2223
        %v2948 = vpack.c.b16 %v2232, %v2228
        %v2949 = vpack.c.b16 %v2233, %v2229
        %v2950 = vpack.c.b16 %v2234, %v2230
        %v2951 = vpack.c.b16 %v2235, %v2231
        %v2952 = vpack.c.b16 %v2240, %v2236
        %v2953 = vpack.c.b16 %v2241, %v2237
        %v2954 = vpack.c.b16 %v2242, %v2238
        %v2955 = vpack.c.b16 %v2243, %v2239
        %v2956 = vpack.c.b16 %v2248, %v2244
        %v2957 = vpack.c.b16 %v2249, %v2245
        %v2958 = vpack.c.b16 %v2250, %v2246
        %v2959 = vpack.c.b16 %v2251, %v2247
        %v2960 = vpack.c.b16 %v2256, %v2252
        %v2961 = vpack.c.b16 %v2257, %v2253
        %v2962 = vpack.c.b16 %v2258, %v2254
        %v2963 = vpack.c.b16 %v2259, %v2255
        %v2964 = vpack.c.b16 %v2264, %v2260
        %v2965 = vpack.c.b16 %v2265, %v2261
        %v2966 = vpack.c.b16 %v2266, %v2262
        %v2967 = vpack.c.b16 %v2267, %v2263
        %v2968 = vpack.c.b16 %v2272, %v2268
        %v2969 = vpack.c.b16 %v2273, %v2269
        %v2970 = vpack.c.b16 %v2274, %v2270
        %v2971 = vpack.c.b16 %v2275, %v2271
        %v2972 = vpack.c.b16 %v2280, %v2276
        %v2973 = vpack.c.b16 %v2281, %v2277
        %v2974 = vpack.c.b16 %v2282, %v2278
        %v2975 = vpack.c.b16 %v2283, %v2279
        %v2976 = vpack.c.b16 %v2288, %v2284
        %v2977 = vpack.c.b16 %v2289, %v2285
        %v2978 = vpack.c.b16 %v2290, %v2286
        %v2979 = vpack.c.b16 %v2291, %v2287
        %v2980 = vpack.c.b16 %v2296, %v2292
        %v2981 = vpack.c.b16 %v2297, %v2293
        %v2982 = vpack.c.b16 %v2298, %v2294
        %v2983 = vpack.c.b16 %v2299, %v2295
        %v2984 = vpack.c.b16 %v2304, %v2300
        %v2985 = vpack.c.b16 %v2305, %v2301
        %v2986 = vpack.c.b16 %v2306, %v2302
        %v2987 = vpack.c.b16 %v2307, %v2303
        %v2988 = vpack.c.b16 %v2312, %v2308
        %v2989 = vpack.c.b16 %v2313, %v2309
        %v2990 = vpack.c.b16 %v2314, %v2310
        %v2991 = vpack.c.b16 %v2315, %v2311
        %v2992 = vpack.c.b16 %v2320, %v2316
        %v2993 = vpack.c.b16 %v2321, %v2317
        %v2994 = vpack.c.b16 %v2322, %v2318
        %v2995 = vpack.c.b16 %v2323, %v2319
        %v2996 = vpack.c.b16 %v2328, %v2324
        %v2997 = vpack.c.b16 %v2329, %v2325
        %v2998 = vpack.c.b16 %v2330, %v2326
        %v2999 = vpack.c.b16 %v2331, %v2327
        %v3000 = vpack.c.b16 %v2336, %v2332
        %v3001 = vpack.c.b16 %v2337, %v2333
        %v3002 = vpack.c.b16 %v2338, %v2334
        %v3003 = vpack.c.b16 %v2339, %v2335
        %v3004 = vpack.c.b16 %v2344, %v2340
        %v3005 = vpack.c.b16 %v2345, %v2341
        %v3006 = vpack.c.b16 %v2346, %v2342
        %v3007 = vpack.c.b16 %v2347, %v2343
        %v3008 = vpack.c.b16 %v2352, %v2348
        %v3009 = vpack.c.b16 %v2353, %v2349
        %v3010 = vpack.c.b16 %v2354, %v2350
        %v3011 = vpack.c.b16 %v2355, %v2351
        %v3012 = vpack.c.b16 %v2360, %v2356
        %v3013 = vpack.c.b16 %v2361, %v2357
        %v3014 = vpack.c.b16 %v2362, %v2358
        %v3015 = vpack.c.b16 %v2363, %v2359
        %v3016 = vpack.c.b16 %v2368, %v2364
        %v3017 = vpack.c.b16 %v2369, %v2365
        %v3018 = vpack.c.b16 %v2370, %v2366
        %v3019 = vpack.c.b16 %v2371, %v2367
        %v3020 = vpack.c.b16 %v2376, %v2372
        %v3021 = vpack.c.b16 %v2377, %v2373
        %v3022 = vpack.c.b16 %v2378, %v2374
        %v3023 = vpack.c.b16 %v2379, %v2375
        %v3024 = vpack.c.b16 %v2384, %v2380
        %v3025 = vpack.c.b16 %v2385, %v2381
        %v3026 = vpack.c.b16 %v2386, %v2382
        %v3027 = vpack.c.b16 %v2387, %v2383
        %v3028 = vpack.c.b16 %v2392, %v2388
        %v3029 = vpack.c.b16 %v2393, %v2389
        %v3030 = vpack.c.b16 %v2394, %v2390
        %v3031 = vpack.c.b16 %v2395, %v2391
        %v3032 = vpack.c.b16 %v2400, %v2396
        %v3033 = vpack.c.b16 %v2401, %v2397
        %v3034 = vpack.c.b16 %v2402, %v2398
        %v3035 = vpack.c.b16 %v2403, %v2399
        %v3036 = vpack.c.b16 %v2408, %v2404
        %v3037 = vpack.c.b16 %v2409, %v2405
        %v3038 = vpack.c.b16 %v2410, %v2406
        %v3039 = vpack.c.b16 %v2411, %v2407
        %v3040 = vpack.c.b16 %v2416, %v2412
        %v3041 = vpack.c.b16 %v2417, %v2413
        %v3042 = vpack.c.b16 %v2418, %v2414
        %v3043 = vpack.c.b16 %v2419, %v2415
        %v3044 = vpack.c.b16 %v2424, %v2420
        %v3045 = vpack.c.b16 %v2425, %v2421
        %v3046 = vpack.c.b16 %v2426, %v2422
        %v3047 = vpack.c.b16 %v2427, %v2423
        %v3048 = vpack.c.b16 %v2432, %v2428
        %v3049 = vpack.c.b16 %v2433, %v2429
        %v3050 = vpack.c.b16 %v2434, %v2430
        %v3051 = vpack.c.b16 %v2435, %v2431
        %v3052 = vpack.c.b16 %v2440, %v2436
        %v3053 = vpack.c.b16 %v2441, %v2437
        %v3054 = vpack.c.b16 %v2442, %v2438
        %v3055 = vpack.c.b16 %v2443, %v2439
        %v3056 = vpack.c.b16 %v2448, %v2444
        %v3057 = vpack.c.b16 %v2449, %v2445
        %v3058 = vpack.c.b16 %v2450, %v2446
        %v3059 = vpack.c.b16 %v2451, %v2447
        %v3060 = vpack.c.b16 %v2456, %v2452
        %v3061 = vpack.c.b16 %v2457, %v2453
        %v3062 = vpack.c.b16 %v2458, %v2454
        %v3063 = vpack.c.b16 %v2459, %v2455
        %v3064 = vpack.c.b16 %v2464, %v2460
        %v3065 = vpack.c.b16 %v2465, %v2461
        %v3066 = vpack.c.b16 %v2466, %v2462
        %v3067 = vpack.c.b16 %v2467, %v2463
        %v3068 = vpack.c.b16 %v2472, %v2468
        %v3069 = vpack.c.b16 %v2473, %v2469
        %v3070 = vpack.c.b16 %v2474, %v2470
        %v3071 = vpack.c.b16 %v2475, %v2471
        %v3072 = vpack.c.b16 %v2480, %v2476
        %v3073 = vpack.c.b16 %v2481, %v2477
        %v3074 = vpack.c.b16 %v2482, %v2478
        %v3075 = vpack.c.b16 %v2483, %v2479
        %v3076 = vpack.c.b16 %v2488, %v2484
        %v3077 = vpack.c.b16 %v2489, %v2485
        %v3078 = vpack.c.b16 %v2490, %v2486
        %v3079 = vpack.c.b16 %v2491, %v2487
        %v3080 = vpack.c.b16 %v2496, %v2492
        %v3081 = vpack.c.b16 %v2497, %v2493
        %v3082 = vpack.c.b16 %v2498, %v2494
        %v3083 = vpack.c.b16 %v2499, %v2495
        %v3084 = vpack.c.b16 %v2504, %v2500
        %v3085 = vpack.c.b16 %v2505, %v2501
        %v3086 = vpack.c.b16 %v2506, %v2502
        %v3087 = vpack.c.b16 %v2507, %v2503
        %v3088 = vpack.c.b16 %v2512, %v2508
        %v3089 = vpack.c.b16 %v2513, %v2509
        %v3090 = vpack.c.b16 %v2514, %v2510
        %v3091 = vpack.c.b16 %v2515, %v2511
        %v3092 = vpack.c.b16 %v2520, %v2516
        %v3093 = vpack.c.b16 %v2521, %v2517
        %v3094 = vpack.c.b16 %v2522, %v2518
        %v3095 = vpack.c.b16 %v2523, %v2519
        %v3096 = vpack.c.b16 %v2528, %v2524
        %v3097 = vpack.c.b16 %v2529, %v2525
        %v3098 = vpack.c.b16 %v2530, %v2526
        %v3099 = vpack.c.b16 %v2531, %v2527
        %v3100 = vpack.c.b16 %v2536, %v2532
        %v3101 = vpack.c.b16 %v2537, %v2533
        %v3102 = vpack.c.b16 %v2538, %v2534
        %v3103 = vpack.c.b16 %v2539, %v2535
        %v3104 = vpack.c.b16 %v2544, %v2540
        %v3105 = vpack.c.b16 %v2545, %v2541
        %v3106 = vpack.c.b16 %v2546, %v2542
        %v3107 = vpack.c.b16 %v2547, %v2543
        %v3108 = vpack.c.b16 %v2552, %v2548
        %v3109 = vpack.c.b16 %v2553, %v2549
        %v3110 = vpack.c.b16 %v2554, %v2550
        %v3111 = vpack.c.b16 %v2555, %v2551
        %v3112 = vpack.c.b16 %v2560, %v2556
        %v3113 = vpack.c.b16 %v2561, %v2557
        %v3114 = vpack.c.b16 %v2562, %v2558
        %v3115 = vpack.c.b16 %v2563, %v2559
        %v3116 = vpack.c.b16 %v2568, %v2564
        %v3117 = vpack.c.b16 %v2569, %v2565
        %v3118 = vpack.c.b16 %v2570, %v2566
        %v3119 = vpack.c.b16 %v2571, %v2567
        %v3120 = vpack.c.b16 %v2576, %v2572
        %v3121 = vpack.c.b16 %v2577, %v2573
        %v3122 = vpack.c.b16 %v2578, %v2574
        %v3123 = vpack.c.b16 %v2579, %v2575
        %v3124 = vpack.c.b16 %v2584, %v2580
        %v3125 = vpack.c.b16 %v2585, %v2581
        %v3126 = vpack.c.b16 %v2586, %v2582
        %v3127 = vpack.c.b16 %v2587, %v2583
        %v3128 = vpack.c.b16 %v2592, %v2588
        %v3129 = vpack.c.b16 %v2593, %v2589
        %v3130 = vpack.c.b16 %v2594, %v2590
        %v3131 = vpack.c.b16 %v2595, %v2591
        %v3132 = vpack.c.b16 %v2600, %v2596
        %v3133 = vpack.c.b16 %v2601, %v2597
        %v3134 = vpack.c.b16 %v2602, %v2598
        %v3135 = vpack.c.b16 %v2603, %v2599
        %v3136 = vpack.c.b16 %v2608, %v2604
        %v3137 = vpack.c.b16 %v2609, %v2605
        %v3138 = vpack.c.b16 %v2610, %v2606
        %v3139 = vpack.c.b16 %v2611, %v2607
        %v3140 = vpack.c.b16 %v2616, %v2612
        %v3141 = vpack.c.b16 %v2617, %v2613
        %v3142 = vpack.c.b16 %v2618, %v2614
        %v3143 = vpack.c.b16 %v2619, %v2615
        %v3144 = vpack.c.b16 %v2624, %v2620
        %v3145 = vpack.c.b16 %v2625, %v2621
        %v3146 = vpack.c.b16 %v2626, %v2622
        %v3147 = vpack.c.b16 %v2627, %v2623
        %v3148 = vpack.c.b16 %v2632, %v2628
        %v3149 = vpack.c.b16 %v2633, %v2629
        %v3150 = vpack.c.b16 %v2634, %v2630
        %v3151 = vpack.c.b16 %v2635, %v2631
        %v3152 = vpack.c.b16 %v2640, %v2636
        %v3153 = vpack.c.b16 %v2641, %v2637
        %v3154 = vpack.c.b16 %v2642, %v2638
        %v3155 = vpack.c.b16 %v2643, %v2639
        %3668 = vmatpush.bf16.msra.mxu0 %v2672
        %3669 = vmatpush.bf16.msra.mxu0 %v2668
        %3670 = vmatpush.bf16.msra.mxu0 %v2664
        %3671 = vmatpush.bf16.msra.mxu0 %v2660
        %3672 = vmatpush.bf16.msra.mxu0 %v2656
        %3673 = vmatpush.bf16.msra.mxu0 %v2652
        %3674 = vmatpush.bf16.msra.mxu0 %v2648
        %3675 = vmatpush.bf16.msra.mxu0 %v2644
        %3676 = vmatmul.bf16.gmra.mxu0 %v1076
        %v3677 = vpop.f32.mrf.mxu0
        %v3678 = vadd.f32 %v1044, %v3677
        %v3679 = vpop.f32.mrf.mxu0
        %3680 = vdwg.mxu0
        %3681 = vmatpush.bf16.msra.mxu0 %v2704
        %3682 = vmatpush.bf16.msra.mxu0 %v2700
        %3683 = vmatpush.bf16.msra.mxu0 %v2696
        %3684 = vmatpush.bf16.msra.mxu0 %v2692
        %3685 = vmatpush.bf16.msra.mxu0 %v2688
        %3686 = vmatpush.bf16.msra.mxu0 %v2684
        %3687 = vmatpush.bf16.msra.mxu0 %v2680
        %3688 = vmatpush.bf16.msra.mxu0 %v2676
        %3689 = vmatmul.bf16.gmra.mxu0 %v1077
        %v3690 = vpop.f32.mrf.mxu0
        %v3691 = vadd.f32 %v3678, %v3690
        %v3692 = vpop.f32.mrf.mxu0
        %3693 = vdwg.mxu0
        %3694 = vmatpush.bf16.msra.mxu0 %v2736
        %3695 = vmatpush.bf16.msra.mxu0 %v2732
        %3696 = vmatpush.bf16.msra.mxu0 %v2728
        %3697 = vmatpush.bf16.msra.mxu0 %v2724
        %3698 = vmatpush.bf16.msra.mxu0 %v2720
        %3699 = vmatpush.bf16.msra.mxu0 %v2716
        %3700 = vmatpush.bf16.msra.mxu0 %v2712
        %3701 = vmatpush.bf16.msra.mxu0 %v2708
        %3702 = vmatmul.bf16.gmra.mxu0 %v1078
        %v3703 = vpop.f32.mrf.mxu0
        %v3704 = vadd.f32 %v3691, %v3703
        %v3705 = vpop.f32.mrf.mxu0
        %3706 = vdwg.mxu0
        %3707 = vmatpush.bf16.msra.mxu0 %v2768
        %3708 = vmatpush.bf16.msra.mxu0 %v2764
        %3709 = vmatpush.bf16.msra.mxu0 %v2760
        %3710 = vmatpush.bf16.msra.mxu0 %v2756
        %3711 = vmatpush.bf16.msra.mxu0 %v2752
        %3712 = vmatpush.bf16.msra.mxu0 %v2748
        %3713 = vmatpush.bf16.msra.mxu0 %v2744
        %3714 = vmatpush.bf16.msra.mxu0 %v2740
        %3715 = vmatmul.bf16.gmra.mxu0 %v1079
        %v3716 = vpop.f32.mrf.mxu0
        %v3717 = vadd.f32 %v3704, %v3716
        %v3718 = vpop.f32.mrf.mxu0
        %3719 = vdwg.mxu0
        %3720 = vmatpush.bf16.msra.mxu0 %v2800
        %3721 = vmatpush.bf16.msra.mxu0 %v2796
        %3722 = vmatpush.bf16.msra.mxu0 %v2792
        %3723 = vmatpush.bf16.msra.mxu0 %v2788
        %3724 = vmatpush.bf16.msra.mxu0 %v2784
        %3725 = vmatpush.bf16.msra.mxu0 %v2780
        %3726 = vmatpush.bf16.msra.mxu0 %v2776
        %3727 = vmatpush.bf16.msra.mxu0 %v2772
        %3728 = vmatmul.bf16.gmra.mxu0 %v1080
        %v3729 = vpop.f32.mrf.mxu0
        %v3730 = vadd.f32 %v3717, %v3729
        %v3731 = vpop.f32.mrf.mxu0
        %3732 = vdwg.mxu0
        %3733 = vmatpush.bf16.msra.mxu0 %v2832
        %3734 = vmatpush.bf16.msra.mxu0 %v2828
        %3735 = vmatpush.bf16.msra.mxu0 %v2824
        %3736 = vmatpush.bf16.msra.mxu0 %v2820
        %3737 = vmatpush.bf16.msra.mxu0 %v2816
        %3738 = vmatpush.bf16.msra.mxu0 %v2812
        %3739 = vmatpush.bf16.msra.mxu0 %v2808
        %3740 = vmatpush.bf16.msra.mxu0 %v2804
        %3741 = vmatmul.bf16.gmra.mxu0 %v1081
        %v3742 = vpop.f32.mrf.mxu0
        %v3743 = vadd.f32 %v3730, %v3742
        %v3744 = vpop.f32.mrf.mxu0
        %3745 = vdwg.mxu0
        %3746 = vmatpush.bf16.msra.mxu0 %v2864
        %3747 = vmatpush.bf16.msra.mxu0 %v2860
        %3748 = vmatpush.bf16.msra.mxu0 %v2856
        %3749 = vmatpush.bf16.msra.mxu0 %v2852
        %3750 = vmatpush.bf16.msra.mxu0 %v2848
        %3751 = vmatpush.bf16.msra.mxu0 %v2844
        %3752 = vmatpush.bf16.msra.mxu0 %v2840
        %3753 = vmatpush.bf16.msra.mxu0 %v2836
        %3754 = vmatmul.bf16.gmra.mxu0 %v1082
        %v3755 = vpop.f32.mrf.mxu0
        %v3756 = vadd.f32 %v3743, %v3755
        %v3757 = vpop.f32.mrf.mxu0
        %3758 = vdwg.mxu0
        %3759 = vmatpush.bf16.msra.mxu0 %v2896
        %3760 = vmatpush.bf16.msra.mxu0 %v2892
        %3761 = vmatpush.bf16.msra.mxu0 %v2888
        %3762 = vmatpush.bf16.msra.mxu0 %v2884
        %3763 = vmatpush.bf16.msra.mxu0 %v2880
        %3764 = vmatpush.bf16.msra.mxu0 %v2876
        %3765 = vmatpush.bf16.msra.mxu0 %v2872
        %3766 = vmatpush.bf16.msra.mxu0 %v2868
        %3767 = vmatmul.bf16.gmra.mxu0 %v1083
        %v3768 = vpop.f32.mrf.mxu0
        %v3769 = vadd.f32 %v3756, %v3768
        %v3770 = vpop.f32.mrf.mxu0
        %3771 = vdwg.mxu0
        %3772 = vmatpush.bf16.msra.mxu0 %v2928
        %3773 = vmatpush.bf16.msra.mxu0 %v2924
        %3774 = vmatpush.bf16.msra.mxu0 %v2920
        %3775 = vmatpush.bf16.msra.mxu0 %v2916
        %3776 = vmatpush.bf16.msra.mxu0 %v2912
        %3777 = vmatpush.bf16.msra.mxu0 %v2908
        %3778 = vmatpush.bf16.msra.mxu0 %v2904
        %3779 = vmatpush.bf16.msra.mxu0 %v2900
        %3780 = vmatmul.bf16.gmra.mxu0 %v1084
        %v3781 = vpop.f32.mrf.mxu0
        %v3782 = vadd.f32 %v3769, %v3781
        %v3783 = vpop.f32.mrf.mxu0
        %3784 = vdwg.mxu0
        %3785 = vmatpush.bf16.msra.mxu0 %v2960
        %3786 = vmatpush.bf16.msra.mxu0 %v2956
        %3787 = vmatpush.bf16.msra.mxu0 %v2952
        %3788 = vmatpush.bf16.msra.mxu0 %v2948
        %3789 = vmatpush.bf16.msra.mxu0 %v2944
        %3790 = vmatpush.bf16.msra.mxu0 %v2940
        %3791 = vmatpush.bf16.msra.mxu0 %v2936
        %3792 = vmatpush.bf16.msra.mxu0 %v2932
        %3793 = vmatmul.bf16.gmra.mxu0 %v1085
        %v3794 = vpop.f32.mrf.mxu0
        %v3795 = vadd.f32 %v3782, %v3794
        %v3796 = vpop.f32.mrf.mxu0
        %3797 = vdwg.mxu0
        %3798 = vmatpush.bf16.msra.mxu0 %v2992
        %3799 = vmatpush.bf16.msra.mxu0 %v2988
        %3800 = vmatpush.bf16.msra.mxu0 %v2984
        %3801 = vmatpush.bf16.msra.mxu0 %v2980
        %3802 = vmatpush.bf16.msra.mxu0 %v2976
        %3803 = vmatpush.bf16.msra.mxu0 %v2972
        %3804 = vmatpush.bf16.msra.mxu0 %v2968
        %3805 = vmatpush.bf16.msra.mxu0 %v2964
        %3806 = vmatmul.bf16.gmra.mxu0 %v1086
        %v3807 = vpop.f32.mrf.mxu0
        %v3808 = vadd.f32 %v3795, %v3807
        %v3809 = vpop.f32.mrf.mxu0
        %3810 = vdwg.mxu0
        %3811 = vmatpush.bf16.msra.mxu0 %v3024
        %3812 = vmatpush.bf16.msra.mxu0 %v3020
        %3813 = vmatpush.bf16.msra.mxu0 %v3016
        %3814 = vmatpush.bf16.msra.mxu0 %v3012
        %3815 = vmatpush.bf16.msra.mxu0 %v3008
        %3816 = vmatpush.bf16.msra.mxu0 %v3004
        %3817 = vmatpush.bf16.msra.mxu0 %v3000
        %3818 = vmatpush.bf16.msra.mxu0 %v2996
        %3819 = vmatmul.bf16.gmra.mxu0 %v1087
        %v3820 = vpop.f32.mrf.mxu0
        %v3821 = vadd.f32 %v3808, %v3820
        %v3822 = vpop.f32.mrf.mxu0
        %3823 = vdwg.mxu0
        %3824 = vmatpush.bf16.msra.mxu0 %v3056
        %3825 = vmatpush.bf16.msra.mxu0 %v3052
        %3826 = vmatpush.bf16.msra.mxu0 %v3048
        %3827 = vmatpush.bf16.msra.mxu0 %v3044
        %3828 = vmatpush.bf16.msra.mxu0 %v3040
        %3829 = vmatpush.bf16.msra.mxu0 %v3036
        %3830 = vmatpush.bf16.msra.mxu0 %v3032
        %3831 = vmatpush.bf16.msra.mxu0 %v3028
        %3832 = vmatmul.bf16.gmra.mxu0 %v1088
        %v3833 = vpop.f32.mrf.mxu0
        %v3834 = vadd.f32 %v3821, %v3833
        %v3835 = vpop.f32.mrf.mxu0
        %3836 = vdwg.mxu0
        %3837 = vmatpush.bf16.msra.mxu0 %v3088
        %3838 = vmatpush.bf16.msra.mxu0 %v3084
        %3839 = vmatpush.bf16.msra.mxu0 %v3080
        %3840 = vmatpush.bf16.msra.mxu0 %v3076
        %3841 = vmatpush.bf16.msra.mxu0 %v3072
        %3842 = vmatpush.bf16.msra.mxu0 %v3068
        %3843 = vmatpush.bf16.msra.mxu0 %v3064
        %3844 = vmatpush.bf16.msra.mxu0 %v3060
        %3845 = vmatmul.bf16.gmra.mxu0 %v1089
        %v3846 = vpop.f32.mrf.mxu0
        %v3847 = vadd.f32 %v3834, %v3846
        %v3848 = vpop.f32.mrf.mxu0
        %3849 = vdwg.mxu0
        %3850 = vmatpush.bf16.msra.mxu0 %v3120
        %3851 = vmatpush.bf16.msra.mxu0 %v3116
        %3852 = vmatpush.bf16.msra.mxu0 %v3112
        %3853 = vmatpush.bf16.msra.mxu0 %v3108
        %3854 = vmatpush.bf16.msra.mxu0 %v3104
        %3855 = vmatpush.bf16.msra.mxu0 %v3100
        %3856 = vmatpush.bf16.msra.mxu0 %v3096
        %3857 = vmatpush.bf16.msra.mxu0 %v3092
        %3858 = vmatmul.bf16.gmra.mxu0 %v1090
        %v3859 = vpop.f32.mrf.mxu0
        %v3860 = vadd.f32 %v3847, %v3859
        %v3861 = vpop.f32.mrf.mxu0
        %3862 = vdwg.mxu0
        %3863 = vmatpush.bf16.msra.mxu0 %v3152
        %3864 = vmatpush.bf16.msra.mxu0 %v3148
        %3865 = vmatpush.bf16.msra.mxu0 %v3144
        %3866 = vmatpush.bf16.msra.mxu0 %v3140
        %3867 = vmatpush.bf16.msra.mxu0 %v3136
        %3868 = vmatpush.bf16.msra.mxu0 %v3132
        %3869 = vmatpush.bf16.msra.mxu0 %v3128
        %3870 = vmatpush.bf16.msra.mxu0 %v3124
        %3871 = vmatmul.bf16.gmra.mxu0 %v1091
        %v3872 = vpop.f32.mrf.mxu0
        %v3873 = vadd.f32 %v3860, %v3872
        %v3874 = vpop.f32.mrf.mxu0
        %3875 = vdwg.mxu0
        %3876 = vmatpush.bf16.msra.mxu0 %v2673
        %3877 = vmatpush.bf16.msra.mxu0 %v2669
        %3878 = vmatpush.bf16.msra.mxu0 %v2665
        %3879 = vmatpush.bf16.msra.mxu0 %v2661
        %3880 = vmatpush.bf16.msra.mxu0 %v2657
        %3881 = vmatpush.bf16.msra.mxu0 %v2653
        %3882 = vmatpush.bf16.msra.mxu0 %v2649
        %3883 = vmatpush.bf16.msra.mxu0 %v2645
        %3884 = vmatmul.bf16.gmra.mxu0 %v1076
        %v3885 = vpop.f32.mrf.mxu0
        %v3886 = vadd.f32 %v1045, %v3885
        %v3887 = vpop.f32.mrf.mxu0
        %3888 = vdwg.mxu0
        %3889 = vmatpush.bf16.msra.mxu0 %v2705
        %3890 = vmatpush.bf16.msra.mxu0 %v2701
        %3891 = vmatpush.bf16.msra.mxu0 %v2697
        %3892 = vmatpush.bf16.msra.mxu0 %v2693
        %3893 = vmatpush.bf16.msra.mxu0 %v2689
        %3894 = vmatpush.bf16.msra.mxu0 %v2685
        %3895 = vmatpush.bf16.msra.mxu0 %v2681
        %3896 = vmatpush.bf16.msra.mxu0 %v2677
        %3897 = vmatmul.bf16.gmra.mxu0 %v1077
        %v3898 = vpop.f32.mrf.mxu0
        %v3899 = vadd.f32 %v3886, %v3898
        %v3900 = vpop.f32.mrf.mxu0
        %3901 = vdwg.mxu0
        %3902 = vmatpush.bf16.msra.mxu0 %v2737
        %3903 = vmatpush.bf16.msra.mxu0 %v2733
        %3904 = vmatpush.bf16.msra.mxu0 %v2729
        %3905 = vmatpush.bf16.msra.mxu0 %v2725
        %3906 = vmatpush.bf16.msra.mxu0 %v2721
        %3907 = vmatpush.bf16.msra.mxu0 %v2717
        %3908 = vmatpush.bf16.msra.mxu0 %v2713
        %3909 = vmatpush.bf16.msra.mxu0 %v2709
        %3910 = vmatmul.bf16.gmra.mxu0 %v1078
        %v3911 = vpop.f32.mrf.mxu0
        %v3912 = vadd.f32 %v3899, %v3911
        %v3913 = vpop.f32.mrf.mxu0
        %3914 = vdwg.mxu0
        %3915 = vmatpush.bf16.msra.mxu0 %v2769
        %3916 = vmatpush.bf16.msra.mxu0 %v2765
        %3917 = vmatpush.bf16.msra.mxu0 %v2761
        %3918 = vmatpush.bf16.msra.mxu0 %v2757
        %3919 = vmatpush.bf16.msra.mxu0 %v2753
        %3920 = vmatpush.bf16.msra.mxu0 %v2749
        %3921 = vmatpush.bf16.msra.mxu0 %v2745
        %3922 = vmatpush.bf16.msra.mxu0 %v2741
        %3923 = vmatmul.bf16.gmra.mxu0 %v1079
        %v3924 = vpop.f32.mrf.mxu0
        %v3925 = vadd.f32 %v3912, %v3924
        %v3926 = vpop.f32.mrf.mxu0
        %3927 = vdwg.mxu0
        %3928 = vmatpush.bf16.msra.mxu0 %v2801
        %3929 = vmatpush.bf16.msra.mxu0 %v2797
        %3930 = vmatpush.bf16.msra.mxu0 %v2793
        %3931 = vmatpush.bf16.msra.mxu0 %v2789
        %3932 = vmatpush.bf16.msra.mxu0 %v2785
        %3933 = vmatpush.bf16.msra.mxu0 %v2781
        %3934 = vmatpush.bf16.msra.mxu0 %v2777
        %3935 = vmatpush.bf16.msra.mxu0 %v2773
        %3936 = vmatmul.bf16.gmra.mxu0 %v1080
        %v3937 = vpop.f32.mrf.mxu0
        %v3938 = vadd.f32 %v3925, %v3937
        %v3939 = vpop.f32.mrf.mxu0
        %3940 = vdwg.mxu0
        %3941 = vmatpush.bf16.msra.mxu0 %v2833
        %3942 = vmatpush.bf16.msra.mxu0 %v2829
        %3943 = vmatpush.bf16.msra.mxu0 %v2825
        %3944 = vmatpush.bf16.msra.mxu0 %v2821
        %3945 = vmatpush.bf16.msra.mxu0 %v2817
        %3946 = vmatpush.bf16.msra.mxu0 %v2813
        %3947 = vmatpush.bf16.msra.mxu0 %v2809
        %3948 = vmatpush.bf16.msra.mxu0 %v2805
        %3949 = vmatmul.bf16.gmra.mxu0 %v1081
        %v3950 = vpop.f32.mrf.mxu0
        %v3951 = vadd.f32 %v3938, %v3950
        %v3952 = vpop.f32.mrf.mxu0
        %3953 = vdwg.mxu0
        %3954 = vmatpush.bf16.msra.mxu0 %v2865
        %3955 = vmatpush.bf16.msra.mxu0 %v2861
        %3956 = vmatpush.bf16.msra.mxu0 %v2857
        %3957 = vmatpush.bf16.msra.mxu0 %v2853
        %3958 = vmatpush.bf16.msra.mxu0 %v2849
        %3959 = vmatpush.bf16.msra.mxu0 %v2845
        %3960 = vmatpush.bf16.msra.mxu0 %v2841
        %3961 = vmatpush.bf16.msra.mxu0 %v2837
        %3962 = vmatmul.bf16.gmra.mxu0 %v1082
        %v3963 = vpop.f32.mrf.mxu0
        %v3964 = vadd.f32 %v3951, %v3963
        %v3965 = vpop.f32.mrf.mxu0
        %3966 = vdwg.mxu0
        %3967 = vmatpush.bf16.msra.mxu0 %v2897
        %3968 = vmatpush.bf16.msra.mxu0 %v2893
        %3969 = vmatpush.bf16.msra.mxu0 %v2889
        %3970 = vmatpush.bf16.msra.mxu0 %v2885
        %3971 = vmatpush.bf16.msra.mxu0 %v2881
        %3972 = vmatpush.bf16.msra.mxu0 %v2877
        %3973 = vmatpush.bf16.msra.mxu0 %v2873
        %3974 = vmatpush.bf16.msra.mxu0 %v2869
        %3975 = vmatmul.bf16.gmra.mxu0 %v1083
        %v3976 = vpop.f32.mrf.mxu0
        %v3977 = vadd.f32 %v3964, %v3976
        %v3978 = vpop.f32.mrf.mxu0
        %3979 = vdwg.mxu0
        %3980 = vmatpush.bf16.msra.mxu0 %v2929
        %3981 = vmatpush.bf16.msra.mxu0 %v2925
        %3982 = vmatpush.bf16.msra.mxu0 %v2921
        %3983 = vmatpush.bf16.msra.mxu0 %v2917
        %3984 = vmatpush.bf16.msra.mxu0 %v2913
        %3985 = vmatpush.bf16.msra.mxu0 %v2909
        %3986 = vmatpush.bf16.msra.mxu0 %v2905
        %3987 = vmatpush.bf16.msra.mxu0 %v2901
        %3988 = vmatmul.bf16.gmra.mxu0 %v1084
        %v3989 = vpop.f32.mrf.mxu0
        %v3990 = vadd.f32 %v3977, %v3989
        %v3991 = vpop.f32.mrf.mxu0
        %3992 = vdwg.mxu0
        %3993 = vmatpush.bf16.msra.mxu0 %v2961
        %3994 = vmatpush.bf16.msra.mxu0 %v2957
        %3995 = vmatpush.bf16.msra.mxu0 %v2953
        %3996 = vmatpush.bf16.msra.mxu0 %v2949
        %3997 = vmatpush.bf16.msra.mxu0 %v2945
        %3998 = vmatpush.bf16.msra.mxu0 %v2941
        %3999 = vmatpush.bf16.msra.mxu0 %v2937
        %4000 = vmatpush.bf16.msra.mxu0 %v2933
        %4001 = vmatmul.bf16.gmra.mxu0 %v1085
        %v4002 = vpop.f32.mrf.mxu0
        %v4003 = vadd.f32 %v3990, %v4002
        %v4004 = vpop.f32.mrf.mxu0
        %4005 = vdwg.mxu0
        %4006 = vmatpush.bf16.msra.mxu0 %v2993
        %4007 = vmatpush.bf16.msra.mxu0 %v2989
        %4008 = vmatpush.bf16.msra.mxu0 %v2985
        %4009 = vmatpush.bf16.msra.mxu0 %v2981
        %4010 = vmatpush.bf16.msra.mxu0 %v2977
        %4011 = vmatpush.bf16.msra.mxu0 %v2973
        %4012 = vmatpush.bf16.msra.mxu0 %v2969
        %4013 = vmatpush.bf16.msra.mxu0 %v2965
        %4014 = vmatmul.bf16.gmra.mxu0 %v1086
        %v4015 = vpop.f32.mrf.mxu0
        %v4016 = vadd.f32 %v4003, %v4015
        %v4017 = vpop.f32.mrf.mxu0
        %4018 = vdwg.mxu0
        %4019 = vmatpush.bf16.msra.mxu0 %v3025
        %4020 = vmatpush.bf16.msra.mxu0 %v3021
        %4021 = vmatpush.bf16.msra.mxu0 %v3017
        %4022 = vmatpush.bf16.msra.mxu0 %v3013
        %4023 = vmatpush.bf16.msra.mxu0 %v3009
        %4024 = vmatpush.bf16.msra.mxu0 %v3005
        %4025 = vmatpush.bf16.msra.mxu0 %v3001
        %4026 = vmatpush.bf16.msra.mxu0 %v2997
        %4027 = vmatmul.bf16.gmra.mxu0 %v1087
        %v4028 = vpop.f32.mrf.mxu0
        %v4029 = vadd.f32 %v4016, %v4028
        %v4030 = vpop.f32.mrf.mxu0
        %4031 = vdwg.mxu0
        %4032 = vmatpush.bf16.msra.mxu0 %v3057
        %4033 = vmatpush.bf16.msra.mxu0 %v3053
        %4034 = vmatpush.bf16.msra.mxu0 %v3049
        %4035 = vmatpush.bf16.msra.mxu0 %v3045
        %4036 = vmatpush.bf16.msra.mxu0 %v3041
        %4037 = vmatpush.bf16.msra.mxu0 %v3037
        %4038 = vmatpush.bf16.msra.mxu0 %v3033
        %4039 = vmatpush.bf16.msra.mxu0 %v3029
        %4040 = vmatmul.bf16.gmra.mxu0 %v1088
        %v4041 = vpop.f32.mrf.mxu0
        %v4042 = vadd.f32 %v4029, %v4041
        %v4043 = vpop.f32.mrf.mxu0
        %4044 = vdwg.mxu0
        %4045 = vmatpush.bf16.msra.mxu0 %v3089
        %4046 = vmatpush.bf16.msra.mxu0 %v3085
        %4047 = vmatpush.bf16.msra.mxu0 %v3081
        %4048 = vmatpush.bf16.msra.mxu0 %v3077
        %4049 = vmatpush.bf16.msra.mxu0 %v3073
        %4050 = vmatpush.bf16.msra.mxu0 %v3069
        %4051 = vmatpush.bf16.msra.mxu0 %v3065
        %4052 = vmatpush.bf16.msra.mxu0 %v3061
        %4053 = vmatmul.bf16.gmra.mxu0 %v1089
        %v4054 = vpop.f32.mrf.mxu0
        %v4055 = vadd.f32 %v4042, %v4054
        %v4056 = vpop.f32.mrf.mxu0
        %4057 = vdwg.mxu0
        %4058 = vmatpush.bf16.msra.mxu0 %v3121
        %4059 = vmatpush.bf16.msra.mxu0 %v3117
        %4060 = vmatpush.bf16.msra.mxu0 %v3113
        %4061 = vmatpush.bf16.msra.mxu0 %v3109
        %4062 = vmatpush.bf16.msra.mxu0 %v3105
        %4063 = vmatpush.bf16.msra.mxu0 %v3101
        %4064 = vmatpush.bf16.msra.mxu0 %v3097
        %4065 = vmatpush.bf16.msra.mxu0 %v3093
        %4066 = vmatmul.bf16.gmra.mxu0 %v1090
        %v4067 = vpop.f32.mrf.mxu0
        %v4068 = vadd.f32 %v4055, %v4067
        %v4069 = vpop.f32.mrf.mxu0
        %4070 = vdwg.mxu0
        %4071 = vmatpush.bf16.msra.mxu0 %v3153
        %4072 = vmatpush.bf16.msra.mxu0 %v3149
        %4073 = vmatpush.bf16.msra.mxu0 %v3145
        %4074 = vmatpush.bf16.msra.mxu0 %v3141
        %4075 = vmatpush.bf16.msra.mxu0 %v3137
        %4076 = vmatpush.bf16.msra.mxu0 %v3133
        %4077 = vmatpush.bf16.msra.mxu0 %v3129
        %4078 = vmatpush.bf16.msra.mxu0 %v3125
        %4079 = vmatmul.bf16.gmra.mxu0 %v1091
        %v4080 = vpop.f32.mrf.mxu0
        %v4081 = vadd.f32 %v4068, %v4080
        %v4082 = vpop.f32.mrf.mxu0
        %4083 = vdwg.mxu0
        %4084 = vmatpush.bf16.msra.mxu0 %v2674
        %4085 = vmatpush.bf16.msra.mxu0 %v2670
        %4086 = vmatpush.bf16.msra.mxu0 %v2666
        %4087 = vmatpush.bf16.msra.mxu0 %v2662
        %4088 = vmatpush.bf16.msra.mxu0 %v2658
        %4089 = vmatpush.bf16.msra.mxu0 %v2654
        %4090 = vmatpush.bf16.msra.mxu0 %v2650
        %4091 = vmatpush.bf16.msra.mxu0 %v2646
        %4092 = vmatmul.bf16.gmra.mxu0 %v1076
        %v4093 = vpop.f32.mrf.mxu0
        %v4094 = vadd.f32 %v1046, %v4093
        %v4095 = vpop.f32.mrf.mxu0
        %4096 = vdwg.mxu0
        %4097 = vmatpush.bf16.msra.mxu0 %v2706
        %4098 = vmatpush.bf16.msra.mxu0 %v2702
        %4099 = vmatpush.bf16.msra.mxu0 %v2698
        %4100 = vmatpush.bf16.msra.mxu0 %v2694
        %4101 = vmatpush.bf16.msra.mxu0 %v2690
        %4102 = vmatpush.bf16.msra.mxu0 %v2686
        %4103 = vmatpush.bf16.msra.mxu0 %v2682
        %4104 = vmatpush.bf16.msra.mxu0 %v2678
        %4105 = vmatmul.bf16.gmra.mxu0 %v1077
        %v4106 = vpop.f32.mrf.mxu0
        %v4107 = vadd.f32 %v4094, %v4106
        %v4108 = vpop.f32.mrf.mxu0
        %4109 = vdwg.mxu0
        %4110 = vmatpush.bf16.msra.mxu0 %v2738
        %4111 = vmatpush.bf16.msra.mxu0 %v2734
        %4112 = vmatpush.bf16.msra.mxu0 %v2730
        %4113 = vmatpush.bf16.msra.mxu0 %v2726
        %4114 = vmatpush.bf16.msra.mxu0 %v2722
        %4115 = vmatpush.bf16.msra.mxu0 %v2718
        %4116 = vmatpush.bf16.msra.mxu0 %v2714
        %4117 = vmatpush.bf16.msra.mxu0 %v2710
        %4118 = vmatmul.bf16.gmra.mxu0 %v1078
        %v4119 = vpop.f32.mrf.mxu0
        %v4120 = vadd.f32 %v4107, %v4119
        %v4121 = vpop.f32.mrf.mxu0
        %4122 = vdwg.mxu0
        %4123 = vmatpush.bf16.msra.mxu0 %v2770
        %4124 = vmatpush.bf16.msra.mxu0 %v2766
        %4125 = vmatpush.bf16.msra.mxu0 %v2762
        %4126 = vmatpush.bf16.msra.mxu0 %v2758
        %4127 = vmatpush.bf16.msra.mxu0 %v2754
        %4128 = vmatpush.bf16.msra.mxu0 %v2750
        %4129 = vmatpush.bf16.msra.mxu0 %v2746
        %4130 = vmatpush.bf16.msra.mxu0 %v2742
        %4131 = vmatmul.bf16.gmra.mxu0 %v1079
        %v4132 = vpop.f32.mrf.mxu0
        %v4133 = vadd.f32 %v4120, %v4132
        %v4134 = vpop.f32.mrf.mxu0
        %4135 = vdwg.mxu0
        %4136 = vmatpush.bf16.msra.mxu0 %v2802
        %4137 = vmatpush.bf16.msra.mxu0 %v2798
        %4138 = vmatpush.bf16.msra.mxu0 %v2794
        %4139 = vmatpush.bf16.msra.mxu0 %v2790
        %4140 = vmatpush.bf16.msra.mxu0 %v2786
        %4141 = vmatpush.bf16.msra.mxu0 %v2782
        %4142 = vmatpush.bf16.msra.mxu0 %v2778
        %4143 = vmatpush.bf16.msra.mxu0 %v2774
        %4144 = vmatmul.bf16.gmra.mxu0 %v1080
        %v4145 = vpop.f32.mrf.mxu0
        %v4146 = vadd.f32 %v4133, %v4145
        %v4147 = vpop.f32.mrf.mxu0
        %4148 = vdwg.mxu0
        %4149 = vmatpush.bf16.msra.mxu0 %v2834
        %4150 = vmatpush.bf16.msra.mxu0 %v2830
        %4151 = vmatpush.bf16.msra.mxu0 %v2826
        %4152 = vmatpush.bf16.msra.mxu0 %v2822
        %4153 = vmatpush.bf16.msra.mxu0 %v2818
        %4154 = vmatpush.bf16.msra.mxu0 %v2814
        %4155 = vmatpush.bf16.msra.mxu0 %v2810
        %4156 = vmatpush.bf16.msra.mxu0 %v2806
        %4157 = vmatmul.bf16.gmra.mxu0 %v1081
        %v4158 = vpop.f32.mrf.mxu0
        %v4159 = vadd.f32 %v4146, %v4158
        %v4160 = vpop.f32.mrf.mxu0
        %4161 = vdwg.mxu0
        %4162 = vmatpush.bf16.msra.mxu0 %v2866
        %4163 = vmatpush.bf16.msra.mxu0 %v2862
        %4164 = vmatpush.bf16.msra.mxu0 %v2858
        %4165 = vmatpush.bf16.msra.mxu0 %v2854
        %4166 = vmatpush.bf16.msra.mxu0 %v2850
        %4167 = vmatpush.bf16.msra.mxu0 %v2846
        %4168 = vmatpush.bf16.msra.mxu0 %v2842
        %4169 = vmatpush.bf16.msra.mxu0 %v2838
        %4170 = vmatmul.bf16.gmra.mxu0 %v1082
        %v4171 = vpop.f32.mrf.mxu0
        %v4172 = vadd.f32 %v4159, %v4171
        %v4173 = vpop.f32.mrf.mxu0
        %4174 = vdwg.mxu0
        %4175 = vmatpush.bf16.msra.mxu0 %v2898
        %4176 = vmatpush.bf16.msra.mxu0 %v2894
        %4177 = vmatpush.bf16.msra.mxu0 %v2890
        %4178 = vmatpush.bf16.msra.mxu0 %v2886
        %4179 = vmatpush.bf16.msra.mxu0 %v2882
        %4180 = vmatpush.bf16.msra.mxu0 %v2878
        %4181 = vmatpush.bf16.msra.mxu0 %v2874
        %4182 = vmatpush.bf16.msra.mxu0 %v2870
        %4183 = vmatmul.bf16.gmra.mxu0 %v1083
        %v4184 = vpop.f32.mrf.mxu0
        %v4185 = vadd.f32 %v4172, %v4184
        %v4186 = vpop.f32.mrf.mxu0
        %4187 = vdwg.mxu0
        %4188 = vmatpush.bf16.msra.mxu0 %v2930
        %4189 = vmatpush.bf16.msra.mxu0 %v2926
        %4190 = vmatpush.bf16.msra.mxu0 %v2922
        %4191 = vmatpush.bf16.msra.mxu0 %v2918
        %4192 = vmatpush.bf16.msra.mxu0 %v2914
        %4193 = vmatpush.bf16.msra.mxu0 %v2910
        %4194 = vmatpush.bf16.msra.mxu0 %v2906
        %4195 = vmatpush.bf16.msra.mxu0 %v2902
        %4196 = vmatmul.bf16.gmra.mxu0 %v1084
        %v4197 = vpop.f32.mrf.mxu0
        %v4198 = vadd.f32 %v4185, %v4197
        %v4199 = vpop.f32.mrf.mxu0
        %4200 = vdwg.mxu0
        %4201 = vmatpush.bf16.msra.mxu0 %v2962
        %4202 = vmatpush.bf16.msra.mxu0 %v2958
        %4203 = vmatpush.bf16.msra.mxu0 %v2954
        %4204 = vmatpush.bf16.msra.mxu0 %v2950
        %4205 = vmatpush.bf16.msra.mxu0 %v2946
        %4206 = vmatpush.bf16.msra.mxu0 %v2942
        %4207 = vmatpush.bf16.msra.mxu0 %v2938
        %4208 = vmatpush.bf16.msra.mxu0 %v2934
        %4209 = vmatmul.bf16.gmra.mxu0 %v1085
        %v4210 = vpop.f32.mrf.mxu0
        %v4211 = vadd.f32 %v4198, %v4210
        %v4212 = vpop.f32.mrf.mxu0
        %4213 = vdwg.mxu0
        %4214 = vmatpush.bf16.msra.mxu0 %v2994
        %4215 = vmatpush.bf16.msra.mxu0 %v2990
        %4216 = vmatpush.bf16.msra.mxu0 %v2986
        %4217 = vmatpush.bf16.msra.mxu0 %v2982
        %4218 = vmatpush.bf16.msra.mxu0 %v2978
        %4219 = vmatpush.bf16.msra.mxu0 %v2974
        %4220 = vmatpush.bf16.msra.mxu0 %v2970
        %4221 = vmatpush.bf16.msra.mxu0 %v2966
        %4222 = vmatmul.bf16.gmra.mxu0 %v1086
        %v4223 = vpop.f32.mrf.mxu0
        %v4224 = vadd.f32 %v4211, %v4223
        %v4225 = vpop.f32.mrf.mxu0
        %4226 = vdwg.mxu0
        %4227 = vmatpush.bf16.msra.mxu0 %v3026
        %4228 = vmatpush.bf16.msra.mxu0 %v3022
        %4229 = vmatpush.bf16.msra.mxu0 %v3018
        %4230 = vmatpush.bf16.msra.mxu0 %v3014
        %4231 = vmatpush.bf16.msra.mxu0 %v3010
        %4232 = vmatpush.bf16.msra.mxu0 %v3006
        %4233 = vmatpush.bf16.msra.mxu0 %v3002
        %4234 = vmatpush.bf16.msra.mxu0 %v2998
        %4235 = vmatmul.bf16.gmra.mxu0 %v1087
        %v4236 = vpop.f32.mrf.mxu0
        %v4237 = vadd.f32 %v4224, %v4236
        %v4238 = vpop.f32.mrf.mxu0
        %4239 = vdwg.mxu0
        %4240 = vmatpush.bf16.msra.mxu0 %v3058
        %4241 = vmatpush.bf16.msra.mxu0 %v3054
        %4242 = vmatpush.bf16.msra.mxu0 %v3050
        %4243 = vmatpush.bf16.msra.mxu0 %v3046
        %4244 = vmatpush.bf16.msra.mxu0 %v3042
        %4245 = vmatpush.bf16.msra.mxu0 %v3038
        %4246 = vmatpush.bf16.msra.mxu0 %v3034
        %4247 = vmatpush.bf16.msra.mxu0 %v3030
        %4248 = vmatmul.bf16.gmra.mxu0 %v1088
        %v4249 = vpop.f32.mrf.mxu0
        %v4250 = vadd.f32 %v4237, %v4249
        %v4251 = vpop.f32.mrf.mxu0
        %4252 = vdwg.mxu0
        %4253 = vmatpush.bf16.msra.mxu0 %v3090
        %4254 = vmatpush.bf16.msra.mxu0 %v3086
        %4255 = vmatpush.bf16.msra.mxu0 %v3082
        %4256 = vmatpush.bf16.msra.mxu0 %v3078
        %4257 = vmatpush.bf16.msra.mxu0 %v3074
        %4258 = vmatpush.bf16.msra.mxu0 %v3070
        %4259 = vmatpush.bf16.msra.mxu0 %v3066
        %4260 = vmatpush.bf16.msra.mxu0 %v3062
        %4261 = vmatmul.bf16.gmra.mxu0 %v1089
        %v4262 = vpop.f32.mrf.mxu0
        %v4263 = vadd.f32 %v4250, %v4262
        %v4264 = vpop.f32.mrf.mxu0
        %4265 = vdwg.mxu0
        %4266 = vmatpush.bf16.msra.mxu0 %v3122
        %4267 = vmatpush.bf16.msra.mxu0 %v3118
        %4268 = vmatpush.bf16.msra.mxu0 %v3114
        %4269 = vmatpush.bf16.msra.mxu0 %v3110
        %4270 = vmatpush.bf16.msra.mxu0 %v3106
        %4271 = vmatpush.bf16.msra.mxu0 %v3102
        %4272 = vmatpush.bf16.msra.mxu0 %v3098
        %4273 = vmatpush.bf16.msra.mxu0 %v3094
        %4274 = vmatmul.bf16.gmra.mxu0 %v1090
        %v4275 = vpop.f32.mrf.mxu0
        %v4276 = vadd.f32 %v4263, %v4275
        %v4277 = vpop.f32.mrf.mxu0
        %4278 = vdwg.mxu0
        %4279 = vmatpush.bf16.msra.mxu0 %v3154
        %4280 = vmatpush.bf16.msra.mxu0 %v3150
        %4281 = vmatpush.bf16.msra.mxu0 %v3146
        %4282 = vmatpush.bf16.msra.mxu0 %v3142
        %4283 = vmatpush.bf16.msra.mxu0 %v3138
        %4284 = vmatpush.bf16.msra.mxu0 %v3134
        %4285 = vmatpush.bf16.msra.mxu0 %v3130
        %4286 = vmatpush.bf16.msra.mxu0 %v3126
        %4287 = vmatmul.bf16.gmra.mxu0 %v1091
        %v4288 = vpop.f32.mrf.mxu0
        %v4289 = vadd.f32 %v4276, %v4288
        %v4290 = vpop.f32.mrf.mxu0
        %4291 = vdwg.mxu0
        %4292 = vmatpush.bf16.msra.mxu0 %v2675
        %4293 = vmatpush.bf16.msra.mxu0 %v2671
        %4294 = vmatpush.bf16.msra.mxu0 %v2667
        %4295 = vmatpush.bf16.msra.mxu0 %v2663
        %4296 = vmatpush.bf16.msra.mxu0 %v2659
        %4297 = vmatpush.bf16.msra.mxu0 %v2655
        %4298 = vmatpush.bf16.msra.mxu0 %v2651
        %4299 = vmatpush.bf16.msra.mxu0 %v2647
        %4300 = vmatmul.bf16.gmra.mxu0 %v1076
        %v4301 = vpop.f32.mrf.mxu0
        %v4302 = vadd.f32 %v1047, %v4301
        %v4303 = vpop.f32.mrf.mxu0
        %4304 = vdwg.mxu0
        %4305 = vmatpush.bf16.msra.mxu0 %v2707
        %4306 = vmatpush.bf16.msra.mxu0 %v2703
        %4307 = vmatpush.bf16.msra.mxu0 %v2699
        %4308 = vmatpush.bf16.msra.mxu0 %v2695
        %4309 = vmatpush.bf16.msra.mxu0 %v2691
        %4310 = vmatpush.bf16.msra.mxu0 %v2687
        %4311 = vmatpush.bf16.msra.mxu0 %v2683
        %4312 = vmatpush.bf16.msra.mxu0 %v2679
        %4313 = vmatmul.bf16.gmra.mxu0 %v1077
        %v4314 = vpop.f32.mrf.mxu0
        %v4315 = vadd.f32 %v4302, %v4314
        %v4316 = vpop.f32.mrf.mxu0
        %4317 = vdwg.mxu0
        %4318 = vmatpush.bf16.msra.mxu0 %v2739
        %4319 = vmatpush.bf16.msra.mxu0 %v2735
        %4320 = vmatpush.bf16.msra.mxu0 %v2731
        %4321 = vmatpush.bf16.msra.mxu0 %v2727
        %4322 = vmatpush.bf16.msra.mxu0 %v2723
        %4323 = vmatpush.bf16.msra.mxu0 %v2719
        %4324 = vmatpush.bf16.msra.mxu0 %v2715
        %4325 = vmatpush.bf16.msra.mxu0 %v2711
        %4326 = vmatmul.bf16.gmra.mxu0 %v1078
        %v4327 = vpop.f32.mrf.mxu0
        %v4328 = vadd.f32 %v4315, %v4327
        %v4329 = vpop.f32.mrf.mxu0
        %4330 = vdwg.mxu0
        %4331 = vmatpush.bf16.msra.mxu0 %v2771
        %4332 = vmatpush.bf16.msra.mxu0 %v2767
        %4333 = vmatpush.bf16.msra.mxu0 %v2763
        %4334 = vmatpush.bf16.msra.mxu0 %v2759
        %4335 = vmatpush.bf16.msra.mxu0 %v2755
        %4336 = vmatpush.bf16.msra.mxu0 %v2751
        %4337 = vmatpush.bf16.msra.mxu0 %v2747
        %4338 = vmatpush.bf16.msra.mxu0 %v2743
        %4339 = vmatmul.bf16.gmra.mxu0 %v1079
        %v4340 = vpop.f32.mrf.mxu0
        %v4341 = vadd.f32 %v4328, %v4340
        %v4342 = vpop.f32.mrf.mxu0
        %4343 = vdwg.mxu0
        %4344 = vmatpush.bf16.msra.mxu0 %v2803
        %4345 = vmatpush.bf16.msra.mxu0 %v2799
        %4346 = vmatpush.bf16.msra.mxu0 %v2795
        %4347 = vmatpush.bf16.msra.mxu0 %v2791
        %4348 = vmatpush.bf16.msra.mxu0 %v2787
        %4349 = vmatpush.bf16.msra.mxu0 %v2783
        %4350 = vmatpush.bf16.msra.mxu0 %v2779
        %4351 = vmatpush.bf16.msra.mxu0 %v2775
        %4352 = vmatmul.bf16.gmra.mxu0 %v1080
        %v4353 = vpop.f32.mrf.mxu0
        %v4354 = vadd.f32 %v4341, %v4353
        %v4355 = vpop.f32.mrf.mxu0
        %4356 = vdwg.mxu0
        %4357 = vmatpush.bf16.msra.mxu0 %v2835
        %4358 = vmatpush.bf16.msra.mxu0 %v2831
        %4359 = vmatpush.bf16.msra.mxu0 %v2827
        %4360 = vmatpush.bf16.msra.mxu0 %v2823
        %4361 = vmatpush.bf16.msra.mxu0 %v2819
        %4362 = vmatpush.bf16.msra.mxu0 %v2815
        %4363 = vmatpush.bf16.msra.mxu0 %v2811
        %4364 = vmatpush.bf16.msra.mxu0 %v2807
        %4365 = vmatmul.bf16.gmra.mxu0 %v1081
        %v4366 = vpop.f32.mrf.mxu0
        %v4367 = vadd.f32 %v4354, %v4366
        %v4368 = vpop.f32.mrf.mxu0
        %4369 = vdwg.mxu0
        %4370 = vmatpush.bf16.msra.mxu0 %v2867
        %4371 = vmatpush.bf16.msra.mxu0 %v2863
        %4372 = vmatpush.bf16.msra.mxu0 %v2859
        %4373 = vmatpush.bf16.msra.mxu0 %v2855
        %4374 = vmatpush.bf16.msra.mxu0 %v2851
        %4375 = vmatpush.bf16.msra.mxu0 %v2847
        %4376 = vmatpush.bf16.msra.mxu0 %v2843
        %4377 = vmatpush.bf16.msra.mxu0 %v2839
        %4378 = vmatmul.bf16.gmra.mxu0 %v1082
        %v4379 = vpop.f32.mrf.mxu0
        %v4380 = vadd.f32 %v4367, %v4379
        %v4381 = vpop.f32.mrf.mxu0
        %4382 = vdwg.mxu0
        %4383 = vmatpush.bf16.msra.mxu0 %v2899
        %4384 = vmatpush.bf16.msra.mxu0 %v2895
        %4385 = vmatpush.bf16.msra.mxu0 %v2891
        %4386 = vmatpush.bf16.msra.mxu0 %v2887
        %4387 = vmatpush.bf16.msra.mxu0 %v2883
        %4388 = vmatpush.bf16.msra.mxu0 %v2879
        %4389 = vmatpush.bf16.msra.mxu0 %v2875
        %4390 = vmatpush.bf16.msra.mxu0 %v2871
        %4391 = vmatmul.bf16.gmra.mxu0 %v1083
        %v4392 = vpop.f32.mrf.mxu0
        %v4393 = vadd.f32 %v4380, %v4392
        %v4394 = vpop.f32.mrf.mxu0
        %4395 = vdwg.mxu0
        %4396 = vmatpush.bf16.msra.mxu0 %v2931
        %4397 = vmatpush.bf16.msra.mxu0 %v2927
        %4398 = vmatpush.bf16.msra.mxu0 %v2923
        %4399 = vmatpush.bf16.msra.mxu0 %v2919
        %4400 = vmatpush.bf16.msra.mxu0 %v2915
        %4401 = vmatpush.bf16.msra.mxu0 %v2911
        %4402 = vmatpush.bf16.msra.mxu0 %v2907
        %4403 = vmatpush.bf16.msra.mxu0 %v2903
        %4404 = vmatmul.bf16.gmra.mxu0 %v1084
        %v4405 = vpop.f32.mrf.mxu0
        %v4406 = vadd.f32 %v4393, %v4405
        %v4407 = vpop.f32.mrf.mxu0
        %4408 = vdwg.mxu0
        %4409 = vmatpush.bf16.msra.mxu0 %v2963
        %4410 = vmatpush.bf16.msra.mxu0 %v2959
        %4411 = vmatpush.bf16.msra.mxu0 %v2955
        %4412 = vmatpush.bf16.msra.mxu0 %v2951
        %4413 = vmatpush.bf16.msra.mxu0 %v2947
        %4414 = vmatpush.bf16.msra.mxu0 %v2943
        %4415 = vmatpush.bf16.msra.mxu0 %v2939
        %4416 = vmatpush.bf16.msra.mxu0 %v2935
        %4417 = vmatmul.bf16.gmra.mxu0 %v1085
        %v4418 = vpop.f32.mrf.mxu0
        %v4419 = vadd.f32 %v4406, %v4418
        %v4420 = vpop.f32.mrf.mxu0
        %4421 = vdwg.mxu0
        %4422 = vmatpush.bf16.msra.mxu0 %v2995
        %4423 = vmatpush.bf16.msra.mxu0 %v2991
        %4424 = vmatpush.bf16.msra.mxu0 %v2987
        %4425 = vmatpush.bf16.msra.mxu0 %v2983
        %4426 = vmatpush.bf16.msra.mxu0 %v2979
        %4427 = vmatpush.bf16.msra.mxu0 %v2975
        %4428 = vmatpush.bf16.msra.mxu0 %v2971
        %4429 = vmatpush.bf16.msra.mxu0 %v2967
        %4430 = vmatmul.bf16.gmra.mxu0 %v1086
        %v4431 = vpop.f32.mrf.mxu0
        %v4432 = vadd.f32 %v4419, %v4431
        %v4433 = vpop.f32.mrf.mxu0
        %4434 = vdwg.mxu0
        %4435 = vmatpush.bf16.msra.mxu0 %v3027
        %4436 = vmatpush.bf16.msra.mxu0 %v3023
        %4437 = vmatpush.bf16.msra.mxu0 %v3019
        %4438 = vmatpush.bf16.msra.mxu0 %v3015
        %4439 = vmatpush.bf16.msra.mxu0 %v3011
        %4440 = vmatpush.bf16.msra.mxu0 %v3007
        %4441 = vmatpush.bf16.msra.mxu0 %v3003
        %4442 = vmatpush.bf16.msra.mxu0 %v2999
        %4443 = vmatmul.bf16.gmra.mxu0 %v1087
        %v4444 = vpop.f32.mrf.mxu0
        %v4445 = vadd.f32 %v4432, %v4444
        %v4446 = vpop.f32.mrf.mxu0
        %4447 = vdwg.mxu0
        %4448 = vmatpush.bf16.msra.mxu0 %v3059
        %4449 = vmatpush.bf16.msra.mxu0 %v3055
        %4450 = vmatpush.bf16.msra.mxu0 %v3051
        %4451 = vmatpush.bf16.msra.mxu0 %v3047
        %4452 = vmatpush.bf16.msra.mxu0 %v3043
        %4453 = vmatpush.bf16.msra.mxu0 %v3039
        %4454 = vmatpush.bf16.msra.mxu0 %v3035
        %4455 = vmatpush.bf16.msra.mxu0 %v3031
        %4456 = vmatmul.bf16.gmra.mxu0 %v1088
        %v4457 = vpop.f32.mrf.mxu0
        %v4458 = vadd.f32 %v4445, %v4457
        %v4459 = vpop.f32.mrf.mxu0
        %4460 = vdwg.mxu0
        %4461 = vmatpush.bf16.msra.mxu0 %v3091
        %4462 = vmatpush.bf16.msra.mxu0 %v3087
        %4463 = vmatpush.bf16.msra.mxu0 %v3083
        %4464 = vmatpush.bf16.msra.mxu0 %v3079
        %4465 = vmatpush.bf16.msra.mxu0 %v3075
        %4466 = vmatpush.bf16.msra.mxu0 %v3071
        %4467 = vmatpush.bf16.msra.mxu0 %v3067
        %4468 = vmatpush.bf16.msra.mxu0 %v3063
        %4469 = vmatmul.bf16.gmra.mxu0 %v1089
        %v4470 = vpop.f32.mrf.mxu0
        %v4471 = vadd.f32 %v4458, %v4470
        %v4472 = vpop.f32.mrf.mxu0
        %4473 = vdwg.mxu0
        %4474 = vmatpush.bf16.msra.mxu0 %v3123
        %4475 = vmatpush.bf16.msra.mxu0 %v3119
        %4476 = vmatpush.bf16.msra.mxu0 %v3115
        %4477 = vmatpush.bf16.msra.mxu0 %v3111
        %4478 = vmatpush.bf16.msra.mxu0 %v3107
        %4479 = vmatpush.bf16.msra.mxu0 %v3103
        %4480 = vmatpush.bf16.msra.mxu0 %v3099
        %4481 = vmatpush.bf16.msra.mxu0 %v3095
        %4482 = vmatmul.bf16.gmra.mxu0 %v1090
        %v4483 = vpop.f32.mrf.mxu0
        %v4484 = vadd.f32 %v4471, %v4483
        %v4485 = vpop.f32.mrf.mxu0
        %4486 = vdwg.mxu0
        %4487 = vmatpush.bf16.msra.mxu0 %v3155
        %4488 = vmatpush.bf16.msra.mxu0 %v3151
        %4489 = vmatpush.bf16.msra.mxu0 %v3147
        %4490 = vmatpush.bf16.msra.mxu0 %v3143
        %4491 = vmatpush.bf16.msra.mxu0 %v3139
        %4492 = vmatpush.bf16.msra.mxu0 %v3135
        %4493 = vmatpush.bf16.msra.mxu0 %v3131
        %4494 = vmatpush.bf16.msra.mxu0 %v3127
        %4495 = vmatmul.bf16.gmra.mxu0 %v1091
        %v4496 = vpop.f32.mrf.mxu0
        %v4497 = vadd.f32 %v4484, %v4496
        %v4498 = vpop.f32.mrf.mxu0
        %4499 = vdwg.mxu0
        %v4500 = vld [vmem:[#allocation3] sm:$0xff]
        %v4501 = vld [vmem:[#allocation3 + $0x8] sm:$0xff]
        %v4502 = vld [vmem:[#allocation3 + $0x10] sm:$0xff]
        %v4503 = vld [vmem:[#allocation3 + $0x18] sm:$0xff]
        %v4504 = vadd.f32 %v4500, %v3873
        %v4505 = vadd.f32 %v4501, %v4081
        %v4506 = vadd.f32 %v4502, %v4289
        %v4507 = vadd.f32 %v4503, %v4497
        %4508 = vst [vmem:[#allocation3] sm:$0xff] %v4504
        %4509 = vst [vmem:[#allocation3 + $0x8] sm:$0xff] %v4505
        %4510 = vst [vmem:[#allocation3 + $0x10] sm:$0xff] %v4506
        %4511 = vst [vmem:[#allocation3 + $0x18] sm:$0xff] %v4507
        %v4512 = vld [vmem:[#allocation2] sm:$0xff]
        %v4513 = vld [vmem:[#allocation2 + $0x8] sm:$0xff]
        %v4514 = vld [vmem:[#allocation2 + $0x10] sm:$0xff]
        %v4515 = vpack.c.bf16 %v3873, %v3873
        %v4516 = vpack.c.bf16 %v4081, %v4081
        %v4517 = vpack.c.bf16 %v4289, %v4289
        %v4518 = vpack.c.bf16 %v4497, %v4497
        %v4519 = vld [vmem:[%s442] sm:$0xff]
        %v4520 = vld [vmem:[%s442 + $0x8] sm:$0xf]
        %v4521 = vld [vmem:[%s442 + $0xc] sm:$0xff]
        %v4522 = vld [vmem:[%s442 + $0x14] sm:$0xf]
        %v4523 = vld [vmem:[%s442 + $0x18] sm:$0xff]
        %v4524 = vld [vmem:[%s442 + $0x20] sm:$0xf]
        %v4525 = vld [vmem:[%s442 + $0x24] sm:$0xff]
        %v4526 = vld [vmem:[%s442 + $0x2c] sm:$0xf]
        %v4527 = vld [vmem:[%s442 + $0x30] sm:$0xff]
        %v4528 = vld [vmem:[%s442 + $0x38] sm:$0xf]
        %v4529 = vld [vmem:[%s442 + $0x3c] sm:$0xff]
        %v4530 = vld [vmem:[%s442 + $0x44] sm:$0xf]
        %v4531 = vld [vmem:[%s442 + $0x48] sm:$0xff]
        %v4532 = vld [vmem:[%s442 + $0x50] sm:$0xf]
        %v4533 = vld [vmem:[%s442 + $0x54] sm:$0xff]
        %v4534 = vld [vmem:[%s442 + $0x5c] sm:$0xf]
        %v4535 = vld [vmem:[%s442 + $0x60] sm:$0xff]
        %v4536 = vld [vmem:[%s442 + $0x68] sm:$0xf]
        %v4537 = vld [vmem:[%s442 + $0x6c] sm:$0xff]
        %v4538 = vld [vmem:[%s442 + $0x74] sm:$0xf]
        %v4539 = vld [vmem:[%s442 + $0x78] sm:$0xff]
        %v4540 = vld [vmem:[%s442 + $0x80] sm:$0xf]
        %v4541 = vld [vmem:[%s442 + $0x84] sm:$0xff]
        %v4542 = vld [vmem:[%s442 + $0x8c] sm:$0xf]
        %v4543 = vld [vmem:[%s442 + $0x90] sm:$0xff]
        %v4544 = vld [vmem:[%s442 + $0x98] sm:$0xf]
        %v4545 = vld [vmem:[%s442 + $0x9c] sm:$0xff]
        %v4546 = vld [vmem:[%s442 + $0xa4] sm:$0xf]
        %v4547 = vld [vmem:[%s442 + $0xa8] sm:$0xff]
        %v4548 = vld [vmem:[%s442 + $0xb0] sm:$0xf]
        %v4549 = vld [vmem:[%s442 + $0xb4] sm:$0xff]
        %v4550 = vld [vmem:[%s442 + $0xbc] sm:$0xf]
        %v4551 = vld [vmem:[%s442 + $0xc0] sm:$0xff]
        %v4552 = vld [vmem:[%s442 + $0xc8] sm:$0xf]
        %v4553 = vld [vmem:[%s442 + $0xcc] sm:$0xff]
        %v4554 = vld [vmem:[%s442 + $0xd4] sm:$0xf]
        %v4555 = vld [vmem:[%s442 + $0xd8] sm:$0xff]
        %v4556 = vld [vmem:[%s442 + $0xe0] sm:$0xf]
        %v4557 = vld [vmem:[%s442 + $0xe4] sm:$0xff]
        %v4558 = vld [vmem:[%s442 + $0xec] sm:$0xf]
        %v4559 = vld [vmem:[%s442 + $0xf0] sm:$0xff]
        %v4560 = vld [vmem:[%s442 + $0xf8] sm:$0xf]
        %v4561 = vld [vmem:[%s442 + $0xfc] sm:$0xff]
        %v4562 = vld [vmem:[%s442 + $0x104] sm:$0xf]
        %v4563 = vld [vmem:[%s442 + $0x108] sm:$0xff]
        %v4564 = vld [vmem:[%s442 + $0x110] sm:$0xf]
        %v4565 = vld [vmem:[%s442 + $0x114] sm:$0xff]
        %v4566 = vld [vmem:[%s442 + $0x11c] sm:$0xf]
        %v4567 = vld [vmem:[%s442 + $0x120] sm:$0xff]
        %v4568 = vld [vmem:[%s442 + $0x128] sm:$0xf]
        %v4569 = vld [vmem:[%s442 + $0x12c] sm:$0xff]
        %v4570 = vld [vmem:[%s442 + $0x134] sm:$0xf]
        %v4571 = vld [vmem:[%s442 + $0x138] sm:$0xff]
        %v4572 = vld [vmem:[%s442 + $0x140] sm:$0xf]
        %v4573 = vld [vmem:[%s442 + $0x144] sm:$0xff]
        %v4574 = vld [vmem:[%s442 + $0x14c] sm:$0xf]
        %v4575 = vld [vmem:[%s442 + $0x150] sm:$0xff]
        %v4576 = vld [vmem:[%s442 + $0x158] sm:$0xf]
        %v4577 = vld [vmem:[%s442 + $0x15c] sm:$0xff]
        %v4578 = vld [vmem:[%s442 + $0x164] sm:$0xf]
        %v4579 = vld [vmem:[%s442 + $0x168] sm:$0xff]
        %v4580 = vld [vmem:[%s442 + $0x170] sm:$0xf]
        %v4581 = vld [vmem:[%s442 + $0x174] sm:$0xff]
        %v4582 = vld [vmem:[%s442 + $0x17c] sm:$0xf]
        %v4583 = vld [vmem:[%s442 + $0x180] sm:$0xff]
        %v4584 = vld [vmem:[%s442 + $0x188] sm:$0xf]
        %v4585 = vld [vmem:[%s442 + $0x18c] sm:$0xff]
        %v4586 = vld [vmem:[%s442 + $0x194] sm:$0xf]
        %v4587 = vld [vmem:[%s442 + $0x198] sm:$0xff]
        %v4588 = vld [vmem:[%s442 + $0x1a0] sm:$0xf]
        %v4589 = vld [vmem:[%s442 + $0x1a4] sm:$0xff]
        %v4590 = vld [vmem:[%s442 + $0x1ac] sm:$0xf]
        %v4591 = vld [vmem:[%s442 + $0x1b0] sm:$0xff]
        %v4592 = vld [vmem:[%s442 + $0x1b8] sm:$0xf]
        %v4593 = vld [vmem:[%s442 + $0x1bc] sm:$0xff]
        %v4594 = vld [vmem:[%s442 + $0x1c4] sm:$0xf]
        %v4595 = vld [vmem:[%s442 + $0x1c8] sm:$0xff]
        %v4596 = vld [vmem:[%s442 + $0x1d0] sm:$0xf]
        %v4597 = vld [vmem:[%s442 + $0x1d4] sm:$0xff]
        %v4598 = vld [vmem:[%s442 + $0x1dc] sm:$0xf]
        %v4599 = vld [vmem:[%s442 + $0x1e0] sm:$0xff]
        %v4600 = vld [vmem:[%s442 + $0x1e8] sm:$0xf]
        %v4601 = vld [vmem:[%s442 + $0x1ec] sm:$0xff]
        %v4602 = vld [vmem:[%s442 + $0x1f4] sm:$0xf]
        %v4603 = vld [vmem:[%s442 + $0x1f8] sm:$0xff]
        %v4604 = vld [vmem:[%s442 + $0x200] sm:$0xf]
        %v4605 = vld [vmem:[%s442 + $0x204] sm:$0xff]
        %v4606 = vld [vmem:[%s442 + $0x20c] sm:$0xf]
        %v4607 = vld [vmem:[%s442 + $0x210] sm:$0xff]
        %v4608 = vld [vmem:[%s442 + $0x218] sm:$0xf]
        %v4609 = vld [vmem:[%s442 + $0x21c] sm:$0xff]
        %v4610 = vld [vmem:[%s442 + $0x224] sm:$0xf]
        %v4611 = vld [vmem:[%s442 + $0x228] sm:$0xff]
        %v4612 = vld [vmem:[%s442 + $0x230] sm:$0xf]
        %v4613 = vld [vmem:[%s442 + $0x234] sm:$0xff]
        %v4614 = vld [vmem:[%s442 + $0x23c] sm:$0xf]
        %v4615 = vld [vmem:[%s442 + $0x240] sm:$0xff]
        %v4616 = vld [vmem:[%s442 + $0x248] sm:$0xf]
        %v4617 = vld [vmem:[%s442 + $0x24c] sm:$0xff]
        %v4618 = vld [vmem:[%s442 + $0x254] sm:$0xf]
        %v4619 = vld [vmem:[%s442 + $0x258] sm:$0xff]
        %v4620 = vld [vmem:[%s442 + $0x260] sm:$0xf]
        %v4621 = vld [vmem:[%s442 + $0x264] sm:$0xff]
        %v4622 = vld [vmem:[%s442 + $0x26c] sm:$0xf]
        %v4623 = vld [vmem:[%s442 + $0x270] sm:$0xff]
        %v4624 = vld [vmem:[%s442 + $0x278] sm:$0xf]
        %v4625 = vld [vmem:[%s442 + $0x27c] sm:$0xff]
        %v4626 = vld [vmem:[%s442 + $0x284] sm:$0xf]
        %v4627 = vld [vmem:[%s442 + $0x288] sm:$0xff]
        %v4628 = vld [vmem:[%s442 + $0x290] sm:$0xf]
        %v4629 = vld [vmem:[%s442 + $0x294] sm:$0xff]
        %v4630 = vld [vmem:[%s442 + $0x29c] sm:$0xf]
        %v4631 = vld [vmem:[%s442 + $0x2a0] sm:$0xff]
        %v4632 = vld [vmem:[%s442 + $0x2a8] sm:$0xf]
        %v4633 = vld [vmem:[%s442 + $0x2ac] sm:$0xff]
        %v4634 = vld [vmem:[%s442 + $0x2b4] sm:$0xf]
        %v4635 = vld [vmem:[%s442 + $0x2b8] sm:$0xff]
        %v4636 = vld [vmem:[%s442 + $0x2c0] sm:$0xf]
        %v4637 = vld [vmem:[%s442 + $0x2c4] sm:$0xff]
        %v4638 = vld [vmem:[%s442 + $0x2cc] sm:$0xf]
        %v4639 = vld [vmem:[%s442 + $0x2d0] sm:$0xff]
        %v4640 = vld [vmem:[%s442 + $0x2d8] sm:$0xf]
        %v4641 = vld [vmem:[%s442 + $0x2dc] sm:$0xff]
        %v4642 = vld [vmem:[%s442 + $0x2e4] sm:$0xf]
        %v4643 = vld [vmem:[%s442 + $0x2e8] sm:$0xff]
        %v4644 = vld [vmem:[%s442 + $0x2f0] sm:$0xf]
        %v4645 = vld [vmem:[%s442 + $0x2f4] sm:$0xff]
        %v4646 = vld [vmem:[%s442 + $0x2fc] sm:$0xf]
        %v4775 = vunpack.c.l.b16 %v4519
        %v4776 = vunpack.c.h.b16 %v4519
        %v4777 = vunpack.c.l.b16 %v4520
        %v4778 = vunpack.c.l.b16 %v4521
        %v4779 = vunpack.c.h.b16 %v4521
        %v4780 = vunpack.c.l.b16 %v4522
        %v4781 = vunpack.c.l.b16 %v4523
        %v4782 = vunpack.c.h.b16 %v4523
        %v4783 = vunpack.c.l.b16 %v4524
        %v4784 = vunpack.c.l.b16 %v4525
        %v4785 = vunpack.c.h.b16 %v4525
        %v4786 = vunpack.c.l.b16 %v4526
        %v4787 = vunpack.c.l.b16 %v4527
        %v4788 = vunpack.c.h.b16 %v4527
        %v4789 = vunpack.c.l.b16 %v4528
        %v4790 = vunpack.c.l.b16 %v4529
        %v4791 = vunpack.c.h.b16 %v4529
        %v4792 = vunpack.c.l.b16 %v4530
        %v4793 = vunpack.c.l.b16 %v4531
        %v4794 = vunpack.c.h.b16 %v4531
        %v4795 = vunpack.c.l.b16 %v4532
        %v4796 = vunpack.c.l.b16 %v4533
        %v4797 = vunpack.c.h.b16 %v4533
        %v4798 = vunpack.c.l.b16 %v4534
        %v4799 = vunpack.c.l.b16 %v4535
        %v4800 = vunpack.c.h.b16 %v4535
        %v4801 = vunpack.c.l.b16 %v4536
        %v4802 = vunpack.c.l.b16 %v4537
        %v4803 = vunpack.c.h.b16 %v4537
        %v4804 = vunpack.c.l.b16 %v4538
        %v4805 = vunpack.c.l.b16 %v4539
        %v4806 = vunpack.c.h.b16 %v4539
        %v4807 = vunpack.c.l.b16 %v4540
        %v4808 = vunpack.c.l.b16 %v4541
        %v4809 = vunpack.c.h.b16 %v4541
        %v4810 = vunpack.c.l.b16 %v4542
        %v4811 = vunpack.c.l.b16 %v4543
        %v4812 = vunpack.c.h.b16 %v4543
        %v4813 = vunpack.c.l.b16 %v4544
        %v4814 = vunpack.c.l.b16 %v4545
        %v4815 = vunpack.c.h.b16 %v4545
        %v4816 = vunpack.c.l.b16 %v4546
        %v4817 = vunpack.c.l.b16 %v4547
        %v4818 = vunpack.c.h.b16 %v4547
        %v4819 = vunpack.c.l.b16 %v4548
        %v4820 = vunpack.c.l.b16 %v4549
        %v4821 = vunpack.c.h.b16 %v4549
        %v4822 = vunpack.c.l.b16 %v4550
        %v4823 = vunpack.c.l.b16 %v4551
        %v4824 = vunpack.c.h.b16 %v4551
        %v4825 = vunpack.c.l.b16 %v4552
        %v4826 = vunpack.c.l.b16 %v4553
        %v4827 = vunpack.c.h.b16 %v4553
        %v4828 = vunpack.c.l.b16 %v4554
        %v4829 = vunpack.c.l.b16 %v4555
        %v4830 = vunpack.c.h.b16 %v4555
        %v4831 = vunpack.c.l.b16 %v4556
        %v4832 = vunpack.c.l.b16 %v4557
        %v4833 = vunpack.c.h.b16 %v4557
        %v4834 = vunpack.c.l.b16 %v4558
        %v4835 = vunpack.c.l.b16 %v4559
        %v4836 = vunpack.c.h.b16 %v4559
        %v4837 = vunpack.c.l.b16 %v4560
        %v4838 = vunpack.c.l.b16 %v4561
        %v4839 = vunpack.c.h.b16 %v4561
        %v4840 = vunpack.c.l.b16 %v4562
        %v4841 = vunpack.c.l.b16 %v4563
        %v4842 = vunpack.c.h.b16 %v4563
        %v4843 = vunpack.c.l.b16 %v4564
        %v4844 = vunpack.c.l.b16 %v4565
        %v4845 = vunpack.c.h.b16 %v4565
        %v4846 = vunpack.c.l.b16 %v4566
        %v4847 = vunpack.c.l.b16 %v4567
        %v4848 = vunpack.c.h.b16 %v4567
        %v4849 = vunpack.c.l.b16 %v4568
        %v4850 = vunpack.c.l.b16 %v4569
        %v4851 = vunpack.c.h.b16 %v4569
        %v4852 = vunpack.c.l.b16 %v4570
        %v4853 = vunpack.c.l.b16 %v4571
        %v4854 = vunpack.c.h.b16 %v4571
        %v4855 = vunpack.c.l.b16 %v4572
        %v4856 = vunpack.c.l.b16 %v4573
        %v4857 = vunpack.c.h.b16 %v4573
        %v4858 = vunpack.c.l.b16 %v4574
        %v4859 = vunpack.c.l.b16 %v4575
        %v4860 = vunpack.c.h.b16 %v4575
        %v4861 = vunpack.c.l.b16 %v4576
        %v4862 = vunpack.c.l.b16 %v4577
        %v4863 = vunpack.c.h.b16 %v4577
        %v4864 = vunpack.c.l.b16 %v4578
        %v4865 = vunpack.c.l.b16 %v4579
        %v4866 = vunpack.c.h.b16 %v4579
        %v4867 = vunpack.c.l.b16 %v4580
        %v4868 = vunpack.c.l.b16 %v4581
        %v4869 = vunpack.c.h.b16 %v4581
        %v4870 = vunpack.c.l.b16 %v4582
        %v4871 = vunpack.c.l.b16 %v4583
        %v4872 = vunpack.c.h.b16 %v4583
        %v4873 = vunpack.c.l.b16 %v4584
        %v4874 = vunpack.c.l.b16 %v4585
        %v4875 = vunpack.c.h.b16 %v4585
        %v4876 = vunpack.c.l.b16 %v4586
        %v4877 = vunpack.c.l.b16 %v4587
        %v4878 = vunpack.c.h.b16 %v4587
        %v4879 = vunpack.c.l.b16 %v4588
        %v4880 = vunpack.c.l.b16 %v4589
        %v4881 = vunpack.c.h.b16 %v4589
        %v4882 = vunpack.c.l.b16 %v4590
        %v4883 = vunpack.c.l.b16 %v4591
        %v4884 = vunpack.c.h.b16 %v4591
        %v4885 = vunpack.c.l.b16 %v4592
        %v4886 = vunpack.c.l.b16 %v4593
        %v4887 = vunpack.c.h.b16 %v4593
        %v4888 = vunpack.c.l.b16 %v4594
        %v4889 = vunpack.c.l.b16 %v4595
        %v4890 = vunpack.c.h.b16 %v4595
        %v4891 = vunpack.c.l.b16 %v4596
        %v4892 = vunpack.c.l.b16 %v4597
        %v4893 = vunpack.c.h.b16 %v4597
        %v4894 = vunpack.c.l.b16 %v4598
        %v4895 = vunpack.c.l.b16 %v4599
        %v4896 = vunpack.c.h.b16 %v4599
        %v4897 = vunpack.c.l.b16 %v4600
        %v4898 = vunpack.c.l.b16 %v4601
        %v4899 = vunpack.c.h.b16 %v4601
        %v4900 = vunpack.c.l.b16 %v4602
        %v4901 = vunpack.c.l.b16 %v4603
        %v4902 = vunpack.c.h.b16 %v4603
        %v4903 = vunpack.c.l.b16 %v4604
        %v4904 = vunpack.c.l.b16 %v4605
        %v4905 = vunpack.c.h.b16 %v4605
        %v4906 = vunpack.c.l.b16 %v4606
        %v4907 = vunpack.c.l.b16 %v4607
        %v4908 = vunpack.c.h.b16 %v4607
        %v4909 = vunpack.c.l.b16 %v4608
        %v4910 = vunpack.c.l.b16 %v4609
        %v4911 = vunpack.c.h.b16 %v4609
        %v4912 = vunpack.c.l.b16 %v4610
        %v4913 = vunpack.c.l.b16 %v4611
        %v4914 = vunpack.c.h.b16 %v4611
        %v4915 = vunpack.c.l.b16 %v4612
        %v4916 = vunpack.c.l.b16 %v4613
        %v4917 = vunpack.c.h.b16 %v4613
        %v4918 = vunpack.c.l.b16 %v4614
        %v4919 = vunpack.c.l.b16 %v4615
        %v4920 = vunpack.c.h.b16 %v4615
        %v4921 = vunpack.c.l.b16 %v4616
        %v4922 = vunpack.c.l.b16 %v4617
        %v4923 = vunpack.c.h.b16 %v4617
        %v4924 = vunpack.c.l.b16 %v4618
        %v4925 = vunpack.c.l.b16 %v4619
        %v4926 = vunpack.c.h.b16 %v4619
        %v4927 = vunpack.c.l.b16 %v4620
        %v4928 = vunpack.c.l.b16 %v4621
        %v4929 = vunpack.c.h.b16 %v4621
        %v4930 = vunpack.c.l.b16 %v4622
        %v4931 = vunpack.c.l.b16 %v4623
        %v4932 = vunpack.c.h.b16 %v4623
        %v4933 = vunpack.c.l.b16 %v4624
        %v4934 = vunpack.c.l.b16 %v4625
        %v4935 = vunpack.c.h.b16 %v4625
        %v4936 = vunpack.c.l.b16 %v4626
        %v4937 = vunpack.c.l.b16 %v4627
        %v4938 = vunpack.c.h.b16 %v4627
        %v4939 = vunpack.c.l.b16 %v4628
        %v4940 = vunpack.c.l.b16 %v4629
        %v4941 = vunpack.c.h.b16 %v4629
        %v4942 = vunpack.c.l.b16 %v4630
        %v4943 = vunpack.c.l.b16 %v4631
        %v4944 = vunpack.c.h.b16 %v4631
        %v4945 = vunpack.c.l.b16 %v4632
        %v4946 = vunpack.c.l.b16 %v4633
        %v4947 = vunpack.c.h.b16 %v4633
        %v4948 = vunpack.c.l.b16 %v4634
        %v4949 = vunpack.c.l.b16 %v4635
        %v4950 = vunpack.c.h.b16 %v4635
        %v4951 = vunpack.c.l.b16 %v4636
        %v4952 = vunpack.c.l.b16 %v4637
        %v4953 = vunpack.c.h.b16 %v4637
        %v4954 = vunpack.c.l.b16 %v4638
        %v4955 = vunpack.c.l.b16 %v4639
        %v4956 = vunpack.c.h.b16 %v4639
        %v4957 = vunpack.c.l.b16 %v4640
        %v4958 = vunpack.c.l.b16 %v4641
        %v4959 = vunpack.c.h.b16 %v4641
        %v4960 = vunpack.c.l.b16 %v4642
        %v4961 = vunpack.c.l.b16 %v4643
        %v4962 = vunpack.c.h.b16 %v4643
        %v4963 = vunpack.c.l.b16 %v4644
        %v4964 = vunpack.c.l.b16 %v4645
        %v4965 = vunpack.c.h.b16 %v4645
        %v4966 = vunpack.c.l.b16 %v4646
        %v4967 = vpack.c.b16 %v4778, %v4775
        %v4968 = vpack.c.b16 %v4779, %v4776
        %v4969 = vpack.c.b16 %v4780, %v4777
        %v4970 = vpack.c.b16 %v4784, %v4781
        %v4971 = vpack.c.b16 %v4785, %v4782
        %v4972 = vpack.c.b16 %v4786, %v4783
        %v4973 = vpack.c.b16 %v4790, %v4787
        %v4974 = vpack.c.b16 %v4791, %v4788
        %v4975 = vpack.c.b16 %v4792, %v4789
        %v4976 = vpack.c.b16 %v4796, %v4793
        %v4977 = vpack.c.b16 %v4797, %v4794
        %v4978 = vpack.c.b16 %v4798, %v4795
        %v4979 = vpack.c.b16 %v4802, %v4799
        %v4980 = vpack.c.b16 %v4803, %v4800
        %v4981 = vpack.c.b16 %v4804, %v4801
        %v4982 = vpack.c.b16 %v4808, %v4805
        %v4983 = vpack.c.b16 %v4809, %v4806
        %v4984 = vpack.c.b16 %v4810, %v4807
        %v4985 = vpack.c.b16 %v4814, %v4811
        %v4986 = vpack.c.b16 %v4815, %v4812
        %v4987 = vpack.c.b16 %v4816, %v4813
        %v4988 = vpack.c.b16 %v4820, %v4817
        %v4989 = vpack.c.b16 %v4821, %v4818
        %v4990 = vpack.c.b16 %v4822, %v4819
        %v4991 = vpack.c.b16 %v4826, %v4823
        %v4992 = vpack.c.b16 %v4827, %v4824
        %v4993 = vpack.c.b16 %v4828, %v4825
        %v4994 = vpack.c.b16 %v4832, %v4829
        %v4995 = vpack.c.b16 %v4833, %v4830
        %v4996 = vpack.c.b16 %v4834, %v4831
        %v4997 = vpack.c.b16 %v4838, %v4835
        %v4998 = vpack.c.b16 %v4839, %v4836
        %v4999 = vpack.c.b16 %v4840, %v4837
        %v5000 = vpack.c.b16 %v4844, %v4841
        %v5001 = vpack.c.b16 %v4845, %v4842
        %v5002 = vpack.c.b16 %v4846, %v4843
        %v5003 = vpack.c.b16 %v4850, %v4847
        %v5004 = vpack.c.b16 %v4851, %v4848
        %v5005 = vpack.c.b16 %v4852, %v4849
        %v5006 = vpack.c.b16 %v4856, %v4853
        %v5007 = vpack.c.b16 %v4857, %v4854
        %v5008 = vpack.c.b16 %v4858, %v4855
        %v5009 = vpack.c.b16 %v4862, %v4859
        %v5010 = vpack.c.b16 %v4863, %v4860
        %v5011 = vpack.c.b16 %v4864, %v4861
        %v5012 = vpack.c.b16 %v4868, %v4865
        %v5013 = vpack.c.b16 %v4869, %v4866
        %v5014 = vpack.c.b16 %v4870, %v4867
        %v5015 = vpack.c.b16 %v4874, %v4871
        %v5016 = vpack.c.b16 %v4875, %v4872
        %v5017 = vpack.c.b16 %v4876, %v4873
        %v5018 = vpack.c.b16 %v4880, %v4877
        %v5019 = vpack.c.b16 %v4881, %v4878
        %v5020 = vpack.c.b16 %v4882, %v4879
        %v5021 = vpack.c.b16 %v4886, %v4883
        %v5022 = vpack.c.b16 %v4887, %v4884
        %v5023 = vpack.c.b16 %v4888, %v4885
        %v5024 = vpack.c.b16 %v4892, %v4889
        %v5025 = vpack.c.b16 %v4893, %v4890
        %v5026 = vpack.c.b16 %v4894, %v4891
        %v5027 = vpack.c.b16 %v4898, %v4895
        %v5028 = vpack.c.b16 %v4899, %v4896
        %v5029 = vpack.c.b16 %v4900, %v4897
        %v5030 = vpack.c.b16 %v4904, %v4901
        %v5031 = vpack.c.b16 %v4905, %v4902
        %v5032 = vpack.c.b16 %v4906, %v4903
        %v5033 = vpack.c.b16 %v4910, %v4907
        %v5034 = vpack.c.b16 %v4911, %v4908
        %v5035 = vpack.c.b16 %v4912, %v4909
        %v5036 = vpack.c.b16 %v4916, %v4913
        %v5037 = vpack.c.b16 %v4917, %v4914
        %v5038 = vpack.c.b16 %v4918, %v4915
        %v5039 = vpack.c.b16 %v4922, %v4919
        %v5040 = vpack.c.b16 %v4923, %v4920
        %v5041 = vpack.c.b16 %v4924, %v4921
        %v5042 = vpack.c.b16 %v4928, %v4925
        %v5043 = vpack.c.b16 %v4929, %v4926
        %v5044 = vpack.c.b16 %v4930, %v4927
        %v5045 = vpack.c.b16 %v4934, %v4931
        %v5046 = vpack.c.b16 %v4935, %v4932
        %v5047 = vpack.c.b16 %v4936, %v4933
        %v5048 = vpack.c.b16 %v4940, %v4937
        %v5049 = vpack.c.b16 %v4941, %v4938
        %v5050 = vpack.c.b16 %v4942, %v4939
        %v5051 = vpack.c.b16 %v4946, %v4943
        %v5052 = vpack.c.b16 %v4947, %v4944
        %v5053 = vpack.c.b16 %v4948, %v4945
        %v5054 = vpack.c.b16 %v4952, %v4949
        %v5055 = vpack.c.b16 %v4953, %v4950
        %v5056 = vpack.c.b16 %v4954, %v4951
        %v5057 = vpack.c.b16 %v4958, %v4955
        %v5058 = vpack.c.b16 %v4959, %v4956
        %v5059 = vpack.c.b16 %v4960, %v4957
        %v5060 = vpack.c.b16 %v4964, %v4961
        %v5061 = vpack.c.b16 %v4965, %v4962
        %v5062 = vpack.c.b16 %v4966, %v4963
        %5159 = vmatpush.bf16.msra.mxu0 %v4988
        %5160 = vmatpush.bf16.msra.mxu0 %v4985
        %5161 = vmatpush.bf16.msra.mxu0 %v4982
        %5162 = vmatpush.bf16.msra.mxu0 %v4979
        %5163 = vmatpush.bf16.msra.mxu0 %v4976
        %5164 = vmatpush.bf16.msra.mxu0 %v4973
        %5165 = vmatpush.bf16.msra.mxu0 %v4970
        %5166 = vmatpush.bf16.msra.mxu0 %v4967
        %5167 = vmatmul.bf16.gmra.mxu0 %v4515
        %v5168 = vpop.f32.mrf.mxu0
        %v5169 = vadd.f32 0.0, %v5168
        %v5170 = vpop.f32.mrf.mxu0
        %5171 = vdwg.mxu0
        %5172 = vmatpush.bf16.msra.mxu0 %v5012
        %5173 = vmatpush.bf16.msra.mxu0 %v5009
        %5174 = vmatpush.bf16.msra.mxu0 %v5006
        %5175 = vmatpush.bf16.msra.mxu0 %v5003
        %5176 = vmatpush.bf16.msra.mxu0 %v5000
        %5177 = vmatpush.bf16.msra.mxu0 %v4997
        %5178 = vmatpush.bf16.msra.mxu0 %v4994
        %5179 = vmatpush.bf16.msra.mxu0 %v4991
        %5180 = vmatmul.bf16.gmra.mxu0 %v4516
        %v5181 = vpop.f32.mrf.mxu0
        %v5182 = vadd.f32 %v5169, %v5181
        %v5183 = vpop.f32.mrf.mxu0
        %5184 = vdwg.mxu0
        %5185 = vmatpush.bf16.msra.mxu0 %v5036
        %5186 = vmatpush.bf16.msra.mxu0 %v5033
        %5187 = vmatpush.bf16.msra.mxu0 %v5030
        %5188 = vmatpush.bf16.msra.mxu0 %v5027
        %5189 = vmatpush.bf16.msra.mxu0 %v5024
        %5190 = vmatpush.bf16.msra.mxu0 %v5021
        %5191 = vmatpush.bf16.msra.mxu0 %v5018
        %5192 = vmatpush.bf16.msra.mxu0 %v5015
        %5193 = vmatmul.bf16.gmra.mxu0 %v4517
        %v5194 = vpop.f32.mrf.mxu0
        %v5195 = vadd.f32 %v5182, %v5194
        %v5196 = vpop.f32.mrf.mxu0
        %5197 = vdwg.mxu0
        %5198 = vmatpush.bf16.msra.mxu0 %v5060
        %5199 = vmatpush.bf16.msra.mxu0 %v5057
        %5200 = vmatpush.bf16.msra.mxu0 %v5054
        %5201 = vmatpush.bf16.msra.mxu0 %v5051
        %5202 = vmatpush.bf16.msra.mxu0 %v5048
        %5203 = vmatpush.bf16.msra.mxu0 %v5045
        %5204 = vmatpush.bf16.msra.mxu0 %v5042
        %5205 = vmatpush.bf16.msra.mxu0 %v5039
        %5206 = vmatmul.bf16.gmra.mxu0 %v4518
        %v5207 = vpop.f32.mrf.mxu0
        %v5208 = vadd.f32 %v5195, %v5207
        %v5209 = vpop.f32.mrf.mxu0
        %5210 = vdwg.mxu0
        %5211 = vmatpush.bf16.msra.mxu0 %v4989
        %5212 = vmatpush.bf16.msra.mxu0 %v4986
        %5213 = vmatpush.bf16.msra.mxu0 %v4983
        %5214 = vmatpush.bf16.msra.mxu0 %v4980
        %5215 = vmatpush.bf16.msra.mxu0 %v4977
        %5216 = vmatpush.bf16.msra.mxu0 %v4974
        %5217 = vmatpush.bf16.msra.mxu0 %v4971
        %5218 = vmatpush.bf16.msra.mxu0 %v4968
        %5219 = vmatmul.bf16.gmra.mxu0 %v4515
        %v5220 = vpop.f32.mrf.mxu0
        %v5221 = vadd.f32 0.0, %v5220
        %v5222 = vpop.f32.mrf.mxu0
        %5223 = vdwg.mxu0
        %5224 = vmatpush.bf16.msra.mxu0 %v5013
        %5225 = vmatpush.bf16.msra.mxu0 %v5010
        %5226 = vmatpush.bf16.msra.mxu0 %v5007
        %5227 = vmatpush.bf16.msra.mxu0 %v5004
        %5228 = vmatpush.bf16.msra.mxu0 %v5001
        %5229 = vmatpush.bf16.msra.mxu0 %v4998
        %5230 = vmatpush.bf16.msra.mxu0 %v4995
        %5231 = vmatpush.bf16.msra.mxu0 %v4992
        %5232 = vmatmul.bf16.gmra.mxu0 %v4516
        %v5233 = vpop.f32.mrf.mxu0
        %v5234 = vadd.f32 %v5221, %v5233
        %v5235 = vpop.f32.mrf.mxu0
        %5236 = vdwg.mxu0
        %5237 = vmatpush.bf16.msra.mxu0 %v5037
        %5238 = vmatpush.bf16.msra.mxu0 %v5034
        %5239 = vmatpush.bf16.msra.mxu0 %v5031
        %5240 = vmatpush.bf16.msra.mxu0 %v5028
        %5241 = vmatpush.bf16.msra.mxu0 %v5025
        %5242 = vmatpush.bf16.msra.mxu0 %v5022
        %5243 = vmatpush.bf16.msra.mxu0 %v5019
        %5244 = vmatpush.bf16.msra.mxu0 %v5016
        %5245 = vmatmul.bf16.gmra.mxu0 %v4517
        %v5246 = vpop.f32.mrf.mxu0
        %v5247 = vadd.f32 %v5234, %v5246
        %v5248 = vpop.f32.mrf.mxu0
        %5249 = vdwg.mxu0
        %5250 = vmatpush.bf16.msra.mxu0 %v5061
        %5251 = vmatpush.bf16.msra.mxu0 %v5058
        %5252 = vmatpush.bf16.msra.mxu0 %v5055
        %5253 = vmatpush.bf16.msra.mxu0 %v5052
        %5254 = vmatpush.bf16.msra.mxu0 %v5049
        %5255 = vmatpush.bf16.msra.mxu0 %v5046
        %5256 = vmatpush.bf16.msra.mxu0 %v5043
        %5257 = vmatpush.bf16.msra.mxu0 %v5040
        %5258 = vmatmul.bf16.gmra.mxu0 %v4518
        %v5259 = vpop.f32.mrf.mxu0
        %v5260 = vadd.f32 %v5247, %v5259
        %v5261 = vpop.f32.mrf.mxu0
        %5262 = vdwg.mxu0
        %5263 = vmatpush.bf16.msra.mxu0 %v4990
        %5264 = vmatpush.bf16.msra.mxu0 %v4987
        %5265 = vmatpush.bf16.msra.mxu0 %v4984
        %5266 = vmatpush.bf16.msra.mxu0 %v4981
        %5267 = vmatpush.bf16.msra.mxu0 %v4978
        %5268 = vmatpush.bf16.msra.mxu0 %v4975
        %5269 = vmatpush.bf16.msra.mxu0 %v4972
        %5270 = vmatpush.bf16.msra.mxu0 %v4969
        %5271 = vmatmul.bf16.gmra.mxu0 %v4515
        %v5272 = vpop.f32.mrf.mxu0
        %v5273 = vadd.f32 0.0, %v5272
        %v5274 = vpop.f32.mrf.mxu0
        %5275 = vdwg.mxu0
        %5276 = vmatpush.bf16.msra.mxu0 %v5014
        %5277 = vmatpush.bf16.msra.mxu0 %v5011
        %5278 = vmatpush.bf16.msra.mxu0 %v5008
        %5279 = vmatpush.bf16.msra.mxu0 %v5005
        %5280 = vmatpush.bf16.msra.mxu0 %v5002
        %5281 = vmatpush.bf16.msra.mxu0 %v4999
        %5282 = vmatpush.bf16.msra.mxu0 %v4996
        %5283 = vmatpush.bf16.msra.mxu0 %v4993
        %5284 = vmatmul.bf16.gmra.mxu0 %v4516
        %v5285 = vpop.f32.mrf.mxu0
        %v5286 = vadd.f32 %v5273, %v5285
        %v5287 = vpop.f32.mrf.mxu0
        %5288 = vdwg.mxu0
        %5289 = vmatpush.bf16.msra.mxu0 %v5038
        %5290 = vmatpush.bf16.msra.mxu0 %v5035
        %5291 = vmatpush.bf16.msra.mxu0 %v5032
        %5292 = vmatpush.bf16.msra.mxu0 %v5029
        %5293 = vmatpush.bf16.msra.mxu0 %v5026
        %5294 = vmatpush.bf16.msra.mxu0 %v5023
        %5295 = vmatpush.bf16.msra.mxu0 %v5020
        %5296 = vmatpush.bf16.msra.mxu0 %v5017
        %5297 = vmatmul.bf16.gmra.mxu0 %v4517
        %v5298 = vpop.f32.mrf.mxu0
        %v5299 = vadd.f32 %v5286, %v5298
        %v5300 = vpop.f32.mrf.mxu0
        %5301 = vdwg.mxu0
        %5302 = vmatpush.bf16.msra.mxu0 %v5062
        %5303 = vmatpush.bf16.msra.mxu0 %v5059
        %5304 = vmatpush.bf16.msra.mxu0 %v5056
        %5305 = vmatpush.bf16.msra.mxu0 %v5053
        %5306 = vmatpush.bf16.msra.mxu0 %v5050
        %5307 = vmatpush.bf16.msra.mxu0 %v5047
        %5308 = vmatpush.bf16.msra.mxu0 %v5044
        %5309 = vmatpush.bf16.msra.mxu0 %v5041
        %5310 = vmatmul.bf16.gmra.mxu0 %v4518
        %v5311 = vpop.f32.mrf.mxu0
        %v5312 = vadd.f32 %v5299, %v5311
        %v5313 = vpop.f32.mrf.mxu0
        %5314 = vdwg.mxu0
        %v5315 = vadd.f32 %v4512, %v5208
        %v5316 = vadd.f32 %v4513, %v5260
        %v5317 = vadd.f32 %v4514, %v5312
        %5318 = vst [vmem:[#allocation2] sm:$0xff] %v5315
        %5319 = vst [vmem:[#allocation2 + $0x8] sm:$0xff] %v5316
        %5320 = vst [vmem:[#allocation2 + $0x10] sm:$0xff] %v5317
        %s5321 = scalar_lea.vmem %s412, 64 [#allocation4]
        %v5322 = vld [vmem:[%s5321] sm:$0xff]
        %v5323 = vld [vmem:[%s5321 + $0x8] sm:$0xff]
        %v5324 = vld [vmem:[%s5321 + $0x10] sm:$0xff]
        %v5325 = vld [vmem:[%s5321 + $0x18] sm:$0xff]
        %v5326 = vld [vmem:[%s5321 + $0x20] sm:$0xff]
        %v5327 = vld [vmem:[%s5321 + $0x28] sm:$0xff]
        %v5328 = vld [vmem:[%s5321 + $0x30] sm:$0xff]
        %v5329 = vld [vmem:[%s5321 + $0x38] sm:$0xff]
        %s5330 = scalar_lea.vmem %s422, 4096 [#allocation7]
        %v5331 = vld [vmem:[%s5330] sm:$0xff]
        %v5332 = vld [vmem:[%s5330 + $0x8] sm:$0xff]
        %v5333 = vld [vmem:[%s5330 + $0x10] sm:$0xff]
        %v5334 = vld [vmem:[%s5330 + $0x18] sm:$0xff]
        %v5335 = vld [vmem:[%s5330 + $0x20] sm:$0xff]
        %v5336 = vld [vmem:[%s5330 + $0x28] sm:$0xff]
        %v5337 = vld [vmem:[%s5330 + $0x30] sm:$0xff]
        %v5338 = vld [vmem:[%s5330 + $0x38] sm:$0xff]
        %v5339 = vld [vmem:[%s5330 + $0x40] sm:$0xff]
        %v5340 = vld [vmem:[%s5330 + $0x48] sm:$0xff]
        %v5341 = vld [vmem:[%s5330 + $0x50] sm:$0xff]
        %v5342 = vld [vmem:[%s5330 + $0x58] sm:$0xff]
        %v5343 = vld [vmem:[%s5330 + $0x60] sm:$0xff]
        %v5344 = vld [vmem:[%s5330 + $0x68] sm:$0xff]
        %v5345 = vld [vmem:[%s5330 + $0x70] sm:$0xff]
        %v5346 = vld [vmem:[%s5330 + $0x78] sm:$0xff]
        %v5347 = vld [vmem:[%s5330 + $0x80] sm:$0xff]
        %v5348 = vld [vmem:[%s5330 + $0x88] sm:$0xff]
        %v5349 = vld [vmem:[%s5330 + $0x90] sm:$0xff]
        %v5350 = vld [vmem:[%s5330 + $0x98] sm:$0xff]
        %v5351 = vld [vmem:[%s5330 + $0xa0] sm:$0xff]
        %v5352 = vld [vmem:[%s5330 + $0xa8] sm:$0xff]
        %v5353 = vld [vmem:[%s5330 + $0xb0] sm:$0xff]
        %v5354 = vld [vmem:[%s5330 + $0xb8] sm:$0xff]
        %v5355 = vld [vmem:[%s5330 + $0xc0] sm:$0xff]
        %v5356 = vld [vmem:[%s5330 + $0xc8] sm:$0xff]
        %v5357 = vld [vmem:[%s5330 + $0xd0] sm:$0xff]
        %v5358 = vld [vmem:[%s5330 + $0xd8] sm:$0xff]
        %v5359 = vld [vmem:[%s5330 + $0xe0] sm:$0xff]
        %v5360 = vld [vmem:[%s5330 + $0xe8] sm:$0xff]
        %v5361 = vld [vmem:[%s5330 + $0xf0] sm:$0xff]
        %v5362 = vld [vmem:[%s5330 + $0xf8] sm:$0xff]
        %v5363 = vld [vmem:[%s5330 + $0x100] sm:$0xff]
        %v5364 = vld [vmem:[%s5330 + $0x108] sm:$0xff]
        %v5365 = vld [vmem:[%s5330 + $0x110] sm:$0xff]
        %v5366 = vld [vmem:[%s5330 + $0x118] sm:$0xff]
        %v5367 = vld [vmem:[%s5330 + $0x120] sm:$0xff]
        %v5368 = vld [vmem:[%s5330 + $0x128] sm:$0xff]
        %v5369 = vld [vmem:[%s5330 + $0x130] sm:$0xff]
        %v5370 = vld [vmem:[%s5330 + $0x138] sm:$0xff]
        %v5371 = vld [vmem:[%s5330 + $0x140] sm:$0xff]
        %v5372 = vld [vmem:[%s5330 + $0x148] sm:$0xff]
        %v5373 = vld [vmem:[%s5330 + $0x150] sm:$0xff]
        %v5374 = vld [vmem:[%s5330 + $0x158] sm:$0xff]
        %v5375 = vld [vmem:[%s5330 + $0x160] sm:$0xff]
        %v5376 = vld [vmem:[%s5330 + $0x168] sm:$0xff]
        %v5377 = vld [vmem:[%s5330 + $0x170] sm:$0xff]
        %v5378 = vld [vmem:[%s5330 + $0x178] sm:$0xff]
        %v5379 = vld [vmem:[%s5330 + $0x180] sm:$0xff]
        %v5380 = vld [vmem:[%s5330 + $0x188] sm:$0xff]
        %v5381 = vld [vmem:[%s5330 + $0x190] sm:$0xff]
        %v5382 = vld [vmem:[%s5330 + $0x198] sm:$0xff]
        %v5383 = vld [vmem:[%s5330 + $0x1a0] sm:$0xff]
        %v5384 = vld [vmem:[%s5330 + $0x1a8] sm:$0xff]
        %v5385 = vld [vmem:[%s5330 + $0x1b0] sm:$0xff]
        %v5386 = vld [vmem:[%s5330 + $0x1b8] sm:$0xff]
        %v5387 = vld [vmem:[%s5330 + $0x1c0] sm:$0xff]
        %v5388 = vld [vmem:[%s5330 + $0x1c8] sm:$0xff]
        %v5389 = vld [vmem:[%s5330 + $0x1d0] sm:$0xff]
        %v5390 = vld [vmem:[%s5330 + $0x1d8] sm:$0xff]
        %v5391 = vld [vmem:[%s5330 + $0x1e0] sm:$0xff]
        %v5392 = vld [vmem:[%s5330 + $0x1e8] sm:$0xff]
        %v5393 = vld [vmem:[%s5330 + $0x1f0] sm:$0xff]
        %v5394 = vld [vmem:[%s5330 + $0x1f8] sm:$0xff]
        %v5395 = vld [vmem:[%s5330 + $0x200] sm:$0xff]
        %v5396 = vld [vmem:[%s5330 + $0x208] sm:$0xff]
        %v5397 = vld [vmem:[%s5330 + $0x210] sm:$0xff]
        %v5398 = vld [vmem:[%s5330 + $0x218] sm:$0xff]
        %v5399 = vld [vmem:[%s5330 + $0x220] sm:$0xff]
        %v5400 = vld [vmem:[%s5330 + $0x228] sm:$0xff]
        %v5401 = vld [vmem:[%s5330 + $0x230] sm:$0xff]
        %v5402 = vld [vmem:[%s5330 + $0x238] sm:$0xff]
        %v5403 = vld [vmem:[%s5330 + $0x240] sm:$0xff]
        %v5404 = vld [vmem:[%s5330 + $0x248] sm:$0xff]
        %v5405 = vld [vmem:[%s5330 + $0x250] sm:$0xff]
        %v5406 = vld [vmem:[%s5330 + $0x258] sm:$0xff]
        %v5407 = vld [vmem:[%s5330 + $0x260] sm:$0xff]
        %v5408 = vld [vmem:[%s5330 + $0x268] sm:$0xff]
        %v5409 = vld [vmem:[%s5330 + $0x270] sm:$0xff]
        %v5410 = vld [vmem:[%s5330 + $0x278] sm:$0xff]
        %v5411 = vld [vmem:[%s5330 + $0x280] sm:$0xff]
        %v5412 = vld [vmem:[%s5330 + $0x288] sm:$0xff]
        %v5413 = vld [vmem:[%s5330 + $0x290] sm:$0xff]
        %v5414 = vld [vmem:[%s5330 + $0x298] sm:$0xff]
        %v5415 = vld [vmem:[%s5330 + $0x2a0] sm:$0xff]
        %v5416 = vld [vmem:[%s5330 + $0x2a8] sm:$0xff]
        %v5417 = vld [vmem:[%s5330 + $0x2b0] sm:$0xff]
        %v5418 = vld [vmem:[%s5330 + $0x2b8] sm:$0xff]
        %v5419 = vld [vmem:[%s5330 + $0x2c0] sm:$0xff]
        %v5420 = vld [vmem:[%s5330 + $0x2c8] sm:$0xff]
        %v5421 = vld [vmem:[%s5330 + $0x2d0] sm:$0xff]
        %v5422 = vld [vmem:[%s5330 + $0x2d8] sm:$0xff]
        %v5423 = vld [vmem:[%s5330 + $0x2e0] sm:$0xff]
        %v5424 = vld [vmem:[%s5330 + $0x2e8] sm:$0xff]
        %v5425 = vld [vmem:[%s5330 + $0x2f0] sm:$0xff]
        %v5426 = vld [vmem:[%s5330 + $0x2f8] sm:$0xff]
        %v5427 = vld [vmem:[%s5330 + $0x300] sm:$0xff]
        %v5428 = vld [vmem:[%s5330 + $0x308] sm:$0xff]
        %v5429 = vld [vmem:[%s5330 + $0x310] sm:$0xff]
        %v5430 = vld [vmem:[%s5330 + $0x318] sm:$0xff]
        %v5431 = vld [vmem:[%s5330 + $0x320] sm:$0xff]
        %v5432 = vld [vmem:[%s5330 + $0x328] sm:$0xff]
        %v5433 = vld [vmem:[%s5330 + $0x330] sm:$0xff]
        %v5434 = vld [vmem:[%s5330 + $0x338] sm:$0xff]
        %v5435 = vld [vmem:[%s5330 + $0x340] sm:$0xff]
        %v5436 = vld [vmem:[%s5330 + $0x348] sm:$0xff]
        %v5437 = vld [vmem:[%s5330 + $0x350] sm:$0xff]
        %v5438 = vld [vmem:[%s5330 + $0x358] sm:$0xff]
        %v5439 = vld [vmem:[%s5330 + $0x360] sm:$0xff]
        %v5440 = vld [vmem:[%s5330 + $0x368] sm:$0xff]
        %v5441 = vld [vmem:[%s5330 + $0x370] sm:$0xff]
        %v5442 = vld [vmem:[%s5330 + $0x378] sm:$0xff]
        %v5443 = vld [vmem:[%s5330 + $0x380] sm:$0xff]
        %v5444 = vld [vmem:[%s5330 + $0x388] sm:$0xff]
        %v5445 = vld [vmem:[%s5330 + $0x390] sm:$0xff]
        %v5446 = vld [vmem:[%s5330 + $0x398] sm:$0xff]
        %v5447 = vld [vmem:[%s5330 + $0x3a0] sm:$0xff]
        %v5448 = vld [vmem:[%s5330 + $0x3a8] sm:$0xff]
        %v5449 = vld [vmem:[%s5330 + $0x3b0] sm:$0xff]
        %v5450 = vld [vmem:[%s5330 + $0x3b8] sm:$0xff]
        %v5451 = vld [vmem:[%s5330 + $0x3c0] sm:$0xff]
        %v5452 = vld [vmem:[%s5330 + $0x3c8] sm:$0xff]
        %v5453 = vld [vmem:[%s5330 + $0x3d0] sm:$0xff]
        %v5454 = vld [vmem:[%s5330 + $0x3d8] sm:$0xff]
        %v5455 = vld [vmem:[%s5330 + $0x3e0] sm:$0xff]
        %v5456 = vld [vmem:[%s5330 + $0x3e8] sm:$0xff]
        %v5457 = vld [vmem:[%s5330 + $0x3f0] sm:$0xff]
        %v5458 = vld [vmem:[%s5330 + $0x3f8] sm:$0xff]
        %v5459 = vld [vmem:[%s5330 + $0x400] sm:$0xff]
        %v5460 = vld [vmem:[%s5330 + $0x408] sm:$0xff]
        %v5461 = vld [vmem:[%s5330 + $0x410] sm:$0xff]
        %v5462 = vld [vmem:[%s5330 + $0x418] sm:$0xff]
        %v5463 = vld [vmem:[%s5330 + $0x420] sm:$0xff]
        %v5464 = vld [vmem:[%s5330 + $0x428] sm:$0xff]
        %v5465 = vld [vmem:[%s5330 + $0x430] sm:$0xff]
        %v5466 = vld [vmem:[%s5330 + $0x438] sm:$0xff]
        %v5467 = vld [vmem:[%s5330 + $0x440] sm:$0xff]
        %v5468 = vld [vmem:[%s5330 + $0x448] sm:$0xff]
        %v5469 = vld [vmem:[%s5330 + $0x450] sm:$0xff]
        %v5470 = vld [vmem:[%s5330 + $0x458] sm:$0xff]
        %v5471 = vld [vmem:[%s5330 + $0x460] sm:$0xff]
        %v5472 = vld [vmem:[%s5330 + $0x468] sm:$0xff]
        %v5473 = vld [vmem:[%s5330 + $0x470] sm:$0xff]
        %v5474 = vld [vmem:[%s5330 + $0x478] sm:$0xff]
        %v5475 = vld [vmem:[%s5330 + $0x480] sm:$0xff]
        %v5476 = vld [vmem:[%s5330 + $0x488] sm:$0xff]
        %v5477 = vld [vmem:[%s5330 + $0x490] sm:$0xff]
        %v5478 = vld [vmem:[%s5330 + $0x498] sm:$0xff]
        %v5479 = vld [vmem:[%s5330 + $0x4a0] sm:$0xff]
        %v5480 = vld [vmem:[%s5330 + $0x4a8] sm:$0xff]
        %v5481 = vld [vmem:[%s5330 + $0x4b0] sm:$0xff]
        %v5482 = vld [vmem:[%s5330 + $0x4b8] sm:$0xff]
        %v5483 = vld [vmem:[%s5330 + $0x4c0] sm:$0xff]
        %v5484 = vld [vmem:[%s5330 + $0x4c8] sm:$0xff]
        %v5485 = vld [vmem:[%s5330 + $0x4d0] sm:$0xff]
        %v5486 = vld [vmem:[%s5330 + $0x4d8] sm:$0xff]
        %v5487 = vld [vmem:[%s5330 + $0x4e0] sm:$0xff]
        %v5488 = vld [vmem:[%s5330 + $0x4e8] sm:$0xff]
        %v5489 = vld [vmem:[%s5330 + $0x4f0] sm:$0xff]
        %v5490 = vld [vmem:[%s5330 + $0x4f8] sm:$0xff]
        %v5491 = vld [vmem:[%s5330 + $0x500] sm:$0xff]
        %v5492 = vld [vmem:[%s5330 + $0x508] sm:$0xff]
        %v5493 = vld [vmem:[%s5330 + $0x510] sm:$0xff]
        %v5494 = vld [vmem:[%s5330 + $0x518] sm:$0xff]
        %v5495 = vld [vmem:[%s5330 + $0x520] sm:$0xff]
        %v5496 = vld [vmem:[%s5330 + $0x528] sm:$0xff]
        %v5497 = vld [vmem:[%s5330 + $0x530] sm:$0xff]
        %v5498 = vld [vmem:[%s5330 + $0x538] sm:$0xff]
        %v5499 = vld [vmem:[%s5330 + $0x540] sm:$0xff]
        %v5500 = vld [vmem:[%s5330 + $0x548] sm:$0xff]
        %v5501 = vld [vmem:[%s5330 + $0x550] sm:$0xff]
        %v5502 = vld [vmem:[%s5330 + $0x558] sm:$0xff]
        %v5503 = vld [vmem:[%s5330 + $0x560] sm:$0xff]
        %v5504 = vld [vmem:[%s5330 + $0x568] sm:$0xff]
        %v5505 = vld [vmem:[%s5330 + $0x570] sm:$0xff]
        %v5506 = vld [vmem:[%s5330 + $0x578] sm:$0xff]
        %v5507 = vld [vmem:[%s5330 + $0x580] sm:$0xff]
        %v5508 = vld [vmem:[%s5330 + $0x588] sm:$0xff]
        %v5509 = vld [vmem:[%s5330 + $0x590] sm:$0xff]
        %v5510 = vld [vmem:[%s5330 + $0x598] sm:$0xff]
        %v5511 = vld [vmem:[%s5330 + $0x5a0] sm:$0xff]
        %v5512 = vld [vmem:[%s5330 + $0x5a8] sm:$0xff]
        %v5513 = vld [vmem:[%s5330 + $0x5b0] sm:$0xff]
        %v5514 = vld [vmem:[%s5330 + $0x5b8] sm:$0xff]
        %v5515 = vld [vmem:[%s5330 + $0x5c0] sm:$0xff]
        %v5516 = vld [vmem:[%s5330 + $0x5c8] sm:$0xff]
        %v5517 = vld [vmem:[%s5330 + $0x5d0] sm:$0xff]
        %v5518 = vld [vmem:[%s5330 + $0x5d8] sm:$0xff]
        %v5519 = vld [vmem:[%s5330 + $0x5e0] sm:$0xff]
        %v5520 = vld [vmem:[%s5330 + $0x5e8] sm:$0xff]
        %v5521 = vld [vmem:[%s5330 + $0x5f0] sm:$0xff]
        %v5522 = vld [vmem:[%s5330 + $0x5f8] sm:$0xff]
        %v5523 = vld [vmem:[%s5330 + $0x600] sm:$0xff]
        %v5524 = vld [vmem:[%s5330 + $0x608] sm:$0xff]
        %v5525 = vld [vmem:[%s5330 + $0x610] sm:$0xff]
        %v5526 = vld [vmem:[%s5330 + $0x618] sm:$0xff]
        %v5527 = vld [vmem:[%s5330 + $0x620] sm:$0xff]
        %v5528 = vld [vmem:[%s5330 + $0x628] sm:$0xff]
        %v5529 = vld [vmem:[%s5330 + $0x630] sm:$0xff]
        %v5530 = vld [vmem:[%s5330 + $0x638] sm:$0xff]
        %v5531 = vld [vmem:[%s5330 + $0x640] sm:$0xff]
        %v5532 = vld [vmem:[%s5330 + $0x648] sm:$0xff]
        %v5533 = vld [vmem:[%s5330 + $0x650] sm:$0xff]
        %v5534 = vld [vmem:[%s5330 + $0x658] sm:$0xff]
        %v5535 = vld [vmem:[%s5330 + $0x660] sm:$0xff]
        %v5536 = vld [vmem:[%s5330 + $0x668] sm:$0xff]
        %v5537 = vld [vmem:[%s5330 + $0x670] sm:$0xff]
        %v5538 = vld [vmem:[%s5330 + $0x678] sm:$0xff]
        %v5539 = vld [vmem:[%s5330 + $0x680] sm:$0xff]
        %v5540 = vld [vmem:[%s5330 + $0x688] sm:$0xff]
        %v5541 = vld [vmem:[%s5330 + $0x690] sm:$0xff]
        %v5542 = vld [vmem:[%s5330 + $0x698] sm:$0xff]
        %v5543 = vld [vmem:[%s5330 + $0x6a0] sm:$0xff]
        %v5544 = vld [vmem:[%s5330 + $0x6a8] sm:$0xff]
        %v5545 = vld [vmem:[%s5330 + $0x6b0] sm:$0xff]
        %v5546 = vld [vmem:[%s5330 + $0x6b8] sm:$0xff]
        %v5547 = vld [vmem:[%s5330 + $0x6c0] sm:$0xff]
        %v5548 = vld [vmem:[%s5330 + $0x6c8] sm:$0xff]
        %v5549 = vld [vmem:[%s5330 + $0x6d0] sm:$0xff]
        %v5550 = vld [vmem:[%s5330 + $0x6d8] sm:$0xff]
        %v5551 = vld [vmem:[%s5330 + $0x6e0] sm:$0xff]
        %v5552 = vld [vmem:[%s5330 + $0x6e8] sm:$0xff]
        %v5553 = vld [vmem:[%s5330 + $0x6f0] sm:$0xff]
        %v5554 = vld [vmem:[%s5330 + $0x6f8] sm:$0xff]
        %v5555 = vld [vmem:[%s5330 + $0x700] sm:$0xff]
        %v5556 = vld [vmem:[%s5330 + $0x708] sm:$0xff]
        %v5557 = vld [vmem:[%s5330 + $0x710] sm:$0xff]
        %v5558 = vld [vmem:[%s5330 + $0x718] sm:$0xff]
        %v5559 = vld [vmem:[%s5330 + $0x720] sm:$0xff]
        %v5560 = vld [vmem:[%s5330 + $0x728] sm:$0xff]
        %v5561 = vld [vmem:[%s5330 + $0x730] sm:$0xff]
        %v5562 = vld [vmem:[%s5330 + $0x738] sm:$0xff]
        %v5563 = vld [vmem:[%s5330 + $0x740] sm:$0xff]
        %v5564 = vld [vmem:[%s5330 + $0x748] sm:$0xff]
        %v5565 = vld [vmem:[%s5330 + $0x750] sm:$0xff]
        %v5566 = vld [vmem:[%s5330 + $0x758] sm:$0xff]
        %v5567 = vld [vmem:[%s5330 + $0x760] sm:$0xff]
        %v5568 = vld [vmem:[%s5330 + $0x768] sm:$0xff]
        %v5569 = vld [vmem:[%s5330 + $0x770] sm:$0xff]
        %v5570 = vld [vmem:[%s5330 + $0x778] sm:$0xff]
        %v5571 = vld [vmem:[%s5330 + $0x780] sm:$0xff]
        %v5572 = vld [vmem:[%s5330 + $0x788] sm:$0xff]
        %v5573 = vld [vmem:[%s5330 + $0x790] sm:$0xff]
        %v5574 = vld [vmem:[%s5330 + $0x798] sm:$0xff]
        %v5575 = vld [vmem:[%s5330 + $0x7a0] sm:$0xff]
        %v5576 = vld [vmem:[%s5330 + $0x7a8] sm:$0xff]
        %v5577 = vld [vmem:[%s5330 + $0x7b0] sm:$0xff]
        %v5578 = vld [vmem:[%s5330 + $0x7b8] sm:$0xff]
        %v5579 = vld [vmem:[%s5330 + $0x7c0] sm:$0xff]
        %v5580 = vld [vmem:[%s5330 + $0x7c8] sm:$0xff]
        %v5581 = vld [vmem:[%s5330 + $0x7d0] sm:$0xff]
        %v5582 = vld [vmem:[%s5330 + $0x7d8] sm:$0xff]
        %v5583 = vld [vmem:[%s5330 + $0x7e0] sm:$0xff]
        %v5584 = vld [vmem:[%s5330 + $0x7e8] sm:$0xff]
        %v5585 = vld [vmem:[%s5330 + $0x7f0] sm:$0xff]
        %v5586 = vld [vmem:[%s5330 + $0x7f8] sm:$0xff]
        %v5587 = vld [vmem:[%s5330 + $0x800] sm:$0xff]
        %v5588 = vld [vmem:[%s5330 + $0x808] sm:$0xff]
        %v5589 = vld [vmem:[%s5330 + $0x810] sm:$0xff]
        %v5590 = vld [vmem:[%s5330 + $0x818] sm:$0xff]
        %v5591 = vld [vmem:[%s5330 + $0x820] sm:$0xff]
        %v5592 = vld [vmem:[%s5330 + $0x828] sm:$0xff]
        %v5593 = vld [vmem:[%s5330 + $0x830] sm:$0xff]
        %v5594 = vld [vmem:[%s5330 + $0x838] sm:$0xff]
        %v5595 = vld [vmem:[%s5330 + $0x840] sm:$0xff]
        %v5596 = vld [vmem:[%s5330 + $0x848] sm:$0xff]
        %v5597 = vld [vmem:[%s5330 + $0x850] sm:$0xff]
        %v5598 = vld [vmem:[%s5330 + $0x858] sm:$0xff]
        %v5599 = vld [vmem:[%s5330 + $0x860] sm:$0xff]
        %v5600 = vld [vmem:[%s5330 + $0x868] sm:$0xff]
        %v5601 = vld [vmem:[%s5330 + $0x870] sm:$0xff]
        %v5602 = vld [vmem:[%s5330 + $0x878] sm:$0xff]
        %v5603 = vld [vmem:[%s5330 + $0x880] sm:$0xff]
        %v5604 = vld [vmem:[%s5330 + $0x888] sm:$0xff]
        %v5605 = vld [vmem:[%s5330 + $0x890] sm:$0xff]
        %v5606 = vld [vmem:[%s5330 + $0x898] sm:$0xff]
        %v5607 = vld [vmem:[%s5330 + $0x8a0] sm:$0xff]
        %v5608 = vld [vmem:[%s5330 + $0x8a8] sm:$0xff]
        %v5609 = vld [vmem:[%s5330 + $0x8b0] sm:$0xff]
        %v5610 = vld [vmem:[%s5330 + $0x8b8] sm:$0xff]
        %v5611 = vld [vmem:[%s5330 + $0x8c0] sm:$0xff]
        %v5612 = vld [vmem:[%s5330 + $0x8c8] sm:$0xff]
        %v5613 = vld [vmem:[%s5330 + $0x8d0] sm:$0xff]
        %v5614 = vld [vmem:[%s5330 + $0x8d8] sm:$0xff]
        %v5615 = vld [vmem:[%s5330 + $0x8e0] sm:$0xff]
        %v5616 = vld [vmem:[%s5330 + $0x8e8] sm:$0xff]
        %v5617 = vld [vmem:[%s5330 + $0x8f0] sm:$0xff]
        %v5618 = vld [vmem:[%s5330 + $0x8f8] sm:$0xff]
        %v5619 = vld [vmem:[%s5330 + $0x900] sm:$0xff]
        %v5620 = vld [vmem:[%s5330 + $0x908] sm:$0xff]
        %v5621 = vld [vmem:[%s5330 + $0x910] sm:$0xff]
        %v5622 = vld [vmem:[%s5330 + $0x918] sm:$0xff]
        %v5623 = vld [vmem:[%s5330 + $0x920] sm:$0xff]
        %v5624 = vld [vmem:[%s5330 + $0x928] sm:$0xff]
        %v5625 = vld [vmem:[%s5330 + $0x930] sm:$0xff]
        %v5626 = vld [vmem:[%s5330 + $0x938] sm:$0xff]
        %v5627 = vld [vmem:[%s5330 + $0x940] sm:$0xff]
        %v5628 = vld [vmem:[%s5330 + $0x948] sm:$0xff]
        %v5629 = vld [vmem:[%s5330 + $0x950] sm:$0xff]
        %v5630 = vld [vmem:[%s5330 + $0x958] sm:$0xff]
        %v5631 = vld [vmem:[%s5330 + $0x960] sm:$0xff]
        %v5632 = vld [vmem:[%s5330 + $0x968] sm:$0xff]
        %v5633 = vld [vmem:[%s5330 + $0x970] sm:$0xff]
        %v5634 = vld [vmem:[%s5330 + $0x978] sm:$0xff]
        %v5635 = vld [vmem:[%s5330 + $0x980] sm:$0xff]
        %v5636 = vld [vmem:[%s5330 + $0x988] sm:$0xff]
        %v5637 = vld [vmem:[%s5330 + $0x990] sm:$0xff]
        %v5638 = vld [vmem:[%s5330 + $0x998] sm:$0xff]
        %v5639 = vld [vmem:[%s5330 + $0x9a0] sm:$0xff]
        %v5640 = vld [vmem:[%s5330 + $0x9a8] sm:$0xff]
        %v5641 = vld [vmem:[%s5330 + $0x9b0] sm:$0xff]
        %v5642 = vld [vmem:[%s5330 + $0x9b8] sm:$0xff]
        %v5643 = vld [vmem:[%s5330 + $0x9c0] sm:$0xff]
        %v5644 = vld [vmem:[%s5330 + $0x9c8] sm:$0xff]
        %v5645 = vld [vmem:[%s5330 + $0x9d0] sm:$0xff]
        %v5646 = vld [vmem:[%s5330 + $0x9d8] sm:$0xff]
        %v5647 = vld [vmem:[%s5330 + $0x9e0] sm:$0xff]
        %v5648 = vld [vmem:[%s5330 + $0x9e8] sm:$0xff]
        %v5649 = vld [vmem:[%s5330 + $0x9f0] sm:$0xff]
        %v5650 = vld [vmem:[%s5330 + $0x9f8] sm:$0xff]
        %v5651 = vld [vmem:[%s5330 + $0xa00] sm:$0xff]
        %v5652 = vld [vmem:[%s5330 + $0xa08] sm:$0xff]
        %v5653 = vld [vmem:[%s5330 + $0xa10] sm:$0xff]
        %v5654 = vld [vmem:[%s5330 + $0xa18] sm:$0xff]
        %v5655 = vld [vmem:[%s5330 + $0xa20] sm:$0xff]
        %v5656 = vld [vmem:[%s5330 + $0xa28] sm:$0xff]
        %v5657 = vld [vmem:[%s5330 + $0xa30] sm:$0xff]
        %v5658 = vld [vmem:[%s5330 + $0xa38] sm:$0xff]
        %v5659 = vld [vmem:[%s5330 + $0xa40] sm:$0xff]
        %v5660 = vld [vmem:[%s5330 + $0xa48] sm:$0xff]
        %v5661 = vld [vmem:[%s5330 + $0xa50] sm:$0xff]
        %v5662 = vld [vmem:[%s5330 + $0xa58] sm:$0xff]
        %v5663 = vld [vmem:[%s5330 + $0xa60] sm:$0xff]
        %v5664 = vld [vmem:[%s5330 + $0xa68] sm:$0xff]
        %v5665 = vld [vmem:[%s5330 + $0xa70] sm:$0xff]
        %v5666 = vld [vmem:[%s5330 + $0xa78] sm:$0xff]
        %v5667 = vld [vmem:[%s5330 + $0xa80] sm:$0xff]
        %v5668 = vld [vmem:[%s5330 + $0xa88] sm:$0xff]
        %v5669 = vld [vmem:[%s5330 + $0xa90] sm:$0xff]
        %v5670 = vld [vmem:[%s5330 + $0xa98] sm:$0xff]
        %v5671 = vld [vmem:[%s5330 + $0xaa0] sm:$0xff]
        %v5672 = vld [vmem:[%s5330 + $0xaa8] sm:$0xff]
        %v5673 = vld [vmem:[%s5330 + $0xab0] sm:$0xff]
        %v5674 = vld [vmem:[%s5330 + $0xab8] sm:$0xff]
        %v5675 = vld [vmem:[%s5330 + $0xac0] sm:$0xff]
        %v5676 = vld [vmem:[%s5330 + $0xac8] sm:$0xff]
        %v5677 = vld [vmem:[%s5330 + $0xad0] sm:$0xff]
        %v5678 = vld [vmem:[%s5330 + $0xad8] sm:$0xff]
        %v5679 = vld [vmem:[%s5330 + $0xae0] sm:$0xff]
        %v5680 = vld [vmem:[%s5330 + $0xae8] sm:$0xff]
        %v5681 = vld [vmem:[%s5330 + $0xaf0] sm:$0xff]
        %v5682 = vld [vmem:[%s5330 + $0xaf8] sm:$0xff]
        %v5683 = vld [vmem:[%s5330 + $0xb00] sm:$0xff]
        %v5684 = vld [vmem:[%s5330 + $0xb08] sm:$0xff]
        %v5685 = vld [vmem:[%s5330 + $0xb10] sm:$0xff]
        %v5686 = vld [vmem:[%s5330 + $0xb18] sm:$0xff]
        %v5687 = vld [vmem:[%s5330 + $0xb20] sm:$0xff]
        %v5688 = vld [vmem:[%s5330 + $0xb28] sm:$0xff]
        %v5689 = vld [vmem:[%s5330 + $0xb30] sm:$0xff]
        %v5690 = vld [vmem:[%s5330 + $0xb38] sm:$0xff]
        %v5691 = vld [vmem:[%s5330 + $0xb40] sm:$0xff]
        %v5692 = vld [vmem:[%s5330 + $0xb48] sm:$0xff]
        %v5693 = vld [vmem:[%s5330 + $0xb50] sm:$0xff]
        %v5694 = vld [vmem:[%s5330 + $0xb58] sm:$0xff]
        %v5695 = vld [vmem:[%s5330 + $0xb60] sm:$0xff]
        %v5696 = vld [vmem:[%s5330 + $0xb68] sm:$0xff]
        %v5697 = vld [vmem:[%s5330 + $0xb70] sm:$0xff]
        %v5698 = vld [vmem:[%s5330 + $0xb78] sm:$0xff]
        %v5699 = vld [vmem:[%s5330 + $0xb80] sm:$0xff]
        %v5700 = vld [vmem:[%s5330 + $0xb88] sm:$0xff]
        %v5701 = vld [vmem:[%s5330 + $0xb90] sm:$0xff]
        %v5702 = vld [vmem:[%s5330 + $0xb98] sm:$0xff]
        %v5703 = vld [vmem:[%s5330 + $0xba0] sm:$0xff]
        %v5704 = vld [vmem:[%s5330 + $0xba8] sm:$0xff]
        %v5705 = vld [vmem:[%s5330 + $0xbb0] sm:$0xff]
        %v5706 = vld [vmem:[%s5330 + $0xbb8] sm:$0xff]
        %v5707 = vld [vmem:[%s5330 + $0xbc0] sm:$0xff]
        %v5708 = vld [vmem:[%s5330 + $0xbc8] sm:$0xff]
        %v5709 = vld [vmem:[%s5330 + $0xbd0] sm:$0xff]
        %v5710 = vld [vmem:[%s5330 + $0xbd8] sm:$0xff]
        %v5711 = vld [vmem:[%s5330 + $0xbe0] sm:$0xff]
        %v5712 = vld [vmem:[%s5330 + $0xbe8] sm:$0xff]
        %v5713 = vld [vmem:[%s5330 + $0xbf0] sm:$0xff]
        %v5714 = vld [vmem:[%s5330 + $0xbf8] sm:$0xff]
        %v5715 = vld [vmem:[%s5330 + $0xc00] sm:$0xff]
        %v5716 = vld [vmem:[%s5330 + $0xc08] sm:$0xff]
        %v5717 = vld [vmem:[%s5330 + $0xc10] sm:$0xff]
        %v5718 = vld [vmem:[%s5330 + $0xc18] sm:$0xff]
        %v5719 = vld [vmem:[%s5330 + $0xc20] sm:$0xff]
        %v5720 = vld [vmem:[%s5330 + $0xc28] sm:$0xff]
        %v5721 = vld [vmem:[%s5330 + $0xc30] sm:$0xff]
        %v5722 = vld [vmem:[%s5330 + $0xc38] sm:$0xff]
        %v5723 = vld [vmem:[%s5330 + $0xc40] sm:$0xff]
        %v5724 = vld [vmem:[%s5330 + $0xc48] sm:$0xff]
        %v5725 = vld [vmem:[%s5330 + $0xc50] sm:$0xff]
        %v5726 = vld [vmem:[%s5330 + $0xc58] sm:$0xff]
        %v5727 = vld [vmem:[%s5330 + $0xc60] sm:$0xff]
        %v5728 = vld [vmem:[%s5330 + $0xc68] sm:$0xff]
        %v5729 = vld [vmem:[%s5330 + $0xc70] sm:$0xff]
        %v5730 = vld [vmem:[%s5330 + $0xc78] sm:$0xff]
        %v5731 = vld [vmem:[%s5330 + $0xc80] sm:$0xff]
        %v5732 = vld [vmem:[%s5330 + $0xc88] sm:$0xff]
        %v5733 = vld [vmem:[%s5330 + $0xc90] sm:$0xff]
        %v5734 = vld [vmem:[%s5330 + $0xc98] sm:$0xff]
        %v5735 = vld [vmem:[%s5330 + $0xca0] sm:$0xff]
        %v5736 = vld [vmem:[%s5330 + $0xca8] sm:$0xff]
        %v5737 = vld [vmem:[%s5330 + $0xcb0] sm:$0xff]
        %v5738 = vld [vmem:[%s5330 + $0xcb8] sm:$0xff]
        %v5739 = vld [vmem:[%s5330 + $0xcc0] sm:$0xff]
        %v5740 = vld [vmem:[%s5330 + $0xcc8] sm:$0xff]
        %v5741 = vld [vmem:[%s5330 + $0xcd0] sm:$0xff]
        %v5742 = vld [vmem:[%s5330 + $0xcd8] sm:$0xff]
        %v5743 = vld [vmem:[%s5330 + $0xce0] sm:$0xff]
        %v5744 = vld [vmem:[%s5330 + $0xce8] sm:$0xff]
        %v5745 = vld [vmem:[%s5330 + $0xcf0] sm:$0xff]
        %v5746 = vld [vmem:[%s5330 + $0xcf8] sm:$0xff]
        %v5747 = vld [vmem:[%s5330 + $0xd00] sm:$0xff]
        %v5748 = vld [vmem:[%s5330 + $0xd08] sm:$0xff]
        %v5749 = vld [vmem:[%s5330 + $0xd10] sm:$0xff]
        %v5750 = vld [vmem:[%s5330 + $0xd18] sm:$0xff]
        %v5751 = vld [vmem:[%s5330 + $0xd20] sm:$0xff]
        %v5752 = vld [vmem:[%s5330 + $0xd28] sm:$0xff]
        %v5753 = vld [vmem:[%s5330 + $0xd30] sm:$0xff]
        %v5754 = vld [vmem:[%s5330 + $0xd38] sm:$0xff]
        %v5755 = vld [vmem:[%s5330 + $0xd40] sm:$0xff]
        %v5756 = vld [vmem:[%s5330 + $0xd48] sm:$0xff]
        %v5757 = vld [vmem:[%s5330 + $0xd50] sm:$0xff]
        %v5758 = vld [vmem:[%s5330 + $0xd58] sm:$0xff]
        %v5759 = vld [vmem:[%s5330 + $0xd60] sm:$0xff]
        %v5760 = vld [vmem:[%s5330 + $0xd68] sm:$0xff]
        %v5761 = vld [vmem:[%s5330 + $0xd70] sm:$0xff]
        %v5762 = vld [vmem:[%s5330 + $0xd78] sm:$0xff]
        %v5763 = vld [vmem:[%s5330 + $0xd80] sm:$0xff]
        %v5764 = vld [vmem:[%s5330 + $0xd88] sm:$0xff]
        %v5765 = vld [vmem:[%s5330 + $0xd90] sm:$0xff]
        %v5766 = vld [vmem:[%s5330 + $0xd98] sm:$0xff]
        %v5767 = vld [vmem:[%s5330 + $0xda0] sm:$0xff]
        %v5768 = vld [vmem:[%s5330 + $0xda8] sm:$0xff]
        %v5769 = vld [vmem:[%s5330 + $0xdb0] sm:$0xff]
        %v5770 = vld [vmem:[%s5330 + $0xdb8] sm:$0xff]
        %v5771 = vld [vmem:[%s5330 + $0xdc0] sm:$0xff]
        %v5772 = vld [vmem:[%s5330 + $0xdc8] sm:$0xff]
        %v5773 = vld [vmem:[%s5330 + $0xdd0] sm:$0xff]
        %v5774 = vld [vmem:[%s5330 + $0xdd8] sm:$0xff]
        %v5775 = vld [vmem:[%s5330 + $0xde0] sm:$0xff]
        %v5776 = vld [vmem:[%s5330 + $0xde8] sm:$0xff]
        %v5777 = vld [vmem:[%s5330 + $0xdf0] sm:$0xff]
        %v5778 = vld [vmem:[%s5330 + $0xdf8] sm:$0xff]
        %v5779 = vld [vmem:[%s5330 + $0xe00] sm:$0xff]
        %v5780 = vld [vmem:[%s5330 + $0xe08] sm:$0xff]
        %v5781 = vld [vmem:[%s5330 + $0xe10] sm:$0xff]
        %v5782 = vld [vmem:[%s5330 + $0xe18] sm:$0xff]
        %v5783 = vld [vmem:[%s5330 + $0xe20] sm:$0xff]
        %v5784 = vld [vmem:[%s5330 + $0xe28] sm:$0xff]
        %v5785 = vld [vmem:[%s5330 + $0xe30] sm:$0xff]
        %v5786 = vld [vmem:[%s5330 + $0xe38] sm:$0xff]
        %v5787 = vld [vmem:[%s5330 + $0xe40] sm:$0xff]
        %v5788 = vld [vmem:[%s5330 + $0xe48] sm:$0xff]
        %v5789 = vld [vmem:[%s5330 + $0xe50] sm:$0xff]
        %v5790 = vld [vmem:[%s5330 + $0xe58] sm:$0xff]
        %v5791 = vld [vmem:[%s5330 + $0xe60] sm:$0xff]
        %v5792 = vld [vmem:[%s5330 + $0xe68] sm:$0xff]
        %v5793 = vld [vmem:[%s5330 + $0xe70] sm:$0xff]
        %v5794 = vld [vmem:[%s5330 + $0xe78] sm:$0xff]
        %v5795 = vld [vmem:[%s5330 + $0xe80] sm:$0xff]
        %v5796 = vld [vmem:[%s5330 + $0xe88] sm:$0xff]
        %v5797 = vld [vmem:[%s5330 + $0xe90] sm:$0xff]
        %v5798 = vld [vmem:[%s5330 + $0xe98] sm:$0xff]
        %v5799 = vld [vmem:[%s5330 + $0xea0] sm:$0xff]
        %v5800 = vld [vmem:[%s5330 + $0xea8] sm:$0xff]
        %v5801 = vld [vmem:[%s5330 + $0xeb0] sm:$0xff]
        %v5802 = vld [vmem:[%s5330 + $0xeb8] sm:$0xff]
        %v5803 = vld [vmem:[%s5330 + $0xec0] sm:$0xff]
        %v5804 = vld [vmem:[%s5330 + $0xec8] sm:$0xff]
        %v5805 = vld [vmem:[%s5330 + $0xed0] sm:$0xff]
        %v5806 = vld [vmem:[%s5330 + $0xed8] sm:$0xff]
        %v5807 = vld [vmem:[%s5330 + $0xee0] sm:$0xff]
        %v5808 = vld [vmem:[%s5330 + $0xee8] sm:$0xff]
        %v5809 = vld [vmem:[%s5330 + $0xef0] sm:$0xff]
        %v5810 = vld [vmem:[%s5330 + $0xef8] sm:$0xff]
        %v5811 = vld [vmem:[%s5330 + $0xf00] sm:$0xff]
        %v5812 = vld [vmem:[%s5330 + $0xf08] sm:$0xff]
        %v5813 = vld [vmem:[%s5330 + $0xf10] sm:$0xff]
        %v5814 = vld [vmem:[%s5330 + $0xf18] sm:$0xff]
        %v5815 = vld [vmem:[%s5330 + $0xf20] sm:$0xff]
        %v5816 = vld [vmem:[%s5330 + $0xf28] sm:$0xff]
        %v5817 = vld [vmem:[%s5330 + $0xf30] sm:$0xff]
        %v5818 = vld [vmem:[%s5330 + $0xf38] sm:$0xff]
        %v5819 = vld [vmem:[%s5330 + $0xf40] sm:$0xff]
        %v5820 = vld [vmem:[%s5330 + $0xf48] sm:$0xff]
        %v5821 = vld [vmem:[%s5330 + $0xf50] sm:$0xff]
        %v5822 = vld [vmem:[%s5330 + $0xf58] sm:$0xff]
        %v5823 = vld [vmem:[%s5330 + $0xf60] sm:$0xff]
        %v5824 = vld [vmem:[%s5330 + $0xf68] sm:$0xff]
        %v5825 = vld [vmem:[%s5330 + $0xf70] sm:$0xff]
        %v5826 = vld [vmem:[%s5330 + $0xf78] sm:$0xff]
        %v5827 = vld [vmem:[%s5330 + $0xf80] sm:$0xff]
        %v5828 = vld [vmem:[%s5330 + $0xf88] sm:$0xff]
        %v5829 = vld [vmem:[%s5330 + $0xf90] sm:$0xff]
        %v5830 = vld [vmem:[%s5330 + $0xf98] sm:$0xff]
        %v5831 = vld [vmem:[%s5330 + $0xfa0] sm:$0xff]
        %v5832 = vld [vmem:[%s5330 + $0xfa8] sm:$0xff]
        %v5833 = vld [vmem:[%s5330 + $0xfb0] sm:$0xff]
        %v5834 = vld [vmem:[%s5330 + $0xfb8] sm:$0xff]
        %v5835 = vld [vmem:[%s5330 + $0xfc0] sm:$0xff]
        %v5836 = vld [vmem:[%s5330 + $0xfc8] sm:$0xff]
        %v5837 = vld [vmem:[%s5330 + $0xfd0] sm:$0xff]
        %v5838 = vld [vmem:[%s5330 + $0xfd8] sm:$0xff]
        %v5839 = vld [vmem:[%s5330 + $0xfe0] sm:$0xff]
        %v5840 = vld [vmem:[%s5330 + $0xfe8] sm:$0xff]
        %v5841 = vld [vmem:[%s5330 + $0xff0] sm:$0xff]
        %v5842 = vld [vmem:[%s5330 + $0xff8] sm:$0xff]
        %s5843 = scalar_lea.vmem %s432, 4 [#allocation9]
        %v5844 = vld [vmem:[%s5843] sm:$0xf]
        %v5846 = vperm.slane %v5844, 0
        %v5847 = vperm.slane %v5844, 1
        %v5848 = vperm.slane %v5844, 2
        %v5849 = vperm.slane %v5844, 3
        %v5862 = vunpack.c.l.b16 %v5322
        %v5863 = vunpack.c.h.b16 %v5322
        %v5864 = vunpack.c.l.b16 %v5323
        %v5865 = vunpack.c.h.b16 %v5323
        %v5866 = vunpack.c.l.b16 %v5324
        %v5867 = vunpack.c.h.b16 %v5324
        %v5868 = vunpack.c.l.b16 %v5325
        %v5869 = vunpack.c.h.b16 %v5325
        %v5870 = vunpack.c.l.b16 %v5326
        %v5871 = vunpack.c.h.b16 %v5326
        %v5872 = vunpack.c.l.b16 %v5327
        %v5873 = vunpack.c.h.b16 %v5327
        %v5874 = vunpack.c.l.b16 %v5328
        %v5875 = vunpack.c.h.b16 %v5328
        %v5876 = vunpack.c.l.b16 %v5329
        %v5877 = vunpack.c.h.b16 %v5329
        %v5878 = vpack.c.b16 %v5862, %v5862
        %v5879 = vpack.c.b16 %v5863, %v5863
        %v5880 = vpack.c.b16 %v5864, %v5864
        %v5881 = vpack.c.b16 %v5865, %v5865
        %v5882 = vpack.c.b16 %v5866, %v5866
        %v5883 = vpack.c.b16 %v5867, %v5867
        %v5884 = vpack.c.b16 %v5868, %v5868
        %v5885 = vpack.c.b16 %v5869, %v5869
        %v5886 = vpack.c.b16 %v5870, %v5870
        %v5887 = vpack.c.b16 %v5871, %v5871
        %v5888 = vpack.c.b16 %v5872, %v5872
        %v5889 = vpack.c.b16 %v5873, %v5873
        %v5890 = vpack.c.b16 %v5874, %v5874
        %v5891 = vpack.c.b16 %v5875, %v5875
        %v5892 = vpack.c.b16 %v5876, %v5876
        %v5893 = vpack.c.b16 %v5877, %v5877
        %v6422 = vunpack.c.l.b16 %v5331
        %v6423 = vunpack.c.h.b16 %v5331
        %v6424 = vunpack.c.l.b16 %v5332
        %v6425 = vunpack.c.h.b16 %v5332
        %v6426 = vunpack.c.l.b16 %v5333
        %v6427 = vunpack.c.h.b16 %v5333
        %v6428 = vunpack.c.l.b16 %v5334
        %v6429 = vunpack.c.h.b16 %v5334
        %v6430 = vunpack.c.l.b16 %v5335
        %v6431 = vunpack.c.h.b16 %v5335
        %v6432 = vunpack.c.l.b16 %v5336
        %v6433 = vunpack.c.h.b16 %v5336
        %v6434 = vunpack.c.l.b16 %v5337
        %v6435 = vunpack.c.h.b16 %v5337
        %v6436 = vunpack.c.l.b16 %v5338
        %v6437 = vunpack.c.h.b16 %v5338
        %v6438 = vunpack.c.l.b16 %v5339
        %v6439 = vunpack.c.h.b16 %v5339
        %v6440 = vunpack.c.l.b16 %v5340
        %v6441 = vunpack.c.h.b16 %v5340
        %v6442 = vunpack.c.l.b16 %v5341
        %v6443 = vunpack.c.h.b16 %v5341
        %v6444 = vunpack.c.l.b16 %v5342
        %v6445 = vunpack.c.h.b16 %v5342
        %v6446 = vunpack.c.l.b16 %v5343
        %v6447 = vunpack.c.h.b16 %v5343
        %v6448 = vunpack.c.l.b16 %v5344
        %v6449 = vunpack.c.h.b16 %v5344
        %v6450 = vunpack.c.l.b16 %v5345
        %v6451 = vunpack.c.h.b16 %v5345
        %v6452 = vunpack.c.l.b16 %v5346
        %v6453 = vunpack.c.h.b16 %v5346
        %v6454 = vunpack.c.l.b16 %v5347
        %v6455 = vunpack.c.h.b16 %v5347
        %v6456 = vunpack.c.l.b16 %v5348
        %v6457 = vunpack.c.h.b16 %v5348
        %v6458 = vunpack.c.l.b16 %v5349
        %v6459 = vunpack.c.h.b16 %v5349
        %v6460 = vunpack.c.l.b16 %v5350
        %v6461 = vunpack.c.h.b16 %v5350
        %v6462 = vunpack.c.l.b16 %v5351
        %v6463 = vunpack.c.h.b16 %v5351
        %v6464 = vunpack.c.l.b16 %v5352
        %v6465 = vunpack.c.h.b16 %v5352
        %v6466 = vunpack.c.l.b16 %v5353
        %v6467 = vunpack.c.h.b16 %v5353
        %v6468 = vunpack.c.l.b16 %v5354
        %v6469 = vunpack.c.h.b16 %v5354
        %v6470 = vunpack.c.l.b16 %v5355
        %v6471 = vunpack.c.h.b16 %v5355
        %v6472 = vunpack.c.l.b16 %v5356
        %v6473 = vunpack.c.h.b16 %v5356
        %v6474 = vunpack.c.l.b16 %v5357
        %v6475 = vunpack.c.h.b16 %v5357
        %v6476 = vunpack.c.l.b16 %v5358
        %v6477 = vunpack.c.h.b16 %v5358
        %v6478 = vunpack.c.l.b16 %v5359
        %v6479 = vunpack.c.h.b16 %v5359
        %v6480 = vunpack.c.l.b16 %v5360
        %v6481 = vunpack.c.h.b16 %v5360
        %v6482 = vunpack.c.l.b16 %v5361
        %v6483 = vunpack.c.h.b16 %v5361
        %v6484 = vunpack.c.l.b16 %v5362
        %v6485 = vunpack.c.h.b16 %v5362
        %v6486 = vunpack.c.l.b16 %v5363
        %v6487 = vunpack.c.h.b16 %v5363
        %v6488 = vunpack.c.l.b16 %v5364
        %v6489 = vunpack.c.h.b16 %v5364
        %v6490 = vunpack.c.l.b16 %v5365
        %v6491 = vunpack.c.h.b16 %v5365
        %v6492 = vunpack.c.l.b16 %v5366
        %v6493 = vunpack.c.h.b16 %v5366
        %v6494 = vunpack.c.l.b16 %v5367
        %v6495 = vunpack.c.h.b16 %v5367
        %v6496 = vunpack.c.l.b16 %v5368
        %v6497 = vunpack.c.h.b16 %v5368
        %v6498 = vunpack.c.l.b16 %v5369
        %v6499 = vunpack.c.h.b16 %v5369
        %v6500 = vunpack.c.l.b16 %v5370
        %v6501 = vunpack.c.h.b16 %v5370
        %v6502 = vunpack.c.l.b16 %v5371
        %v6503 = vunpack.c.h.b16 %v5371
        %v6504 = vunpack.c.l.b16 %v5372
        %v6505 = vunpack.c.h.b16 %v5372
        %v6506 = vunpack.c.l.b16 %v5373
        %v6507 = vunpack.c.h.b16 %v5373
        %v6508 = vunpack.c.l.b16 %v5374
        %v6509 = vunpack.c.h.b16 %v5374
        %v6510 = vunpack.c.l.b16 %v5375
        %v6511 = vunpack.c.h.b16 %v5375
        %v6512 = vunpack.c.l.b16 %v5376
        %v6513 = vunpack.c.h.b16 %v5376
        %v6514 = vunpack.c.l.b16 %v5377
        %v6515 = vunpack.c.h.b16 %v5377
        %v6516 = vunpack.c.l.b16 %v5378
        %v6517 = vunpack.c.h.b16 %v5378
        %v6518 = vunpack.c.l.b16 %v5379
        %v6519 = vunpack.c.h.b16 %v5379
        %v6520 = vunpack.c.l.b16 %v5380
        %v6521 = vunpack.c.h.b16 %v5380
        %v6522 = vunpack.c.l.b16 %v5381
        %v6523 = vunpack.c.h.b16 %v5381
        %v6524 = vunpack.c.l.b16 %v5382
        %v6525 = vunpack.c.h.b16 %v5382
        %v6526 = vunpack.c.l.b16 %v5383
        %v6527 = vunpack.c.h.b16 %v5383
        %v6528 = vunpack.c.l.b16 %v5384
        %v6529 = vunpack.c.h.b16 %v5384
        %v6530 = vunpack.c.l.b16 %v5385
        %v6531 = vunpack.c.h.b16 %v5385
        %v6532 = vunpack.c.l.b16 %v5386
        %v6533 = vunpack.c.h.b16 %v5386
        %v6534 = vunpack.c.l.b16 %v5387
        %v6535 = vunpack.c.h.b16 %v5387
        %v6536 = vunpack.c.l.b16 %v5388
        %v6537 = vunpack.c.h.b16 %v5388
        %v6538 = vunpack.c.l.b16 %v5389
        %v6539 = vunpack.c.h.b16 %v5389
        %v6540 = vunpack.c.l.b16 %v5390
        %v6541 = vunpack.c.h.b16 %v5390
        %v6542 = vunpack.c.l.b16 %v5391
        %v6543 = vunpack.c.h.b16 %v5391
        %v6544 = vunpack.c.l.b16 %v5392
        %v6545 = vunpack.c.h.b16 %v5392
        %v6546 = vunpack.c.l.b16 %v5393
        %v6547 = vunpack.c.h.b16 %v5393
        %v6548 = vunpack.c.l.b16 %v5394
        %v6549 = vunpack.c.h.b16 %v5394
        %v6550 = vunpack.c.l.b16 %v5395
        %v6551 = vunpack.c.h.b16 %v5395
        %v6552 = vunpack.c.l.b16 %v5396
        %v6553 = vunpack.c.h.b16 %v5396
        %v6554 = vunpack.c.l.b16 %v5397
        %v6555 = vunpack.c.h.b16 %v5397
        %v6556 = vunpack.c.l.b16 %v5398
        %v6557 = vunpack.c.h.b16 %v5398
        %v6558 = vunpack.c.l.b16 %v5399
        %v6559 = vunpack.c.h.b16 %v5399
        %v6560 = vunpack.c.l.b16 %v5400
        %v6561 = vunpack.c.h.b16 %v5400
        %v6562 = vunpack.c.l.b16 %v5401
        %v6563 = vunpack.c.h.b16 %v5401
        %v6564 = vunpack.c.l.b16 %v5402
        %v6565 = vunpack.c.h.b16 %v5402
        %v6566 = vunpack.c.l.b16 %v5403
        %v6567 = vunpack.c.h.b16 %v5403
        %v6568 = vunpack.c.l.b16 %v5404
        %v6569 = vunpack.c.h.b16 %v5404
        %v6570 = vunpack.c.l.b16 %v5405
        %v6571 = vunpack.c.h.b16 %v5405
        %v6572 = vunpack.c.l.b16 %v5406
        %v6573 = vunpack.c.h.b16 %v5406
        %v6574 = vunpack.c.l.b16 %v5407
        %v6575 = vunpack.c.h.b16 %v5407
        %v6576 = vunpack.c.l.b16 %v5408
        %v6577 = vunpack.c.h.b16 %v5408
        %v6578 = vunpack.c.l.b16 %v5409
        %v6579 = vunpack.c.h.b16 %v5409
        %v6580 = vunpack.c.l.b16 %v5410
        %v6581 = vunpack.c.h.b16 %v5410
        %v6582 = vunpack.c.l.b16 %v5411
        %v6583 = vunpack.c.h.b16 %v5411
        %v6584 = vunpack.c.l.b16 %v5412
        %v6585 = vunpack.c.h.b16 %v5412
        %v6586 = vunpack.c.l.b16 %v5413
        %v6587 = vunpack.c.h.b16 %v5413
        %v6588 = vunpack.c.l.b16 %v5414
        %v6589 = vunpack.c.h.b16 %v5414
        %v6590 = vunpack.c.l.b16 %v5415
        %v6591 = vunpack.c.h.b16 %v5415
        %v6592 = vunpack.c.l.b16 %v5416
        %v6593 = vunpack.c.h.b16 %v5416
        %v6594 = vunpack.c.l.b16 %v5417
        %v6595 = vunpack.c.h.b16 %v5417
        %v6596 = vunpack.c.l.b16 %v5418
        %v6597 = vunpack.c.h.b16 %v5418
        %v6598 = vunpack.c.l.b16 %v5419
        %v6599 = vunpack.c.h.b16 %v5419
        %v6600 = vunpack.c.l.b16 %v5420
        %v6601 = vunpack.c.h.b16 %v5420
        %v6602 = vunpack.c.l.b16 %v5421
        %v6603 = vunpack.c.h.b16 %v5421
        %v6604 = vunpack.c.l.b16 %v5422
        %v6605 = vunpack.c.h.b16 %v5422
        %v6606 = vunpack.c.l.b16 %v5423
        %v6607 = vunpack.c.h.b16 %v5423
        %v6608 = vunpack.c.l.b16 %v5424
        %v6609 = vunpack.c.h.b16 %v5424
        %v6610 = vunpack.c.l.b16 %v5425
        %v6611 = vunpack.c.h.b16 %v5425
        %v6612 = vunpack.c.l.b16 %v5426
        %v6613 = vunpack.c.h.b16 %v5426
        %v6614 = vunpack.c.l.b16 %v5427
        %v6615 = vunpack.c.h.b16 %v5427
        %v6616 = vunpack.c.l.b16 %v5428
        %v6617 = vunpack.c.h.b16 %v5428
        %v6618 = vunpack.c.l.b16 %v5429
        %v6619 = vunpack.c.h.b16 %v5429
        %v6620 = vunpack.c.l.b16 %v5430
        %v6621 = vunpack.c.h.b16 %v5430
        %v6622 = vunpack.c.l.b16 %v5431
        %v6623 = vunpack.c.h.b16 %v5431
        %v6624 = vunpack.c.l.b16 %v5432
        %v6625 = vunpack.c.h.b16 %v5432
        %v6626 = vunpack.c.l.b16 %v5433
        %v6627 = vunpack.c.h.b16 %v5433
        %v6628 = vunpack.c.l.b16 %v5434
        %v6629 = vunpack.c.h.b16 %v5434
        %v6630 = vunpack.c.l.b16 %v5435
        %v6631 = vunpack.c.h.b16 %v5435
        %v6632 = vunpack.c.l.b16 %v5436
        %v6633 = vunpack.c.h.b16 %v5436
        %v6634 = vunpack.c.l.b16 %v5437
        %v6635 = vunpack.c.h.b16 %v5437
        %v6636 = vunpack.c.l.b16 %v5438
        %v6637 = vunpack.c.h.b16 %v5438
        %v6638 = vunpack.c.l.b16 %v5439
        %v6639 = vunpack.c.h.b16 %v5439
        %v6640 = vunpack.c.l.b16 %v5440
        %v6641 = vunpack.c.h.b16 %v5440
        %v6642 = vunpack.c.l.b16 %v5441
        %v6643 = vunpack.c.h.b16 %v5441
        %v6644 = vunpack.c.l.b16 %v5442
        %v6645 = vunpack.c.h.b16 %v5442
        %v6646 = vunpack.c.l.b16 %v5443
        %v6647 = vunpack.c.h.b16 %v5443
        %v6648 = vunpack.c.l.b16 %v5444
        %v6649 = vunpack.c.h.b16 %v5444
        %v6650 = vunpack.c.l.b16 %v5445
        %v6651 = vunpack.c.h.b16 %v5445
        %v6652 = vunpack.c.l.b16 %v5446
        %v6653 = vunpack.c.h.b16 %v5446
        %v6654 = vunpack.c.l.b16 %v5447
        %v6655 = vunpack.c.h.b16 %v5447
        %v6656 = vunpack.c.l.b16 %v5448
        %v6657 = vunpack.c.h.b16 %v5448
        %v6658 = vunpack.c.l.b16 %v5449
        %v6659 = vunpack.c.h.b16 %v5449
        %v6660 = vunpack.c.l.b16 %v5450
        %v6661 = vunpack.c.h.b16 %v5450
        %v6662 = vunpack.c.l.b16 %v5451
        %v6663 = vunpack.c.h.b16 %v5451
        %v6664 = vunpack.c.l.b16 %v5452
        %v6665 = vunpack.c.h.b16 %v5452
        %v6666 = vunpack.c.l.b16 %v5453
        %v6667 = vunpack.c.h.b16 %v5453
        %v6668 = vunpack.c.l.b16 %v5454
        %v6669 = vunpack.c.h.b16 %v5454
        %v6670 = vunpack.c.l.b16 %v5455
        %v6671 = vunpack.c.h.b16 %v5455
        %v6672 = vunpack.c.l.b16 %v5456
        %v6673 = vunpack.c.h.b16 %v5456
        %v6674 = vunpack.c.l.b16 %v5457
        %v6675 = vunpack.c.h.b16 %v5457
        %v6676 = vunpack.c.l.b16 %v5458
        %v6677 = vunpack.c.h.b16 %v5458
        %v6678 = vunpack.c.l.b16 %v5459
        %v6679 = vunpack.c.h.b16 %v5459
        %v6680 = vunpack.c.l.b16 %v5460
        %v6681 = vunpack.c.h.b16 %v5460
        %v6682 = vunpack.c.l.b16 %v5461
        %v6683 = vunpack.c.h.b16 %v5461
        %v6684 = vunpack.c.l.b16 %v5462
        %v6685 = vunpack.c.h.b16 %v5462
        %v6686 = vunpack.c.l.b16 %v5463
        %v6687 = vunpack.c.h.b16 %v5463
        %v6688 = vunpack.c.l.b16 %v5464
        %v6689 = vunpack.c.h.b16 %v5464
        %v6690 = vunpack.c.l.b16 %v5465
        %v6691 = vunpack.c.h.b16 %v5465
        %v6692 = vunpack.c.l.b16 %v5466
        %v6693 = vunpack.c.h.b16 %v5466
        %v6694 = vunpack.c.l.b16 %v5467
        %v6695 = vunpack.c.h.b16 %v5467
        %v6696 = vunpack.c.l.b16 %v5468
        %v6697 = vunpack.c.h.b16 %v5468
        %v6698 = vunpack.c.l.b16 %v5469
        %v6699 = vunpack.c.h.b16 %v5469
        %v6700 = vunpack.c.l.b16 %v5470
        %v6701 = vunpack.c.h.b16 %v5470
        %v6702 = vunpack.c.l.b16 %v5471
        %v6703 = vunpack.c.h.b16 %v5471
        %v6704 = vunpack.c.l.b16 %v5472
        %v6705 = vunpack.c.h.b16 %v5472
        %v6706 = vunpack.c.l.b16 %v5473
        %v6707 = vunpack.c.h.b16 %v5473
        %v6708 = vunpack.c.l.b16 %v5474
        %v6709 = vunpack.c.h.b16 %v5474
        %v6710 = vunpack.c.l.b16 %v5475
        %v6711 = vunpack.c.h.b16 %v5475
        %v6712 = vunpack.c.l.b16 %v5476
        %v6713 = vunpack.c.h.b16 %v5476
        %v6714 = vunpack.c.l.b16 %v5477
        %v6715 = vunpack.c.h.b16 %v5477
        %v6716 = vunpack.c.l.b16 %v5478
        %v6717 = vunpack.c.h.b16 %v5478
        %v6718 = vunpack.c.l.b16 %v5479
        %v6719 = vunpack.c.h.b16 %v5479
        %v6720 = vunpack.c.l.b16 %v5480
        %v6721 = vunpack.c.h.b16 %v5480
        %v6722 = vunpack.c.l.b16 %v5481
        %v6723 = vunpack.c.h.b16 %v5481
        %v6724 = vunpack.c.l.b16 %v5482
        %v6725 = vunpack.c.h.b16 %v5482
        %v6726 = vunpack.c.l.b16 %v5483
        %v6727 = vunpack.c.h.b16 %v5483
        %v6728 = vunpack.c.l.b16 %v5484
        %v6729 = vunpack.c.h.b16 %v5484
        %v6730 = vunpack.c.l.b16 %v5485
        %v6731 = vunpack.c.h.b16 %v5485
        %v6732 = vunpack.c.l.b16 %v5486
        %v6733 = vunpack.c.h.b16 %v5486
        %v6734 = vunpack.c.l.b16 %v5487
        %v6735 = vunpack.c.h.b16 %v5487
        %v6736 = vunpack.c.l.b16 %v5488
        %v6737 = vunpack.c.h.b16 %v5488
        %v6738 = vunpack.c.l.b16 %v5489
        %v6739 = vunpack.c.h.b16 %v5489
        %v6740 = vunpack.c.l.b16 %v5490
        %v6741 = vunpack.c.h.b16 %v5490
        %v6742 = vunpack.c.l.b16 %v5491
        %v6743 = vunpack.c.h.b16 %v5491
        %v6744 = vunpack.c.l.b16 %v5492
        %v6745 = vunpack.c.h.b16 %v5492
        %v6746 = vunpack.c.l.b16 %v5493
        %v6747 = vunpack.c.h.b16 %v5493
        %v6748 = vunpack.c.l.b16 %v5494
        %v6749 = vunpack.c.h.b16 %v5494
        %v6750 = vunpack.c.l.b16 %v5495
        %v6751 = vunpack.c.h.b16 %v5495
        %v6752 = vunpack.c.l.b16 %v5496
        %v6753 = vunpack.c.h.b16 %v5496
        %v6754 = vunpack.c.l.b16 %v5497
        %v6755 = vunpack.c.h.b16 %v5497
        %v6756 = vunpack.c.l.b16 %v5498
        %v6757 = vunpack.c.h.b16 %v5498
        %v6758 = vunpack.c.l.b16 %v5499
        %v6759 = vunpack.c.h.b16 %v5499
        %v6760 = vunpack.c.l.b16 %v5500
        %v6761 = vunpack.c.h.b16 %v5500
        %v6762 = vunpack.c.l.b16 %v5501
        %v6763 = vunpack.c.h.b16 %v5501
        %v6764 = vunpack.c.l.b16 %v5502
        %v6765 = vunpack.c.h.b16 %v5502
        %v6766 = vunpack.c.l.b16 %v5503
        %v6767 = vunpack.c.h.b16 %v5503
        %v6768 = vunpack.c.l.b16 %v5504
        %v6769 = vunpack.c.h.b16 %v5504
        %v6770 = vunpack.c.l.b16 %v5505
        %v6771 = vunpack.c.h.b16 %v5505
        %v6772 = vunpack.c.l.b16 %v5506
        %v6773 = vunpack.c.h.b16 %v5506
        %v6774 = vunpack.c.l.b16 %v5507
        %v6775 = vunpack.c.h.b16 %v5507
        %v6776 = vunpack.c.l.b16 %v5508
        %v6777 = vunpack.c.h.b16 %v5508
        %v6778 = vunpack.c.l.b16 %v5509
        %v6779 = vunpack.c.h.b16 %v5509
        %v6780 = vunpack.c.l.b16 %v5510
        %v6781 = vunpack.c.h.b16 %v5510
        %v6782 = vunpack.c.l.b16 %v5511
        %v6783 = vunpack.c.h.b16 %v5511
        %v6784 = vunpack.c.l.b16 %v5512
        %v6785 = vunpack.c.h.b16 %v5512
        %v6786 = vunpack.c.l.b16 %v5513
        %v6787 = vunpack.c.h.b16 %v5513
        %v6788 = vunpack.c.l.b16 %v5514
        %v6789 = vunpack.c.h.b16 %v5514
        %v6790 = vunpack.c.l.b16 %v5515
        %v6791 = vunpack.c.h.b16 %v5515
        %v6792 = vunpack.c.l.b16 %v5516
        %v6793 = vunpack.c.h.b16 %v5516
        %v6794 = vunpack.c.l.b16 %v5517
        %v6795 = vunpack.c.h.b16 %v5517
        %v6796 = vunpack.c.l.b16 %v5518
        %v6797 = vunpack.c.h.b16 %v5518
        %v6798 = vunpack.c.l.b16 %v5519
        %v6799 = vunpack.c.h.b16 %v5519
        %v6800 = vunpack.c.l.b16 %v5520
        %v6801 = vunpack.c.h.b16 %v5520
        %v6802 = vunpack.c.l.b16 %v5521
        %v6803 = vunpack.c.h.b16 %v5521
        %v6804 = vunpack.c.l.b16 %v5522
        %v6805 = vunpack.c.h.b16 %v5522
        %v6806 = vunpack.c.l.b16 %v5523
        %v6807 = vunpack.c.h.b16 %v5523
        %v6808 = vunpack.c.l.b16 %v5524
        %v6809 = vunpack.c.h.b16 %v5524
        %v6810 = vunpack.c.l.b16 %v5525
        %v6811 = vunpack.c.h.b16 %v5525
        %v6812 = vunpack.c.l.b16 %v5526
        %v6813 = vunpack.c.h.b16 %v5526
        %v6814 = vunpack.c.l.b16 %v5527
        %v6815 = vunpack.c.h.b16 %v5527
        %v6816 = vunpack.c.l.b16 %v5528
        %v6817 = vunpack.c.h.b16 %v5528
        %v6818 = vunpack.c.l.b16 %v5529
        %v6819 = vunpack.c.h.b16 %v5529
        %v6820 = vunpack.c.l.b16 %v5530
        %v6821 = vunpack.c.h.b16 %v5530
        %v6822 = vunpack.c.l.b16 %v5531
        %v6823 = vunpack.c.h.b16 %v5531
        %v6824 = vunpack.c.l.b16 %v5532
        %v6825 = vunpack.c.h.b16 %v5532
        %v6826 = vunpack.c.l.b16 %v5533
        %v6827 = vunpack.c.h.b16 %v5533
        %v6828 = vunpack.c.l.b16 %v5534
        %v6829 = vunpack.c.h.b16 %v5534
        %v6830 = vunpack.c.l.b16 %v5535
        %v6831 = vunpack.c.h.b16 %v5535
        %v6832 = vunpack.c.l.b16 %v5536
        %v6833 = vunpack.c.h.b16 %v5536
        %v6834 = vunpack.c.l.b16 %v5537
        %v6835 = vunpack.c.h.b16 %v5537
        %v6836 = vunpack.c.l.b16 %v5538
        %v6837 = vunpack.c.h.b16 %v5538
        %v6838 = vunpack.c.l.b16 %v5539
        %v6839 = vunpack.c.h.b16 %v5539
        %v6840 = vunpack.c.l.b16 %v5540
        %v6841 = vunpack.c.h.b16 %v5540
        %v6842 = vunpack.c.l.b16 %v5541
        %v6843 = vunpack.c.h.b16 %v5541
        %v6844 = vunpack.c.l.b16 %v5542
        %v6845 = vunpack.c.h.b16 %v5542
        %v6846 = vunpack.c.l.b16 %v5543
        %v6847 = vunpack.c.h.b16 %v5543
        %v6848 = vunpack.c.l.b16 %v5544
        %v6849 = vunpack.c.h.b16 %v5544
        %v6850 = vunpack.c.l.b16 %v5545
        %v6851 = vunpack.c.h.b16 %v5545
        %v6852 = vunpack.c.l.b16 %v5546
        %v6853 = vunpack.c.h.b16 %v5546
        %v6854 = vunpack.c.l.b16 %v5547
        %v6855 = vunpack.c.h.b16 %v5547
        %v6856 = vunpack.c.l.b16 %v5548
        %v6857 = vunpack.c.h.b16 %v5548
        %v6858 = vunpack.c.l.b16 %v5549
        %v6859 = vunpack.c.h.b16 %v5549
        %v6860 = vunpack.c.l.b16 %v5550
        %v6861 = vunpack.c.h.b16 %v5550
        %v6862 = vunpack.c.l.b16 %v5551
        %v6863 = vunpack.c.h.b16 %v5551
        %v6864 = vunpack.c.l.b16 %v5552
        %v6865 = vunpack.c.h.b16 %v5552
        %v6866 = vunpack.c.l.b16 %v5553
        %v6867 = vunpack.c.h.b16 %v5553
        %v6868 = vunpack.c.l.b16 %v5554
        %v6869 = vunpack.c.h.b16 %v5554
        %v6870 = vunpack.c.l.b16 %v5555
        %v6871 = vunpack.c.h.b16 %v5555
        %v6872 = vunpack.c.l.b16 %v5556
        %v6873 = vunpack.c.h.b16 %v5556
        %v6874 = vunpack.c.l.b16 %v5557
        %v6875 = vunpack.c.h.b16 %v5557
        %v6876 = vunpack.c.l.b16 %v5558
        %v6877 = vunpack.c.h.b16 %v5558
        %v6878 = vunpack.c.l.b16 %v5559
        %v6879 = vunpack.c.h.b16 %v5559
        %v6880 = vunpack.c.l.b16 %v5560
        %v6881 = vunpack.c.h.b16 %v5560
        %v6882 = vunpack.c.l.b16 %v5561
        %v6883 = vunpack.c.h.b16 %v5561
        %v6884 = vunpack.c.l.b16 %v5562
        %v6885 = vunpack.c.h.b16 %v5562
        %v6886 = vunpack.c.l.b16 %v5563
        %v6887 = vunpack.c.h.b16 %v5563
        %v6888 = vunpack.c.l.b16 %v5564
        %v6889 = vunpack.c.h.b16 %v5564
        %v6890 = vunpack.c.l.b16 %v5565
        %v6891 = vunpack.c.h.b16 %v5565
        %v6892 = vunpack.c.l.b16 %v5566
        %v6893 = vunpack.c.h.b16 %v5566
        %v6894 = vunpack.c.l.b16 %v5567
        %v6895 = vunpack.c.h.b16 %v5567
        %v6896 = vunpack.c.l.b16 %v5568
        %v6897 = vunpack.c.h.b16 %v5568
        %v6898 = vunpack.c.l.b16 %v5569
        %v6899 = vunpack.c.h.b16 %v5569
        %v6900 = vunpack.c.l.b16 %v5570
        %v6901 = vunpack.c.h.b16 %v5570
        %v6902 = vunpack.c.l.b16 %v5571
        %v6903 = vunpack.c.h.b16 %v5571
        %v6904 = vunpack.c.l.b16 %v5572
        %v6905 = vunpack.c.h.b16 %v5572
        %v6906 = vunpack.c.l.b16 %v5573
        %v6907 = vunpack.c.h.b16 %v5573
        %v6908 = vunpack.c.l.b16 %v5574
        %v6909 = vunpack.c.h.b16 %v5574
        %v6910 = vunpack.c.l.b16 %v5575
        %v6911 = vunpack.c.h.b16 %v5575
        %v6912 = vunpack.c.l.b16 %v5576
        %v6913 = vunpack.c.h.b16 %v5576
        %v6914 = vunpack.c.l.b16 %v5577
        %v6915 = vunpack.c.h.b16 %v5577
        %v6916 = vunpack.c.l.b16 %v5578
        %v6917 = vunpack.c.h.b16 %v5578
        %v6918 = vunpack.c.l.b16 %v5579
        %v6919 = vunpack.c.h.b16 %v5579
        %v6920 = vunpack.c.l.b16 %v5580
        %v6921 = vunpack.c.h.b16 %v5580
        %v6922 = vunpack.c.l.b16 %v5581
        %v6923 = vunpack.c.h.b16 %v5581
        %v6924 = vunpack.c.l.b16 %v5582
        %v6925 = vunpack.c.h.b16 %v5582
        %v6926 = vunpack.c.l.b16 %v5583
        %v6927 = vunpack.c.h.b16 %v5583
        %v6928 = vunpack.c.l.b16 %v5584
        %v6929 = vunpack.c.h.b16 %v5584
        %v6930 = vunpack.c.l.b16 %v5585
        %v6931 = vunpack.c.h.b16 %v5585
        %v6932 = vunpack.c.l.b16 %v5586
        %v6933 = vunpack.c.h.b16 %v5586
        %v6934 = vunpack.c.l.b16 %v5587
        %v6935 = vunpack.c.h.b16 %v5587
        %v6936 = vunpack.c.l.b16 %v5588
        %v6937 = vunpack.c.h.b16 %v5588
        %v6938 = vunpack.c.l.b16 %v5589
        %v6939 = vunpack.c.h.b16 %v5589
        %v6940 = vunpack.c.l.b16 %v5590
        %v6941 = vunpack.c.h.b16 %v5590
        %v6942 = vunpack.c.l.b16 %v5591
        %v6943 = vunpack.c.h.b16 %v5591
        %v6944 = vunpack.c.l.b16 %v5592
        %v6945 = vunpack.c.h.b16 %v5592
        %v6946 = vunpack.c.l.b16 %v5593
        %v6947 = vunpack.c.h.b16 %v5593
        %v6948 = vunpack.c.l.b16 %v5594
        %v6949 = vunpack.c.h.b16 %v5594
        %v6950 = vunpack.c.l.b16 %v5595
        %v6951 = vunpack.c.h.b16 %v5595
        %v6952 = vunpack.c.l.b16 %v5596
        %v6953 = vunpack.c.h.b16 %v5596
        %v6954 = vunpack.c.l.b16 %v5597
        %v6955 = vunpack.c.h.b16 %v5597
        %v6956 = vunpack.c.l.b16 %v5598
        %v6957 = vunpack.c.h.b16 %v5598
        %v6958 = vunpack.c.l.b16 %v5599
        %v6959 = vunpack.c.h.b16 %v5599
        %v6960 = vunpack.c.l.b16 %v5600
        %v6961 = vunpack.c.h.b16 %v5600
        %v6962 = vunpack.c.l.b16 %v5601
        %v6963 = vunpack.c.h.b16 %v5601
        %v6964 = vunpack.c.l.b16 %v5602
        %v6965 = vunpack.c.h.b16 %v5602
        %v6966 = vunpack.c.l.b16 %v5603
        %v6967 = vunpack.c.h.b16 %v5603
        %v6968 = vunpack.c.l.b16 %v5604
        %v6969 = vunpack.c.h.b16 %v5604
        %v6970 = vunpack.c.l.b16 %v5605
        %v6971 = vunpack.c.h.b16 %v5605
        %v6972 = vunpack.c.l.b16 %v5606
        %v6973 = vunpack.c.h.b16 %v5606
        %v6974 = vunpack.c.l.b16 %v5607
        %v6975 = vunpack.c.h.b16 %v5607
        %v6976 = vunpack.c.l.b16 %v5608
        %v6977 = vunpack.c.h.b16 %v5608
        %v6978 = vunpack.c.l.b16 %v5609
        %v6979 = vunpack.c.h.b16 %v5609
        %v6980 = vunpack.c.l.b16 %v5610
        %v6981 = vunpack.c.h.b16 %v5610
        %v6982 = vunpack.c.l.b16 %v5611
        %v6983 = vunpack.c.h.b16 %v5611
        %v6984 = vunpack.c.l.b16 %v5612
        %v6985 = vunpack.c.h.b16 %v5612
        %v6986 = vunpack.c.l.b16 %v5613
        %v6987 = vunpack.c.h.b16 %v5613
        %v6988 = vunpack.c.l.b16 %v5614
        %v6989 = vunpack.c.h.b16 %v5614
        %v6990 = vunpack.c.l.b16 %v5615
        %v6991 = vunpack.c.h.b16 %v5615
        %v6992 = vunpack.c.l.b16 %v5616
        %v6993 = vunpack.c.h.b16 %v5616
        %v6994 = vunpack.c.l.b16 %v5617
        %v6995 = vunpack.c.h.b16 %v5617
        %v6996 = vunpack.c.l.b16 %v5618
        %v6997 = vunpack.c.h.b16 %v5618
        %v6998 = vunpack.c.l.b16 %v5619
        %v6999 = vunpack.c.h.b16 %v5619
        %v7000 = vunpack.c.l.b16 %v5620
        %v7001 = vunpack.c.h.b16 %v5620
        %v7002 = vunpack.c.l.b16 %v5621
        %v7003 = vunpack.c.h.b16 %v5621
        %v7004 = vunpack.c.l.b16 %v5622
        %v7005 = vunpack.c.h.b16 %v5622
        %v7006 = vunpack.c.l.b16 %v5623
        %v7007 = vunpack.c.h.b16 %v5623
        %v7008 = vunpack.c.l.b16 %v5624
        %v7009 = vunpack.c.h.b16 %v5624
        %v7010 = vunpack.c.l.b16 %v5625
        %v7011 = vunpack.c.h.b16 %v5625
        %v7012 = vunpack.c.l.b16 %v5626
        %v7013 = vunpack.c.h.b16 %v5626
        %v7014 = vunpack.c.l.b16 %v5627
        %v7015 = vunpack.c.h.b16 %v5627
        %v7016 = vunpack.c.l.b16 %v5628
        %v7017 = vunpack.c.h.b16 %v5628
        %v7018 = vunpack.c.l.b16 %v5629
        %v7019 = vunpack.c.h.b16 %v5629
        %v7020 = vunpack.c.l.b16 %v5630
        %v7021 = vunpack.c.h.b16 %v5630
        %v7022 = vunpack.c.l.b16 %v5631
        %v7023 = vunpack.c.h.b16 %v5631
        %v7024 = vunpack.c.l.b16 %v5632
        %v7025 = vunpack.c.h.b16 %v5632
        %v7026 = vunpack.c.l.b16 %v5633
        %v7027 = vunpack.c.h.b16 %v5633
        %v7028 = vunpack.c.l.b16 %v5634
        %v7029 = vunpack.c.h.b16 %v5634
        %v7030 = vunpack.c.l.b16 %v5635
        %v7031 = vunpack.c.h.b16 %v5635
        %v7032 = vunpack.c.l.b16 %v5636
        %v7033 = vunpack.c.h.b16 %v5636
        %v7034 = vunpack.c.l.b16 %v5637
        %v7035 = vunpack.c.h.b16 %v5637
        %v7036 = vunpack.c.l.b16 %v5638
        %v7037 = vunpack.c.h.b16 %v5638
        %v7038 = vunpack.c.l.b16 %v5639
        %v7039 = vunpack.c.h.b16 %v5639
        %v7040 = vunpack.c.l.b16 %v5640
        %v7041 = vunpack.c.h.b16 %v5640
        %v7042 = vunpack.c.l.b16 %v5641
        %v7043 = vunpack.c.h.b16 %v5641
        %v7044 = vunpack.c.l.b16 %v5642
        %v7045 = vunpack.c.h.b16 %v5642
        %v7046 = vunpack.c.l.b16 %v5643
        %v7047 = vunpack.c.h.b16 %v5643
        %v7048 = vunpack.c.l.b16 %v5644
        %v7049 = vunpack.c.h.b16 %v5644
        %v7050 = vunpack.c.l.b16 %v5645
        %v7051 = vunpack.c.h.b16 %v5645
        %v7052 = vunpack.c.l.b16 %v5646
        %v7053 = vunpack.c.h.b16 %v5646
        %v7054 = vunpack.c.l.b16 %v5647
        %v7055 = vunpack.c.h.b16 %v5647
        %v7056 = vunpack.c.l.b16 %v5648
        %v7057 = vunpack.c.h.b16 %v5648
        %v7058 = vunpack.c.l.b16 %v5649
        %v7059 = vunpack.c.h.b16 %v5649
        %v7060 = vunpack.c.l.b16 %v5650
        %v7061 = vunpack.c.h.b16 %v5650
        %v7062 = vunpack.c.l.b16 %v5651
        %v7063 = vunpack.c.h.b16 %v5651
        %v7064 = vunpack.c.l.b16 %v5652
        %v7065 = vunpack.c.h.b16 %v5652
        %v7066 = vunpack.c.l.b16 %v5653
        %v7067 = vunpack.c.h.b16 %v5653
        %v7068 = vunpack.c.l.b16 %v5654
        %v7069 = vunpack.c.h.b16 %v5654
        %v7070 = vunpack.c.l.b16 %v5655
        %v7071 = vunpack.c.h.b16 %v5655
        %v7072 = vunpack.c.l.b16 %v5656
        %v7073 = vunpack.c.h.b16 %v5656
        %v7074 = vunpack.c.l.b16 %v5657
        %v7075 = vunpack.c.h.b16 %v5657
        %v7076 = vunpack.c.l.b16 %v5658
        %v7077 = vunpack.c.h.b16 %v5658
        %v7078 = vunpack.c.l.b16 %v5659
        %v7079 = vunpack.c.h.b16 %v5659
        %v7080 = vunpack.c.l.b16 %v5660
        %v7081 = vunpack.c.h.b16 %v5660
        %v7082 = vunpack.c.l.b16 %v5661
        %v7083 = vunpack.c.h.b16 %v5661
        %v7084 = vunpack.c.l.b16 %v5662
        %v7085 = vunpack.c.h.b16 %v5662
        %v7086 = vunpack.c.l.b16 %v5663
        %v7087 = vunpack.c.h.b16 %v5663
        %v7088 = vunpack.c.l.b16 %v5664
        %v7089 = vunpack.c.h.b16 %v5664
        %v7090 = vunpack.c.l.b16 %v5665
        %v7091 = vunpack.c.h.b16 %v5665
        %v7092 = vunpack.c.l.b16 %v5666
        %v7093 = vunpack.c.h.b16 %v5666
        %v7094 = vunpack.c.l.b16 %v5667
        %v7095 = vunpack.c.h.b16 %v5667
        %v7096 = vunpack.c.l.b16 %v5668
        %v7097 = vunpack.c.h.b16 %v5668
        %v7098 = vunpack.c.l.b16 %v5669
        %v7099 = vunpack.c.h.b16 %v5669
        %v7100 = vunpack.c.l.b16 %v5670
        %v7101 = vunpack.c.h.b16 %v5670
        %v7102 = vunpack.c.l.b16 %v5671
        %v7103 = vunpack.c.h.b16 %v5671
        %v7104 = vunpack.c.l.b16 %v5672
        %v7105 = vunpack.c.h.b16 %v5672
        %v7106 = vunpack.c.l.b16 %v5673
        %v7107 = vunpack.c.h.b16 %v5673
        %v7108 = vunpack.c.l.b16 %v5674
        %v7109 = vunpack.c.h.b16 %v5674
        %v7110 = vunpack.c.l.b16 %v5675
        %v7111 = vunpack.c.h.b16 %v5675
        %v7112 = vunpack.c.l.b16 %v5676
        %v7113 = vunpack.c.h.b16 %v5676
        %v7114 = vunpack.c.l.b16 %v5677
        %v7115 = vunpack.c.h.b16 %v5677
        %v7116 = vunpack.c.l.b16 %v5678
        %v7117 = vunpack.c.h.b16 %v5678
        %v7118 = vunpack.c.l.b16 %v5679
        %v7119 = vunpack.c.h.b16 %v5679
        %v7120 = vunpack.c.l.b16 %v5680
        %v7121 = vunpack.c.h.b16 %v5680
        %v7122 = vunpack.c.l.b16 %v5681
        %v7123 = vunpack.c.h.b16 %v5681
        %v7124 = vunpack.c.l.b16 %v5682
        %v7125 = vunpack.c.h.b16 %v5682
        %v7126 = vunpack.c.l.b16 %v5683
        %v7127 = vunpack.c.h.b16 %v5683
        %v7128 = vunpack.c.l.b16 %v5684
        %v7129 = vunpack.c.h.b16 %v5684
        %v7130 = vunpack.c.l.b16 %v5685
        %v7131 = vunpack.c.h.b16 %v5685
        %v7132 = vunpack.c.l.b16 %v5686
        %v7133 = vunpack.c.h.b16 %v5686
        %v7134 = vunpack.c.l.b16 %v5687
        %v7135 = vunpack.c.h.b16 %v5687
        %v7136 = vunpack.c.l.b16 %v5688
        %v7137 = vunpack.c.h.b16 %v5688
        %v7138 = vunpack.c.l.b16 %v5689
        %v7139 = vunpack.c.h.b16 %v5689
        %v7140 = vunpack.c.l.b16 %v5690
        %v7141 = vunpack.c.h.b16 %v5690
        %v7142 = vunpack.c.l.b16 %v5691
        %v7143 = vunpack.c.h.b16 %v5691
        %v7144 = vunpack.c.l.b16 %v5692
        %v7145 = vunpack.c.h.b16 %v5692
        %v7146 = vunpack.c.l.b16 %v5693
        %v7147 = vunpack.c.h.b16 %v5693
        %v7148 = vunpack.c.l.b16 %v5694
        %v7149 = vunpack.c.h.b16 %v5694
        %v7150 = vunpack.c.l.b16 %v5695
        %v7151 = vunpack.c.h.b16 %v5695
        %v7152 = vunpack.c.l.b16 %v5696
        %v7153 = vunpack.c.h.b16 %v5696
        %v7154 = vunpack.c.l.b16 %v5697
        %v7155 = vunpack.c.h.b16 %v5697
        %v7156 = vunpack.c.l.b16 %v5698
        %v7157 = vunpack.c.h.b16 %v5698
        %v7158 = vunpack.c.l.b16 %v5699
        %v7159 = vunpack.c.h.b16 %v5699
        %v7160 = vunpack.c.l.b16 %v5700
        %v7161 = vunpack.c.h.b16 %v5700
        %v7162 = vunpack.c.l.b16 %v5701
        %v7163 = vunpack.c.h.b16 %v5701
        %v7164 = vunpack.c.l.b16 %v5702
        %v7165 = vunpack.c.h.b16 %v5702
        %v7166 = vunpack.c.l.b16 %v5703
        %v7167 = vunpack.c.h.b16 %v5703
        %v7168 = vunpack.c.l.b16 %v5704
        %v7169 = vunpack.c.h.b16 %v5704
        %v7170 = vunpack.c.l.b16 %v5705
        %v7171 = vunpack.c.h.b16 %v5705
        %v7172 = vunpack.c.l.b16 %v5706
        %v7173 = vunpack.c.h.b16 %v5706
        %v7174 = vunpack.c.l.b16 %v5707
        %v7175 = vunpack.c.h.b16 %v5707
        %v7176 = vunpack.c.l.b16 %v5708
        %v7177 = vunpack.c.h.b16 %v5708
        %v7178 = vunpack.c.l.b16 %v5709
        %v7179 = vunpack.c.h.b16 %v5709
        %v7180 = vunpack.c.l.b16 %v5710
        %v7181 = vunpack.c.h.b16 %v5710
        %v7182 = vunpack.c.l.b16 %v5711
        %v7183 = vunpack.c.h.b16 %v5711
        %v7184 = vunpack.c.l.b16 %v5712
        %v7185 = vunpack.c.h.b16 %v5712
        %v7186 = vunpack.c.l.b16 %v5713
        %v7187 = vunpack.c.h.b16 %v5713
        %v7188 = vunpack.c.l.b16 %v5714
        %v7189 = vunpack.c.h.b16 %v5714
        %v7190 = vunpack.c.l.b16 %v5715
        %v7191 = vunpack.c.h.b16 %v5715
        %v7192 = vunpack.c.l.b16 %v5716
        %v7193 = vunpack.c.h.b16 %v5716
        %v7194 = vunpack.c.l.b16 %v5717
        %v7195 = vunpack.c.h.b16 %v5717
        %v7196 = vunpack.c.l.b16 %v5718
        %v7197 = vunpack.c.h.b16 %v5718
        %v7198 = vunpack.c.l.b16 %v5719
        %v7199 = vunpack.c.h.b16 %v5719
        %v7200 = vunpack.c.l.b16 %v5720
        %v7201 = vunpack.c.h.b16 %v5720
        %v7202 = vunpack.c.l.b16 %v5721
        %v7203 = vunpack.c.h.b16 %v5721
        %v7204 = vunpack.c.l.b16 %v5722
        %v7205 = vunpack.c.h.b16 %v5722
        %v7206 = vunpack.c.l.b16 %v5723
        %v7207 = vunpack.c.h.b16 %v5723
        %v7208 = vunpack.c.l.b16 %v5724
        %v7209 = vunpack.c.h.b16 %v5724
        %v7210 = vunpack.c.l.b16 %v5725
        %v7211 = vunpack.c.h.b16 %v5725
        %v7212 = vunpack.c.l.b16 %v5726
        %v7213 = vunpack.c.h.b16 %v5726
        %v7214 = vunpack.c.l.b16 %v5727
        %v7215 = vunpack.c.h.b16 %v5727
        %v7216 = vunpack.c.l.b16 %v5728
        %v7217 = vunpack.c.h.b16 %v5728
        %v7218 = vunpack.c.l.b16 %v5729
        %v7219 = vunpack.c.h.b16 %v5729
        %v7220 = vunpack.c.l.b16 %v5730
        %v7221 = vunpack.c.h.b16 %v5730
        %v7222 = vunpack.c.l.b16 %v5731
        %v7223 = vunpack.c.h.b16 %v5731
        %v7224 = vunpack.c.l.b16 %v5732
        %v7225 = vunpack.c.h.b16 %v5732
        %v7226 = vunpack.c.l.b16 %v5733
        %v7227 = vunpack.c.h.b16 %v5733
        %v7228 = vunpack.c.l.b16 %v5734
        %v7229 = vunpack.c.h.b16 %v5734
        %v7230 = vunpack.c.l.b16 %v5735
        %v7231 = vunpack.c.h.b16 %v5735
        %v7232 = vunpack.c.l.b16 %v5736
        %v7233 = vunpack.c.h.b16 %v5736
        %v7234 = vunpack.c.l.b16 %v5737
        %v7235 = vunpack.c.h.b16 %v5737
        %v7236 = vunpack.c.l.b16 %v5738
        %v7237 = vunpack.c.h.b16 %v5738
        %v7238 = vunpack.c.l.b16 %v5739
        %v7239 = vunpack.c.h.b16 %v5739
        %v7240 = vunpack.c.l.b16 %v5740
        %v7241 = vunpack.c.h.b16 %v5740
        %v7242 = vunpack.c.l.b16 %v5741
        %v7243 = vunpack.c.h.b16 %v5741
        %v7244 = vunpack.c.l.b16 %v5742
        %v7245 = vunpack.c.h.b16 %v5742
        %v7246 = vunpack.c.l.b16 %v5743
        %v7247 = vunpack.c.h.b16 %v5743
        %v7248 = vunpack.c.l.b16 %v5744
        %v7249 = vunpack.c.h.b16 %v5744
        %v7250 = vunpack.c.l.b16 %v5745
        %v7251 = vunpack.c.h.b16 %v5745
        %v7252 = vunpack.c.l.b16 %v5746
        %v7253 = vunpack.c.h.b16 %v5746
        %v7254 = vunpack.c.l.b16 %v5747
        %v7255 = vunpack.c.h.b16 %v5747
        %v7256 = vunpack.c.l.b16 %v5748
        %v7257 = vunpack.c.h.b16 %v5748
        %v7258 = vunpack.c.l.b16 %v5749
        %v7259 = vunpack.c.h.b16 %v5749
        %v7260 = vunpack.c.l.b16 %v5750
        %v7261 = vunpack.c.h.b16 %v5750
        %v7262 = vunpack.c.l.b16 %v5751
        %v7263 = vunpack.c.h.b16 %v5751
        %v7264 = vunpack.c.l.b16 %v5752
        %v7265 = vunpack.c.h.b16 %v5752
        %v7266 = vunpack.c.l.b16 %v5753
        %v7267 = vunpack.c.h.b16 %v5753
        %v7268 = vunpack.c.l.b16 %v5754
        %v7269 = vunpack.c.h.b16 %v5754
        %v7270 = vunpack.c.l.b16 %v5755
        %v7271 = vunpack.c.h.b16 %v5755
        %v7272 = vunpack.c.l.b16 %v5756
        %v7273 = vunpack.c.h.b16 %v5756
        %v7274 = vunpack.c.l.b16 %v5757
        %v7275 = vunpack.c.h.b16 %v5757
        %v7276 = vunpack.c.l.b16 %v5758
        %v7277 = vunpack.c.h.b16 %v5758
        %v7278 = vunpack.c.l.b16 %v5759
        %v7279 = vunpack.c.h.b16 %v5759
        %v7280 = vunpack.c.l.b16 %v5760
        %v7281 = vunpack.c.h.b16 %v5760
        %v7282 = vunpack.c.l.b16 %v5761
        %v7283 = vunpack.c.h.b16 %v5761
        %v7284 = vunpack.c.l.b16 %v5762
        %v7285 = vunpack.c.h.b16 %v5762
        %v7286 = vunpack.c.l.b16 %v5763
        %v7287 = vunpack.c.h.b16 %v5763
        %v7288 = vunpack.c.l.b16 %v5764
        %v7289 = vunpack.c.h.b16 %v5764
        %v7290 = vunpack.c.l.b16 %v5765
        %v7291 = vunpack.c.h.b16 %v5765
        %v7292 = vunpack.c.l.b16 %v5766
        %v7293 = vunpack.c.h.b16 %v5766
        %v7294 = vunpack.c.l.b16 %v5767
        %v7295 = vunpack.c.h.b16 %v5767
        %v7296 = vunpack.c.l.b16 %v5768
        %v7297 = vunpack.c.h.b16 %v5768
        %v7298 = vunpack.c.l.b16 %v5769
        %v7299 = vunpack.c.h.b16 %v5769
        %v7300 = vunpack.c.l.b16 %v5770
        %v7301 = vunpack.c.h.b16 %v5770
        %v7302 = vunpack.c.l.b16 %v5771
        %v7303 = vunpack.c.h.b16 %v5771
        %v7304 = vunpack.c.l.b16 %v5772
        %v7305 = vunpack.c.h.b16 %v5772
        %v7306 = vunpack.c.l.b16 %v5773
        %v7307 = vunpack.c.h.b16 %v5773
        %v7308 = vunpack.c.l.b16 %v5774
        %v7309 = vunpack.c.h.b16 %v5774
        %v7310 = vunpack.c.l.b16 %v5775
        %v7311 = vunpack.c.h.b16 %v5775
        %v7312 = vunpack.c.l.b16 %v5776
        %v7313 = vunpack.c.h.b16 %v5776
        %v7314 = vunpack.c.l.b16 %v5777
        %v7315 = vunpack.c.h.b16 %v5777
        %v7316 = vunpack.c.l.b16 %v5778
        %v7317 = vunpack.c.h.b16 %v5778
        %v7318 = vunpack.c.l.b16 %v5779
        %v7319 = vunpack.c.h.b16 %v5779
        %v7320 = vunpack.c.l.b16 %v5780
        %v7321 = vunpack.c.h.b16 %v5780
        %v7322 = vunpack.c.l.b16 %v5781
        %v7323 = vunpack.c.h.b16 %v5781
        %v7324 = vunpack.c.l.b16 %v5782
        %v7325 = vunpack.c.h.b16 %v5782
        %v7326 = vunpack.c.l.b16 %v5783
        %v7327 = vunpack.c.h.b16 %v5783
        %v7328 = vunpack.c.l.b16 %v5784
        %v7329 = vunpack.c.h.b16 %v5784
        %v7330 = vunpack.c.l.b16 %v5785
        %v7331 = vunpack.c.h.b16 %v5785
        %v7332 = vunpack.c.l.b16 %v5786
        %v7333 = vunpack.c.h.b16 %v5786
        %v7334 = vunpack.c.l.b16 %v5787
        %v7335 = vunpack.c.h.b16 %v5787
        %v7336 = vunpack.c.l.b16 %v5788
        %v7337 = vunpack.c.h.b16 %v5788
        %v7338 = vunpack.c.l.b16 %v5789
        %v7339 = vunpack.c.h.b16 %v5789
        %v7340 = vunpack.c.l.b16 %v5790
        %v7341 = vunpack.c.h.b16 %v5790
        %v7342 = vunpack.c.l.b16 %v5791
        %v7343 = vunpack.c.h.b16 %v5791
        %v7344 = vunpack.c.l.b16 %v5792
        %v7345 = vunpack.c.h.b16 %v5792
        %v7346 = vunpack.c.l.b16 %v5793
        %v7347 = vunpack.c.h.b16 %v5793
        %v7348 = vunpack.c.l.b16 %v5794
        %v7349 = vunpack.c.h.b16 %v5794
        %v7350 = vunpack.c.l.b16 %v5795
        %v7351 = vunpack.c.h.b16 %v5795
        %v7352 = vunpack.c.l.b16 %v5796
        %v7353 = vunpack.c.h.b16 %v5796
        %v7354 = vunpack.c.l.b16 %v5797
        %v7355 = vunpack.c.h.b16 %v5797
        %v7356 = vunpack.c.l.b16 %v5798
        %v7357 = vunpack.c.h.b16 %v5798
        %v7358 = vunpack.c.l.b16 %v5799
        %v7359 = vunpack.c.h.b16 %v5799
        %v7360 = vunpack.c.l.b16 %v5800
        %v7361 = vunpack.c.h.b16 %v5800
        %v7362 = vunpack.c.l.b16 %v5801
        %v7363 = vunpack.c.h.b16 %v5801
        %v7364 = vunpack.c.l.b16 %v5802
        %v7365 = vunpack.c.h.b16 %v5802
        %v7366 = vunpack.c.l.b16 %v5803
        %v7367 = vunpack.c.h.b16 %v5803
        %v7368 = vunpack.c.l.b16 %v5804
        %v7369 = vunpack.c.h.b16 %v5804
        %v7370 = vunpack.c.l.b16 %v5805
        %v7371 = vunpack.c.h.b16 %v5805
        %v7372 = vunpack.c.l.b16 %v5806
        %v7373 = vunpack.c.h.b16 %v5806
        %v7374 = vunpack.c.l.b16 %v5807
        %v7375 = vunpack.c.h.b16 %v5807
        %v7376 = vunpack.c.l.b16 %v5808
        %v7377 = vunpack.c.h.b16 %v5808
        %v7378 = vunpack.c.l.b16 %v5809
        %v7379 = vunpack.c.h.b16 %v5809
        %v7380 = vunpack.c.l.b16 %v5810
        %v7381 = vunpack.c.h.b16 %v5810
        %v7382 = vunpack.c.l.b16 %v5811
        %v7383 = vunpack.c.h.b16 %v5811
        %v7384 = vunpack.c.l.b16 %v5812
        %v7385 = vunpack.c.h.b16 %v5812
        %v7386 = vunpack.c.l.b16 %v5813
        %v7387 = vunpack.c.h.b16 %v5813
        %v7388 = vunpack.c.l.b16 %v5814
        %v7389 = vunpack.c.h.b16 %v5814
        %v7390 = vunpack.c.l.b16 %v5815
        %v7391 = vunpack.c.h.b16 %v5815
        %v7392 = vunpack.c.l.b16 %v5816
        %v7393 = vunpack.c.h.b16 %v5816
        %v7394 = vunpack.c.l.b16 %v5817
        %v7395 = vunpack.c.h.b16 %v5817
        %v7396 = vunpack.c.l.b16 %v5818
        %v7397 = vunpack.c.h.b16 %v5818
        %v7398 = vunpack.c.l.b16 %v5819
        %v7399 = vunpack.c.h.b16 %v5819
        %v7400 = vunpack.c.l.b16 %v5820
        %v7401 = vunpack.c.h.b16 %v5820
        %v7402 = vunpack.c.l.b16 %v5821
        %v7403 = vunpack.c.h.b16 %v5821
        %v7404 = vunpack.c.l.b16 %v5822
        %v7405 = vunpack.c.h.b16 %v5822
        %v7406 = vunpack.c.l.b16 %v5823
        %v7407 = vunpack.c.h.b16 %v5823
        %v7408 = vunpack.c.l.b16 %v5824
        %v7409 = vunpack.c.h.b16 %v5824
        %v7410 = vunpack.c.l.b16 %v5825
        %v7411 = vunpack.c.h.b16 %v5825
        %v7412 = vunpack.c.l.b16 %v5826
        %v7413 = vunpack.c.h.b16 %v5826
        %v7414 = vunpack.c.l.b16 %v5827
        %v7415 = vunpack.c.h.b16 %v5827
        %v7416 = vunpack.c.l.b16 %v5828
        %v7417 = vunpack.c.h.b16 %v5828
        %v7418 = vunpack.c.l.b16 %v5829
        %v7419 = vunpack.c.h.b16 %v5829
        %v7420 = vunpack.c.l.b16 %v5830
        %v7421 = vunpack.c.h.b16 %v5830
        %v7422 = vunpack.c.l.b16 %v5831
        %v7423 = vunpack.c.h.b16 %v5831
        %v7424 = vunpack.c.l.b16 %v5832
        %v7425 = vunpack.c.h.b16 %v5832
        %v7426 = vunpack.c.l.b16 %v5833
        %v7427 = vunpack.c.h.b16 %v5833
        %v7428 = vunpack.c.l.b16 %v5834
        %v7429 = vunpack.c.h.b16 %v5834
        %v7430 = vunpack.c.l.b16 %v5835
        %v7431 = vunpack.c.h.b16 %v5835
        %v7432 = vunpack.c.l.b16 %v5836
        %v7433 = vunpack.c.h.b16 %v5836
        %v7434 = vunpack.c.l.b16 %v5837
        %v7435 = vunpack.c.h.b16 %v5837
        %v7436 = vunpack.c.l.b16 %v5838
        %v7437 = vunpack.c.h.b16 %v5838
        %v7438 = vunpack.c.l.b16 %v5839
        %v7439 = vunpack.c.h.b16 %v5839
        %v7440 = vunpack.c.l.b16 %v5840
        %v7441 = vunpack.c.h.b16 %v5840
        %v7442 = vunpack.c.l.b16 %v5841
        %v7443 = vunpack.c.h.b16 %v5841
        %v7444 = vunpack.c.l.b16 %v5842
        %v7445 = vunpack.c.h.b16 %v5842
        %v7446 = vpack.c.b16 %v6426, %v6422
        %v7447 = vpack.c.b16 %v6427, %v6423
        %v7448 = vpack.c.b16 %v6428, %v6424
        %v7449 = vpack.c.b16 %v6429, %v6425
        %v7450 = vpack.c.b16 %v6434, %v6430
        %v7451 = vpack.c.b16 %v6435, %v6431
        %v7452 = vpack.c.b16 %v6436, %v6432
        %v7453 = vpack.c.b16 %v6437, %v6433
        %v7454 = vpack.c.b16 %v6442, %v6438
        %v7455 = vpack.c.b16 %v6443, %v6439
        %v7456 = vpack.c.b16 %v6444, %v6440
        %v7457 = vpack.c.b16 %v6445, %v6441
        %v7458 = vpack.c.b16 %v6450, %v6446
        %v7459 = vpack.c.b16 %v6451, %v6447
        %v7460 = vpack.c.b16 %v6452, %v6448
        %v7461 = vpack.c.b16 %v6453, %v6449
        %v7462 = vpack.c.b16 %v6458, %v6454
        %v7463 = vpack.c.b16 %v6459, %v6455
        %v7464 = vpack.c.b16 %v6460, %v6456
        %v7465 = vpack.c.b16 %v6461, %v6457
        %v7466 = vpack.c.b16 %v6466, %v6462
        %v7467 = vpack.c.b16 %v6467, %v6463
        %v7468 = vpack.c.b16 %v6468, %v6464
        %v7469 = vpack.c.b16 %v6469, %v6465
        %v7470 = vpack.c.b16 %v6474, %v6470
        %v7471 = vpack.c.b16 %v6475, %v6471
        %v7472 = vpack.c.b16 %v6476, %v6472
        %v7473 = vpack.c.b16 %v6477, %v6473
        %v7474 = vpack.c.b16 %v6482, %v6478
        %v7475 = vpack.c.b16 %v6483, %v6479
        %v7476 = vpack.c.b16 %v6484, %v6480
        %v7477 = vpack.c.b16 %v6485, %v6481
        %v7478 = vpack.c.b16 %v6490, %v6486
        %v7479 = vpack.c.b16 %v6491, %v6487
        %v7480 = vpack.c.b16 %v6492, %v6488
        %v7481 = vpack.c.b16 %v6493, %v6489
        %v7482 = vpack.c.b16 %v6498, %v6494
        %v7483 = vpack.c.b16 %v6499, %v6495
        %v7484 = vpack.c.b16 %v6500, %v6496
        %v7485 = vpack.c.b16 %v6501, %v6497
        %v7486 = vpack.c.b16 %v6506, %v6502
        %v7487 = vpack.c.b16 %v6507, %v6503
        %v7488 = vpack.c.b16 %v6508, %v6504
        %v7489 = vpack.c.b16 %v6509, %v6505
        %v7490 = vpack.c.b16 %v6514, %v6510
        %v7491 = vpack.c.b16 %v6515, %v6511
        %v7492 = vpack.c.b16 %v6516, %v6512
        %v7493 = vpack.c.b16 %v6517, %v6513
        %v7494 = vpack.c.b16 %v6522, %v6518
        %v7495 = vpack.c.b16 %v6523, %v6519
        %v7496 = vpack.c.b16 %v6524, %v6520
        %v7497 = vpack.c.b16 %v6525, %v6521
        %v7498 = vpack.c.b16 %v6530, %v6526
        %v7499 = vpack.c.b16 %v6531, %v6527
        %v7500 = vpack.c.b16 %v6532, %v6528
        %v7501 = vpack.c.b16 %v6533, %v6529
        %v7502 = vpack.c.b16 %v6538, %v6534
        %v7503 = vpack.c.b16 %v6539, %v6535
        %v7504 = vpack.c.b16 %v6540, %v6536
        %v7505 = vpack.c.b16 %v6541, %v6537
        %v7506 = vpack.c.b16 %v6546, %v6542
        %v7507 = vpack.c.b16 %v6547, %v6543
        %v7508 = vpack.c.b16 %v6548, %v6544
        %v7509 = vpack.c.b16 %v6549, %v6545
        %v7510 = vpack.c.b16 %v6554, %v6550
        %v7511 = vpack.c.b16 %v6555, %v6551
        %v7512 = vpack.c.b16 %v6556, %v6552
        %v7513 = vpack.c.b16 %v6557, %v6553
        %v7514 = vpack.c.b16 %v6562, %v6558
        %v7515 = vpack.c.b16 %v6563, %v6559
        %v7516 = vpack.c.b16 %v6564, %v6560
        %v7517 = vpack.c.b16 %v6565, %v6561
        %v7518 = vpack.c.b16 %v6570, %v6566
        %v7519 = vpack.c.b16 %v6571, %v6567
        %v7520 = vpack.c.b16 %v6572, %v6568
        %v7521 = vpack.c.b16 %v6573, %v6569
        %v7522 = vpack.c.b16 %v6578, %v6574
        %v7523 = vpack.c.b16 %v6579, %v6575
        %v7524 = vpack.c.b16 %v6580, %v6576
        %v7525 = vpack.c.b16 %v6581, %v6577
        %v7526 = vpack.c.b16 %v6586, %v6582
        %v7527 = vpack.c.b16 %v6587, %v6583
        %v7528 = vpack.c.b16 %v6588, %v6584
        %v7529 = vpack.c.b16 %v6589, %v6585
        %v7530 = vpack.c.b16 %v6594, %v6590
        %v7531 = vpack.c.b16 %v6595, %v6591
        %v7532 = vpack.c.b16 %v6596, %v6592
        %v7533 = vpack.c.b16 %v6597, %v6593
        %v7534 = vpack.c.b16 %v6602, %v6598
        %v7535 = vpack.c.b16 %v6603, %v6599
        %v7536 = vpack.c.b16 %v6604, %v6600
        %v7537 = vpack.c.b16 %v6605, %v6601
        %v7538 = vpack.c.b16 %v6610, %v6606
        %v7539 = vpack.c.b16 %v6611, %v6607
        %v7540 = vpack.c.b16 %v6612, %v6608
        %v7541 = vpack.c.b16 %v6613, %v6609
        %v7542 = vpack.c.b16 %v6618, %v6614
        %v7543 = vpack.c.b16 %v6619, %v6615
        %v7544 = vpack.c.b16 %v6620, %v6616
        %v7545 = vpack.c.b16 %v6621, %v6617
        %v7546 = vpack.c.b16 %v6626, %v6622
        %v7547 = vpack.c.b16 %v6627, %v6623
        %v7548 = vpack.c.b16 %v6628, %v6624
        %v7549 = vpack.c.b16 %v6629, %v6625
        %v7550 = vpack.c.b16 %v6634, %v6630
        %v7551 = vpack.c.b16 %v6635, %v6631
        %v7552 = vpack.c.b16 %v6636, %v6632
        %v7553 = vpack.c.b16 %v6637, %v6633
        %v7554 = vpack.c.b16 %v6642, %v6638
        %v7555 = vpack.c.b16 %v6643, %v6639
        %v7556 = vpack.c.b16 %v6644, %v6640
        %v7557 = vpack.c.b16 %v6645, %v6641
        %v7558 = vpack.c.b16 %v6650, %v6646
        %v7559 = vpack.c.b16 %v6651, %v6647
        %v7560 = vpack.c.b16 %v6652, %v6648
        %v7561 = vpack.c.b16 %v6653, %v6649
        %v7562 = vpack.c.b16 %v6658, %v6654
        %v7563 = vpack.c.b16 %v6659, %v6655
        %v7564 = vpack.c.b16 %v6660, %v6656
        %v7565 = vpack.c.b16 %v6661, %v6657
        %v7566 = vpack.c.b16 %v6666, %v6662
        %v7567 = vpack.c.b16 %v6667, %v6663
        %v7568 = vpack.c.b16 %v6668, %v6664
        %v7569 = vpack.c.b16 %v6669, %v6665
        %v7570 = vpack.c.b16 %v6674, %v6670
        %v7571 = vpack.c.b16 %v6675, %v6671
        %v7572 = vpack.c.b16 %v6676, %v6672
        %v7573 = vpack.c.b16 %v6677, %v6673
        %v7574 = vpack.c.b16 %v6682, %v6678
        %v7575 = vpack.c.b16 %v6683, %v6679
        %v7576 = vpack.c.b16 %v6684, %v6680
        %v7577 = vpack.c.b16 %v6685, %v6681
        %v7578 = vpack.c.b16 %v6690, %v6686
        %v7579 = vpack.c.b16 %v6691, %v6687
        %v7580 = vpack.c.b16 %v6692, %v6688
        %v7581 = vpack.c.b16 %v6693, %v6689
        %v7582 = vpack.c.b16 %v6698, %v6694
        %v7583 = vpack.c.b16 %v6699, %v6695
        %v7584 = vpack.c.b16 %v6700, %v6696
        %v7585 = vpack.c.b16 %v6701, %v6697
        %v7586 = vpack.c.b16 %v6706, %v6702
        %v7587 = vpack.c.b16 %v6707, %v6703
        %v7588 = vpack.c.b16 %v6708, %v6704
        %v7589 = vpack.c.b16 %v6709, %v6705
        %v7590 = vpack.c.b16 %v6714, %v6710
        %v7591 = vpack.c.b16 %v6715, %v6711
        %v7592 = vpack.c.b16 %v6716, %v6712
        %v7593 = vpack.c.b16 %v6717, %v6713
        %v7594 = vpack.c.b16 %v6722, %v6718
        %v7595 = vpack.c.b16 %v6723, %v6719
        %v7596 = vpack.c.b16 %v6724, %v6720
        %v7597 = vpack.c.b16 %v6725, %v6721
        %v7598 = vpack.c.b16 %v6730, %v6726
        %v7599 = vpack.c.b16 %v6731, %v6727
        %v7600 = vpack.c.b16 %v6732, %v6728
        %v7601 = vpack.c.b16 %v6733, %v6729
        %v7602 = vpack.c.b16 %v6738, %v6734
        %v7603 = vpack.c.b16 %v6739, %v6735
        %v7604 = vpack.c.b16 %v6740, %v6736
        %v7605 = vpack.c.b16 %v6741, %v6737
        %v7606 = vpack.c.b16 %v6746, %v6742
        %v7607 = vpack.c.b16 %v6747, %v6743
        %v7608 = vpack.c.b16 %v6748, %v6744
        %v7609 = vpack.c.b16 %v6749, %v6745
        %v7610 = vpack.c.b16 %v6754, %v6750
        %v7611 = vpack.c.b16 %v6755, %v6751
        %v7612 = vpack.c.b16 %v6756, %v6752
        %v7613 = vpack.c.b16 %v6757, %v6753
        %v7614 = vpack.c.b16 %v6762, %v6758
        %v7615 = vpack.c.b16 %v6763, %v6759
        %v7616 = vpack.c.b16 %v6764, %v6760
        %v7617 = vpack.c.b16 %v6765, %v6761
        %v7618 = vpack.c.b16 %v6770, %v6766
        %v7619 = vpack.c.b16 %v6771, %v6767
        %v7620 = vpack.c.b16 %v6772, %v6768
        %v7621 = vpack.c.b16 %v6773, %v6769
        %v7622 = vpack.c.b16 %v6778, %v6774
        %v7623 = vpack.c.b16 %v6779, %v6775
        %v7624 = vpack.c.b16 %v6780, %v6776
        %v7625 = vpack.c.b16 %v6781, %v6777
        %v7626 = vpack.c.b16 %v6786, %v6782
        %v7627 = vpack.c.b16 %v6787, %v6783
        %v7628 = vpack.c.b16 %v6788, %v6784
        %v7629 = vpack.c.b16 %v6789, %v6785
        %v7630 = vpack.c.b16 %v6794, %v6790
        %v7631 = vpack.c.b16 %v6795, %v6791
        %v7632 = vpack.c.b16 %v6796, %v6792
        %v7633 = vpack.c.b16 %v6797, %v6793
        %v7634 = vpack.c.b16 %v6802, %v6798
        %v7635 = vpack.c.b16 %v6803, %v6799
        %v7636 = vpack.c.b16 %v6804, %v6800
        %v7637 = vpack.c.b16 %v6805, %v6801
        %v7638 = vpack.c.b16 %v6810, %v6806
        %v7639 = vpack.c.b16 %v6811, %v6807
        %v7640 = vpack.c.b16 %v6812, %v6808
        %v7641 = vpack.c.b16 %v6813, %v6809
        %v7642 = vpack.c.b16 %v6818, %v6814
        %v7643 = vpack.c.b16 %v6819, %v6815
        %v7644 = vpack.c.b16 %v6820, %v6816
        %v7645 = vpack.c.b16 %v6821, %v6817
        %v7646 = vpack.c.b16 %v6826, %v6822
        %v7647 = vpack.c.b16 %v6827, %v6823
        %v7648 = vpack.c.b16 %v6828, %v6824
        %v7649 = vpack.c.b16 %v6829, %v6825
        %v7650 = vpack.c.b16 %v6834, %v6830
        %v7651 = vpack.c.b16 %v6835, %v6831
        %v7652 = vpack.c.b16 %v6836, %v6832
        %v7653 = vpack.c.b16 %v6837, %v6833
        %v7654 = vpack.c.b16 %v6842, %v6838
        %v7655 = vpack.c.b16 %v6843, %v6839
        %v7656 = vpack.c.b16 %v6844, %v6840
        %v7657 = vpack.c.b16 %v6845, %v6841
        %v7658 = vpack.c.b16 %v6850, %v6846
        %v7659 = vpack.c.b16 %v6851, %v6847
        %v7660 = vpack.c.b16 %v6852, %v6848
        %v7661 = vpack.c.b16 %v6853, %v6849
        %v7662 = vpack.c.b16 %v6858, %v6854
        %v7663 = vpack.c.b16 %v6859, %v6855
        %v7664 = vpack.c.b16 %v6860, %v6856
        %v7665 = vpack.c.b16 %v6861, %v6857
        %v7666 = vpack.c.b16 %v6866, %v6862
        %v7667 = vpack.c.b16 %v6867, %v6863
        %v7668 = vpack.c.b16 %v6868, %v6864
        %v7669 = vpack.c.b16 %v6869, %v6865
        %v7670 = vpack.c.b16 %v6874, %v6870
        %v7671 = vpack.c.b16 %v6875, %v6871
        %v7672 = vpack.c.b16 %v6876, %v6872
        %v7673 = vpack.c.b16 %v6877, %v6873
        %v7674 = vpack.c.b16 %v6882, %v6878
        %v7675 = vpack.c.b16 %v6883, %v6879
        %v7676 = vpack.c.b16 %v6884, %v6880
        %v7677 = vpack.c.b16 %v6885, %v6881
        %v7678 = vpack.c.b16 %v6890, %v6886
        %v7679 = vpack.c.b16 %v6891, %v6887
        %v7680 = vpack.c.b16 %v6892, %v6888
        %v7681 = vpack.c.b16 %v6893, %v6889
        %v7682 = vpack.c.b16 %v6898, %v6894
        %v7683 = vpack.c.b16 %v6899, %v6895
        %v7684 = vpack.c.b16 %v6900, %v6896
        %v7685 = vpack.c.b16 %v6901, %v6897
        %v7686 = vpack.c.b16 %v6906, %v6902
        %v7687 = vpack.c.b16 %v6907, %v6903
        %v7688 = vpack.c.b16 %v6908, %v6904
        %v7689 = vpack.c.b16 %v6909, %v6905
        %v7690 = vpack.c.b16 %v6914, %v6910
        %v7691 = vpack.c.b16 %v6915, %v6911
        %v7692 = vpack.c.b16 %v6916, %v6912
        %v7693 = vpack.c.b16 %v6917, %v6913
        %v7694 = vpack.c.b16 %v6922, %v6918
        %v7695 = vpack.c.b16 %v6923, %v6919
        %v7696 = vpack.c.b16 %v6924, %v6920
        %v7697 = vpack.c.b16 %v6925, %v6921
        %v7698 = vpack.c.b16 %v6930, %v6926
        %v7699 = vpack.c.b16 %v6931, %v6927
        %v7700 = vpack.c.b16 %v6932, %v6928
        %v7701 = vpack.c.b16 %v6933, %v6929
        %v7702 = vpack.c.b16 %v6938, %v6934
        %v7703 = vpack.c.b16 %v6939, %v6935
        %v7704 = vpack.c.b16 %v6940, %v6936
        %v7705 = vpack.c.b16 %v6941, %v6937
        %v7706 = vpack.c.b16 %v6946, %v6942
        %v7707 = vpack.c.b16 %v6947, %v6943
        %v7708 = vpack.c.b16 %v6948, %v6944
        %v7709 = vpack.c.b16 %v6949, %v6945
        %v7710 = vpack.c.b16 %v6954, %v6950
        %v7711 = vpack.c.b16 %v6955, %v6951
        %v7712 = vpack.c.b16 %v6956, %v6952
        %v7713 = vpack.c.b16 %v6957, %v6953
        %v7714 = vpack.c.b16 %v6962, %v6958
        %v7715 = vpack.c.b16 %v6963, %v6959
        %v7716 = vpack.c.b16 %v6964, %v6960
        %v7717 = vpack.c.b16 %v6965, %v6961
        %v7718 = vpack.c.b16 %v6970, %v6966
        %v7719 = vpack.c.b16 %v6971, %v6967
        %v7720 = vpack.c.b16 %v6972, %v6968
        %v7721 = vpack.c.b16 %v6973, %v6969
        %v7722 = vpack.c.b16 %v6978, %v6974
        %v7723 = vpack.c.b16 %v6979, %v6975
        %v7724 = vpack.c.b16 %v6980, %v6976
        %v7725 = vpack.c.b16 %v6981, %v6977
        %v7726 = vpack.c.b16 %v6986, %v6982
        %v7727 = vpack.c.b16 %v6987, %v6983
        %v7728 = vpack.c.b16 %v6988, %v6984
        %v7729 = vpack.c.b16 %v6989, %v6985
        %v7730 = vpack.c.b16 %v6994, %v6990
        %v7731 = vpack.c.b16 %v6995, %v6991
        %v7732 = vpack.c.b16 %v6996, %v6992
        %v7733 = vpack.c.b16 %v6997, %v6993
        %v7734 = vpack.c.b16 %v7002, %v6998
        %v7735 = vpack.c.b16 %v7003, %v6999
        %v7736 = vpack.c.b16 %v7004, %v7000
        %v7737 = vpack.c.b16 %v7005, %v7001
        %v7738 = vpack.c.b16 %v7010, %v7006
        %v7739 = vpack.c.b16 %v7011, %v7007
        %v7740 = vpack.c.b16 %v7012, %v7008
        %v7741 = vpack.c.b16 %v7013, %v7009
        %v7742 = vpack.c.b16 %v7018, %v7014
        %v7743 = vpack.c.b16 %v7019, %v7015
        %v7744 = vpack.c.b16 %v7020, %v7016
        %v7745 = vpack.c.b16 %v7021, %v7017
        %v7746 = vpack.c.b16 %v7026, %v7022
        %v7747 = vpack.c.b16 %v7027, %v7023
        %v7748 = vpack.c.b16 %v7028, %v7024
        %v7749 = vpack.c.b16 %v7029, %v7025
        %v7750 = vpack.c.b16 %v7034, %v7030
        %v7751 = vpack.c.b16 %v7035, %v7031
        %v7752 = vpack.c.b16 %v7036, %v7032
        %v7753 = vpack.c.b16 %v7037, %v7033
        %v7754 = vpack.c.b16 %v7042, %v7038
        %v7755 = vpack.c.b16 %v7043, %v7039
        %v7756 = vpack.c.b16 %v7044, %v7040
        %v7757 = vpack.c.b16 %v7045, %v7041
        %v7758 = vpack.c.b16 %v7050, %v7046
        %v7759 = vpack.c.b16 %v7051, %v7047
        %v7760 = vpack.c.b16 %v7052, %v7048
        %v7761 = vpack.c.b16 %v7053, %v7049
        %v7762 = vpack.c.b16 %v7058, %v7054
        %v7763 = vpack.c.b16 %v7059, %v7055
        %v7764 = vpack.c.b16 %v7060, %v7056
        %v7765 = vpack.c.b16 %v7061, %v7057
        %v7766 = vpack.c.b16 %v7066, %v7062
        %v7767 = vpack.c.b16 %v7067, %v7063
        %v7768 = vpack.c.b16 %v7068, %v7064
        %v7769 = vpack.c.b16 %v7069, %v7065
        %v7770 = vpack.c.b16 %v7074, %v7070
        %v7771 = vpack.c.b16 %v7075, %v7071
        %v7772 = vpack.c.b16 %v7076, %v7072
        %v7773 = vpack.c.b16 %v7077, %v7073
        %v7774 = vpack.c.b16 %v7082, %v7078
        %v7775 = vpack.c.b16 %v7083, %v7079
        %v7776 = vpack.c.b16 %v7084, %v7080
        %v7777 = vpack.c.b16 %v7085, %v7081
        %v7778 = vpack.c.b16 %v7090, %v7086
        %v7779 = vpack.c.b16 %v7091, %v7087
        %v7780 = vpack.c.b16 %v7092, %v7088
        %v7781 = vpack.c.b16 %v7093, %v7089
        %v7782 = vpack.c.b16 %v7098, %v7094
        %v7783 = vpack.c.b16 %v7099, %v7095
        %v7784 = vpack.c.b16 %v7100, %v7096
        %v7785 = vpack.c.b16 %v7101, %v7097
        %v7786 = vpack.c.b16 %v7106, %v7102
        %v7787 = vpack.c.b16 %v7107, %v7103
        %v7788 = vpack.c.b16 %v7108, %v7104
        %v7789 = vpack.c.b16 %v7109, %v7105
        %v7790 = vpack.c.b16 %v7114, %v7110
        %v7791 = vpack.c.b16 %v7115, %v7111
        %v7792 = vpack.c.b16 %v7116, %v7112
        %v7793 = vpack.c.b16 %v7117, %v7113
        %v7794 = vpack.c.b16 %v7122, %v7118
        %v7795 = vpack.c.b16 %v7123, %v7119
        %v7796 = vpack.c.b16 %v7124, %v7120
        %v7797 = vpack.c.b16 %v7125, %v7121
        %v7798 = vpack.c.b16 %v7130, %v7126
        %v7799 = vpack.c.b16 %v7131, %v7127
        %v7800 = vpack.c.b16 %v7132, %v7128
        %v7801 = vpack.c.b16 %v7133, %v7129
        %v7802 = vpack.c.b16 %v7138, %v7134
        %v7803 = vpack.c.b16 %v7139, %v7135
        %v7804 = vpack.c.b16 %v7140, %v7136
        %v7805 = vpack.c.b16 %v7141, %v7137
        %v7806 = vpack.c.b16 %v7146, %v7142
        %v7807 = vpack.c.b16 %v7147, %v7143
        %v7808 = vpack.c.b16 %v7148, %v7144
        %v7809 = vpack.c.b16 %v7149, %v7145
        %v7810 = vpack.c.b16 %v7154, %v7150
        %v7811 = vpack.c.b16 %v7155, %v7151
        %v7812 = vpack.c.b16 %v7156, %v7152
        %v7813 = vpack.c.b16 %v7157, %v7153
        %v7814 = vpack.c.b16 %v7162, %v7158
        %v7815 = vpack.c.b16 %v7163, %v7159
        %v7816 = vpack.c.b16 %v7164, %v7160
        %v7817 = vpack.c.b16 %v7165, %v7161
        %v7818 = vpack.c.b16 %v7170, %v7166
        %v7819 = vpack.c.b16 %v7171, %v7167
        %v7820 = vpack.c.b16 %v7172, %v7168
        %v7821 = vpack.c.b16 %v7173, %v7169
        %v7822 = vpack.c.b16 %v7178, %v7174
        %v7823 = vpack.c.b16 %v7179, %v7175
        %v7824 = vpack.c.b16 %v7180, %v7176
        %v7825 = vpack.c.b16 %v7181, %v7177
        %v7826 = vpack.c.b16 %v7186, %v7182
        %v7827 = vpack.c.b16 %v7187, %v7183
        %v7828 = vpack.c.b16 %v7188, %v7184
        %v7829 = vpack.c.b16 %v7189, %v7185
        %v7830 = vpack.c.b16 %v7194, %v7190
        %v7831 = vpack.c.b16 %v7195, %v7191
        %v7832 = vpack.c.b16 %v7196, %v7192
        %v7833 = vpack.c.b16 %v7197, %v7193
        %v7834 = vpack.c.b16 %v7202, %v7198
        %v7835 = vpack.c.b16 %v7203, %v7199
        %v7836 = vpack.c.b16 %v7204, %v7200
        %v7837 = vpack.c.b16 %v7205, %v7201
        %v7838 = vpack.c.b16 %v7210, %v7206
        %v7839 = vpack.c.b16 %v7211, %v7207
        %v7840 = vpack.c.b16 %v7212, %v7208
        %v7841 = vpack.c.b16 %v7213, %v7209
        %v7842 = vpack.c.b16 %v7218, %v7214
        %v7843 = vpack.c.b16 %v7219, %v7215
        %v7844 = vpack.c.b16 %v7220, %v7216
        %v7845 = vpack.c.b16 %v7221, %v7217
        %v7846 = vpack.c.b16 %v7226, %v7222
        %v7847 = vpack.c.b16 %v7227, %v7223
        %v7848 = vpack.c.b16 %v7228, %v7224
        %v7849 = vpack.c.b16 %v7229, %v7225
        %v7850 = vpack.c.b16 %v7234, %v7230
        %v7851 = vpack.c.b16 %v7235, %v7231
        %v7852 = vpack.c.b16 %v7236, %v7232
        %v7853 = vpack.c.b16 %v7237, %v7233
        %v7854 = vpack.c.b16 %v7242, %v7238
        %v7855 = vpack.c.b16 %v7243, %v7239
        %v7856 = vpack.c.b16 %v7244, %v7240
        %v7857 = vpack.c.b16 %v7245, %v7241
        %v7858 = vpack.c.b16 %v7250, %v7246
        %v7859 = vpack.c.b16 %v7251, %v7247
        %v7860 = vpack.c.b16 %v7252, %v7248
        %v7861 = vpack.c.b16 %v7253, %v7249
        %v7862 = vpack.c.b16 %v7258, %v7254
        %v7863 = vpack.c.b16 %v7259, %v7255
        %v7864 = vpack.c.b16 %v7260, %v7256
        %v7865 = vpack.c.b16 %v7261, %v7257
        %v7866 = vpack.c.b16 %v7266, %v7262
        %v7867 = vpack.c.b16 %v7267, %v7263
        %v7868 = vpack.c.b16 %v7268, %v7264
        %v7869 = vpack.c.b16 %v7269, %v7265
        %v7870 = vpack.c.b16 %v7274, %v7270
        %v7871 = vpack.c.b16 %v7275, %v7271
        %v7872 = vpack.c.b16 %v7276, %v7272
        %v7873 = vpack.c.b16 %v7277, %v7273
        %v7874 = vpack.c.b16 %v7282, %v7278
        %v7875 = vpack.c.b16 %v7283, %v7279
        %v7876 = vpack.c.b16 %v7284, %v7280
        %v7877 = vpack.c.b16 %v7285, %v7281
        %v7878 = vpack.c.b16 %v7290, %v7286
        %v7879 = vpack.c.b16 %v7291, %v7287
        %v7880 = vpack.c.b16 %v7292, %v7288
        %v7881 = vpack.c.b16 %v7293, %v7289
        %v7882 = vpack.c.b16 %v7298, %v7294
        %v7883 = vpack.c.b16 %v7299, %v7295
        %v7884 = vpack.c.b16 %v7300, %v7296
        %v7885 = vpack.c.b16 %v7301, %v7297
        %v7886 = vpack.c.b16 %v7306, %v7302
        %v7887 = vpack.c.b16 %v7307, %v7303
        %v7888 = vpack.c.b16 %v7308, %v7304
        %v7889 = vpack.c.b16 %v7309, %v7305
        %v7890 = vpack.c.b16 %v7314, %v7310
        %v7891 = vpack.c.b16 %v7315, %v7311
        %v7892 = vpack.c.b16 %v7316, %v7312
        %v7893 = vpack.c.b16 %v7317, %v7313
        %v7894 = vpack.c.b16 %v7322, %v7318
        %v7895 = vpack.c.b16 %v7323, %v7319
        %v7896 = vpack.c.b16 %v7324, %v7320
        %v7897 = vpack.c.b16 %v7325, %v7321
        %v7898 = vpack.c.b16 %v7330, %v7326
        %v7899 = vpack.c.b16 %v7331, %v7327
        %v7900 = vpack.c.b16 %v7332, %v7328
        %v7901 = vpack.c.b16 %v7333, %v7329
        %v7902 = vpack.c.b16 %v7338, %v7334
        %v7903 = vpack.c.b16 %v7339, %v7335
        %v7904 = vpack.c.b16 %v7340, %v7336
        %v7905 = vpack.c.b16 %v7341, %v7337
        %v7906 = vpack.c.b16 %v7346, %v7342
        %v7907 = vpack.c.b16 %v7347, %v7343
        %v7908 = vpack.c.b16 %v7348, %v7344
        %v7909 = vpack.c.b16 %v7349, %v7345
        %v7910 = vpack.c.b16 %v7354, %v7350
        %v7911 = vpack.c.b16 %v7355, %v7351
        %v7912 = vpack.c.b16 %v7356, %v7352
        %v7913 = vpack.c.b16 %v7357, %v7353
        %v7914 = vpack.c.b16 %v7362, %v7358
        %v7915 = vpack.c.b16 %v7363, %v7359
        %v7916 = vpack.c.b16 %v7364, %v7360
        %v7917 = vpack.c.b16 %v7365, %v7361
        %v7918 = vpack.c.b16 %v7370, %v7366
        %v7919 = vpack.c.b16 %v7371, %v7367
        %v7920 = vpack.c.b16 %v7372, %v7368
        %v7921 = vpack.c.b16 %v7373, %v7369
        %v7922 = vpack.c.b16 %v7378, %v7374
        %v7923 = vpack.c.b16 %v7379, %v7375
        %v7924 = vpack.c.b16 %v7380, %v7376
        %v7925 = vpack.c.b16 %v7381, %v7377
        %v7926 = vpack.c.b16 %v7386, %v7382
        %v7927 = vpack.c.b16 %v7387, %v7383
        %v7928 = vpack.c.b16 %v7388, %v7384
        %v7929 = vpack.c.b16 %v7389, %v7385
        %v7930 = vpack.c.b16 %v7394, %v7390
        %v7931 = vpack.c.b16 %v7395, %v7391
        %v7932 = vpack.c.b16 %v7396, %v7392
        %v7933 = vpack.c.b16 %v7397, %v7393
        %v7934 = vpack.c.b16 %v7402, %v7398
        %v7935 = vpack.c.b16 %v7403, %v7399
        %v7936 = vpack.c.b16 %v7404, %v7400
        %v7937 = vpack.c.b16 %v7405, %v7401
        %v7938 = vpack.c.b16 %v7410, %v7406
        %v7939 = vpack.c.b16 %v7411, %v7407
        %v7940 = vpack.c.b16 %v7412, %v7408
        %v7941 = vpack.c.b16 %v7413, %v7409
        %v7942 = vpack.c.b16 %v7418, %v7414
        %v7943 = vpack.c.b16 %v7419, %v7415
        %v7944 = vpack.c.b16 %v7420, %v7416
        %v7945 = vpack.c.b16 %v7421, %v7417
        %v7946 = vpack.c.b16 %v7426, %v7422
        %v7947 = vpack.c.b16 %v7427, %v7423
        %v7948 = vpack.c.b16 %v7428, %v7424
        %v7949 = vpack.c.b16 %v7429, %v7425
        %v7950 = vpack.c.b16 %v7434, %v7430
        %v7951 = vpack.c.b16 %v7435, %v7431
        %v7952 = vpack.c.b16 %v7436, %v7432
        %v7953 = vpack.c.b16 %v7437, %v7433
        %v7954 = vpack.c.b16 %v7442, %v7438
        %v7955 = vpack.c.b16 %v7443, %v7439
        %v7956 = vpack.c.b16 %v7444, %v7440
        %v7957 = vpack.c.b16 %v7445, %v7441
        %8470 = vmatpush.bf16.msra.mxu0 %v7474
        %8471 = vmatpush.bf16.msra.mxu0 %v7470
        %8472 = vmatpush.bf16.msra.mxu0 %v7466
        %8473 = vmatpush.bf16.msra.mxu0 %v7462
        %8474 = vmatpush.bf16.msra.mxu0 %v7458
        %8475 = vmatpush.bf16.msra.mxu0 %v7454
        %8476 = vmatpush.bf16.msra.mxu0 %v7450
        %8477 = vmatpush.bf16.msra.mxu0 %v7446
        %8478 = vmatmul.bf16.gmra.mxu0 %v5878
        %v8479 = vpop.f32.mrf.mxu0
        %v8480 = vadd.f32 %v5846, %v8479
        %v8481 = vpop.f32.mrf.mxu0
        %8482 = vdwg.mxu0
        %8483 = vmatpush.bf16.msra.mxu0 %v7506
        %8484 = vmatpush.bf16.msra.mxu0 %v7502
        %8485 = vmatpush.bf16.msra.mxu0 %v7498
        %8486 = vmatpush.bf16.msra.mxu0 %v7494
        %8487 = vmatpush.bf16.msra.mxu0 %v7490
        %8488 = vmatpush.bf16.msra.mxu0 %v7486
        %8489 = vmatpush.bf16.msra.mxu0 %v7482
        %8490 = vmatpush.bf16.msra.mxu0 %v7478
        %8491 = vmatmul.bf16.gmra.mxu0 %v5879
        %v8492 = vpop.f32.mrf.mxu0
        %v8493 = vadd.f32 %v8480, %v8492
        %v8494 = vpop.f32.mrf.mxu0
        %8495 = vdwg.mxu0
        %8496 = vmatpush.bf16.msra.mxu0 %v7538
        %8497 = vmatpush.bf16.msra.mxu0 %v7534
        %8498 = vmatpush.bf16.msra.mxu0 %v7530
        %8499 = vmatpush.bf16.msra.mxu0 %v7526
        %8500 = vmatpush.bf16.msra.mxu0 %v7522
        %8501 = vmatpush.bf16.msra.mxu0 %v7518
        %8502 = vmatpush.bf16.msra.mxu0 %v7514
        %8503 = vmatpush.bf16.msra.mxu0 %v7510
        %8504 = vmatmul.bf16.gmra.mxu0 %v5880
        %v8505 = vpop.f32.mrf.mxu0
        %v8506 = vadd.f32 %v8493, %v8505
        %v8507 = vpop.f32.mrf.mxu0
        %8508 = vdwg.mxu0
        %8509 = vmatpush.bf16.msra.mxu0 %v7570
        %8510 = vmatpush.bf16.msra.mxu0 %v7566
        %8511 = vmatpush.bf16.msra.mxu0 %v7562
        %8512 = vmatpush.bf16.msra.mxu0 %v7558
        %8513 = vmatpush.bf16.msra.mxu0 %v7554
        %8514 = vmatpush.bf16.msra.mxu0 %v7550
        %8515 = vmatpush.bf16.msra.mxu0 %v7546
        %8516 = vmatpush.bf16.msra.mxu0 %v7542
        %8517 = vmatmul.bf16.gmra.mxu0 %v5881
        %v8518 = vpop.f32.mrf.mxu0
        %v8519 = vadd.f32 %v8506, %v8518
        %v8520 = vpop.f32.mrf.mxu0
        %8521 = vdwg.mxu0
        %8522 = vmatpush.bf16.msra.mxu0 %v7602
        %8523 = vmatpush.bf16.msra.mxu0 %v7598
        %8524 = vmatpush.bf16.msra.mxu0 %v7594
        %8525 = vmatpush.bf16.msra.mxu0 %v7590
        %8526 = vmatpush.bf16.msra.mxu0 %v7586
        %8527 = vmatpush.bf16.msra.mxu0 %v7582
        %8528 = vmatpush.bf16.msra.mxu0 %v7578
        %8529 = vmatpush.bf16.msra.mxu0 %v7574
        %8530 = vmatmul.bf16.gmra.mxu0 %v5882
        %v8531 = vpop.f32.mrf.mxu0
        %v8532 = vadd.f32 %v8519, %v8531
        %v8533 = vpop.f32.mrf.mxu0
        %8534 = vdwg.mxu0
        %8535 = vmatpush.bf16.msra.mxu0 %v7634
        %8536 = vmatpush.bf16.msra.mxu0 %v7630
        %8537 = vmatpush.bf16.msra.mxu0 %v7626
        %8538 = vmatpush.bf16.msra.mxu0 %v7622
        %8539 = vmatpush.bf16.msra.mxu0 %v7618
        %8540 = vmatpush.bf16.msra.mxu0 %v7614
        %8541 = vmatpush.bf16.msra.mxu0 %v7610
        %8542 = vmatpush.bf16.msra.mxu0 %v7606
        %8543 = vmatmul.bf16.gmra.mxu0 %v5883
        %v8544 = vpop.f32.mrf.mxu0
        %v8545 = vadd.f32 %v8532, %v8544
        %v8546 = vpop.f32.mrf.mxu0
        %8547 = vdwg.mxu0
        %8548 = vmatpush.bf16.msra.mxu0 %v7666
        %8549 = vmatpush.bf16.msra.mxu0 %v7662
        %8550 = vmatpush.bf16.msra.mxu0 %v7658
        %8551 = vmatpush.bf16.msra.mxu0 %v7654
        %8552 = vmatpush.bf16.msra.mxu0 %v7650
        %8553 = vmatpush.bf16.msra.mxu0 %v7646
        %8554 = vmatpush.bf16.msra.mxu0 %v7642
        %8555 = vmatpush.bf16.msra.mxu0 %v7638
        %8556 = vmatmul.bf16.gmra.mxu0 %v5884
        %v8557 = vpop.f32.mrf.mxu0
        %v8558 = vadd.f32 %v8545, %v8557
        %v8559 = vpop.f32.mrf.mxu0
        %8560 = vdwg.mxu0
        %8561 = vmatpush.bf16.msra.mxu0 %v7698
        %8562 = vmatpush.bf16.msra.mxu0 %v7694
        %8563 = vmatpush.bf16.msra.mxu0 %v7690
        %8564 = vmatpush.bf16.msra.mxu0 %v7686
        %8565 = vmatpush.bf16.msra.mxu0 %v7682
        %8566 = vmatpush.bf16.msra.mxu0 %v7678
        %8567 = vmatpush.bf16.msra.mxu0 %v7674
        %8568 = vmatpush.bf16.msra.mxu0 %v7670
        %8569 = vmatmul.bf16.gmra.mxu0 %v5885
        %v8570 = vpop.f32.mrf.mxu0
        %v8571 = vadd.f32 %v8558, %v8570
        %v8572 = vpop.f32.mrf.mxu0
        %8573 = vdwg.mxu0
        %8574 = vmatpush.bf16.msra.mxu0 %v7730
        %8575 = vmatpush.bf16.msra.mxu0 %v7726
        %8576 = vmatpush.bf16.msra.mxu0 %v7722
        %8577 = vmatpush.bf16.msra.mxu0 %v7718
        %8578 = vmatpush.bf16.msra.mxu0 %v7714
        %8579 = vmatpush.bf16.msra.mxu0 %v7710
        %8580 = vmatpush.bf16.msra.mxu0 %v7706
        %8581 = vmatpush.bf16.msra.mxu0 %v7702
        %8582 = vmatmul.bf16.gmra.mxu0 %v5886
        %v8583 = vpop.f32.mrf.mxu0
        %v8584 = vadd.f32 %v8571, %v8583
        %v8585 = vpop.f32.mrf.mxu0
        %8586 = vdwg.mxu0
        %8587 = vmatpush.bf16.msra.mxu0 %v7762
        %8588 = vmatpush.bf16.msra.mxu0 %v7758
        %8589 = vmatpush.bf16.msra.mxu0 %v7754
        %8590 = vmatpush.bf16.msra.mxu0 %v7750
        %8591 = vmatpush.bf16.msra.mxu0 %v7746
        %8592 = vmatpush.bf16.msra.mxu0 %v7742
        %8593 = vmatpush.bf16.msra.mxu0 %v7738
        %8594 = vmatpush.bf16.msra.mxu0 %v7734
        %8595 = vmatmul.bf16.gmra.mxu0 %v5887
        %v8596 = vpop.f32.mrf.mxu0
        %v8597 = vadd.f32 %v8584, %v8596
        %v8598 = vpop.f32.mrf.mxu0
        %8599 = vdwg.mxu0
        %8600 = vmatpush.bf16.msra.mxu0 %v7794
        %8601 = vmatpush.bf16.msra.mxu0 %v7790
        %8602 = vmatpush.bf16.msra.mxu0 %v7786
        %8603 = vmatpush.bf16.msra.mxu0 %v7782
        %8604 = vmatpush.bf16.msra.mxu0 %v7778
        %8605 = vmatpush.bf16.msra.mxu0 %v7774
        %8606 = vmatpush.bf16.msra.mxu0 %v7770
        %8607 = vmatpush.bf16.msra.mxu0 %v7766
        %8608 = vmatmul.bf16.gmra.mxu0 %v5888
        %v8609 = vpop.f32.mrf.mxu0
        %v8610 = vadd.f32 %v8597, %v8609
        %v8611 = vpop.f32.mrf.mxu0
        %8612 = vdwg.mxu0
        %8613 = vmatpush.bf16.msra.mxu0 %v7826
        %8614 = vmatpush.bf16.msra.mxu0 %v7822
        %8615 = vmatpush.bf16.msra.mxu0 %v7818
        %8616 = vmatpush.bf16.msra.mxu0 %v7814
        %8617 = vmatpush.bf16.msra.mxu0 %v7810
        %8618 = vmatpush.bf16.msra.mxu0 %v7806
        %8619 = vmatpush.bf16.msra.mxu0 %v7802
        %8620 = vmatpush.bf16.msra.mxu0 %v7798
        %8621 = vmatmul.bf16.gmra.mxu0 %v5889
        %v8622 = vpop.f32.mrf.mxu0
        %v8623 = vadd.f32 %v8610, %v8622
        %v8624 = vpop.f32.mrf.mxu0
        %8625 = vdwg.mxu0
        %8626 = vmatpush.bf16.msra.mxu0 %v7858
        %8627 = vmatpush.bf16.msra.mxu0 %v7854
        %8628 = vmatpush.bf16.msra.mxu0 %v7850
        %8629 = vmatpush.bf16.msra.mxu0 %v7846
        %8630 = vmatpush.bf16.msra.mxu0 %v7842
        %8631 = vmatpush.bf16.msra.mxu0 %v7838
        %8632 = vmatpush.bf16.msra.mxu0 %v7834
        %8633 = vmatpush.bf16.msra.mxu0 %v7830
        %8634 = vmatmul.bf16.gmra.mxu0 %v5890
        %v8635 = vpop.f32.mrf.mxu0
        %v8636 = vadd.f32 %v8623, %v8635
        %v8637 = vpop.f32.mrf.mxu0
        %8638 = vdwg.mxu0
        %8639 = vmatpush.bf16.msra.mxu0 %v7890
        %8640 = vmatpush.bf16.msra.mxu0 %v7886
        %8641 = vmatpush.bf16.msra.mxu0 %v7882
        %8642 = vmatpush.bf16.msra.mxu0 %v7878
        %8643 = vmatpush.bf16.msra.mxu0 %v7874
        %8644 = vmatpush.bf16.msra.mxu0 %v7870
        %8645 = vmatpush.bf16.msra.mxu0 %v7866
        %8646 = vmatpush.bf16.msra.mxu0 %v7862
        %8647 = vmatmul.bf16.gmra.mxu0 %v5891
        %v8648 = vpop.f32.mrf.mxu0
        %v8649 = vadd.f32 %v8636, %v8648
        %v8650 = vpop.f32.mrf.mxu0
        %8651 = vdwg.mxu0
        %8652 = vmatpush.bf16.msra.mxu0 %v7922
        %8653 = vmatpush.bf16.msra.mxu0 %v7918
        %8654 = vmatpush.bf16.msra.mxu0 %v7914
        %8655 = vmatpush.bf16.msra.mxu0 %v7910
        %8656 = vmatpush.bf16.msra.mxu0 %v7906
        %8657 = vmatpush.bf16.msra.mxu0 %v7902
        %8658 = vmatpush.bf16.msra.mxu0 %v7898
        %8659 = vmatpush.bf16.msra.mxu0 %v7894
        %8660 = vmatmul.bf16.gmra.mxu0 %v5892
        %v8661 = vpop.f32.mrf.mxu0
        %v8662 = vadd.f32 %v8649, %v8661
        %v8663 = vpop.f32.mrf.mxu0
        %8664 = vdwg.mxu0
        %8665 = vmatpush.bf16.msra.mxu0 %v7954
        %8666 = vmatpush.bf16.msra.mxu0 %v7950
        %8667 = vmatpush.bf16.msra.mxu0 %v7946
        %8668 = vmatpush.bf16.msra.mxu0 %v7942
        %8669 = vmatpush.bf16.msra.mxu0 %v7938
        %8670 = vmatpush.bf16.msra.mxu0 %v7934
        %8671 = vmatpush.bf16.msra.mxu0 %v7930
        %8672 = vmatpush.bf16.msra.mxu0 %v7926
        %8673 = vmatmul.bf16.gmra.mxu0 %v5893
        %v8674 = vpop.f32.mrf.mxu0
        %v8675 = vadd.f32 %v8662, %v8674
        %v8676 = vpop.f32.mrf.mxu0
        %8677 = vdwg.mxu0
        %8678 = vmatpush.bf16.msra.mxu0 %v7475
        %8679 = vmatpush.bf16.msra.mxu0 %v7471
        %8680 = vmatpush.bf16.msra.mxu0 %v7467
        %8681 = vmatpush.bf16.msra.mxu0 %v7463
        %8682 = vmatpush.bf16.msra.mxu0 %v7459
        %8683 = vmatpush.bf16.msra.mxu0 %v7455
        %8684 = vmatpush.bf16.msra.mxu0 %v7451
        %8685 = vmatpush.bf16.msra.mxu0 %v7447
        %8686 = vmatmul.bf16.gmra.mxu0 %v5878
        %v8687 = vpop.f32.mrf.mxu0
        %v8688 = vadd.f32 %v5847, %v8687
        %v8689 = vpop.f32.mrf.mxu0
        %8690 = vdwg.mxu0
        %8691 = vmatpush.bf16.msra.mxu0 %v7507
        %8692 = vmatpush.bf16.msra.mxu0 %v7503
        %8693 = vmatpush.bf16.msra.mxu0 %v7499
        %8694 = vmatpush.bf16.msra.mxu0 %v7495
        %8695 = vmatpush.bf16.msra.mxu0 %v7491
        %8696 = vmatpush.bf16.msra.mxu0 %v7487
        %8697 = vmatpush.bf16.msra.mxu0 %v7483
        %8698 = vmatpush.bf16.msra.mxu0 %v7479
        %8699 = vmatmul.bf16.gmra.mxu0 %v5879
        %v8700 = vpop.f32.mrf.mxu0
        %v8701 = vadd.f32 %v8688, %v8700
        %v8702 = vpop.f32.mrf.mxu0
        %8703 = vdwg.mxu0
        %8704 = vmatpush.bf16.msra.mxu0 %v7539
        %8705 = vmatpush.bf16.msra.mxu0 %v7535
        %8706 = vmatpush.bf16.msra.mxu0 %v7531
        %8707 = vmatpush.bf16.msra.mxu0 %v7527
        %8708 = vmatpush.bf16.msra.mxu0 %v7523
        %8709 = vmatpush.bf16.msra.mxu0 %v7519
        %8710 = vmatpush.bf16.msra.mxu0 %v7515
        %8711 = vmatpush.bf16.msra.mxu0 %v7511
        %8712 = vmatmul.bf16.gmra.mxu0 %v5880
        %v8713 = vpop.f32.mrf.mxu0
        %v8714 = vadd.f32 %v8701, %v8713
        %v8715 = vpop.f32.mrf.mxu0
        %8716 = vdwg.mxu0
        %8717 = vmatpush.bf16.msra.mxu0 %v7571
        %8718 = vmatpush.bf16.msra.mxu0 %v7567
        %8719 = vmatpush.bf16.msra.mxu0 %v7563
        %8720 = vmatpush.bf16.msra.mxu0 %v7559
        %8721 = vmatpush.bf16.msra.mxu0 %v7555
        %8722 = vmatpush.bf16.msra.mxu0 %v7551
        %8723 = vmatpush.bf16.msra.mxu0 %v7547
        %8724 = vmatpush.bf16.msra.mxu0 %v7543
        %8725 = vmatmul.bf16.gmra.mxu0 %v5881
        %v8726 = vpop.f32.mrf.mxu0
        %v8727 = vadd.f32 %v8714, %v8726
        %v8728 = vpop.f32.mrf.mxu0
        %8729 = vdwg.mxu0
        %8730 = vmatpush.bf16.msra.mxu0 %v7603
        %8731 = vmatpush.bf16.msra.mxu0 %v7599
        %8732 = vmatpush.bf16.msra.mxu0 %v7595
        %8733 = vmatpush.bf16.msra.mxu0 %v7591
        %8734 = vmatpush.bf16.msra.mxu0 %v7587
        %8735 = vmatpush.bf16.msra.mxu0 %v7583
        %8736 = vmatpush.bf16.msra.mxu0 %v7579
        %8737 = vmatpush.bf16.msra.mxu0 %v7575
        %8738 = vmatmul.bf16.gmra.mxu0 %v5882
        %v8739 = vpop.f32.mrf.mxu0
        %v8740 = vadd.f32 %v8727, %v8739
        %v8741 = vpop.f32.mrf.mxu0
        %8742 = vdwg.mxu0
        %8743 = vmatpush.bf16.msra.mxu0 %v7635
        %8744 = vmatpush.bf16.msra.mxu0 %v7631
        %8745 = vmatpush.bf16.msra.mxu0 %v7627
        %8746 = vmatpush.bf16.msra.mxu0 %v7623
        %8747 = vmatpush.bf16.msra.mxu0 %v7619
        %8748 = vmatpush.bf16.msra.mxu0 %v7615
        %8749 = vmatpush.bf16.msra.mxu0 %v7611
        %8750 = vmatpush.bf16.msra.mxu0 %v7607
        %8751 = vmatmul.bf16.gmra.mxu0 %v5883
        %v8752 = vpop.f32.mrf.mxu0
        %v8753 = vadd.f32 %v8740, %v8752
        %v8754 = vpop.f32.mrf.mxu0
        %8755 = vdwg.mxu0
        %8756 = vmatpush.bf16.msra.mxu0 %v7667
        %8757 = vmatpush.bf16.msra.mxu0 %v7663
        %8758 = vmatpush.bf16.msra.mxu0 %v7659
        %8759 = vmatpush.bf16.msra.mxu0 %v7655
        %8760 = vmatpush.bf16.msra.mxu0 %v7651
        %8761 = vmatpush.bf16.msra.mxu0 %v7647
        %8762 = vmatpush.bf16.msra.mxu0 %v7643
        %8763 = vmatpush.bf16.msra.mxu0 %v7639
        %8764 = vmatmul.bf16.gmra.mxu0 %v5884
        %v8765 = vpop.f32.mrf.mxu0
        %v8766 = vadd.f32 %v8753, %v8765
        %v8767 = vpop.f32.mrf.mxu0
        %8768 = vdwg.mxu0
        %8769 = vmatpush.bf16.msra.mxu0 %v7699
        %8770 = vmatpush.bf16.msra.mxu0 %v7695
        %8771 = vmatpush.bf16.msra.mxu0 %v7691
        %8772 = vmatpush.bf16.msra.mxu0 %v7687
        %8773 = vmatpush.bf16.msra.mxu0 %v7683
        %8774 = vmatpush.bf16.msra.mxu0 %v7679
        %8775 = vmatpush.bf16.msra.mxu0 %v7675
        %8776 = vmatpush.bf16.msra.mxu0 %v7671
        %8777 = vmatmul.bf16.gmra.mxu0 %v5885
        %v8778 = vpop.f32.mrf.mxu0
        %v8779 = vadd.f32 %v8766, %v8778
        %v8780 = vpop.f32.mrf.mxu0
        %8781 = vdwg.mxu0
        %8782 = vmatpush.bf16.msra.mxu0 %v7731
        %8783 = vmatpush.bf16.msra.mxu0 %v7727
        %8784 = vmatpush.bf16.msra.mxu0 %v7723
        %8785 = vmatpush.bf16.msra.mxu0 %v7719
        %8786 = vmatpush.bf16.msra.mxu0 %v7715
        %8787 = vmatpush.bf16.msra.mxu0 %v7711
        %8788 = vmatpush.bf16.msra.mxu0 %v7707
        %8789 = vmatpush.bf16.msra.mxu0 %v7703
        %8790 = vmatmul.bf16.gmra.mxu0 %v5886
        %v8791 = vpop.f32.mrf.mxu0
        %v8792 = vadd.f32 %v8779, %v8791
        %v8793 = vpop.f32.mrf.mxu0
        %8794 = vdwg.mxu0
        %8795 = vmatpush.bf16.msra.mxu0 %v7763
        %8796 = vmatpush.bf16.msra.mxu0 %v7759
        %8797 = vmatpush.bf16.msra.mxu0 %v7755
        %8798 = vmatpush.bf16.msra.mxu0 %v7751
        %8799 = vmatpush.bf16.msra.mxu0 %v7747
        %8800 = vmatpush.bf16.msra.mxu0 %v7743
        %8801 = vmatpush.bf16.msra.mxu0 %v7739
        %8802 = vmatpush.bf16.msra.mxu0 %v7735
        %8803 = vmatmul.bf16.gmra.mxu0 %v5887
        %v8804 = vpop.f32.mrf.mxu0
        %v8805 = vadd.f32 %v8792, %v8804
        %v8806 = vpop.f32.mrf.mxu0
        %8807 = vdwg.mxu0
        %8808 = vmatpush.bf16.msra.mxu0 %v7795
        %8809 = vmatpush.bf16.msra.mxu0 %v7791
        %8810 = vmatpush.bf16.msra.mxu0 %v7787
        %8811 = vmatpush.bf16.msra.mxu0 %v7783
        %8812 = vmatpush.bf16.msra.mxu0 %v7779
        %8813 = vmatpush.bf16.msra.mxu0 %v7775
        %8814 = vmatpush.bf16.msra.mxu0 %v7771
        %8815 = vmatpush.bf16.msra.mxu0 %v7767
        %8816 = vmatmul.bf16.gmra.mxu0 %v5888
        %v8817 = vpop.f32.mrf.mxu0
        %v8818 = vadd.f32 %v8805, %v8817
        %v8819 = vpop.f32.mrf.mxu0
        %8820 = vdwg.mxu0
        %8821 = vmatpush.bf16.msra.mxu0 %v7827
        %8822 = vmatpush.bf16.msra.mxu0 %v7823
        %8823 = vmatpush.bf16.msra.mxu0 %v7819
        %8824 = vmatpush.bf16.msra.mxu0 %v7815
        %8825 = vmatpush.bf16.msra.mxu0 %v7811
        %8826 = vmatpush.bf16.msra.mxu0 %v7807
        %8827 = vmatpush.bf16.msra.mxu0 %v7803
        %8828 = vmatpush.bf16.msra.mxu0 %v7799
        %8829 = vmatmul.bf16.gmra.mxu0 %v5889
        %v8830 = vpop.f32.mrf.mxu0
        %v8831 = vadd.f32 %v8818, %v8830
        %v8832 = vpop.f32.mrf.mxu0
        %8833 = vdwg.mxu0
        %8834 = vmatpush.bf16.msra.mxu0 %v7859
        %8835 = vmatpush.bf16.msra.mxu0 %v7855
        %8836 = vmatpush.bf16.msra.mxu0 %v7851
        %8837 = vmatpush.bf16.msra.mxu0 %v7847
        %8838 = vmatpush.bf16.msra.mxu0 %v7843
        %8839 = vmatpush.bf16.msra.mxu0 %v7839
        %8840 = vmatpush.bf16.msra.mxu0 %v7835
        %8841 = vmatpush.bf16.msra.mxu0 %v7831
        %8842 = vmatmul.bf16.gmra.mxu0 %v5890
        %v8843 = vpop.f32.mrf.mxu0
        %v8844 = vadd.f32 %v8831, %v8843
        %v8845 = vpop.f32.mrf.mxu0
        %8846 = vdwg.mxu0
        %8847 = vmatpush.bf16.msra.mxu0 %v7891
        %8848 = vmatpush.bf16.msra.mxu0 %v7887
        %8849 = vmatpush.bf16.msra.mxu0 %v7883
        %8850 = vmatpush.bf16.msra.mxu0 %v7879
        %8851 = vmatpush.bf16.msra.mxu0 %v7875
        %8852 = vmatpush.bf16.msra.mxu0 %v7871
        %8853 = vmatpush.bf16.msra.mxu0 %v7867
        %8854 = vmatpush.bf16.msra.mxu0 %v7863
        %8855 = vmatmul.bf16.gmra.mxu0 %v5891
        %v8856 = vpop.f32.mrf.mxu0
        %v8857 = vadd.f32 %v8844, %v8856
        %v8858 = vpop.f32.mrf.mxu0
        %8859 = vdwg.mxu0
        %8860 = vmatpush.bf16.msra.mxu0 %v7923
        %8861 = vmatpush.bf16.msra.mxu0 %v7919
        %8862 = vmatpush.bf16.msra.mxu0 %v7915
        %8863 = vmatpush.bf16.msra.mxu0 %v7911
        %8864 = vmatpush.bf16.msra.mxu0 %v7907
        %8865 = vmatpush.bf16.msra.mxu0 %v7903
        %8866 = vmatpush.bf16.msra.mxu0 %v7899
        %8867 = vmatpush.bf16.msra.mxu0 %v7895
        %8868 = vmatmul.bf16.gmra.mxu0 %v5892
        %v8869 = vpop.f32.mrf.mxu0
        %v8870 = vadd.f32 %v8857, %v8869
        %v8871 = vpop.f32.mrf.mxu0
        %8872 = vdwg.mxu0
        %8873 = vmatpush.bf16.msra.mxu0 %v7955
        %8874 = vmatpush.bf16.msra.mxu0 %v7951
        %8875 = vmatpush.bf16.msra.mxu0 %v7947
        %8876 = vmatpush.bf16.msra.mxu0 %v7943
        %8877 = vmatpush.bf16.msra.mxu0 %v7939
        %8878 = vmatpush.bf16.msra.mxu0 %v7935
        %8879 = vmatpush.bf16.msra.mxu0 %v7931
        %8880 = vmatpush.bf16.msra.mxu0 %v7927
        %8881 = vmatmul.bf16.gmra.mxu0 %v5893
        %v8882 = vpop.f32.mrf.mxu0
        %v8883 = vadd.f32 %v8870, %v8882
        %v8884 = vpop.f32.mrf.mxu0
        %8885 = vdwg.mxu0
        %8886 = vmatpush.bf16.msra.mxu0 %v7476
        %8887 = vmatpush.bf16.msra.mxu0 %v7472
        %8888 = vmatpush.bf16.msra.mxu0 %v7468
        %8889 = vmatpush.bf16.msra.mxu0 %v7464
        %8890 = vmatpush.bf16.msra.mxu0 %v7460
        %8891 = vmatpush.bf16.msra.mxu0 %v7456
        %8892 = vmatpush.bf16.msra.mxu0 %v7452
        %8893 = vmatpush.bf16.msra.mxu0 %v7448
        %8894 = vmatmul.bf16.gmra.mxu0 %v5878
        %v8895 = vpop.f32.mrf.mxu0
        %v8896 = vadd.f32 %v5848, %v8895
        %v8897 = vpop.f32.mrf.mxu0
        %8898 = vdwg.mxu0
        %8899 = vmatpush.bf16.msra.mxu0 %v7508
        %8900 = vmatpush.bf16.msra.mxu0 %v7504
        %8901 = vmatpush.bf16.msra.mxu0 %v7500
        %8902 = vmatpush.bf16.msra.mxu0 %v7496
        %8903 = vmatpush.bf16.msra.mxu0 %v7492
        %8904 = vmatpush.bf16.msra.mxu0 %v7488
        %8905 = vmatpush.bf16.msra.mxu0 %v7484
        %8906 = vmatpush.bf16.msra.mxu0 %v7480
        %8907 = vmatmul.bf16.gmra.mxu0 %v5879
        %v8908 = vpop.f32.mrf.mxu0
        %v8909 = vadd.f32 %v8896, %v8908
        %v8910 = vpop.f32.mrf.mxu0
        %8911 = vdwg.mxu0
        %8912 = vmatpush.bf16.msra.mxu0 %v7540
        %8913 = vmatpush.bf16.msra.mxu0 %v7536
        %8914 = vmatpush.bf16.msra.mxu0 %v7532
        %8915 = vmatpush.bf16.msra.mxu0 %v7528
        %8916 = vmatpush.bf16.msra.mxu0 %v7524
        %8917 = vmatpush.bf16.msra.mxu0 %v7520
        %8918 = vmatpush.bf16.msra.mxu0 %v7516
        %8919 = vmatpush.bf16.msra.mxu0 %v7512
        %8920 = vmatmul.bf16.gmra.mxu0 %v5880
        %v8921 = vpop.f32.mrf.mxu0
        %v8922 = vadd.f32 %v8909, %v8921
        %v8923 = vpop.f32.mrf.mxu0
        %8924 = vdwg.mxu0
        %8925 = vmatpush.bf16.msra.mxu0 %v7572
        %8926 = vmatpush.bf16.msra.mxu0 %v7568
        %8927 = vmatpush.bf16.msra.mxu0 %v7564
        %8928 = vmatpush.bf16.msra.mxu0 %v7560
        %8929 = vmatpush.bf16.msra.mxu0 %v7556
        %8930 = vmatpush.bf16.msra.mxu0 %v7552
        %8931 = vmatpush.bf16.msra.mxu0 %v7548
        %8932 = vmatpush.bf16.msra.mxu0 %v7544
        %8933 = vmatmul.bf16.gmra.mxu0 %v5881
        %v8934 = vpop.f32.mrf.mxu0
        %v8935 = vadd.f32 %v8922, %v8934
        %v8936 = vpop.f32.mrf.mxu0
        %8937 = vdwg.mxu0
        %8938 = vmatpush.bf16.msra.mxu0 %v7604
        %8939 = vmatpush.bf16.msra.mxu0 %v7600
        %8940 = vmatpush.bf16.msra.mxu0 %v7596
        %8941 = vmatpush.bf16.msra.mxu0 %v7592
        %8942 = vmatpush.bf16.msra.mxu0 %v7588
        %8943 = vmatpush.bf16.msra.mxu0 %v7584
        %8944 = vmatpush.bf16.msra.mxu0 %v7580
        %8945 = vmatpush.bf16.msra.mxu0 %v7576
        %8946 = vmatmul.bf16.gmra.mxu0 %v5882
        %v8947 = vpop.f32.mrf.mxu0
        %v8948 = vadd.f32 %v8935, %v8947
        %v8949 = vpop.f32.mrf.mxu0
        %8950 = vdwg.mxu0
        %8951 = vmatpush.bf16.msra.mxu0 %v7636
        %8952 = vmatpush.bf16.msra.mxu0 %v7632
        %8953 = vmatpush.bf16.msra.mxu0 %v7628
        %8954 = vmatpush.bf16.msra.mxu0 %v7624
        %8955 = vmatpush.bf16.msra.mxu0 %v7620
        %8956 = vmatpush.bf16.msra.mxu0 %v7616
        %8957 = vmatpush.bf16.msra.mxu0 %v7612
        %8958 = vmatpush.bf16.msra.mxu0 %v7608
        %8959 = vmatmul.bf16.gmra.mxu0 %v5883
        %v8960 = vpop.f32.mrf.mxu0
        %v8961 = vadd.f32 %v8948, %v8960
        %v8962 = vpop.f32.mrf.mxu0
        %8963 = vdwg.mxu0
        %8964 = vmatpush.bf16.msra.mxu0 %v7668
        %8965 = vmatpush.bf16.msra.mxu0 %v7664
        %8966 = vmatpush.bf16.msra.mxu0 %v7660
        %8967 = vmatpush.bf16.msra.mxu0 %v7656
        %8968 = vmatpush.bf16.msra.mxu0 %v7652
        %8969 = vmatpush.bf16.msra.mxu0 %v7648
        %8970 = vmatpush.bf16.msra.mxu0 %v7644
        %8971 = vmatpush.bf16.msra.mxu0 %v7640
        %8972 = vmatmul.bf16.gmra.mxu0 %v5884
        %v8973 = vpop.f32.mrf.mxu0
        %v8974 = vadd.f32 %v8961, %v8973
        %v8975 = vpop.f32.mrf.mxu0
        %8976 = vdwg.mxu0
        %8977 = vmatpush.bf16.msra.mxu0 %v7700
        %8978 = vmatpush.bf16.msra.mxu0 %v7696
        %8979 = vmatpush.bf16.msra.mxu0 %v7692
        %8980 = vmatpush.bf16.msra.mxu0 %v7688
        %8981 = vmatpush.bf16.msra.mxu0 %v7684
        %8982 = vmatpush.bf16.msra.mxu0 %v7680
        %8983 = vmatpush.bf16.msra.mxu0 %v7676
        %8984 = vmatpush.bf16.msra.mxu0 %v7672
        %8985 = vmatmul.bf16.gmra.mxu0 %v5885
        %v8986 = vpop.f32.mrf.mxu0
        %v8987 = vadd.f32 %v8974, %v8986
        %v8988 = vpop.f32.mrf.mxu0
        %8989 = vdwg.mxu0
        %8990 = vmatpush.bf16.msra.mxu0 %v7732
        %8991 = vmatpush.bf16.msra.mxu0 %v7728
        %8992 = vmatpush.bf16.msra.mxu0 %v7724
        %8993 = vmatpush.bf16.msra.mxu0 %v7720
        %8994 = vmatpush.bf16.msra.mxu0 %v7716
        %8995 = vmatpush.bf16.msra.mxu0 %v7712
        %8996 = vmatpush.bf16.msra.mxu0 %v7708
        %8997 = vmatpush.bf16.msra.mxu0 %v7704
        %8998 = vmatmul.bf16.gmra.mxu0 %v5886
        %v8999 = vpop.f32.mrf.mxu0
        %v9000 = vadd.f32 %v8987, %v8999
        %v9001 = vpop.f32.mrf.mxu0
        %9002 = vdwg.mxu0
        %9003 = vmatpush.bf16.msra.mxu0 %v7764
        %9004 = vmatpush.bf16.msra.mxu0 %v7760
        %9005 = vmatpush.bf16.msra.mxu0 %v7756
        %9006 = vmatpush.bf16.msra.mxu0 %v7752
        %9007 = vmatpush.bf16.msra.mxu0 %v7748
        %9008 = vmatpush.bf16.msra.mxu0 %v7744
        %9009 = vmatpush.bf16.msra.mxu0 %v7740
        %9010 = vmatpush.bf16.msra.mxu0 %v7736
        %9011 = vmatmul.bf16.gmra.mxu0 %v5887
        %v9012 = vpop.f32.mrf.mxu0
        %v9013 = vadd.f32 %v9000, %v9012
        %v9014 = vpop.f32.mrf.mxu0
        %9015 = vdwg.mxu0
        %9016 = vmatpush.bf16.msra.mxu0 %v7796
        %9017 = vmatpush.bf16.msra.mxu0 %v7792
        %9018 = vmatpush.bf16.msra.mxu0 %v7788
        %9019 = vmatpush.bf16.msra.mxu0 %v7784
        %9020 = vmatpush.bf16.msra.mxu0 %v7780
        %9021 = vmatpush.bf16.msra.mxu0 %v7776
        %9022 = vmatpush.bf16.msra.mxu0 %v7772
        %9023 = vmatpush.bf16.msra.mxu0 %v7768
        %9024 = vmatmul.bf16.gmra.mxu0 %v5888
        %v9025 = vpop.f32.mrf.mxu0
        %v9026 = vadd.f32 %v9013, %v9025
        %v9027 = vpop.f32.mrf.mxu0
        %9028 = vdwg.mxu0
        %9029 = vmatpush.bf16.msra.mxu0 %v7828
        %9030 = vmatpush.bf16.msra.mxu0 %v7824
        %9031 = vmatpush.bf16.msra.mxu0 %v7820
        %9032 = vmatpush.bf16.msra.mxu0 %v7816
        %9033 = vmatpush.bf16.msra.mxu0 %v7812
        %9034 = vmatpush.bf16.msra.mxu0 %v7808
        %9035 = vmatpush.bf16.msra.mxu0 %v7804
        %9036 = vmatpush.bf16.msra.mxu0 %v7800
        %9037 = vmatmul.bf16.gmra.mxu0 %v5889
        %v9038 = vpop.f32.mrf.mxu0
        %v9039 = vadd.f32 %v9026, %v9038
        %v9040 = vpop.f32.mrf.mxu0
        %9041 = vdwg.mxu0
        %9042 = vmatpush.bf16.msra.mxu0 %v7860
        %9043 = vmatpush.bf16.msra.mxu0 %v7856
        %9044 = vmatpush.bf16.msra.mxu0 %v7852
        %9045 = vmatpush.bf16.msra.mxu0 %v7848
        %9046 = vmatpush.bf16.msra.mxu0 %v7844
        %9047 = vmatpush.bf16.msra.mxu0 %v7840
        %9048 = vmatpush.bf16.msra.mxu0 %v7836
        %9049 = vmatpush.bf16.msra.mxu0 %v7832
        %9050 = vmatmul.bf16.gmra.mxu0 %v5890
        %v9051 = vpop.f32.mrf.mxu0
        %v9052 = vadd.f32 %v9039, %v9051
        %v9053 = vpop.f32.mrf.mxu0
        %9054 = vdwg.mxu0
        %9055 = vmatpush.bf16.msra.mxu0 %v7892
        %9056 = vmatpush.bf16.msra.mxu0 %v7888
        %9057 = vmatpush.bf16.msra.mxu0 %v7884
        %9058 = vmatpush.bf16.msra.mxu0 %v7880
        %9059 = vmatpush.bf16.msra.mxu0 %v7876
        %9060 = vmatpush.bf16.msra.mxu0 %v7872
        %9061 = vmatpush.bf16.msra.mxu0 %v7868
        %9062 = vmatpush.bf16.msra.mxu0 %v7864
        %9063 = vmatmul.bf16.gmra.mxu0 %v5891
        %v9064 = vpop.f32.mrf.mxu0
        %v9065 = vadd.f32 %v9052, %v9064
        %v9066 = vpop.f32.mrf.mxu0
        %9067 = vdwg.mxu0
        %9068 = vmatpush.bf16.msra.mxu0 %v7924
        %9069 = vmatpush.bf16.msra.mxu0 %v7920
        %9070 = vmatpush.bf16.msra.mxu0 %v7916
        %9071 = vmatpush.bf16.msra.mxu0 %v7912
        %9072 = vmatpush.bf16.msra.mxu0 %v7908
        %9073 = vmatpush.bf16.msra.mxu0 %v7904
        %9074 = vmatpush.bf16.msra.mxu0 %v7900
        %9075 = vmatpush.bf16.msra.mxu0 %v7896
        %9076 = vmatmul.bf16.gmra.mxu0 %v5892
        %v9077 = vpop.f32.mrf.mxu0
        %v9078 = vadd.f32 %v9065, %v9077
        %v9079 = vpop.f32.mrf.mxu0
        %9080 = vdwg.mxu0
        %9081 = vmatpush.bf16.msra.mxu0 %v7956
        %9082 = vmatpush.bf16.msra.mxu0 %v7952
        %9083 = vmatpush.bf16.msra.mxu0 %v7948
        %9084 = vmatpush.bf16.msra.mxu0 %v7944
        %9085 = vmatpush.bf16.msra.mxu0 %v7940
        %9086 = vmatpush.bf16.msra.mxu0 %v7936
        %9087 = vmatpush.bf16.msra.mxu0 %v7932
        %9088 = vmatpush.bf16.msra.mxu0 %v7928
        %9089 = vmatmul.bf16.gmra.mxu0 %v5893
        %v9090 = vpop.f32.mrf.mxu0
        %v9091 = vadd.f32 %v9078, %v9090
        %v9092 = vpop.f32.mrf.mxu0
        %9093 = vdwg.mxu0
        %9094 = vmatpush.bf16.msra.mxu0 %v7477
        %9095 = vmatpush.bf16.msra.mxu0 %v7473
        %9096 = vmatpush.bf16.msra.mxu0 %v7469
        %9097 = vmatpush.bf16.msra.mxu0 %v7465
        %9098 = vmatpush.bf16.msra.mxu0 %v7461
        %9099 = vmatpush.bf16.msra.mxu0 %v7457
        %9100 = vmatpush.bf16.msra.mxu0 %v7453
        %9101 = vmatpush.bf16.msra.mxu0 %v7449
        %9102 = vmatmul.bf16.gmra.mxu0 %v5878
        %v9103 = vpop.f32.mrf.mxu0
        %v9104 = vadd.f32 %v5849, %v9103
        %v9105 = vpop.f32.mrf.mxu0
        %9106 = vdwg.mxu0
        %9107 = vmatpush.bf16.msra.mxu0 %v7509
        %9108 = vmatpush.bf16.msra.mxu0 %v7505
        %9109 = vmatpush.bf16.msra.mxu0 %v7501
        %9110 = vmatpush.bf16.msra.mxu0 %v7497
        %9111 = vmatpush.bf16.msra.mxu0 %v7493
        %9112 = vmatpush.bf16.msra.mxu0 %v7489
        %9113 = vmatpush.bf16.msra.mxu0 %v7485
        %9114 = vmatpush.bf16.msra.mxu0 %v7481
        %9115 = vmatmul.bf16.gmra.mxu0 %v5879
        %v9116 = vpop.f32.mrf.mxu0
        %v9117 = vadd.f32 %v9104, %v9116
        %v9118 = vpop.f32.mrf.mxu0
        %9119 = vdwg.mxu0
        %9120 = vmatpush.bf16.msra.mxu0 %v7541
        %9121 = vmatpush.bf16.msra.mxu0 %v7537
        %9122 = vmatpush.bf16.msra.mxu0 %v7533
        %9123 = vmatpush.bf16.msra.mxu0 %v7529
        %9124 = vmatpush.bf16.msra.mxu0 %v7525
        %9125 = vmatpush.bf16.msra.mxu0 %v7521
        %9126 = vmatpush.bf16.msra.mxu0 %v7517
        %9127 = vmatpush.bf16.msra.mxu0 %v7513
        %9128 = vmatmul.bf16.gmra.mxu0 %v5880
        %v9129 = vpop.f32.mrf.mxu0
        %v9130 = vadd.f32 %v9117, %v9129
        %v9131 = vpop.f32.mrf.mxu0
        %9132 = vdwg.mxu0
        %9133 = vmatpush.bf16.msra.mxu0 %v7573
        %9134 = vmatpush.bf16.msra.mxu0 %v7569
        %9135 = vmatpush.bf16.msra.mxu0 %v7565
        %9136 = vmatpush.bf16.msra.mxu0 %v7561
        %9137 = vmatpush.bf16.msra.mxu0 %v7557
        %9138 = vmatpush.bf16.msra.mxu0 %v7553
        %9139 = vmatpush.bf16.msra.mxu0 %v7549
        %9140 = vmatpush.bf16.msra.mxu0 %v7545
        %9141 = vmatmul.bf16.gmra.mxu0 %v5881
        %v9142 = vpop.f32.mrf.mxu0
        %v9143 = vadd.f32 %v9130, %v9142
        %v9144 = vpop.f32.mrf.mxu0
        %9145 = vdwg.mxu0
        %9146 = vmatpush.bf16.msra.mxu0 %v7605
        %9147 = vmatpush.bf16.msra.mxu0 %v7601
        %9148 = vmatpush.bf16.msra.mxu0 %v7597
        %9149 = vmatpush.bf16.msra.mxu0 %v7593
        %9150 = vmatpush.bf16.msra.mxu0 %v7589
        %9151 = vmatpush.bf16.msra.mxu0 %v7585
        %9152 = vmatpush.bf16.msra.mxu0 %v7581
        %9153 = vmatpush.bf16.msra.mxu0 %v7577
        %9154 = vmatmul.bf16.gmra.mxu0 %v5882
        %v9155 = vpop.f32.mrf.mxu0
        %v9156 = vadd.f32 %v9143, %v9155
        %v9157 = vpop.f32.mrf.mxu0
        %9158 = vdwg.mxu0
        %9159 = vmatpush.bf16.msra.mxu0 %v7637
        %9160 = vmatpush.bf16.msra.mxu0 %v7633
        %9161 = vmatpush.bf16.msra.mxu0 %v7629
        %9162 = vmatpush.bf16.msra.mxu0 %v7625
        %9163 = vmatpush.bf16.msra.mxu0 %v7621
        %9164 = vmatpush.bf16.msra.mxu0 %v7617
        %9165 = vmatpush.bf16.msra.mxu0 %v7613
        %9166 = vmatpush.bf16.msra.mxu0 %v7609
        %9167 = vmatmul.bf16.gmra.mxu0 %v5883
        %v9168 = vpop.f32.mrf.mxu0
        %v9169 = vadd.f32 %v9156, %v9168
        %v9170 = vpop.f32.mrf.mxu0
        %9171 = vdwg.mxu0
        %9172 = vmatpush.bf16.msra.mxu0 %v7669
        %9173 = vmatpush.bf16.msra.mxu0 %v7665
        %9174 = vmatpush.bf16.msra.mxu0 %v7661
        %9175 = vmatpush.bf16.msra.mxu0 %v7657
        %9176 = vmatpush.bf16.msra.mxu0 %v7653
        %9177 = vmatpush.bf16.msra.mxu0 %v7649
        %9178 = vmatpush.bf16.msra.mxu0 %v7645
        %9179 = vmatpush.bf16.msra.mxu0 %v7641
        %9180 = vmatmul.bf16.gmra.mxu0 %v5884
        %v9181 = vpop.f32.mrf.mxu0
        %v9182 = vadd.f32 %v9169, %v9181
        %v9183 = vpop.f32.mrf.mxu0
        %9184 = vdwg.mxu0
        %9185 = vmatpush.bf16.msra.mxu0 %v7701
        %9186 = vmatpush.bf16.msra.mxu0 %v7697
        %9187 = vmatpush.bf16.msra.mxu0 %v7693
        %9188 = vmatpush.bf16.msra.mxu0 %v7689
        %9189 = vmatpush.bf16.msra.mxu0 %v7685
        %9190 = vmatpush.bf16.msra.mxu0 %v7681
        %9191 = vmatpush.bf16.msra.mxu0 %v7677
        %9192 = vmatpush.bf16.msra.mxu0 %v7673
        %9193 = vmatmul.bf16.gmra.mxu0 %v5885
        %v9194 = vpop.f32.mrf.mxu0
        %v9195 = vadd.f32 %v9182, %v9194
        %v9196 = vpop.f32.mrf.mxu0
        %9197 = vdwg.mxu0
        %9198 = vmatpush.bf16.msra.mxu0 %v7733
        %9199 = vmatpush.bf16.msra.mxu0 %v7729
        %9200 = vmatpush.bf16.msra.mxu0 %v7725
        %9201 = vmatpush.bf16.msra.mxu0 %v7721
        %9202 = vmatpush.bf16.msra.mxu0 %v7717
        %9203 = vmatpush.bf16.msra.mxu0 %v7713
        %9204 = vmatpush.bf16.msra.mxu0 %v7709
        %9205 = vmatpush.bf16.msra.mxu0 %v7705
        %9206 = vmatmul.bf16.gmra.mxu0 %v5886
        %v9207 = vpop.f32.mrf.mxu0
        %v9208 = vadd.f32 %v9195, %v9207
        %v9209 = vpop.f32.mrf.mxu0
        %9210 = vdwg.mxu0
        %9211 = vmatpush.bf16.msra.mxu0 %v7765
        %9212 = vmatpush.bf16.msra.mxu0 %v7761
        %9213 = vmatpush.bf16.msra.mxu0 %v7757
        %9214 = vmatpush.bf16.msra.mxu0 %v7753
        %9215 = vmatpush.bf16.msra.mxu0 %v7749
        %9216 = vmatpush.bf16.msra.mxu0 %v7745
        %9217 = vmatpush.bf16.msra.mxu0 %v7741
        %9218 = vmatpush.bf16.msra.mxu0 %v7737
        %9219 = vmatmul.bf16.gmra.mxu0 %v5887
        %v9220 = vpop.f32.mrf.mxu0
        %v9221 = vadd.f32 %v9208, %v9220
        %v9222 = vpop.f32.mrf.mxu0
        %9223 = vdwg.mxu0
        %9224 = vmatpush.bf16.msra.mxu0 %v7797
        %9225 = vmatpush.bf16.msra.mxu0 %v7793
        %9226 = vmatpush.bf16.msra.mxu0 %v7789
        %9227 = vmatpush.bf16.msra.mxu0 %v7785
        %9228 = vmatpush.bf16.msra.mxu0 %v7781
        %9229 = vmatpush.bf16.msra.mxu0 %v7777
        %9230 = vmatpush.bf16.msra.mxu0 %v7773
        %9231 = vmatpush.bf16.msra.mxu0 %v7769
        %9232 = vmatmul.bf16.gmra.mxu0 %v5888
        %v9233 = vpop.f32.mrf.mxu0
        %v9234 = vadd.f32 %v9221, %v9233
        %v9235 = vpop.f32.mrf.mxu0
        %9236 = vdwg.mxu0
        %9237 = vmatpush.bf16.msra.mxu0 %v7829
        %9238 = vmatpush.bf16.msra.mxu0 %v7825
        %9239 = vmatpush.bf16.msra.mxu0 %v7821
        %9240 = vmatpush.bf16.msra.mxu0 %v7817
        %9241 = vmatpush.bf16.msra.mxu0 %v7813
        %9242 = vmatpush.bf16.msra.mxu0 %v7809
        %9243 = vmatpush.bf16.msra.mxu0 %v7805
        %9244 = vmatpush.bf16.msra.mxu0 %v7801
        %9245 = vmatmul.bf16.gmra.mxu0 %v5889
        %v9246 = vpop.f32.mrf.mxu0
        %v9247 = vadd.f32 %v9234, %v9246
        %v9248 = vpop.f32.mrf.mxu0
        %9249 = vdwg.mxu0
        %9250 = vmatpush.bf16.msra.mxu0 %v7861
        %9251 = vmatpush.bf16.msra.mxu0 %v7857
        %9252 = vmatpush.bf16.msra.mxu0 %v7853
        %9253 = vmatpush.bf16.msra.mxu0 %v7849
        %9254 = vmatpush.bf16.msra.mxu0 %v7845
        %9255 = vmatpush.bf16.msra.mxu0 %v7841
        %9256 = vmatpush.bf16.msra.mxu0 %v7837
        %9257 = vmatpush.bf16.msra.mxu0 %v7833
        %9258 = vmatmul.bf16.gmra.mxu0 %v5890
        %v9259 = vpop.f32.mrf.mxu0
        %v9260 = vadd.f32 %v9247, %v9259
        %v9261 = vpop.f32.mrf.mxu0
        %9262 = vdwg.mxu0
        %9263 = vmatpush.bf16.msra.mxu0 %v7893
        %9264 = vmatpush.bf16.msra.mxu0 %v7889
        %9265 = vmatpush.bf16.msra.mxu0 %v7885
        %9266 = vmatpush.bf16.msra.mxu0 %v7881
        %9267 = vmatpush.bf16.msra.mxu0 %v7877
        %9268 = vmatpush.bf16.msra.mxu0 %v7873
        %9269 = vmatpush.bf16.msra.mxu0 %v7869
        %9270 = vmatpush.bf16.msra.mxu0 %v7865
        %9271 = vmatmul.bf16.gmra.mxu0 %v5891
        %v9272 = vpop.f32.mrf.mxu0
        %v9273 = vadd.f32 %v9260, %v9272
        %v9274 = vpop.f32.mrf.mxu0
        %9275 = vdwg.mxu0
        %9276 = vmatpush.bf16.msra.mxu0 %v7925
        %9277 = vmatpush.bf16.msra.mxu0 %v7921
        %9278 = vmatpush.bf16.msra.mxu0 %v7917
        %9279 = vmatpush.bf16.msra.mxu0 %v7913
        %9280 = vmatpush.bf16.msra.mxu0 %v7909
        %9281 = vmatpush.bf16.msra.mxu0 %v7905
        %9282 = vmatpush.bf16.msra.mxu0 %v7901
        %9283 = vmatpush.bf16.msra.mxu0 %v7897
        %9284 = vmatmul.bf16.gmra.mxu0 %v5892
        %v9285 = vpop.f32.mrf.mxu0
        %v9286 = vadd.f32 %v9273, %v9285
        %v9287 = vpop.f32.mrf.mxu0
        %9288 = vdwg.mxu0
        %9289 = vmatpush.bf16.msra.mxu0 %v7957
        %9290 = vmatpush.bf16.msra.mxu0 %v7953
        %9291 = vmatpush.bf16.msra.mxu0 %v7949
        %9292 = vmatpush.bf16.msra.mxu0 %v7945
        %9293 = vmatpush.bf16.msra.mxu0 %v7941
        %9294 = vmatpush.bf16.msra.mxu0 %v7937
        %9295 = vmatpush.bf16.msra.mxu0 %v7933
        %9296 = vmatpush.bf16.msra.mxu0 %v7929
        %9297 = vmatmul.bf16.gmra.mxu0 %v5893
        %v9298 = vpop.f32.mrf.mxu0
        %v9299 = vadd.f32 %v9286, %v9298
        %v9300 = vpop.f32.mrf.mxu0
        %9301 = vdwg.mxu0
        %v9302 = vld [vmem:[#allocation3] sm:$0xff]
        %v9303 = vld [vmem:[#allocation3 + $0x8] sm:$0xff]
        %v9304 = vld [vmem:[#allocation3 + $0x10] sm:$0xff]
        %v9305 = vld [vmem:[#allocation3 + $0x18] sm:$0xff]
        %v9306 = vadd.f32 %v9302, %v8675
        %v9307 = vadd.f32 %v9303, %v8883
        %v9308 = vadd.f32 %v9304, %v9091
        %v9309 = vadd.f32 %v9305, %v9299
        %9310 = vst [vmem:[#allocation3] sm:$0xff] %v9306
        %9311 = vst [vmem:[#allocation3 + $0x8] sm:$0xff] %v9307
        %9312 = vst [vmem:[#allocation3 + $0x10] sm:$0xff] %v9308
        %9313 = vst [vmem:[#allocation3 + $0x18] sm:$0xff] %v9309
        %v9314 = vld [vmem:[#allocation2] sm:$0xff]
        %v9315 = vld [vmem:[#allocation2 + $0x8] sm:$0xff]
        %v9316 = vld [vmem:[#allocation2 + $0x10] sm:$0xff]
        %v9317 = vpack.c.bf16 %v8675, %v8675
        %v9318 = vpack.c.bf16 %v8883, %v8883
        %v9319 = vpack.c.bf16 %v9091, %v9091
        %v9320 = vpack.c.bf16 %v9299, %v9299
        %s9321 = scalar_lea.vmem %s442, 768 [#allocation10]
        %v9322 = vld [vmem:[%s9321] sm:$0xff]
        %v9323 = vld [vmem:[%s9321 + $0x8] sm:$0xf]
        %v9324 = vld [vmem:[%s9321 + $0xc] sm:$0xff]
        %v9325 = vld [vmem:[%s9321 + $0x14] sm:$0xf]
        %v9326 = vld [vmem:[%s9321 + $0x18] sm:$0xff]
        %v9327 = vld [vmem:[%s9321 + $0x20] sm:$0xf]
        %v9328 = vld [vmem:[%s9321 + $0x24] sm:$0xff]
        %v9329 = vld [vmem:[%s9321 + $0x2c] sm:$0xf]
        %v9330 = vld [vmem:[%s9321 + $0x30] sm:$0xff]
        %v9331 = vld [vmem:[%s9321 + $0x38] sm:$0xf]
        %v9332 = vld [vmem:[%s9321 + $0x3c] sm:$0xff]
        %v9333 = vld [vmem:[%s9321 + $0x44] sm:$0xf]
        %v9334 = vld [vmem:[%s9321 + $0x48] sm:$0xff]
        %v9335 = vld [vmem:[%s9321 + $0x50] sm:$0xf]
        %v9336 = vld [vmem:[%s9321 + $0x54] sm:$0xff]
        %v9337 = vld [vmem:[%s9321 + $0x5c] sm:$0xf]
        %v9338 = vld [vmem:[%s9321 + $0x60] sm:$0xff]
        %v9339 = vld [vmem:[%s9321 + $0x68] sm:$0xf]
        %v9340 = vld [vmem:[%s9321 + $0x6c] sm:$0xff]
        %v9341 = vld [vmem:[%s9321 + $0x74] sm:$0xf]
        %v9342 = vld [vmem:[%s9321 + $0x78] sm:$0xff]
        %v9343 = vld [vmem:[%s9321 + $0x80] sm:$0xf]
        %v9344 = vld [vmem:[%s9321 + $0x84] sm:$0xff]
        %v9345 = vld [vmem:[%s9321 + $0x8c] sm:$0xf]
        %v9346 = vld [vmem:[%s9321 + $0x90] sm:$0xff]
        %v9347 = vld [vmem:[%s9321 + $0x98] sm:$0xf]
        %v9348 = vld [vmem:[%s9321 + $0x9c] sm:$0xff]
        %v9349 = vld [vmem:[%s9321 + $0xa4] sm:$0xf]
        %v9350 = vld [vmem:[%s9321 + $0xa8] sm:$0xff]
        %v9351 = vld [vmem:[%s9321 + $0xb0] sm:$0xf]
        %v9352 = vld [vmem:[%s9321 + $0xb4] sm:$0xff]
        %v9353 = vld [vmem:[%s9321 + $0xbc] sm:$0xf]
        %v9354 = vld [vmem:[%s9321 + $0xc0] sm:$0xff]
        %v9355 = vld [vmem:[%s9321 + $0xc8] sm:$0xf]
        %v9356 = vld [vmem:[%s9321 + $0xcc] sm:$0xff]
        %v9357 = vld [vmem:[%s9321 + $0xd4] sm:$0xf]
        %v9358 = vld [vmem:[%s9321 + $0xd8] sm:$0xff]
        %v9359 = vld [vmem:[%s9321 + $0xe0] sm:$0xf]
        %v9360 = vld [vmem:[%s9321 + $0xe4] sm:$0xff]
        %v9361 = vld [vmem:[%s9321 + $0xec] sm:$0xf]
        %v9362 = vld [vmem:[%s9321 + $0xf0] sm:$0xff]
        %v9363 = vld [vmem:[%s9321 + $0xf8] sm:$0xf]
        %v9364 = vld [vmem:[%s9321 + $0xfc] sm:$0xff]
        %v9365 = vld [vmem:[%s9321 + $0x104] sm:$0xf]
        %v9366 = vld [vmem:[%s9321 + $0x108] sm:$0xff]
        %v9367 = vld [vmem:[%s9321 + $0x110] sm:$0xf]
        %v9368 = vld [vmem:[%s9321 + $0x114] sm:$0xff]
        %v9369 = vld [vmem:[%s9321 + $0x11c] sm:$0xf]
        %v9370 = vld [vmem:[%s9321 + $0x120] sm:$0xff]
        %v9371 = vld [vmem:[%s9321 + $0x128] sm:$0xf]
        %v9372 = vld [vmem:[%s9321 + $0x12c] sm:$0xff]
        %v9373 = vld [vmem:[%s9321 + $0x134] sm:$0xf]
        %v9374 = vld [vmem:[%s9321 + $0x138] sm:$0xff]
        %v9375 = vld [vmem:[%s9321 + $0x140] sm:$0xf]
        %v9376 = vld [vmem:[%s9321 + $0x144] sm:$0xff]
        %v9377 = vld [vmem:[%s9321 + $0x14c] sm:$0xf]
        %v9378 = vld [vmem:[%s9321 + $0x150] sm:$0xff]
        %v9379 = vld [vmem:[%s9321 + $0x158] sm:$0xf]
        %v9380 = vld [vmem:[%s9321 + $0x15c] sm:$0xff]
        %v9381 = vld [vmem:[%s9321 + $0x164] sm:$0xf]
        %v9382 = vld [vmem:[%s9321 + $0x168] sm:$0xff]
        %v9383 = vld [vmem:[%s9321 + $0x170] sm:$0xf]
        %v9384 = vld [vmem:[%s9321 + $0x174] sm:$0xff]
        %v9385 = vld [vmem:[%s9321 + $0x17c] sm:$0xf]
        %v9386 = vld [vmem:[%s9321 + $0x180] sm:$0xff]
        %v9387 = vld [vmem:[%s9321 + $0x188] sm:$0xf]
        %v9388 = vld [vmem:[%s9321 + $0x18c] sm:$0xff]
        %v9389 = vld [vmem:[%s9321 + $0x194] sm:$0xf]
        %v9390 = vld [vmem:[%s9321 + $0x198] sm:$0xff]
        %v9391 = vld [vmem:[%s9321 + $0x1a0] sm:$0xf]
        %v9392 = vld [vmem:[%s9321 + $0x1a4] sm:$0xff]
        %v9393 = vld [vmem:[%s9321 + $0x1ac] sm:$0xf]
        %v9394 = vld [vmem:[%s9321 + $0x1b0] sm:$0xff]
        %v9395 = vld [vmem:[%s9321 + $0x1b8] sm:$0xf]
        %v9396 = vld [vmem:[%s9321 + $0x1bc] sm:$0xff]
        %v9397 = vld [vmem:[%s9321 + $0x1c4] sm:$0xf]
        %v9398 = vld [vmem:[%s9321 + $0x1c8] sm:$0xff]
        %v9399 = vld [vmem:[%s9321 + $0x1d0] sm:$0xf]
        %v9400 = vld [vmem:[%s9321 + $0x1d4] sm:$0xff]
        %v9401 = vld [vmem:[%s9321 + $0x1dc] sm:$0xf]
        %v9402 = vld [vmem:[%s9321 + $0x1e0] sm:$0xff]
        %v9403 = vld [vmem:[%s9321 + $0x1e8] sm:$0xf]
        %v9404 = vld [vmem:[%s9321 + $0x1ec] sm:$0xff]
        %v9405 = vld [vmem:[%s9321 + $0x1f4] sm:$0xf]
        %v9406 = vld [vmem:[%s9321 + $0x1f8] sm:$0xff]
        %v9407 = vld [vmem:[%s9321 + $0x200] sm:$0xf]
        %v9408 = vld [vmem:[%s9321 + $0x204] sm:$0xff]
        %v9409 = vld [vmem:[%s9321 + $0x20c] sm:$0xf]
        %v9410 = vld [vmem:[%s9321 + $0x210] sm:$0xff]
        %v9411 = vld [vmem:[%s9321 + $0x218] sm:$0xf]
        %v9412 = vld [vmem:[%s9321 + $0x21c] sm:$0xff]
        %v9413 = vld [vmem:[%s9321 + $0x224] sm:$0xf]
        %v9414 = vld [vmem:[%s9321 + $0x228] sm:$0xff]
        %v9415 = vld [vmem:[%s9321 + $0x230] sm:$0xf]
        %v9416 = vld [vmem:[%s9321 + $0x234] sm:$0xff]
        %v9417 = vld [vmem:[%s9321 + $0x23c] sm:$0xf]
        %v9418 = vld [vmem:[%s9321 + $0x240] sm:$0xff]
        %v9419 = vld [vmem:[%s9321 + $0x248] sm:$0xf]
        %v9420 = vld [vmem:[%s9321 + $0x24c] sm:$0xff]
        %v9421 = vld [vmem:[%s9321 + $0x254] sm:$0xf]
        %v9422 = vld [vmem:[%s9321 + $0x258] sm:$0xff]
        %v9423 = vld [vmem:[%s9321 + $0x260] sm:$0xf]
        %v9424 = vld [vmem:[%s9321 + $0x264] sm:$0xff]
        %v9425 = vld [vmem:[%s9321 + $0x26c] sm:$0xf]
        %v9426 = vld [vmem:[%s9321 + $0x270] sm:$0xff]
        %v9427 = vld [vmem:[%s9321 + $0x278] sm:$0xf]
        %v9428 = vld [vmem:[%s9321 + $0x27c] sm:$0xff]
        %v9429 = vld [vmem:[%s9321 + $0x284] sm:$0xf]
        %v9430 = vld [vmem:[%s9321 + $0x288] sm:$0xff]
        %v9431 = vld [vmem:[%s9321 + $0x290] sm:$0xf]
        %v9432 = vld [vmem:[%s9321 + $0x294] sm:$0xff]
        %v9433 = vld [vmem:[%s9321 + $0x29c] sm:$0xf]
        %v9434 = vld [vmem:[%s9321 + $0x2a0] sm:$0xff]
        %v9435 = vld [vmem:[%s9321 + $0x2a8] sm:$0xf]
        %v9436 = vld [vmem:[%s9321 + $0x2ac] sm:$0xff]
        %v9437 = vld [vmem:[%s9321 + $0x2b4] sm:$0xf]
        %v9438 = vld [vmem:[%s9321 + $0x2b8] sm:$0xff]
        %v9439 = vld [vmem:[%s9321 + $0x2c0] sm:$0xf]
        %v9440 = vld [vmem:[%s9321 + $0x2c4] sm:$0xff]
        %v9441 = vld [vmem:[%s9321 + $0x2cc] sm:$0xf]
        %v9442 = vld [vmem:[%s9321 + $0x2d0] sm:$0xff]
        %v9443 = vld [vmem:[%s9321 + $0x2d8] sm:$0xf]
        %v9444 = vld [vmem:[%s9321 + $0x2dc] sm:$0xff]
        %v9445 = vld [vmem:[%s9321 + $0x2e4] sm:$0xf]
        %v9446 = vld [vmem:[%s9321 + $0x2e8] sm:$0xff]
        %v9447 = vld [vmem:[%s9321 + $0x2f0] sm:$0xf]
        %v9448 = vld [vmem:[%s9321 + $0x2f4] sm:$0xff]
        %v9449 = vld [vmem:[%s9321 + $0x2fc] sm:$0xf]
        %v9578 = vunpack.c.l.b16 %v9322
        %v9579 = vunpack.c.h.b16 %v9322
        %v9580 = vunpack.c.l.b16 %v9323
        %v9581 = vunpack.c.l.b16 %v9324
        %v9582 = vunpack.c.h.b16 %v9324
        %v9583 = vunpack.c.l.b16 %v9325
        %v9584 = vunpack.c.l.b16 %v9326
        %v9585 = vunpack.c.h.b16 %v9326
        %v9586 = vunpack.c.l.b16 %v9327
        %v9587 = vunpack.c.l.b16 %v9328
        %v9588 = vunpack.c.h.b16 %v9328
        %v9589 = vunpack.c.l.b16 %v9329
        %v9590 = vunpack.c.l.b16 %v9330
        %v9591 = vunpack.c.h.b16 %v9330
        %v9592 = vunpack.c.l.b16 %v9331
        %v9593 = vunpack.c.l.b16 %v9332
        %v9594 = vunpack.c.h.b16 %v9332
        %v9595 = vunpack.c.l.b16 %v9333
        %v9596 = vunpack.c.l.b16 %v9334
        %v9597 = vunpack.c.h.b16 %v9334
        %v9598 = vunpack.c.l.b16 %v9335
        %v9599 = vunpack.c.l.b16 %v9336
        %v9600 = vunpack.c.h.b16 %v9336
        %v9601 = vunpack.c.l.b16 %v9337
        %v9602 = vunpack.c.l.b16 %v9338
        %v9603 = vunpack.c.h.b16 %v9338
        %v9604 = vunpack.c.l.b16 %v9339
        %v9605 = vunpack.c.l.b16 %v9340
        %v9606 = vunpack.c.h.b16 %v9340
        %v9607 = vunpack.c.l.b16 %v9341
        %v9608 = vunpack.c.l.b16 %v9342
        %v9609 = vunpack.c.h.b16 %v9342
        %v9610 = vunpack.c.l.b16 %v9343
        %v9611 = vunpack.c.l.b16 %v9344
        %v9612 = vunpack.c.h.b16 %v9344
        %v9613 = vunpack.c.l.b16 %v9345
        %v9614 = vunpack.c.l.b16 %v9346
        %v9615 = vunpack.c.h.b16 %v9346
        %v9616 = vunpack.c.l.b16 %v9347
        %v9617 = vunpack.c.l.b16 %v9348
        %v9618 = vunpack.c.h.b16 %v9348
        %v9619 = vunpack.c.l.b16 %v9349
        %v9620 = vunpack.c.l.b16 %v9350
        %v9621 = vunpack.c.h.b16 %v9350
        %v9622 = vunpack.c.l.b16 %v9351
        %v9623 = vunpack.c.l.b16 %v9352
        %v9624 = vunpack.c.h.b16 %v9352
        %v9625 = vunpack.c.l.b16 %v9353
        %v9626 = vunpack.c.l.b16 %v9354
        %v9627 = vunpack.c.h.b16 %v9354
        %v9628 = vunpack.c.l.b16 %v9355
        %v9629 = vunpack.c.l.b16 %v9356
        %v9630 = vunpack.c.h.b16 %v9356
        %v9631 = vunpack.c.l.b16 %v9357
        %v9632 = vunpack.c.l.b16 %v9358
        %v9633 = vunpack.c.h.b16 %v9358
        %v9634 = vunpack.c.l.b16 %v9359
        %v9635 = vunpack.c.l.b16 %v9360
        %v9636 = vunpack.c.h.b16 %v9360
        %v9637 = vunpack.c.l.b16 %v9361
        %v9638 = vunpack.c.l.b16 %v9362
        %v9639 = vunpack.c.h.b16 %v9362
        %v9640 = vunpack.c.l.b16 %v9363
        %v9641 = vunpack.c.l.b16 %v9364
        %v9642 = vunpack.c.h.b16 %v9364
        %v9643 = vunpack.c.l.b16 %v9365
        %v9644 = vunpack.c.l.b16 %v9366
        %v9645 = vunpack.c.h.b16 %v9366
        %v9646 = vunpack.c.l.b16 %v9367
        %v9647 = vunpack.c.l.b16 %v9368
        %v9648 = vunpack.c.h.b16 %v9368
        %v9649 = vunpack.c.l.b16 %v9369
        %v9650 = vunpack.c.l.b16 %v9370
        %v9651 = vunpack.c.h.b16 %v9370
        %v9652 = vunpack.c.l.b16 %v9371
        %v9653 = vunpack.c.l.b16 %v9372
        %v9654 = vunpack.c.h.b16 %v9372
        %v9655 = vunpack.c.l.b16 %v9373
        %v9656 = vunpack.c.l.b16 %v9374
        %v9657 = vunpack.c.h.b16 %v9374
        %v9658 = vunpack.c.l.b16 %v9375
        %v9659 = vunpack.c.l.b16 %v9376
        %v9660 = vunpack.c.h.b16 %v9376
        %v9661 = vunpack.c.l.b16 %v9377
        %v9662 = vunpack.c.l.b16 %v9378
        %v9663 = vunpack.c.h.b16 %v9378
        %v9664 = vunpack.c.l.b16 %v9379
        %v9665 = vunpack.c.l.b16 %v9380
        %v9666 = vunpack.c.h.b16 %v9380
        %v9667 = vunpack.c.l.b16 %v9381
        %v9668 = vunpack.c.l.b16 %v9382
        %v9669 = vunpack.c.h.b16 %v9382
        %v9670 = vunpack.c.l.b16 %v9383
        %v9671 = vunpack.c.l.b16 %v9384
        %v9672 = vunpack.c.h.b16 %v9384
        %v9673 = vunpack.c.l.b16 %v9385
        %v9674 = vunpack.c.l.b16 %v9386
        %v9675 = vunpack.c.h.b16 %v9386
        %v9676 = vunpack.c.l.b16 %v9387
        %v9677 = vunpack.c.l.b16 %v9388
        %v9678 = vunpack.c.h.b16 %v9388
        %v9679 = vunpack.c.l.b16 %v9389
        %v9680 = vunpack.c.l.b16 %v9390
        %v9681 = vunpack.c.h.b16 %v9390
        %v9682 = vunpack.c.l.b16 %v9391
        %v9683 = vunpack.c.l.b16 %v9392
        %v9684 = vunpack.c.h.b16 %v9392
        %v9685 = vunpack.c.l.b16 %v9393
        %v9686 = vunpack.c.l.b16 %v9394
        %v9687 = vunpack.c.h.b16 %v9394
        %v9688 = vunpack.c.l.b16 %v9395
        %v9689 = vunpack.c.l.b16 %v9396
        %v9690 = vunpack.c.h.b16 %v9396
        %v9691 = vunpack.c.l.b16 %v9397
        %v9692 = vunpack.c.l.b16 %v9398
        %v9693 = vunpack.c.h.b16 %v9398
        %v9694 = vunpack.c.l.b16 %v9399
        %v9695 = vunpack.c.l.b16 %v9400
        %v9696 = vunpack.c.h.b16 %v9400
        %v9697 = vunpack.c.l.b16 %v9401
        %v9698 = vunpack.c.l.b16 %v9402
        %v9699 = vunpack.c.h.b16 %v9402
        %v9700 = vunpack.c.l.b16 %v9403
        %v9701 = vunpack.c.l.b16 %v9404
        %v9702 = vunpack.c.h.b16 %v9404
        %v9703 = vunpack.c.l.b16 %v9405
        %v9704 = vunpack.c.l.b16 %v9406
        %v9705 = vunpack.c.h.b16 %v9406
        %v9706 = vunpack.c.l.b16 %v9407
        %v9707 = vunpack.c.l.b16 %v9408
        %v9708 = vunpack.c.h.b16 %v9408
        %v9709 = vunpack.c.l.b16 %v9409
        %v9710 = vunpack.c.l.b16 %v9410
        %v9711 = vunpack.c.h.b16 %v9410
        %v9712 = vunpack.c.l.b16 %v9411
        %v9713 = vunpack.c.l.b16 %v9412
        %v9714 = vunpack.c.h.b16 %v9412
        %v9715 = vunpack.c.l.b16 %v9413
        %v9716 = vunpack.c.l.b16 %v9414
        %v9717 = vunpack.c.h.b16 %v9414
        %v9718 = vunpack.c.l.b16 %v9415
        %v9719 = vunpack.c.l.b16 %v9416
        %v9720 = vunpack.c.h.b16 %v9416
        %v9721 = vunpack.c.l.b16 %v9417
        %v9722 = vunpack.c.l.b16 %v9418
        %v9723 = vunpack.c.h.b16 %v9418
        %v9724 = vunpack.c.l.b16 %v9419
        %v9725 = vunpack.c.l.b16 %v9420
        %v9726 = vunpack.c.h.b16 %v9420
        %v9727 = vunpack.c.l.b16 %v9421
        %v9728 = vunpack.c.l.b16 %v9422
        %v9729 = vunpack.c.h.b16 %v9422
        %v9730 = vunpack.c.l.b16 %v9423
        %v9731 = vunpack.c.l.b16 %v9424
        %v9732 = vunpack.c.h.b16 %v9424
        %v9733 = vunpack.c.l.b16 %v9425
        %v9734 = vunpack.c.l.b16 %v9426
        %v9735 = vunpack.c.h.b16 %v9426
        %v9736 = vunpack.c.l.b16 %v9427
        %v9737 = vunpack.c.l.b16 %v9428
        %v9738 = vunpack.c.h.b16 %v9428
        %v9739 = vunpack.c.l.b16 %v9429
        %v9740 = vunpack.c.l.b16 %v9430
        %v9741 = vunpack.c.h.b16 %v9430
        %v9742 = vunpack.c.l.b16 %v9431
        %v9743 = vunpack.c.l.b16 %v9432
        %v9744 = vunpack.c.h.b16 %v9432
        %v9745 = vunpack.c.l.b16 %v9433
        %v9746 = vunpack.c.l.b16 %v9434
        %v9747 = vunpack.c.h.b16 %v9434
        %v9748 = vunpack.c.l.b16 %v9435
        %v9749 = vunpack.c.l.b16 %v9436
        %v9750 = vunpack.c.h.b16 %v9436
        %v9751 = vunpack.c.l.b16 %v9437
        %v9752 = vunpack.c.l.b16 %v9438
        %v9753 = vunpack.c.h.b16 %v9438
        %v9754 = vunpack.c.l.b16 %v9439
        %v9755 = vunpack.c.l.b16 %v9440
        %v9756 = vunpack.c.h.b16 %v9440
        %v9757 = vunpack.c.l.b16 %v9441
        %v9758 = vunpack.c.l.b16 %v9442
        %v9759 = vunpack.c.h.b16 %v9442
        %v9760 = vunpack.c.l.b16 %v9443
        %v9761 = vunpack.c.l.b16 %v9444
        %v9762 = vunpack.c.h.b16 %v9444
        %v9763 = vunpack.c.l.b16 %v9445
        %v9764 = vunpack.c.l.b16 %v9446
        %v9765 = vunpack.c.h.b16 %v9446
        %v9766 = vunpack.c.l.b16 %v9447
        %v9767 = vunpack.c.l.b16 %v9448
        %v9768 = vunpack.c.h.b16 %v9448
        %v9769 = vunpack.c.l.b16 %v9449
        %v9770 = vpack.c.b16 %v9581, %v9578
        %v9771 = vpack.c.b16 %v9582, %v9579
        %v9772 = vpack.c.b16 %v9583, %v9580
        %v9773 = vpack.c.b16 %v9587, %v9584
        %v9774 = vpack.c.b16 %v9588, %v9585
        %v9775 = vpack.c.b16 %v9589, %v9586
        %v9776 = vpack.c.b16 %v9593, %v9590
        %v9777 = vpack.c.b16 %v9594, %v9591
        %v9778 = vpack.c.b16 %v9595, %v9592
        %v9779 = vpack.c.b16 %v9599, %v9596
        %v9780 = vpack.c.b16 %v9600, %v9597
        %v9781 = vpack.c.b16 %v9601, %v9598
        %v9782 = vpack.c.b16 %v9605, %v9602
        %v9783 = vpack.c.b16 %v9606, %v9603
        %v9784 = vpack.c.b16 %v9607, %v9604
        %v9785 = vpack.c.b16 %v9611, %v9608
        %v9786 = vpack.c.b16 %v9612, %v9609
        %v9787 = vpack.c.b16 %v9613, %v9610
        %v9788 = vpack.c.b16 %v9617, %v9614
        %v9789 = vpack.c.b16 %v9618, %v9615
        %v9790 = vpack.c.b16 %v9619, %v9616
        %v9791 = vpack.c.b16 %v9623, %v9620
        %v9792 = vpack.c.b16 %v9624, %v9621
        %v9793 = vpack.c.b16 %v9625, %v9622
        %v9794 = vpack.c.b16 %v9629, %v9626
        %v9795 = vpack.c.b16 %v9630, %v9627
        %v9796 = vpack.c.b16 %v9631, %v9628
        %v9797 = vpack.c.b16 %v9635, %v9632
        %v9798 = vpack.c.b16 %v9636, %v9633
        %v9799 = vpack.c.b16 %v9637, %v9634
        %v9800 = vpack.c.b16 %v9641, %v9638
        %v9801 = vpack.c.b16 %v9642, %v9639
        %v9802 = vpack.c.b16 %v9643, %v9640
        %v9803 = vpack.c.b16 %v9647, %v9644
        %v9804 = vpack.c.b16 %v9648, %v9645
        %v9805 = vpack.c.b16 %v9649, %v9646
        %v9806 = vpack.c.b16 %v9653, %v9650
        %v9807 = vpack.c.b16 %v9654, %v9651
        %v9808 = vpack.c.b16 %v9655, %v9652
        %v9809 = vpack.c.b16 %v9659, %v9656
        %v9810 = vpack.c.b16 %v9660, %v9657
        %v9811 = vpack.c.b16 %v9661, %v9658
        %v9812 = vpack.c.b16 %v9665, %v9662
        %v9813 = vpack.c.b16 %v9666, %v9663
        %v9814 = vpack.c.b16 %v9667, %v9664
        %v9815 = vpack.c.b16 %v9671, %v9668
        %v9816 = vpack.c.b16 %v9672, %v9669
        %v9817 = vpack.c.b16 %v9673, %v9670
        %v9818 = vpack.c.b16 %v9677, %v9674
        %v9819 = vpack.c.b16 %v9678, %v9675
        %v9820 = vpack.c.b16 %v9679, %v9676
        %v9821 = vpack.c.b16 %v9683, %v9680
        %v9822 = vpack.c.b16 %v9684, %v9681
        %v9823 = vpack.c.b16 %v9685, %v9682
        %v9824 = vpack.c.b16 %v9689, %v9686
        %v9825 = vpack.c.b16 %v9690, %v9687
        %v9826 = vpack.c.b16 %v9691, %v9688
        %v9827 = vpack.c.b16 %v9695, %v9692
        %v9828 = vpack.c.b16 %v9696, %v9693
        %v9829 = vpack.c.b16 %v9697, %v9694
        %v9830 = vpack.c.b16 %v9701, %v9698
        %v9831 = vpack.c.b16 %v9702, %v9699
        %v9832 = vpack.c.b16 %v9703, %v9700
        %v9833 = vpack.c.b16 %v9707, %v9704
        %v9834 = vpack.c.b16 %v9708, %v9705
        %v9835 = vpack.c.b16 %v9709, %v9706
        %v9836 = vpack.c.b16 %v9713, %v9710
        %v9837 = vpack.c.b16 %v9714, %v9711
        %v9838 = vpack.c.b16 %v9715, %v9712
        %v9839 = vpack.c.b16 %v9719, %v9716
        %v9840 = vpack.c.b16 %v9720, %v9717
        %v9841 = vpack.c.b16 %v9721, %v9718
        %v9842 = vpack.c.b16 %v9725, %v9722
        %v9843 = vpack.c.b16 %v9726, %v9723
        %v9844 = vpack.c.b16 %v9727, %v9724
        %v9845 = vpack.c.b16 %v9731, %v9728
        %v9846 = vpack.c.b16 %v9732, %v9729
        %v9847 = vpack.c.b16 %v9733, %v9730
        %v9848 = vpack.c.b16 %v9737, %v9734
        %v9849 = vpack.c.b16 %v9738, %v9735
        %v9850 = vpack.c.b16 %v9739, %v9736
        %v9851 = vpack.c.b16 %v9743, %v9740
        %v9852 = vpack.c.b16 %v9744, %v9741
        %v9853 = vpack.c.b16 %v9745, %v9742
        %v9854 = vpack.c.b16 %v9749, %v9746
        %v9855 = vpack.c.b16 %v9750, %v9747
        %v9856 = vpack.c.b16 %v9751, %v9748
        %v9857 = vpack.c.b16 %v9755, %v9752
        %v9858 = vpack.c.b16 %v9756, %v9753
        %v9859 = vpack.c.b16 %v9757, %v9754
        %v9860 = vpack.c.b16 %v9761, %v9758
        %v9861 = vpack.c.b16 %v9762, %v9759
        %v9862 = vpack.c.b16 %v9763, %v9760
        %v9863 = vpack.c.b16 %v9767, %v9764
        %v9864 = vpack.c.b16 %v9768, %v9765
        %v9865 = vpack.c.b16 %v9769, %v9766
        %9962 = vmatpush.bf16.msra.mxu0 %v9791
        %9963 = vmatpush.bf16.msra.mxu0 %v9788
        %9964 = vmatpush.bf16.msra.mxu0 %v9785
        %9965 = vmatpush.bf16.msra.mxu0 %v9782
        %9966 = vmatpush.bf16.msra.mxu0 %v9779
        %9967 = vmatpush.bf16.msra.mxu0 %v9776
        %9968 = vmatpush.bf16.msra.mxu0 %v9773
        %9969 = vmatpush.bf16.msra.mxu0 %v9770
        %9970 = vmatmul.bf16.gmra.mxu0 %v9317
        %v9971 = vpop.f32.mrf.mxu0
        %v9972 = vadd.f32 0.0, %v9971
        %v9973 = vpop.f32.mrf.mxu0
        %9974 = vdwg.mxu0
        %9975 = vmatpush.bf16.msra.mxu0 %v9815
        %9976 = vmatpush.bf16.msra.mxu0 %v9812
        %9977 = vmatpush.bf16.msra.mxu0 %v9809
        %9978 = vmatpush.bf16.msra.mxu0 %v9806
        %9979 = vmatpush.bf16.msra.mxu0 %v9803
        %9980 = vmatpush.bf16.msra.mxu0 %v9800
        %9981 = vmatpush.bf16.msra.mxu0 %v9797
        %9982 = vmatpush.bf16.msra.mxu0 %v9794
        %9983 = vmatmul.bf16.gmra.mxu0 %v9318
        %v9984 = vpop.f32.mrf.mxu0
        %v9985 = vadd.f32 %v9972, %v9984
        %v9986 = vpop.f32.mrf.mxu0
        %9987 = vdwg.mxu0
        %9988 = vmatpush.bf16.msra.mxu0 %v9839
        %9989 = vmatpush.bf16.msra.mxu0 %v9836
        %9990 = vmatpush.bf16.msra.mxu0 %v9833
        %9991 = vmatpush.bf16.msra.mxu0 %v9830
        %9992 = vmatpush.bf16.msra.mxu0 %v9827
        %9993 = vmatpush.bf16.msra.mxu0 %v9824
        %9994 = vmatpush.bf16.msra.mxu0 %v9821
        %9995 = vmatpush.bf16.msra.mxu0 %v9818
        %9996 = vmatmul.bf16.gmra.mxu0 %v9319
        %v9997 = vpop.f32.mrf.mxu0
        %v9998 = vadd.f32 %v9985, %v9997
        %v9999 = vpop.f32.mrf.mxu0
        %10000 = vdwg.mxu0
        %10001 = vmatpush.bf16.msra.mxu0 %v9863
        %10002 = vmatpush.bf16.msra.mxu0 %v9860
        %10003 = vmatpush.bf16.msra.mxu0 %v9857
        %10004 = vmatpush.bf16.msra.mxu0 %v9854
        %10005 = vmatpush.bf16.msra.mxu0 %v9851
        %10006 = vmatpush.bf16.msra.mxu0 %v9848
        %10007 = vmatpush.bf16.msra.mxu0 %v9845
        %10008 = vmatpush.bf16.msra.mxu0 %v9842
        %10009 = vmatmul.bf16.gmra.mxu0 %v9320
        %v10010 = vpop.f32.mrf.mxu0
        %v10011 = vadd.f32 %v9998, %v10010
        %v10012 = vpop.f32.mrf.mxu0
        %10013 = vdwg.mxu0
        %10014 = vmatpush.bf16.msra.mxu0 %v9792
        %10015 = vmatpush.bf16.msra.mxu0 %v9789
        %10016 = vmatpush.bf16.msra.mxu0 %v9786
        %10017 = vmatpush.bf16.msra.mxu0 %v9783
        %10018 = vmatpush.bf16.msra.mxu0 %v9780
        %10019 = vmatpush.bf16.msra.mxu0 %v9777
        %10020 = vmatpush.bf16.msra.mxu0 %v9774
        %10021 = vmatpush.bf16.msra.mxu0 %v9771
        %10022 = vmatmul.bf16.gmra.mxu0 %v9317
        %v10023 = vpop.f32.mrf.mxu0
        %v10024 = vadd.f32 0.0, %v10023
        %v10025 = vpop.f32.mrf.mxu0
        %10026 = vdwg.mxu0
        %10027 = vmatpush.bf16.msra.mxu0 %v9816
        %10028 = vmatpush.bf16.msra.mxu0 %v9813
        %10029 = vmatpush.bf16.msra.mxu0 %v9810
        %10030 = vmatpush.bf16.msra.mxu0 %v9807
        %10031 = vmatpush.bf16.msra.mxu0 %v9804
        %10032 = vmatpush.bf16.msra.mxu0 %v9801
        %10033 = vmatpush.bf16.msra.mxu0 %v9798
        %10034 = vmatpush.bf16.msra.mxu0 %v9795
        %10035 = vmatmul.bf16.gmra.mxu0 %v9318
        %v10036 = vpop.f32.mrf.mxu0
        %v10037 = vadd.f32 %v10024, %v10036
        %v10038 = vpop.f32.mrf.mxu0
        %10039 = vdwg.mxu0
        %10040 = vmatpush.bf16.msra.mxu0 %v9840
        %10041 = vmatpush.bf16.msra.mxu0 %v9837
        %10042 = vmatpush.bf16.msra.mxu0 %v9834
        %10043 = vmatpush.bf16.msra.mxu0 %v9831
        %10044 = vmatpush.bf16.msra.mxu0 %v9828
        %10045 = vmatpush.bf16.msra.mxu0 %v9825
        %10046 = vmatpush.bf16.msra.mxu0 %v9822
        %10047 = vmatpush.bf16.msra.mxu0 %v9819
        %10048 = vmatmul.bf16.gmra.mxu0 %v9319
        %v10049 = vpop.f32.mrf.mxu0
        %v10050 = vadd.f32 %v10037, %v10049
        %v10051 = vpop.f32.mrf.mxu0
        %10052 = vdwg.mxu0
        %10053 = vmatpush.bf16.msra.mxu0 %v9864
        %10054 = vmatpush.bf16.msra.mxu0 %v9861
        %10055 = vmatpush.bf16.msra.mxu0 %v9858
        %10056 = vmatpush.bf16.msra.mxu0 %v9855
        %10057 = vmatpush.bf16.msra.mxu0 %v9852
        %10058 = vmatpush.bf16.msra.mxu0 %v9849
        %10059 = vmatpush.bf16.msra.mxu0 %v9846
        %10060 = vmatpush.bf16.msra.mxu0 %v9843
        %10061 = vmatmul.bf16.gmra.mxu0 %v9320
        %v10062 = vpop.f32.mrf.mxu0
        %v10063 = vadd.f32 %v10050, %v10062
        %v10064 = vpop.f32.mrf.mxu0
        %10065 = vdwg.mxu0
        %10066 = vmatpush.bf16.msra.mxu0 %v9793
        %10067 = vmatpush.bf16.msra.mxu0 %v9790
        %10068 = vmatpush.bf16.msra.mxu0 %v9787
        %10069 = vmatpush.bf16.msra.mxu0 %v9784
        %10070 = vmatpush.bf16.msra.mxu0 %v9781
        %10071 = vmatpush.bf16.msra.mxu0 %v9778
        %10072 = vmatpush.bf16.msra.mxu0 %v9775
        %10073 = vmatpush.bf16.msra.mxu0 %v9772
        %10074 = vmatmul.bf16.gmra.mxu0 %v9317
        %v10075 = vpop.f32.mrf.mxu0
        %v10076 = vadd.f32 0.0, %v10075
        %v10077 = vpop.f32.mrf.mxu0
        %10078 = vdwg.mxu0
        %10079 = vmatpush.bf16.msra.mxu0 %v9817
        %10080 = vmatpush.bf16.msra.mxu0 %v9814
        %10081 = vmatpush.bf16.msra.mxu0 %v9811
        %10082 = vmatpush.bf16.msra.mxu0 %v9808
        %10083 = vmatpush.bf16.msra.mxu0 %v9805
        %10084 = vmatpush.bf16.msra.mxu0 %v9802
        %10085 = vmatpush.bf16.msra.mxu0 %v9799
        %10086 = vmatpush.bf16.msra.mxu0 %v9796
        %10087 = vmatmul.bf16.gmra.mxu0 %v9318
        %v10088 = vpop.f32.mrf.mxu0
        %v10089 = vadd.f32 %v10076, %v10088
        %v10090 = vpop.f32.mrf.mxu0
        %10091 = vdwg.mxu0
        %10092 = vmatpush.bf16.msra.mxu0 %v9841
        %10093 = vmatpush.bf16.msra.mxu0 %v9838
        %10094 = vmatpush.bf16.msra.mxu0 %v9835
        %10095 = vmatpush.bf16.msra.mxu0 %v9832
        %10096 = vmatpush.bf16.msra.mxu0 %v9829
        %10097 = vmatpush.bf16.msra.mxu0 %v9826
        %10098 = vmatpush.bf16.msra.mxu0 %v9823
        %10099 = vmatpush.bf16.msra.mxu0 %v9820
        %10100 = vmatmul.bf16.gmra.mxu0 %v9319
        %v10101 = vpop.f32.mrf.mxu0
        %v10102 = vadd.f32 %v10089, %v10101
        %v10103 = vpop.f32.mrf.mxu0
        %10104 = vdwg.mxu0
        %10105 = vmatpush.bf16.msra.mxu0 %v9865
        %10106 = vmatpush.bf16.msra.mxu0 %v9862
        %10107 = vmatpush.bf16.msra.mxu0 %v9859
        %10108 = vmatpush.bf16.msra.mxu0 %v9856
        %10109 = vmatpush.bf16.msra.mxu0 %v9853
        %10110 = vmatpush.bf16.msra.mxu0 %v9850
        %10111 = vmatpush.bf16.msra.mxu0 %v9847
        %10112 = vmatpush.bf16.msra.mxu0 %v9844
        %10113 = vmatmul.bf16.gmra.mxu0 %v9320
        %v10114 = vpop.f32.mrf.mxu0
        %v10115 = vadd.f32 %v10102, %v10114
        %v10116 = vpop.f32.mrf.mxu0
        %10117 = vdwg.mxu0
        %v10118 = vadd.f32 %v9314, %v10011
        %v10119 = vadd.f32 %v9315, %v10063
        %v10120 = vadd.f32 %v9316, %v10115
        %10121 = vst [vmem:[#allocation2] sm:$0xff] %v10118
        %10122 = vst [vmem:[#allocation2 + $0x8] sm:$0xff] %v10119
        %10123 = vst [vmem:[#allocation2 + $0x10] sm:$0xff] %v10120
        %p10124 = scmp.eq.s32.totalorder %s34, 3
        // Predicated region
        $region81: #{forward.1} parent=47 // pred_check
          %p10125 = pneg %p10124
        $region82: #{forward.1} parent=47 // pred_check_branch
          %10127 = sbr.rel (%p10125) target = $region84
        $region83: #{forward.1} parent=47 // pred_region
          %v10128 = vld [vmem:[#allocation2] sm:$0xff]
          %v10129 = vld [vmem:[#allocation2 + $0x8] sm:$0xff]
          %v10130 = vld [vmem:[#allocation2 + $0x10] sm:$0xff]
          %v10131 = vld [vmem:[#allocation3] sm:$0xff]
          %v10132 = vld [vmem:[#allocation3 + $0x8] sm:$0xff]
          %v10133 = vld [vmem:[#allocation3 + $0x10] sm:$0xff]
          %v10134 = vld [vmem:[#allocation3 + $0x18] sm:$0xff]
          %v10135 = vpack.c.bf16 %v10131, %v10131
          %v10136 = vpack.c.bf16 %v10132, %v10132
          %v10137 = vpack.c.bf16 %v10133, %v10133
          %v10138 = vpack.c.bf16 %v10134, %v10134
          %v10139 = vld [vmem:[#allocation12] sm:$0xff]
          %v10140 = vld [vmem:[#allocation12 + $0x8] sm:$0xf]
          %v10141 = vld [vmem:[#allocation12 + $0xc] sm:$0xff]
          %v10142 = vld [vmem:[#allocation12 + $0x14] sm:$0xf]
          %v10143 = vld [vmem:[#allocation12 + $0x18] sm:$0xff]
          %v10144 = vld [vmem:[#allocation12 + $0x20] sm:$0xf]
          %v10145 = vld [vmem:[#allocation12 + $0x24] sm:$0xff]
          %v10146 = vld [vmem:[#allocation12 + $0x2c] sm:$0xf]
          %v10147 = vld [vmem:[#allocation12 + $0x30] sm:$0xff]
          %v10148 = vld [vmem:[#allocation12 + $0x38] sm:$0xf]
          %v10149 = vld [vmem:[#allocation12 + $0x3c] sm:$0xff]
          %v10150 = vld [vmem:[#allocation12 + $0x44] sm:$0xf]
          %v10151 = vld [vmem:[#allocation12 + $0x48] sm:$0xff]
          %v10152 = vld [vmem:[#allocation12 + $0x50] sm:$0xf]
          %v10153 = vld [vmem:[#allocation12 + $0x54] sm:$0xff]
          %v10154 = vld [vmem:[#allocation12 + $0x5c] sm:$0xf]
          %v10155 = vld [vmem:[#allocation12 + $0x60] sm:$0xff]
          %v10156 = vld [vmem:[#allocation12 + $0x68] sm:$0xf]
          %v10157 = vld [vmem:[#allocation12 + $0x6c] sm:$0xff]
          %v10158 = vld [vmem:[#allocation12 + $0x74] sm:$0xf]
          %v10159 = vld [vmem:[#allocation12 + $0x78] sm:$0xff]
          %v10160 = vld [vmem:[#allocation12 + $0x80] sm:$0xf]
          %v10161 = vld [vmem:[#allocation12 + $0x84] sm:$0xff]
          %v10162 = vld [vmem:[#allocation12 + $0x8c] sm:$0xf]
          %v10163 = vld [vmem:[#allocation12 + $0x90] sm:$0xff]
          %v10164 = vld [vmem:[#allocation12 + $0x98] sm:$0xf]
          %v10165 = vld [vmem:[#allocation12 + $0x9c] sm:$0xff]
          %v10166 = vld [vmem:[#allocation12 + $0xa4] sm:$0xf]
          %v10167 = vld [vmem:[#allocation12 + $0xa8] sm:$0xff]
          %v10168 = vld [vmem:[#allocation12 + $0xb0] sm:$0xf]
          %v10169 = vld [vmem:[#allocation12 + $0xb4] sm:$0xff]
          %v10170 = vld [vmem:[#allocation12 + $0xbc] sm:$0xf]
          %v10171 = vld [vmem:[#allocation12 + $0xc0] sm:$0xff]
          %v10172 = vld [vmem:[#allocation12 + $0xc8] sm:$0xf]
          %v10173 = vld [vmem:[#allocation12 + $0xcc] sm:$0xff]
          %v10174 = vld [vmem:[#allocation12 + $0xd4] sm:$0xf]
          %v10175 = vld [vmem:[#allocation12 + $0xd8] sm:$0xff]
          %v10176 = vld [vmem:[#allocation12 + $0xe0] sm:$0xf]
          %v10177 = vld [vmem:[#allocation12 + $0xe4] sm:$0xff]
          %v10178 = vld [vmem:[#allocation12 + $0xec] sm:$0xf]
          %v10179 = vld [vmem:[#allocation12 + $0xf0] sm:$0xff]
          %v10180 = vld [vmem:[#allocation12 + $0xf8] sm:$0xf]
          %v10181 = vld [vmem:[#allocation12 + $0xfc] sm:$0xff]
          %v10182 = vld [vmem:[#allocation12 + $0x104] sm:$0xf]
          %v10183 = vld [vmem:[#allocation12 + $0x108] sm:$0xff]
          %v10184 = vld [vmem:[#allocation12 + $0x110] sm:$0xf]
          %v10185 = vld [vmem:[#allocation12 + $0x114] sm:$0xff]
          %v10186 = vld [vmem:[#allocation12 + $0x11c] sm:$0xf]
          %v10187 = vld [vmem:[#allocation12 + $0x120] sm:$0xff]
          %v10188 = vld [vmem:[#allocation12 + $0x128] sm:$0xf]
          %v10189 = vld [vmem:[#allocation12 + $0x12c] sm:$0xff]
          %v10190 = vld [vmem:[#allocation12 + $0x134] sm:$0xf]
          %v10191 = vld [vmem:[#allocation12 + $0x138] sm:$0xff]
          %v10192 = vld [vmem:[#allocation12 + $0x140] sm:$0xf]
          %v10193 = vld [vmem:[#allocation12 + $0x144] sm:$0xff]
          %v10194 = vld [vmem:[#allocation12 + $0x14c] sm:$0xf]
          %v10195 = vld [vmem:[#allocation12 + $0x150] sm:$0xff]
          %v10196 = vld [vmem:[#allocation12 + $0x158] sm:$0xf]
          %v10197 = vld [vmem:[#allocation12 + $0x15c] sm:$0xff]
          %v10198 = vld [vmem:[#allocation12 + $0x164] sm:$0xf]
          %v10199 = vld [vmem:[#allocation12 + $0x168] sm:$0xff]
          %v10200 = vld [vmem:[#allocation12 + $0x170] sm:$0xf]
          %v10201 = vld [vmem:[#allocation12 + $0x174] sm:$0xff]
          %v10202 = vld [vmem:[#allocation12 + $0x17c] sm:$0xf]
          %v10203 = vld [vmem:[#allocation12 + $0x180] sm:$0xff]
          %v10204 = vld [vmem:[#allocation12 + $0x188] sm:$0xf]
          %v10205 = vld [vmem:[#allocation12 + $0x18c] sm:$0xff]
          %v10206 = vld [vmem:[#allocation12 + $0x194] sm:$0xf]
          %v10207 = vld [vmem:[#allocation12 + $0x198] sm:$0xff]
          %v10208 = vld [vmem:[#allocation12 + $0x1a0] sm:$0xf]
          %v10209 = vld [vmem:[#allocation12 + $0x1a4] sm:$0xff]
          %v10210 = vld [vmem:[#allocation12 + $0x1ac] sm:$0xf]
          %v10211 = vld [vmem:[#allocation12 + $0x1b0] sm:$0xff]
          %v10212 = vld [vmem:[#allocation12 + $0x1b8] sm:$0xf]
          %v10213 = vld [vmem:[#allocation12 + $0x1bc] sm:$0xff]
          %v10214 = vld [vmem:[#allocation12 + $0x1c4] sm:$0xf]
          %v10215 = vld [vmem:[#allocation12 + $0x1c8] sm:$0xff]
          %v10216 = vld [vmem:[#allocation12 + $0x1d0] sm:$0xf]
          %v10217 = vld [vmem:[#allocation12 + $0x1d4] sm:$0xff]
          %v10218 = vld [vmem:[#allocation12 + $0x1dc] sm:$0xf]
          %v10219 = vld [vmem:[#allocation12 + $0x1e0] sm:$0xff]
          %v10220 = vld [vmem:[#allocation12 + $0x1e8] sm:$0xf]
          %v10221 = vld [vmem:[#allocation12 + $0x1ec] sm:$0xff]
          %v10222 = vld [vmem:[#allocation12 + $0x1f4] sm:$0xf]
          %v10223 = vld [vmem:[#allocation12 + $0x1f8] sm:$0xff]
          %v10224 = vld [vmem:[#allocation12 + $0x200] sm:$0xf]
          %v10225 = vld [vmem:[#allocation12 + $0x204] sm:$0xff]
          %v10226 = vld [vmem:[#allocation12 + $0x20c] sm:$0xf]
          %v10227 = vld [vmem:[#allocation12 + $0x210] sm:$0xff]
          %v10228 = vld [vmem:[#allocation12 + $0x218] sm:$0xf]
          %v10229 = vld [vmem:[#allocation12 + $0x21c] sm:$0xff]
          %v10230 = vld [vmem:[#allocation12 + $0x224] sm:$0xf]
          %v10231 = vld [vmem:[#allocation12 + $0x228] sm:$0xff]
          %v10232 = vld [vmem:[#allocation12 + $0x230] sm:$0xf]
          %v10233 = vld [vmem:[#allocation12 + $0x234] sm:$0xff]
          %v10234 = vld [vmem:[#allocation12 + $0x23c] sm:$0xf]
          %v10235 = vld [vmem:[#allocation12 + $0x240] sm:$0xff]
          %v10236 = vld [vmem:[#allocation12 + $0x248] sm:$0xf]
          %v10237 = vld [vmem:[#allocation12 + $0x24c] sm:$0xff]
          %v10238 = vld [vmem:[#allocation12 + $0x254] sm:$0xf]
          %v10239 = vld [vmem:[#allocation12 + $0x258] sm:$0xff]
          %v10240 = vld [vmem:[#allocation12 + $0x260] sm:$0xf]
          %v10241 = vld [vmem:[#allocation12 + $0x264] sm:$0xff]
          %v10242 = vld [vmem:[#allocation12 + $0x26c] sm:$0xf]
          %v10243 = vld [vmem:[#allocation12 + $0x270] sm:$0xff]
          %v10244 = vld [vmem:[#allocation12 + $0x278] sm:$0xf]
          %v10245 = vld [vmem:[#allocation12 + $0x27c] sm:$0xff]
          %v10246 = vld [vmem:[#allocation12 + $0x284] sm:$0xf]
          %v10247 = vld [vmem:[#allocation12 + $0x288] sm:$0xff]
          %v10248 = vld [vmem:[#allocation12 + $0x290] sm:$0xf]
          %v10249 = vld [vmem:[#allocation12 + $0x294] sm:$0xff]
          %v10250 = vld [vmem:[#allocation12 + $0x29c] sm:$0xf]
          %v10251 = vld [vmem:[#allocation12 + $0x2a0] sm:$0xff]
          %v10252 = vld [vmem:[#allocation12 + $0x2a8] sm:$0xf]
          %v10253 = vld [vmem:[#allocation12 + $0x2ac] sm:$0xff]
          %v10254 = vld [vmem:[#allocation12 + $0x2b4] sm:$0xf]
          %v10255 = vld [vmem:[#allocation12 + $0x2b8] sm:$0xff]
          %v10256 = vld [vmem:[#allocation12 + $0x2c0] sm:$0xf]
          %v10257 = vld [vmem:[#allocation12 + $0x2c4] sm:$0xff]
          %v10258 = vld [vmem:[#allocation12 + $0x2cc] sm:$0xf]
          %v10259 = vld [vmem:[#allocation12 + $0x2d0] sm:$0xff]
          %v10260 = vld [vmem:[#allocation12 + $0x2d8] sm:$0xf]
          %v10261 = vld [vmem:[#allocation12 + $0x2dc] sm:$0xff]
          %v10262 = vld [vmem:[#allocation12 + $0x2e4] sm:$0xf]
          %v10263 = vld [vmem:[#allocation12 + $0x2e8] sm:$0xff]
          %v10264 = vld [vmem:[#allocation12 + $0x2f0] sm:$0xf]
          %v10265 = vld [vmem:[#allocation12 + $0x2f4] sm:$0xff]
          %v10266 = vld [vmem:[#allocation12 + $0x2fc] sm:$0xf]
          %v10395 = vunpack.c.l.b16 %v10139
          %v10396 = vunpack.c.h.b16 %v10139
          %v10397 = vunpack.c.l.b16 %v10140
          %v10398 = vunpack.c.l.b16 %v10141
          %v10399 = vunpack.c.h.b16 %v10141
          %v10400 = vunpack.c.l.b16 %v10142
          %v10401 = vunpack.c.l.b16 %v10143
          %v10402 = vunpack.c.h.b16 %v10143
          %v10403 = vunpack.c.l.b16 %v10144
          %v10404 = vunpack.c.l.b16 %v10145
          %v10405 = vunpack.c.h.b16 %v10145
          %v10406 = vunpack.c.l.b16 %v10146
          %v10407 = vunpack.c.l.b16 %v10147
          %v10408 = vunpack.c.h.b16 %v10147
          %v10409 = vunpack.c.l.b16 %v10148
          %v10410 = vunpack.c.l.b16 %v10149
          %v10411 = vunpack.c.h.b16 %v10149
          %v10412 = vunpack.c.l.b16 %v10150
          %v10413 = vunpack.c.l.b16 %v10151
          %v10414 = vunpack.c.h.b16 %v10151
          %v10415 = vunpack.c.l.b16 %v10152
          %v10416 = vunpack.c.l.b16 %v10153
          %v10417 = vunpack.c.h.b16 %v10153
          %v10418 = vunpack.c.l.b16 %v10154
          %v10419 = vunpack.c.l.b16 %v10155
          %v10420 = vunpack.c.h.b16 %v10155
          %v10421 = vunpack.c.l.b16 %v10156
          %v10422 = vunpack.c.l.b16 %v10157
          %v10423 = vunpack.c.h.b16 %v10157
          %v10424 = vunpack.c.l.b16 %v10158
          %v10425 = vunpack.c.l.b16 %v10159
          %v10426 = vunpack.c.h.b16 %v10159
          %v10427 = vunpack.c.l.b16 %v10160
          %v10428 = vunpack.c.l.b16 %v10161
          %v10429 = vunpack.c.h.b16 %v10161
          %v10430 = vunpack.c.l.b16 %v10162
          %v10431 = vunpack.c.l.b16 %v10163
          %v10432 = vunpack.c.h.b16 %v10163
          %v10433 = vunpack.c.l.b16 %v10164
          %v10434 = vunpack.c.l.b16 %v10165
          %v10435 = vunpack.c.h.b16 %v10165
          %v10436 = vunpack.c.l.b16 %v10166
          %v10437 = vunpack.c.l.b16 %v10167
          %v10438 = vunpack.c.h.b16 %v10167
          %v10439 = vunpack.c.l.b16 %v10168
          %v10440 = vunpack.c.l.b16 %v10169
          %v10441 = vunpack.c.h.b16 %v10169
          %v10442 = vunpack.c.l.b16 %v10170
          %v10443 = vunpack.c.l.b16 %v10171
          %v10444 = vunpack.c.h.b16 %v10171
          %v10445 = vunpack.c.l.b16 %v10172
          %v10446 = vunpack.c.l.b16 %v10173
          %v10447 = vunpack.c.h.b16 %v10173
          %v10448 = vunpack.c.l.b16 %v10174
          %v10449 = vunpack.c.l.b16 %v10175
          %v10450 = vunpack.c.h.b16 %v10175
          %v10451 = vunpack.c.l.b16 %v10176
          %v10452 = vunpack.c.l.b16 %v10177
          %v10453 = vunpack.c.h.b16 %v10177
          %v10454 = vunpack.c.l.b16 %v10178
          %v10455 = vunpack.c.l.b16 %v10179
          %v10456 = vunpack.c.h.b16 %v10179
          %v10457 = vunpack.c.l.b16 %v10180
          %v10458 = vunpack.c.l.b16 %v10181
          %v10459 = vunpack.c.h.b16 %v10181
          %v10460 = vunpack.c.l.b16 %v10182
          %v10461 = vunpack.c.l.b16 %v10183
          %v10462 = vunpack.c.h.b16 %v10183
          %v10463 = vunpack.c.l.b16 %v10184
          %v10464 = vunpack.c.l.b16 %v10185
          %v10465 = vunpack.c.h.b16 %v10185
          %v10466 = vunpack.c.l.b16 %v10186
          %v10467 = vunpack.c.l.b16 %v10187
          %v10468 = vunpack.c.h.b16 %v10187
          %v10469 = vunpack.c.l.b16 %v10188
          %v10470 = vunpack.c.l.b16 %v10189
          %v10471 = vunpack.c.h.b16 %v10189
          %v10472 = vunpack.c.l.b16 %v10190
          %v10473 = vunpack.c.l.b16 %v10191
          %v10474 = vunpack.c.h.b16 %v10191
          %v10475 = vunpack.c.l.b16 %v10192
          %v10476 = vunpack.c.l.b16 %v10193
          %v10477 = vunpack.c.h.b16 %v10193
          %v10478 = vunpack.c.l.b16 %v10194
          %v10479 = vunpack.c.l.b16 %v10195
          %v10480 = vunpack.c.h.b16 %v10195
          %v10481 = vunpack.c.l.b16 %v10196
          %v10482 = vunpack.c.l.b16 %v10197
          %v10483 = vunpack.c.h.b16 %v10197
          %v10484 = vunpack.c.l.b16 %v10198
          %v10485 = vunpack.c.l.b16 %v10199
          %v10486 = vunpack.c.h.b16 %v10199
          %v10487 = vunpack.c.l.b16 %v10200
          %v10488 = vunpack.c.l.b16 %v10201
          %v10489 = vunpack.c.h.b16 %v10201
          %v10490 = vunpack.c.l.b16 %v10202
          %v10491 = vunpack.c.l.b16 %v10203
          %v10492 = vunpack.c.h.b16 %v10203
          %v10493 = vunpack.c.l.b16 %v10204
          %v10494 = vunpack.c.l.b16 %v10205
          %v10495 = vunpack.c.h.b16 %v10205
          %v10496 = vunpack.c.l.b16 %v10206
          %v10497 = vunpack.c.l.b16 %v10207
          %v10498 = vunpack.c.h.b16 %v10207
          %v10499 = vunpack.c.l.b16 %v10208
          %v10500 = vunpack.c.l.b16 %v10209
          %v10501 = vunpack.c.h.b16 %v10209
          %v10502 = vunpack.c.l.b16 %v10210
          %v10503 = vunpack.c.l.b16 %v10211
          %v10504 = vunpack.c.h.b16 %v10211
          %v10505 = vunpack.c.l.b16 %v10212
          %v10506 = vunpack.c.l.b16 %v10213
          %v10507 = vunpack.c.h.b16 %v10213
          %v10508 = vunpack.c.l.b16 %v10214
          %v10509 = vunpack.c.l.b16 %v10215
          %v10510 = vunpack.c.h.b16 %v10215
          %v10511 = vunpack.c.l.b16 %v10216
          %v10512 = vunpack.c.l.b16 %v10217
          %v10513 = vunpack.c.h.b16 %v10217
          %v10514 = vunpack.c.l.b16 %v10218
          %v10515 = vunpack.c.l.b16 %v10219
          %v10516 = vunpack.c.h.b16 %v10219
          %v10517 = vunpack.c.l.b16 %v10220
          %v10518 = vunpack.c.l.b16 %v10221
          %v10519 = vunpack.c.h.b16 %v10221
          %v10520 = vunpack.c.l.b16 %v10222
          %v10521 = vunpack.c.l.b16 %v10223
          %v10522 = vunpack.c.h.b16 %v10223
          %v10523 = vunpack.c.l.b16 %v10224
          %v10524 = vunpack.c.l.b16 %v10225
          %v10525 = vunpack.c.h.b16 %v10225
          %v10526 = vunpack.c.l.b16 %v10226
          %v10527 = vunpack.c.l.b16 %v10227
          %v10528 = vunpack.c.h.b16 %v10227
          %v10529 = vunpack.c.l.b16 %v10228
          %v10530 = vunpack.c.l.b16 %v10229
          %v10531 = vunpack.c.h.b16 %v10229
          %v10532 = vunpack.c.l.b16 %v10230
          %v10533 = vunpack.c.l.b16 %v10231
          %v10534 = vunpack.c.h.b16 %v10231
          %v10535 = vunpack.c.l.b16 %v10232
          %v10536 = vunpack.c.l.b16 %v10233
          %v10537 = vunpack.c.h.b16 %v10233
          %v10538 = vunpack.c.l.b16 %v10234
          %v10539 = vunpack.c.l.b16 %v10235
          %v10540 = vunpack.c.h.b16 %v10235
          %v10541 = vunpack.c.l.b16 %v10236
          %v10542 = vunpack.c.l.b16 %v10237
          %v10543 = vunpack.c.h.b16 %v10237
          %v10544 = vunpack.c.l.b16 %v10238
          %v10545 = vunpack.c.l.b16 %v10239
          %v10546 = vunpack.c.h.b16 %v10239
          %v10547 = vunpack.c.l.b16 %v10240
          %v10548 = vunpack.c.l.b16 %v10241
          %v10549 = vunpack.c.h.b16 %v10241
          %v10550 = vunpack.c.l.b16 %v10242
          %v10551 = vunpack.c.l.b16 %v10243
          %v10552 = vunpack.c.h.b16 %v10243
          %v10553 = vunpack.c.l.b16 %v10244
          %v10554 = vunpack.c.l.b16 %v10245
          %v10555 = vunpack.c.h.b16 %v10245
          %v10556 = vunpack.c.l.b16 %v10246
          %v10557 = vunpack.c.l.b16 %v10247
          %v10558 = vunpack.c.h.b16 %v10247
          %v10559 = vunpack.c.l.b16 %v10248
          %v10560 = vunpack.c.l.b16 %v10249
          %v10561 = vunpack.c.h.b16 %v10249
          %v10562 = vunpack.c.l.b16 %v10250
          %v10563 = vunpack.c.l.b16 %v10251
          %v10564 = vunpack.c.h.b16 %v10251
          %v10565 = vunpack.c.l.b16 %v10252
          %v10566 = vunpack.c.l.b16 %v10253
          %v10567 = vunpack.c.h.b16 %v10253
          %v10568 = vunpack.c.l.b16 %v10254
          %v10569 = vunpack.c.l.b16 %v10255
          %v10570 = vunpack.c.h.b16 %v10255
          %v10571 = vunpack.c.l.b16 %v10256
          %v10572 = vunpack.c.l.b16 %v10257
          %v10573 = vunpack.c.h.b16 %v10257
          %v10574 = vunpack.c.l.b16 %v10258
          %v10575 = vunpack.c.l.b16 %v10259
          %v10576 = vunpack.c.h.b16 %v10259
          %v10577 = vunpack.c.l.b16 %v10260
          %v10578 = vunpack.c.l.b16 %v10261
          %v10579 = vunpack.c.h.b16 %v10261
          %v10580 = vunpack.c.l.b16 %v10262
          %v10581 = vunpack.c.l.b16 %v10263
          %v10582 = vunpack.c.h.b16 %v10263
          %v10583 = vunpack.c.l.b16 %v10264
          %v10584 = vunpack.c.l.b16 %v10265
          %v10585 = vunpack.c.h.b16 %v10265
          %v10586 = vunpack.c.l.b16 %v10266
          %v10587 = vpack.c.b16 %v10398, %v10395
          %v10588 = vpack.c.b16 %v10399, %v10396
          %v10589 = vpack.c.b16 %v10400, %v10397
          %v10590 = vpack.c.b16 %v10404, %v10401
          %v10591 = vpack.c.b16 %v10405, %v10402
          %v10592 = vpack.c.b16 %v10406, %v10403
          %v10593 = vpack.c.b16 %v10410, %v10407
          %v10594 = vpack.c.b16 %v10411, %v10408
          %v10595 = vpack.c.b16 %v10412, %v10409
          %v10596 = vpack.c.b16 %v10416, %v10413
          %v10597 = vpack.c.b16 %v10417, %v10414
          %v10598 = vpack.c.b16 %v10418, %v10415
          %v10599 = vpack.c.b16 %v10422, %v10419
          %v10600 = vpack.c.b16 %v10423, %v10420
          %v10601 = vpack.c.b16 %v10424, %v10421
          %v10602 = vpack.c.b16 %v10428, %v10425
          %v10603 = vpack.c.b16 %v10429, %v10426
          %v10604 = vpack.c.b16 %v10430, %v10427
          %v10605 = vpack.c.b16 %v10434, %v10431
          %v10606 = vpack.c.b16 %v10435, %v10432
          %v10607 = vpack.c.b16 %v10436, %v10433
          %v10608 = vpack.c.b16 %v10440, %v10437
          %v10609 = vpack.c.b16 %v10441, %v10438
          %v10610 = vpack.c.b16 %v10442, %v10439
          %v10611 = vpack.c.b16 %v10446, %v10443
          %v10612 = vpack.c.b16 %v10447, %v10444
          %v10613 = vpack.c.b16 %v10448, %v10445
          %v10614 = vpack.c.b16 %v10452, %v10449
          %v10615 = vpack.c.b16 %v10453, %v10450
          %v10616 = vpack.c.b16 %v10454, %v10451
          %v10617 = vpack.c.b16 %v10458, %v10455
          %v10618 = vpack.c.b16 %v10459, %v10456
          %v10619 = vpack.c.b16 %v10460, %v10457
          %v10620 = vpack.c.b16 %v10464, %v10461
          %v10621 = vpack.c.b16 %v10465, %v10462
          %v10622 = vpack.c.b16 %v10466, %v10463
          %v10623 = vpack.c.b16 %v10470, %v10467
          %v10624 = vpack.c.b16 %v10471, %v10468
          %v10625 = vpack.c.b16 %v10472, %v10469
          %v10626 = vpack.c.b16 %v10476, %v10473
          %v10627 = vpack.c.b16 %v10477, %v10474
          %v10628 = vpack.c.b16 %v10478, %v10475
          %v10629 = vpack.c.b16 %v10482, %v10479
          %v10630 = vpack.c.b16 %v10483, %v10480
          %v10631 = vpack.c.b16 %v10484, %v10481
          %v10632 = vpack.c.b16 %v10488, %v10485
          %v10633 = vpack.c.b16 %v10489, %v10486
          %v10634 = vpack.c.b16 %v10490, %v10487
          %v10635 = vpack.c.b16 %v10494, %v10491
          %v10636 = vpack.c.b16 %v10495, %v10492
          %v10637 = vpack.c.b16 %v10496, %v10493
          %v10638 = vpack.c.b16 %v10500, %v10497
          %v10639 = vpack.c.b16 %v10501, %v10498
          %v10640 = vpack.c.b16 %v10502, %v10499
          %v10641 = vpack.c.b16 %v10506, %v10503
          %v10642 = vpack.c.b16 %v10507, %v10504
          %v10643 = vpack.c.b16 %v10508, %v10505
          %v10644 = vpack.c.b16 %v10512, %v10509
          %v10645 = vpack.c.b16 %v10513, %v10510
          %v10646 = vpack.c.b16 %v10514, %v10511
          %v10647 = vpack.c.b16 %v10518, %v10515
          %v10648 = vpack.c.b16 %v10519, %v10516
          %v10649 = vpack.c.b16 %v10520, %v10517
          %v10650 = vpack.c.b16 %v10524, %v10521
          %v10651 = vpack.c.b16 %v10525, %v10522
          %v10652 = vpack.c.b16 %v10526, %v10523
          %v10653 = vpack.c.b16 %v10530, %v10527
          %v10654 = vpack.c.b16 %v10531, %v10528
          %v10655 = vpack.c.b16 %v10532, %v10529
          %v10656 = vpack.c.b16 %v10536, %v10533
          %v10657 = vpack.c.b16 %v10537, %v10534
          %v10658 = vpack.c.b16 %v10538, %v10535
          %v10659 = vpack.c.b16 %v10542, %v10539
          %v10660 = vpack.c.b16 %v10543, %v10540
          %v10661 = vpack.c.b16 %v10544, %v10541
          %v10662 = vpack.c.b16 %v10548, %v10545
          %v10663 = vpack.c.b16 %v10549, %v10546
          %v10664 = vpack.c.b16 %v10550, %v10547
          %v10665 = vpack.c.b16 %v10554, %v10551
          %v10666 = vpack.c.b16 %v10555, %v10552
          %v10667 = vpack.c.b16 %v10556, %v10553
          %v10668 = vpack.c.b16 %v10560, %v10557
          %v10669 = vpack.c.b16 %v10561, %v10558
          %v10670 = vpack.c.b16 %v10562, %v10559
          %v10671 = vpack.c.b16 %v10566, %v10563
          %v10672 = vpack.c.b16 %v10567, %v10564
          %v10673 = vpack.c.b16 %v10568, %v10565
          %v10674 = vpack.c.b16 %v10572, %v10569
          %v10675 = vpack.c.b16 %v10573, %v10570
          %v10676 = vpack.c.b16 %v10574, %v10571
          %v10677 = vpack.c.b16 %v10578, %v10575
          %v10678 = vpack.c.b16 %v10579, %v10576
          %v10679 = vpack.c.b16 %v10580, %v10577
          %v10680 = vpack.c.b16 %v10584, %v10581
          %v10681 = vpack.c.b16 %v10585, %v10582
          %v10682 = vpack.c.b16 %v10586, %v10583
          %10779 = vmatpush.bf16.msra.mxu0 %v10608
          %10780 = vmatpush.bf16.msra.mxu0 %v10605
          %10781 = vmatpush.bf16.msra.mxu0 %v10602
          %10782 = vmatpush.bf16.msra.mxu0 %v10599
          %10783 = vmatpush.bf16.msra.mxu0 %v10596
          %10784 = vmatpush.bf16.msra.mxu0 %v10593
          %10785 = vmatpush.bf16.msra.mxu0 %v10590
          %10786 = vmatpush.bf16.msra.mxu0 %v10587
          %10787 = vmatmul.bf16.gmra.mxu0 %v10135
          %v10788 = vpop.f32.mrf.mxu0
          %v10789 = vadd.f32 0.0, %v10788
          %v10790 = vpop.f32.mrf.mxu0
          %10791 = vdwg.mxu0
          %10792 = vmatpush.bf16.msra.mxu0 %v10632
          %10793 = vmatpush.bf16.msra.mxu0 %v10629
          %10794 = vmatpush.bf16.msra.mxu0 %v10626
          %10795 = vmatpush.bf16.msra.mxu0 %v10623
          %10796 = vmatpush.bf16.msra.mxu0 %v10620
          %10797 = vmatpush.bf16.msra.mxu0 %v10617
          %10798 = vmatpush.bf16.msra.mxu0 %v10614
          %10799 = vmatpush.bf16.msra.mxu0 %v10611
          %10800 = vmatmul.bf16.gmra.mxu0 %v10136
          %v10801 = vpop.f32.mrf.mxu0
          %v10802 = vadd.f32 %v10789, %v10801
          %v10803 = vpop.f32.mrf.mxu0
          %10804 = vdwg.mxu0
          %10805 = vmatpush.bf16.msra.mxu0 %v10656
          %10806 = vmatpush.bf16.msra.mxu0 %v10653
          %10807 = vmatpush.bf16.msra.mxu0 %v10650
          %10808 = vmatpush.bf16.msra.mxu0 %v10647
          %10809 = vmatpush.bf16.msra.mxu0 %v10644
          %10810 = vmatpush.bf16.msra.mxu0 %v10641
          %10811 = vmatpush.bf16.msra.mxu0 %v10638
          %10812 = vmatpush.bf16.msra.mxu0 %v10635
          %10813 = vmatmul.bf16.gmra.mxu0 %v10137
          %v10814 = vpop.f32.mrf.mxu0
          %v10815 = vadd.f32 %v10802, %v10814
          %v10816 = vpop.f32.mrf.mxu0
          %10817 = vdwg.mxu0
          %10818 = vmatpush.bf16.msra.mxu0 %v10680
          %10819 = vmatpush.bf16.msra.mxu0 %v10677
          %10820 = vmatpush.bf16.msra.mxu0 %v10674
          %10821 = vmatpush.bf16.msra.mxu0 %v10671
          %10822 = vmatpush.bf16.msra.mxu0 %v10668
          %10823 = vmatpush.bf16.msra.mxu0 %v10665
          %10824 = vmatpush.bf16.msra.mxu0 %v10662
          %10825 = vmatpush.bf16.msra.mxu0 %v10659
          %10826 = vmatmul.bf16.gmra.mxu0 %v10138
          %v10827 = vpop.f32.mrf.mxu0
          %v10828 = vadd.f32 %v10815, %v10827
          %v10829 = vpop.f32.mrf.mxu0
          %10830 = vdwg.mxu0
          %10831 = vmatpush.bf16.msra.mxu0 %v10609
          %10832 = vmatpush.bf16.msra.mxu0 %v10606
          %10833 = vmatpush.bf16.msra.mxu0 %v10603
          %10834 = vmatpush.bf16.msra.mxu0 %v10600
          %10835 = vmatpush.bf16.msra.mxu0 %v10597
          %10836 = vmatpush.bf16.msra.mxu0 %v10594
          %10837 = vmatpush.bf16.msra.mxu0 %v10591
          %10838 = vmatpush.bf16.msra.mxu0 %v10588
          %10839 = vmatmul.bf16.gmra.mxu0 %v10135
          %v10840 = vpop.f32.mrf.mxu0
          %v10841 = vadd.f32 0.0, %v10840
          %v10842 = vpop.f32.mrf.mxu0
          %10843 = vdwg.mxu0
          %10844 = vmatpush.bf16.msra.mxu0 %v10633
          %10845 = vmatpush.bf16.msra.mxu0 %v10630
          %10846 = vmatpush.bf16.msra.mxu0 %v10627
          %10847 = vmatpush.bf16.msra.mxu0 %v10624
          %10848 = vmatpush.bf16.msra.mxu0 %v10621
          %10849 = vmatpush.bf16.msra.mxu0 %v10618
          %10850 = vmatpush.bf16.msra.mxu0 %v10615
          %10851 = vmatpush.bf16.msra.mxu0 %v10612
          %10852 = vmatmul.bf16.gmra.mxu0 %v10136
          %v10853 = vpop.f32.mrf.mxu0
          %v10854 = vadd.f32 %v10841, %v10853
          %v10855 = vpop.f32.mrf.mxu0
          %10856 = vdwg.mxu0
          %10857 = vmatpush.bf16.msra.mxu0 %v10657
          %10858 = vmatpush.bf16.msra.mxu0 %v10654
          %10859 = vmatpush.bf16.msra.mxu0 %v10651
          %10860 = vmatpush.bf16.msra.mxu0 %v10648
          %10861 = vmatpush.bf16.msra.mxu0 %v10645
          %10862 = vmatpush.bf16.msra.mxu0 %v10642
          %10863 = vmatpush.bf16.msra.mxu0 %v10639
          %10864 = vmatpush.bf16.msra.mxu0 %v10636
          %10865 = vmatmul.bf16.gmra.mxu0 %v10137
          %v10866 = vpop.f32.mrf.mxu0
          %v10867 = vadd.f32 %v10854, %v10866
          %v10868 = vpop.f32.mrf.mxu0
          %10869 = vdwg.mxu0
          %10870 = vmatpush.bf16.msra.mxu0 %v10681
          %10871 = vmatpush.bf16.msra.mxu0 %v10678
          %10872 = vmatpush.bf16.msra.mxu0 %v10675
          %10873 = vmatpush.bf16.msra.mxu0 %v10672
          %10874 = vmatpush.bf16.msra.mxu0 %v10669
          %10875 = vmatpush.bf16.msra.mxu0 %v10666
          %10876 = vmatpush.bf16.msra.mxu0 %v10663
          %10877 = vmatpush.bf16.msra.mxu0 %v10660
          %10878 = vmatmul.bf16.gmra.mxu0 %v10138
          %v10879 = vpop.f32.mrf.mxu0
          %v10880 = vadd.f32 %v10867, %v10879
          %v10881 = vpop.f32.mrf.mxu0
          %10882 = vdwg.mxu0
          %10883 = vmatpush.bf16.msra.mxu0 %v10610
          %10884 = vmatpush.bf16.msra.mxu0 %v10607
          %10885 = vmatpush.bf16.msra.mxu0 %v10604
          %10886 = vmatpush.bf16.msra.mxu0 %v10601
          %10887 = vmatpush.bf16.msra.mxu0 %v10598
          %10888 = vmatpush.bf16.msra.mxu0 %v10595
          %10889 = vmatpush.bf16.msra.mxu0 %v10592
          %10890 = vmatpush.bf16.msra.mxu0 %v10589
          %10891 = vmatmul.bf16.gmra.mxu0 %v10135
          %v10892 = vpop.f32.mrf.mxu0
          %v10893 = vadd.f32 0.0, %v10892
          %v10894 = vpop.f32.mrf.mxu0
          %10895 = vdwg.mxu0
          %10896 = vmatpush.bf16.msra.mxu0 %v10634
          %10897 = vmatpush.bf16.msra.mxu0 %v10631
          %10898 = vmatpush.bf16.msra.mxu0 %v10628
          %10899 = vmatpush.bf16.msra.mxu0 %v10625
          %10900 = vmatpush.bf16.msra.mxu0 %v10622
          %10901 = vmatpush.bf16.msra.mxu0 %v10619
          %10902 = vmatpush.bf16.msra.mxu0 %v10616
          %10903 = vmatpush.bf16.msra.mxu0 %v10613
          %10904 = vmatmul.bf16.gmra.mxu0 %v10136
          %v10905 = vpop.f32.mrf.mxu0
          %v10906 = vadd.f32 %v10893, %v10905
          %v10907 = vpop.f32.mrf.mxu0
          %10908 = vdwg.mxu0
          %10909 = vmatpush.bf16.msra.mxu0 %v10658
          %10910 = vmatpush.bf16.msra.mxu0 %v10655
          %10911 = vmatpush.bf16.msra.mxu0 %v10652
          %10912 = vmatpush.bf16.msra.mxu0 %v10649
          %10913 = vmatpush.bf16.msra.mxu0 %v10646
          %10914 = vmatpush.bf16.msra.mxu0 %v10643
          %10915 = vmatpush.bf16.msra.mxu0 %v10640
          %10916 = vmatpush.bf16.msra.mxu0 %v10637
          %10917 = vmatmul.bf16.gmra.mxu0 %v10137
          %v10918 = vpop.f32.mrf.mxu0
          %v10919 = vadd.f32 %v10906, %v10918
          %v10920 = vpop.f32.mrf.mxu0
          %10921 = vdwg.mxu0
          %10922 = vmatpush.bf16.msra.mxu0 %v10682
          %10923 = vmatpush.bf16.msra.mxu0 %v10679
          %10924 = vmatpush.bf16.msra.mxu0 %v10676
          %10925 = vmatpush.bf16.msra.mxu0 %v10673
          %10926 = vmatpush.bf16.msra.mxu0 %v10670
          %10927 = vmatpush.bf16.msra.mxu0 %v10667
          %10928 = vmatpush.bf16.msra.mxu0 %v10664
          %10929 = vmatpush.bf16.msra.mxu0 %v10661
          %10930 = vmatmul.bf16.gmra.mxu0 %v10138
          %v10931 = vpop.f32.mrf.mxu0
          %v10932 = vadd.f32 %v10919, %v10931
          %v10933 = vpop.f32.mrf.mxu0
          %10934 = vdwg.mxu0
          %v10935 = vadd.f32 %v10128, %v10828
          %v10936 = vadd.f32 %v10129, %v10880
          %v10937 = vadd.f32 %v10130, %v10932
          %p10938 = scmp.eq.s32.totalorder %s33, 0
          %s10939 = scalar_select %p10938, 1, 0
          %s10940 = scvt.s32.f32 %s10939
          %v10941 = vld [vmem:[#allocation13] sm:$0x7]
          %v10942 = vld [vmem:[#allocation15] sm:$0x7]
          %v10943 = vadd.f32 %v10941, %v10942
          %v10944 = vstv %s10940
          %v10945 = vmul.f32 %v10944, %v10943
          %v10947 = vperm.slane %v10945, 0
          %v10948 = vperm.slane %v10945, 1
          %v10949 = vperm.slane %v10945, 2
          %v10953 = vadd.f32 %v10935, %v10947
          %v10954 = vadd.f32 %v10936, %v10948
          %v10955 = vadd.f32 %v10937, %v10949
          %10956 = vst [vmem:[#allocation16] sm:$0xff] %v10953
          %10957 = vst [vmem:[#allocation16 + $0x8] sm:$0xff] %v10954
          %10958 = vst [vmem:[#allocation16 + $0x10] sm:$0xff] %v10955
        $region84: #{forward.1} parent=47 // pred_fallthru
          _
        // Predicated region
        $region85: #{forward.1} parent=47 // pred_check
          %p10959 = pneg %p242
        $region86: #{forward.1} parent=47 // pred_check_branch
          %10961 = sbr.rel (%p10959) target = $region88
        $region87: #{forward.1} parent=47 // pred_region
          %10963 = vsyncadd [#allocation6], 0
          %s10964 = smul.addr %s33, 3
          %s10965 = smul.addr %s10964, 8
          %s10966 = scalar_lea.hbm %s7, %s10965
          %s10968 = sshll.u32 [#allocation16], 4
          %s10969 = int_to_ptr.vmem [resolvable:$true] %s10968
          %s10970 = sshll.u32 %s10966, 4
          %s10971 = int_to_ptr.hbm [resolvable:$true] %s10970
          %10973 = dma.vmem_to_hbm [thread:$0]  %s10969, 384, %s10971, [#allocation6]
        $region88: #{forward.1} parent=47 // pred_fallthru
          _
        // Predicated region
        $region89: #{forward.1} parent=47 // pred_check
          %p10974 = pneg %p242
        $region90: #{forward.1} parent=47 // pred_check_branch
          %10976 = sbr.rel (%p10974) target = $region92
        $region91: #{forward.1} parent=47 // pred_region
          %10978 = dma.done [#allocation6], 384
        $region92: #{forward.1} parent=47 // pred_fallthru
          _
      $region48: #{forward.1} parent=5 // pred_fallthru
        _
      %p10979 = scmp.le.s32.totalorder 2, %s24
      // Predicated region
      $region93: #{forward.1} parent=5 // pred_check
        %p10980 = pneg %p10979
      $region94: #{forward.1} parent=5 // pred_check_branch
        %10982 = sbr.rel (%p10980) target = $region96
      $region95: #{forward.1} parent=5 // pred_region
        %s10983 = ssub.s32 %s24, 2
      $region96: #{forward.1} parent=5 // pred_fallthru
        _
    $region6: #{forward.1} parent=1 // loop_footer
      %s28 = sadd.s32 1, %s24
    $region7: #{forward.1} parent=1 // loop_footer_branch
      %23 = sbr.rel target = $region3
    $region8: #{forward.1} parent=1 // loop_exit
      _
    %10984 = vsyncpa [#allocation5], 1
    %s10985 = scalar_lea.sflag [#allocation5], 1
    %10986 = vsyncpa %s10985, 1
    %10987 = vsyncpa [#allocation8], 1
    %s10988 = scalar_lea.sflag [#allocation8], 1
    %10989 = vsyncpa %s10988, 1
    %10990 = vsyncpa [#allocation11], 1
    %s10991 = scalar_lea.sflag [#allocation11], 1
    %10992 = vsyncpa %s10991, 1
    %10993 = vsyncpa [#allocation14], 1
    %10994 = vsyncpa [#allocation6], 1
    %s10995 = scalar_lea.sflag [#allocation6], 1
    %10996 = vsyncpa %s10995, 1

</llo_original>
